<compile_context>
chip_gen: v7x
topology: tpu7x:2x2x1
jax: 0.10.0
libtpu: 0.0.40
codegen_flags: <defaults>
</compile_context>

<pallas_src>
import functools

import numpy as np
import jax
import jax.numpy as jnp
from jax.experimental import pallas as pl
from jax.experimental.pallas import tpu as pltpu


_WEIGHT_ORDER = ("perm", "mp_avg", "mc_avg",
                 "pw1e", "pw1", "pb1", "pw2", "pb2", "rp",
                 "cw1e", "cw1", "cb1", "cw2", "cb2", "tc",
                 "tw1", "tb1", "tw2p", "tb2p",
                 "wa", "wb", "fb1t")


# ----------------------------- Pallas kernel --------------------------------
def _paa_kernel(xf_ref,
                perm_ref, mp_avg_ref, mc_avg_ref,                 # lane permutation, avg-pool mats
                pw1e_ref, pw1_ref, pb1_ref, pw2_ref, pb2_ref, rp_ref,   # point-att MLP (over P)
                cw1e_ref, cw1_ref, cb1_ref, cw2_ref, cb2_ref, tc_ref,   # chan-att MLP (over C)
                tw1_ref, tb1_ref, tw2p_ref, tb2p_ref,              # task-aware FC (perm [j*C+c])
                wa_ref, wb_ref, fb1t_ref,                          # fc1 block-diag halves + bias
                out_ref,
                *, k, n_points, n_channels):
    f32 = jnp.float32
    P, C = n_points, n_channels

    xf = xf_ref[...]                                   # (tv, P*C) lane-dense

    def dot(a, b):
        return jnp.dot(a, b, preferred_element_type=f32)

    def lane_class_max(v, shifts):
        # Max-combine rotations by s, 2s, 4s, ... : every lane ends up holding
        # the max over its whole stride-s residue class.  The covered offset
        # set is the full class in either rotation direction, so this is
        # independent of the roll sign convention.
        m = v
        for s in shifts:
            m = jnp.maximum(m, pltpu.roll(m, s, 1))
        return m

    # ---- pooled statistics (single lane-dense read of x; no (V,P,C) view) ----
    # channel-max: stride-C residue classes of the lane axis
    c_max_d = lane_class_max(xf, tuple(C << i for i in range(P.bit_length() - 1)))
    # point-max: permute lanes p*C+c -> c*P+p on the MXU, then stride-P classes
    z = dot(xf, perm_ref[...])
    p_max_d = lane_class_max(z, tuple(P << i for i in range(C.bit_length() - 1)))
    mc_avg = mc_avg_ref[...]
    p_avg = dot(xf, mp_avg_ref[...])                   # (tv, P) mean over channels
    c_avg = dot(xf, mc_avg)                            # (tv, C) mean over points

    # ---- point attention (MLP over P); branch L2 outputs share one matmul ----
    pb1 = pb1_ref[...]
    hp = (jnp.maximum(dot(p_max_d, pw1e_ref[...]) + pb1, 0.0)
          + jnp.maximum(dot(p_avg, pw1_ref[...]) + pb1, 0.0))
    s_p = jax.nn.sigmoid(dot(hp, pw2_ref[...]) + 2.0 * pb2_ref[...])   # (tv, P)
    point_w = dot(s_p, rp_ref[...])                    # expand p -> lanes p*C+* (MXU)

    # ---- channel attention (MLP over C) ----
    cb1 = cb1_ref[...]
    tc = tc_ref[...]
    hc = (jnp.maximum(dot(c_max_d, cw1e_ref[...]) + cb1, 0.0)
          + jnp.maximum(dot(c_avg, cw1_ref[...]) + cb1, 0.0))
    s_c = jax.nn.sigmoid(dot(hc, cw2_ref[...]) + 2.0 * cb2_ref[...])   # (tv, C)
    chan_w = dot(s_c, tc)                              # expand c -> lanes *+c (MXU)

    # beta = point_weight * channel_weight, applied lane-dense
    x_att = xf * (point_w * chan_w)                    # (tv, P*C)

    # ---- task-aware DyReLU ----
    m = dot(x_att, mc_avg)                             # (tv, C) mean over points
    ht = jnp.maximum(dot(m, tw1_ref[...]) + tb1_ref[...], 0.0)
    theta = dot(ht, tw2p_ref[...]) + tb2p_ref[...]     # (tv, 2k*C), ordering [j*C+c]
    theta = 2.0 * jax.nn.sigmoid(theta) - 1.0

    out_ta = None
    for j in range(k):
        # slope: lambda=1.0, init 1.0 for j==0 else 0.0; offset: lambda=0.5, init 0.0
        a = theta[:, j * C:(j + 1) * C] + (1.0 if j == 0 else 0.0)      # (tv, C)
        b = theta[:, (k + j) * C:(k + j + 1) * C] * 0.5                 # (tv, C)
        cand = x_att * dot(a, tc) + dot(b, tc)         # coefs expanded to lanes via MXU
        out_ta = cand if out_ta is None else jnp.maximum(out_ta, cand)

    # ---- fc1 on concat([out_ta, x], ch) as block-diagonal matmuls + ReLU ----
    y = dot(out_ta, wa_ref[...]) + dot(xf, wb_ref[...]) + fb1t_ref[...]
    out_ref[...] = jnp.maximum(y, 0.0)                 # (tv, P*B) lane-dense store


# ------------------------------ weight prep ----------------------------------
def _prepare_weights(params, *, P, C, B, k):
    f32 = np.float32
    N = P * C
    # expansion matrices: lane index l = p*C + c
    r_p = np.kron(np.eye(P, dtype=f32), np.ones((1, C), f32))     # (P, N): row p -> lanes p*C+*
    t_c = np.tile(np.eye(C, dtype=f32), (1, P))                   # (C, N): row c -> lanes *+c
    # lane permutation: z[:, c*P+p] = x[:, p*C+c]
    perm = np.zeros((N, N), f32)
    pp, cc = np.meshgrid(np.arange(P), np.arange(C), indexing="ij")
    perm[(pp * C + cc).ravel(), (cc * P + pp).ravel()] = 1.0
    # selection matrices: lane l (< P or < C) holds p_max[l] / c_max[l] after roll-max
    sel_p = np.zeros((N, P), f32); sel_p[np.arange(P), np.arange(P)] = 1.0
    sel_c = np.zeros((N, C), f32); sel_c[np.arange(C), np.arange(C)] = 1.0
    # torch theta ordering [c*2k + j] -> kernel ordering [j*C + c]
    theta_perm = np.array([c * 2 * k + j for j in range(2 * k) for c in range(C)])

    pw1 = np.asarray(params["pw1"], f32)
    cw1 = np.asarray(params["cw1"], f32)
    fw1 = np.asarray(params["fw1"], f32)
    fw1a, fw1b = fw1[:C], fw1[C:]          # cat order is [out_ta, x]

    w = {
        "perm": perm,
        "mp_avg": r_p.T / C,               # (N, P) mean over channels
        "mc_avg": t_c.T / P,               # (N, C) mean over points
        "pw1e": sel_p @ pw1, "pw1": pw1, "pb1": params["pb1"],
        "pw2": params["pw2"], "pb2": params["pb2"], "rp": r_p,
        "cw1e": sel_c @ cw1, "cw1": cw1, "cb1": params["cb1"],
        "cw2": params["cw2"], "cb2": params["cb2"], "tc": t_c,
        "tw1": params["tw1"], "tb1": params["tb1"],
        "tw2p": np.asarray(params["tw2"], f32)[:, theta_perm],
        "tb2p": np.asarray(params["tb2"], f32)[:, theta_perm],
        "wa": np.kron(np.eye(P, dtype=f32), fw1a),   # (N, P*B) block-diagonal
        "wb": np.kron(np.eye(P, dtype=f32), fw1b),   # (N, P*B) block-diagonal
        "fb1t": np.tile(np.asarray(params["fb1"], f32), (1, P)),   # (1, P*B)
    }
    return [jnp.asarray(w[name], jnp.float32) for name in _WEIGHT_ORDER]


# ------------------------------ wrapper --------------------------------------
def paa_module_pallas(x, params, *, k=2, boost_channels=32, tile_v=512):
    V, P, C = x.shape
    B = boost_channels
    assert P * C == 128 and (P & (P - 1)) == 0, (
        "kernel assumes a lane-dense P*C == 128 layout with power-of-two P")
    assert tile_v % 8 == 0

    n_steps = pl.cdiv(V, tile_v)
    Vp = n_steps * tile_v
    xf = jnp.reshape(x, (V, P * C)).astype(jnp.float32)   # lane-dense flat view
    if Vp != V:
        xf = jnp.pad(xf, ((0, Vp - V), (0, 0)))

    weights = _prepare_weights(params, P=P, C=C, B=B, k=k)

    in_specs = [pl.BlockSpec((tile_v, P * C), lambda i: (i, 0))] + [
        pl.BlockSpec(w.shape, lambda i: (0, 0)) for w in weights]

    out = pl.pallas_call(
        functools.partial(_paa_kernel, k=k, n_points=P, n_channels=C),
        out_shape=jax.ShapeDtypeStruct((Vp, P * B), jnp.float32),
        grid_spec=pltpu.PrefetchScalarGridSpec(
            num_scalar_prefetch=0,
            grid=(n_steps,),
            in_specs=in_specs,
            out_specs=pl.BlockSpec((tile_v, P * B), lambda i: (i, 0)),
        ),
        compiler_params=pltpu.CompilerParams(
            dimension_semantics=("parallel",),
            vmem_limit_bytes=48 * 1024 * 1024),
    )(xf, *weights)

    return out[:V].reshape(V, P, B)


# --------------------------- pure-JAX reference -------------------------------
def paa_module_ref(x, params, *, k=2):
    V, P, C = x.shape

    def mlp2(v, w1, b1, w2, b2):
        h = jnp.maximum(v @ w1 + b1, 0.0)
        return h @ w2 + b2

    # point attention (on x.permute(0,2,1): pool over C, MLP over P)
    xt = jnp.transpose(x, (0, 2, 1))
    p_att = (mlp2(jnp.max(xt, axis=1), params["pw1"], params["pb1"],
                  params["pw2"], params["pb2"]) +
             mlp2(jnp.mean(xt, axis=1), params["pw1"], params["pb1"],
                  params["pw2"], params["pb2"]))
    point_w = jax.nn.sigmoid(p_att)[:, :, None]        # (V, P, 1)

    # channel attention (pool over P, MLP over C)
    c_att = (mlp2(jnp.max(x, axis=1), params["cw1"], params["cb1"],
                  params["cw2"], params["cb2"]) +
             mlp2(jnp.mean(x, axis=1), params["cw1"], params["cb1"],
                  params["cw2"], params["cb2"]))
    chan_w = jax.nn.sigmoid(c_att)[:, None, :]         # (V, 1, C)

    x_att = x * (chan_w * point_w)

    # task aware -- torch ordering: theta.view(V, C, 2k)
    m = jnp.mean(x_att, axis=1)
    h = jnp.maximum(m @ params["tw1"] + params["tb1"], 0.0)
    theta = h @ params["tw2"] + params["tb2"]
    theta = 2.0 * jax.nn.sigmoid(theta) - 1.0
    lambdas = jnp.array([1.0] * k + [0.5] * k, jnp.float32)
    init_v = jnp.array([1.0] + [0.0] * (2 * k - 1), jnp.float32)
    rc = theta.reshape(V, C, 2 * k) * lambdas + init_v
    out_ta = jnp.max(x_att[:, :, :, None] * rc[:, None, :, :k]
                     + rc[:, None, :, k:], axis=-1)

    cat = jnp.concatenate([out_ta, x], axis=2)
    return jnp.maximum(cat @ params["fw1"] + params["fb1"][0], 0.0)


# ------------------------------- main ----------------------------------------
if __name__ == "__main__":
    # Module-consistent small sizes: V voxels, P points/voxel, C point features.
    # V is deliberately NOT a multiple of tile_v to exercise the padded tail,
    # and the grid has >1 step so multi-core sharding applies.
    V, P, C = 300, 16, 8
    reduction_rate = 4
    boost = 32
    k = 2
    tile_v = 128

    key = jax.random.PRNGKey(0)
    keys = jax.random.split(key, 16)

    def init(kk, shape, scale=0.3):
        return (scale * jax.random.normal(kk, shape)).astype(jnp.float32)

    # All Linear weights stored as (in_features, out_features) (i.e. W^T of torch).
    params = {
        # point attention MLP: P -> P//r -> P
        "pw1": init(keys[0], (P, P // reduction_rate)),
        "pb1": init(keys[1], (1, P // reduction_rate)),
        "pw2": init(keys[2], (P // reduction_rate, P)),
        "pb2": init(keys[3], (1, P)),
        # channel attention MLP: C -> C//r -> C
        "cw1": init(keys[4], (C, C // reduction_rate)),
        "cb1": init(keys[5], (1, C // reduction_rate)),
        "cw2": init(keys[6], (C // reduction_rate, C)),
        "cb2": init(keys[7], (1, C)),
        # task-aware FC: C -> C//r -> 2k*C  (torch output ordering [c*2k + j])
        "tw1": init(keys[8], (C, C // reduction_rate)),
        "tb1": init(keys[9], (1, C // reduction_rate)),
        "tw2": init(keys[10], (C // reduction_rate, 2 * k * C)),
        "tb2": init(keys[11], (1, 2 * k * C)),
        # fc1: 2C -> boost
        "fw1": init(keys[12], (2 * C, boost)),
        "fb1": init(keys[13], (1, boost)),
    }

    x = (0.5 * jax.random.normal(keys[14], (V, P, C))).astype(jnp.float32)

    out = paa_module_pallas(x, params, k=k, boost_channels=boost, tile_v=tile_v)
    out = jax.block_until_ready(out)

    ref = paa_module_ref(x, params, k=k)
    assert out.shape == (V, P, boost), out.shape
    assert bool(jnp.all(jnp.isfinite(out)))
    assert bool(jnp.allclose(out, ref, atol=2e-2, rtol=2e-2)), (
        float(jnp.max(jnp.abs(out - ref))))

    print("KERNEL_OK")
</pallas_src>

<mosaic_0001>
module attributes {stable_mosaic.version = 11 : i64} {
  func.func @_paa_kernel(%arg0: i32, %arg1: memref<128x128xf32, #tpu.memory_space<vmem>>, %arg2: memref<128x128xf32, #tpu.memory_space<vmem>>, %arg3: memref<128x16xf32, #tpu.memory_space<vmem>>, %arg4: memref<128x8xf32, #tpu.memory_space<vmem>>, %arg5: memref<128x4xf32, #tpu.memory_space<vmem>>, %arg6: memref<16x4xf32, #tpu.memory_space<vmem>>, %arg7: memref<1x4xf32, #tpu.memory_space<vmem>>, %arg8: memref<4x16xf32, #tpu.memory_space<vmem>>, %arg9: memref<1x16xf32, #tpu.memory_space<vmem>>, %arg10: memref<16x128xf32, #tpu.memory_space<vmem>>, %arg11: memref<128x2xf32, #tpu.memory_space<vmem>>, %arg12: memref<8x2xf32, #tpu.memory_space<vmem>>, %arg13: memref<1x2xf32, #tpu.memory_space<vmem>>, %arg14: memref<2x8xf32, #tpu.memory_space<vmem>>, %arg15: memref<1x8xf32, #tpu.memory_space<vmem>>, %arg16: memref<8x128xf32, #tpu.memory_space<vmem>>, %arg17: memref<8x2xf32, #tpu.memory_space<vmem>>, %arg18: memref<1x2xf32, #tpu.memory_space<vmem>>, %arg19: memref<2x32xf32, #tpu.memory_space<vmem>>, %arg20: memref<1x32xf32, #tpu.memory_space<vmem>>, %arg21: memref<128x512xf32, #tpu.memory_space<vmem>>, %arg22: memref<128x512xf32, #tpu.memory_space<vmem>>, %arg23: memref<1x512xf32, #tpu.memory_space<vmem>>, %arg24: memref<128x512xf32, #tpu.memory_space<vmem>>) attributes {dimension_semantics = [#tpu.dimension_semantics<parallel>], iteration_bounds = array<i64: 3>, scalar_prefetch = 0 : i64, scratch_operands = 0 : i64, tpu.core_type = #tpu.core_type<tc>, window_params = [{transform_indices = @transform_0, window_bounds = array<i64: 128, 128>}, {pipeline_mode = #tpu.pipeline_mode<synchronous>, transform_indices = @transform_1, window_bounds = array<i64: 128, 128>}, {pipeline_mode = #tpu.pipeline_mode<synchronous>, transform_indices = @transform_2, window_bounds = array<i64: 128, 16>}, {pipeline_mode = #tpu.pipeline_mode<synchronous>, transform_indices = @transform_3, window_bounds = array<i64: 128, 8>}, {pipeline_mode = #tpu.pipeline_mode<synchronous>, transform_indices = @transform_4, window_bounds = array<i64: 128, 4>}, {pipeline_mode = #tpu.pipeline_mode<synchronous>, transform_indices = @transform_5, window_bounds = array<i64: 16, 4>}, {pipeline_mode = #tpu.pipeline_mode<synchronous>, transform_indices = @transform_6, window_bounds = array<i64: 1, 4>}, {pipeline_mode = #tpu.pipeline_mode<synchronous>, transform_indices = @transform_7, window_bounds = array<i64: 4, 16>}, {pipeline_mode = #tpu.pipeline_mode<synchronous>, transform_indices = @transform_8, window_bounds = array<i64: 1, 16>}, {pipeline_mode = #tpu.pipeline_mode<synchronous>, transform_indices = @transform_9, window_bounds = array<i64: 16, 128>}, {pipeline_mode = #tpu.pipeline_mode<synchronous>, transform_indices = @transform_10, window_bounds = array<i64: 128, 2>}, {pipeline_mode = #tpu.pipeline_mode<synchronous>, transform_indices = @transform_11, window_bounds = array<i64: 8, 2>}, {pipeline_mode = #tpu.pipeline_mode<synchronous>, transform_indices = @transform_12, window_bounds = array<i64: 1, 2>}, {pipeline_mode = #tpu.pipeline_mode<synchronous>, transform_indices = @transform_13, window_bounds = array<i64: 2, 8>}, {pipeline_mode = #tpu.pipeline_mode<synchronous>, transform_indices = @transform_14, window_bounds = array<i64: 1, 8>}, {pipeline_mode = #tpu.pipeline_mode<synchronous>, transform_indices = @transform_15, window_bounds = array<i64: 8, 128>}, {pipeline_mode = #tpu.pipeline_mode<synchronous>, transform_indices = @transform_16, window_bounds = array<i64: 8, 2>}, {pipeline_mode = #tpu.pipeline_mode<synchronous>, transform_indices = @transform_17, window_bounds = array<i64: 1, 2>}, {pipeline_mode = #tpu.pipeline_mode<synchronous>, transform_indices = @transform_18, window_bounds = array<i64: 2, 32>}, {pipeline_mode = #tpu.pipeline_mode<synchronous>, transform_indices = @transform_19, window_bounds = array<i64: 1, 32>}, {pipeline_mode = #tpu.pipeline_mode<synchronous>, transform_indices = @transform_20, window_bounds = array<i64: 128, 512>}, {pipeline_mode = #tpu.pipeline_mode<synchronous>, transform_indices = @transform_21, window_bounds = array<i64: 128, 512>}, {pipeline_mode = #tpu.pipeline_mode<synchronous>, transform_indices = @transform_22, window_bounds = array<i64: 1, 512>}, {transform_indices = @transform_23, window_bounds = array<i64: 128, 512>}]} {
    %c0 = arith.constant 0 : index
    %c0_0 = arith.constant 0 : index
    %0 = vector.load %arg1[%c0, %c0_0] : memref<128x128xf32, #tpu.memory_space<vmem>>, vector<128x128xf32>
    %c8_i32 = arith.constant 8 : i32
    %1 = tpu.dynamic_rotate %0 by %c8_i32 dim 1 : vector<128x128xf32>, i32 -> vector<128x128xf32>
    %2 = arith.maximumf %0, %1 : vector<128x128xf32>
    %c16_i32 = arith.constant 16 : i32
    %3 = tpu.dynamic_rotate %2 by %c16_i32 dim 1 : vector<128x128xf32>, i32 -> vector<128x128xf32>
    %4 = arith.maximumf %2, %3 : vector<128x128xf32>
    %c32_i32 = arith.constant 32 : i32
    %5 = tpu.dynamic_rotate %4 by %c32_i32 dim 1 : vector<128x128xf32>, i32 -> vector<128x128xf32>
    %6 = arith.maximumf %4, %5 : vector<128x128xf32>
    %c64_i32 = arith.constant 64 : i32
    %7 = tpu.dynamic_rotate %6 by %c64_i32 dim 1 : vector<128x128xf32>, i32 -> vector<128x128xf32>
    %8 = arith.maximumf %6, %7 : vector<128x128xf32>
    %c0_1 = arith.constant 0 : index
    %c0_2 = arith.constant 0 : index
    %9 = vector.load %arg2[%c0_1, %c0_2] : memref<128x128xf32, #tpu.memory_space<vmem>>, vector<128x128xf32>
    %cst = arith.constant dense<0.000000e+00> : vector<128x128xf32>
    %10 = tpu.matmul %0, %9, %cst {dimension_numbers = #tpu.dot_dimension_numbers<[1], [0], [0], [1], [0, 0, 1, 1], [], []>} : vector<128x128xf32>, vector<128x128xf32>, vector<128x128xf32> -> vector<128x128xf32>
    %c16_i32_3 = arith.constant 16 : i32
    %11 = tpu.dynamic_rotate %10 by %c16_i32_3 dim 1 : vector<128x128xf32>, i32 -> vector<128x128xf32>
    %12 = arith.maximumf %10, %11 : vector<128x128xf32>
    %c32_i32_4 = arith.constant 32 : i32
    %13 = tpu.dynamic_rotate %12 by %c32_i32_4 dim 1 : vector<128x128xf32>, i32 -> vector<128x128xf32>
    %14 = arith.maximumf %12, %13 : vector<128x128xf32>
    %c64_i32_5 = arith.constant 64 : i32
    %15 = tpu.dynamic_rotate %14 by %c64_i32_5 dim 1 : vector<128x128xf32>, i32 -> vector<128x128xf32>
    %16 = arith.maximumf %14, %15 : vector<128x128xf32>
    %c0_6 = arith.constant 0 : index
    %c0_7 = arith.constant 0 : index
    %17 = vector.load %arg4[%c0_6, %c0_7] : memref<128x8xf32, #tpu.memory_space<vmem>>, vector<128x8xf32>
    %c0_8 = arith.constant 0 : index
    %c0_9 = arith.constant 0 : index
    %18 = vector.load %arg3[%c0_8, %c0_9] : memref<128x16xf32, #tpu.memory_space<vmem>>, vector<128x16xf32>
    %cst_10 = arith.constant dense<0.000000e+00> : vector<128x16xf32>
    %19 = tpu.matmul %0, %18, %cst_10 {dimension_numbers = #tpu.dot_dimension_numbers<[1], [0], [0], [1], [0, 0, 1, 1], [], []>} : vector<128x128xf32>, vector<128x16xf32>, vector<128x16xf32> -> vector<128x16xf32>
    %cst_11 = arith.constant dense<0.000000e+00> : vector<128x8xf32>
    %20 = tpu.matmul %0, %17, %cst_11 {dimension_numbers = #tpu.dot_dimension_numbers<[1], [0], [0], [1], [0, 0, 1, 1], [], []>} : vector<128x128xf32>, vector<128x8xf32>, vector<128x8xf32> -> vector<128x8xf32>
    %c0_12 = arith.constant 0 : index
    %c0_13 = arith.constant 0 : index
    %21 = vector.load %arg7[%c0_12, %c0_13] : memref<1x4xf32, #tpu.memory_space<vmem>>, vector<1x4xf32>
    %c0_14 = arith.constant 0 : index
    %c0_15 = arith.constant 0 : index
    %22 = vector.load %arg5[%c0_14, %c0_15] : memref<128x4xf32, #tpu.memory_space<vmem>>, vector<128x4xf32>
    %cst_16 = arith.constant dense<0.000000e+00> : vector<128x4xf32>
    %23 = tpu.matmul %16, %22, %cst_16 {dimension_numbers = #tpu.dot_dimension_numbers<[1], [0], [0], [1], [0, 0, 1, 1], [], []>} : vector<128x128xf32>, vector<128x4xf32>, vector<128x4xf32> -> vector<128x4xf32>
    %24 = vector.broadcast %21 : vector<1x4xf32> to vector<128x4xf32>
    %25 = arith.addf %23, %24 : vector<128x4xf32>
    %cst_17 = arith.constant 0.000000e+00 : f32
    %26 = vector.broadcast %cst_17 : f32 to vector<128x4xf32>
    %27 = arith.maximumf %25, %26 : vector<128x4xf32>
    %c0_18 = arith.constant 0 : index
    %c0_19 = arith.constant 0 : index
    %28 = vector.load %arg6[%c0_18, %c0_19] : memref<16x4xf32, #tpu.memory_space<vmem>>, vector<16x4xf32>
    %cst_20 = arith.constant dense<0.000000e+00> : vector<128x4xf32>
    %29 = tpu.matmul %19, %28, %cst_20 {dimension_numbers = #tpu.dot_dimension_numbers<[1], [0], [0], [1], [0, 0, 1, 1], [], []>} : vector<128x16xf32>, vector<16x4xf32>, vector<128x4xf32> -> vector<128x4xf32>
    %30 = vector.broadcast %21 : vector<1x4xf32> to vector<128x4xf32>
    %31 = arith.addf %29, %30 : vector<128x4xf32>
    %cst_21 = arith.constant 0.000000e+00 : f32
    %32 = vector.broadcast %cst_21 : f32 to vector<128x4xf32>
    %33 = arith.maximumf %31, %32 : vector<128x4xf32>
    %34 = arith.addf %27, %33 : vector<128x4xf32>
    %c0_22 = arith.constant 0 : index
    %c0_23 = arith.constant 0 : index
    %35 = vector.load %arg8[%c0_22, %c0_23] : memref<4x16xf32, #tpu.memory_space<vmem>>, vector<4x16xf32>
    %cst_24 = arith.constant dense<0.000000e+00> : vector<128x16xf32>
    %36 = tpu.matmul %34, %35, %cst_24 {dimension_numbers = #tpu.dot_dimension_numbers<[1], [0], [0], [1], [0, 0, 1, 1], [], []>} : vector<128x4xf32>, vector<4x16xf32>, vector<128x16xf32> -> vector<128x16xf32>
    %c0_25 = arith.constant 0 : index
    %c0_26 = arith.constant 0 : index
    %37 = vector.load %arg9[%c0_25, %c0_26] : memref<1x16xf32, #tpu.memory_space<vmem>>, vector<1x16xf32>
    %cst_27 = arith.constant 2.000000e+00 : f32
    %38 = vector.broadcast %cst_27 : f32 to vector<1x16xf32>
    %39 = arith.mulf %38, %37 : vector<1x16xf32>
    %40 = vector.broadcast %39 : vector<1x16xf32> to vector<128x16xf32>
    %41 = arith.addf %36, %40 : vector<128x16xf32>
    %42 = arith.negf %41 : vector<128x16xf32>
    %43 = math.exp %42 : vector<128x16xf32>
    %cst_28 = arith.constant 1.000000e+00 : f32
    %44 = vector.broadcast %cst_28 : f32 to vector<128x16xf32>
    %45 = arith.addf %44, %43 : vector<128x16xf32>
    %46 = arith.divf %44, %45 : vector<128x16xf32>
    %c0_29 = arith.constant 0 : index
    %c0_30 = arith.constant 0 : index
    %47 = vector.load %arg10[%c0_29, %c0_30] : memref<16x128xf32, #tpu.memory_space<vmem>>, vector<16x128xf32>
    %cst_31 = arith.constant dense<0.000000e+00> : vector<128x128xf32>
    %48 = tpu.matmul %46, %47, %cst_31 {dimension_numbers = #tpu.dot_dimension_numbers<[1], [0], [0], [1], [0, 0, 1, 1], [], []>} : vector<128x16xf32>, vector<16x128xf32>, vector<128x128xf32> -> vector<128x128xf32>
    %c0_32 = arith.constant 0 : index
    %c0_33 = arith.constant 0 : index
    %49 = vector.load %arg13[%c0_32, %c0_33] : memref<1x2xf32, #tpu.memory_space<vmem>>, vector<1x2xf32>
    %c0_34 = arith.constant 0 : index
    %c0_35 = arith.constant 0 : index
    %50 = vector.load %arg16[%c0_34, %c0_35] : memref<8x128xf32, #tpu.memory_space<vmem>>, vector<8x128xf32>
    %c0_36 = arith.constant 0 : index
    %c0_37 = arith.constant 0 : index
    %51 = vector.load %arg11[%c0_36, %c0_37] : memref<128x2xf32, #tpu.memory_space<vmem>>, vector<128x2xf32>
    %cst_38 = arith.constant dense<0.000000e+00> : vector<128x2xf32>
    %52 = tpu.matmul %8, %51, %cst_38 {dimension_numbers = #tpu.dot_dimension_numbers<[1], [0], [0], [1], [0, 0, 1, 1], [], []>} : vector<128x128xf32>, vector<128x2xf32>, vector<128x2xf32> -> vector<128x2xf32>
    %53 = vector.broadcast %49 : vector<1x2xf32> to vector<128x2xf32>
    %54 = arith.addf %52, %53 : vector<128x2xf32>
    %cst_39 = arith.constant 0.000000e+00 : f32
    %55 = vector.broadcast %cst_39 : f32 to vector<128x2xf32>
    %56 = arith.maximumf %54, %55 : vector<128x2xf32>
    %c0_40 = arith.constant 0 : index
    %c0_41 = arith.constant 0 : index
    %57 = vector.load %arg12[%c0_40, %c0_41] : memref<8x2xf32, #tpu.memory_space<vmem>>, vector<8x2xf32>
    %cst_42 = arith.constant dense<0.000000e+00> : vector<128x2xf32>
    %58 = tpu.matmul %20, %57, %cst_42 {dimension_numbers = #tpu.dot_dimension_numbers<[1], [0], [0], [1], [0, 0, 1, 1], [], []>} : vector<128x8xf32>, vector<8x2xf32>, vector<128x2xf32> -> vector<128x2xf32>
    %59 = vector.broadcast %49 : vector<1x2xf32> to vector<128x2xf32>
    %60 = arith.addf %58, %59 : vector<128x2xf32>
    %cst_43 = arith.constant 0.000000e+00 : f32
    %61 = vector.broadcast %cst_43 : f32 to vector<128x2xf32>
    %62 = arith.maximumf %60, %61 : vector<128x2xf32>
    %63 = arith.addf %56, %62 : vector<128x2xf32>
    %c0_44 = arith.constant 0 : index
    %c0_45 = arith.constant 0 : index
    %64 = vector.load %arg14[%c0_44, %c0_45] : memref<2x8xf32, #tpu.memory_space<vmem>>, vector<2x8xf32>
    %cst_46 = arith.constant dense<0.000000e+00> : vector<128x8xf32>
    %65 = tpu.matmul %63, %64, %cst_46 {dimension_numbers = #tpu.dot_dimension_numbers<[1], [0], [0], [1], [0, 0, 1, 1], [], []>} : vector<128x2xf32>, vector<2x8xf32>, vector<128x8xf32> -> vector<128x8xf32>
    %c0_47 = arith.constant 0 : index
    %c0_48 = arith.constant 0 : index
    %66 = vector.load %arg15[%c0_47, %c0_48] : memref<1x8xf32, #tpu.memory_space<vmem>>, vector<1x8xf32>
    %cst_49 = arith.constant 2.000000e+00 : f32
    %67 = vector.broadcast %cst_49 : f32 to vector<1x8xf32>
    %68 = arith.mulf %67, %66 : vector<1x8xf32>
    %69 = vector.broadcast %68 : vector<1x8xf32> to vector<128x8xf32>
    %70 = arith.addf %65, %69 : vector<128x8xf32>
    %71 = arith.negf %70 : vector<128x8xf32>
    %72 = math.exp %71 : vector<128x8xf32>
    %cst_50 = arith.constant 1.000000e+00 : f32
    %73 = vector.broadcast %cst_50 : f32 to vector<128x8xf32>
    %74 = arith.addf %73, %72 : vector<128x8xf32>
    %75 = arith.divf %73, %74 : vector<128x8xf32>
    %cst_51 = arith.constant dense<0.000000e+00> : vector<128x128xf32>
    %76 = tpu.matmul %75, %50, %cst_51 {dimension_numbers = #tpu.dot_dimension_numbers<[1], [0], [0], [1], [0, 0, 1, 1], [], []>} : vector<128x8xf32>, vector<8x128xf32>, vector<128x128xf32> -> vector<128x128xf32>
    %77 = arith.mulf %48, %76 : vector<128x128xf32>
    %78 = arith.mulf %0, %77 : vector<128x128xf32>
    %cst_52 = arith.constant dense<0.000000e+00> : vector<128x8xf32>
    %79 = tpu.matmul %78, %17, %cst_52 {dimension_numbers = #tpu.dot_dimension_numbers<[1], [0], [0], [1], [0, 0, 1, 1], [], []>} : vector<128x128xf32>, vector<128x8xf32>, vector<128x8xf32> -> vector<128x8xf32>
    %c0_53 = arith.constant 0 : index
    %c0_54 = arith.constant 0 : index
    %80 = vector.load %arg17[%c0_53, %c0_54] : memref<8x2xf32, #tpu.memory_space<vmem>>, vector<8x2xf32>
    %cst_55 = arith.constant dense<0.000000e+00> : vector<128x2xf32>
    %81 = tpu.matmul %79, %80, %cst_55 {dimension_numbers = #tpu.dot_dimension_numbers<[1], [0], [0], [1], [0, 0, 1, 1], [], []>} : vector<128x8xf32>, vector<8x2xf32>, vector<128x2xf32> -> vector<128x2xf32>
    %c0_56 = arith.constant 0 : index
    %c0_57 = arith.constant 0 : index
    %82 = vector.load %arg18[%c0_56, %c0_57] : memref<1x2xf32, #tpu.memory_space<vmem>>, vector<1x2xf32>
    %83 = vector.broadcast %82 : vector<1x2xf32> to vector<128x2xf32>
    %84 = arith.addf %81, %83 : vector<128x2xf32>
    %cst_58 = arith.constant 0.000000e+00 : f32
    %85 = vector.broadcast %cst_58 : f32 to vector<128x2xf32>
    %86 = arith.maximumf %84, %85 : vector<128x2xf32>
    %c0_59 = arith.constant 0 : index
    %c0_60 = arith.constant 0 : index
    %87 = vector.load %arg19[%c0_59, %c0_60] : memref<2x32xf32, #tpu.memory_space<vmem>>, vector<2x32xf32>
    %cst_61 = arith.constant dense<0.000000e+00> : vector<128x32xf32>
    %88 = tpu.matmul %86, %87, %cst_61 {dimension_numbers = #tpu.dot_dimension_numbers<[1], [0], [0], [1], [0, 0, 1, 1], [], []>} : vector<128x2xf32>, vector<2x32xf32>, vector<128x32xf32> -> vector<128x32xf32>
    %c0_62 = arith.constant 0 : index
    %c0_63 = arith.constant 0 : index
    %89 = vector.load %arg20[%c0_62, %c0_63] : memref<1x32xf32, #tpu.memory_space<vmem>>, vector<1x32xf32>
    %90 = vector.broadcast %89 : vector<1x32xf32> to vector<128x32xf32>
    %91 = arith.addf %88, %90 : vector<128x32xf32>
    %92 = arith.negf %91 : vector<128x32xf32>
    %93 = math.exp %92 : vector<128x32xf32>
    %cst_64 = arith.constant 1.000000e+00 : f32
    %94 = vector.broadcast %cst_64 : f32 to vector<128x32xf32>
    %95 = arith.addf %94, %93 : vector<128x32xf32>
    %96 = arith.divf %94, %95 : vector<128x32xf32>
    %cst_65 = arith.constant 2.000000e+00 : f32
    %97 = vector.broadcast %cst_65 : f32 to vector<128x32xf32>
    %98 = arith.mulf %97, %96 : vector<128x32xf32>
    %cst_66 = arith.constant 1.000000e+00 : f32
    %99 = vector.broadcast %cst_66 : f32 to vector<128x32xf32>
    %100 = arith.subf %98, %99 : vector<128x32xf32>
    %101 = vector.extract_strided_slice %100 {offsets = [0, 0], sizes = [128, 8], strides = [1, 1]} : vector<128x32xf32> to vector<128x8xf32>
    %cst_67 = arith.constant 1.000000e+00 : f32
    %102 = vector.broadcast %cst_67 : f32 to vector<128x8xf32>
    %103 = arith.addf %101, %102 : vector<128x8xf32>
    %104 = vector.extract_strided_slice %100 {offsets = [0, 16], sizes = [128, 8], strides = [1, 1]} : vector<128x32xf32> to vector<128x8xf32>
    %cst_68 = arith.constant 5.000000e-01 : f32
    %105 = vector.broadcast %cst_68 : f32 to vector<128x8xf32>
    %106 = arith.mulf %104, %105 : vector<128x8xf32>
    %cst_69 = arith.constant dense<0.000000e+00> : vector<128x128xf32>
    %107 = tpu.matmul %103, %50, %cst_69 {dimension_numbers = #tpu.dot_dimension_numbers<[1], [0], [0], [1], [0, 0, 1, 1], [], []>} : vector<128x8xf32>, vector<8x128xf32>, vector<128x128xf32> -> vector<128x128xf32>
    %108 = arith.mulf %78, %107 : vector<128x128xf32>
    %cst_70 = arith.constant dense<0.000000e+00> : vector<128x128xf32>
    %109 = tpu.matmul %106, %50, %cst_70 {dimension_numbers = #tpu.dot_dimension_numbers<[1], [0], [0], [1], [0, 0, 1, 1], [], []>} : vector<128x8xf32>, vector<8x128xf32>, vector<128x128xf32> -> vector<128x128xf32>
    %110 = arith.addf %108, %109 : vector<128x128xf32>
    %111 = vector.extract_strided_slice %100 {offsets = [0, 8], sizes = [128, 8], strides = [1, 1]} : vector<128x32xf32> to vector<128x8xf32>
    %cst_71 = arith.constant 0.000000e+00 : f32
    %112 = vector.broadcast %cst_71 : f32 to vector<128x8xf32>
    %113 = arith.addf %111, %112 : vector<128x8xf32>
    %114 = vector.extract_strided_slice %100 {offsets = [0, 24], sizes = [128, 8], strides = [1, 1]} : vector<128x32xf32> to vector<128x8xf32>
    %cst_72 = arith.constant 5.000000e-01 : f32
    %115 = vector.broadcast %cst_72 : f32 to vector<128x8xf32>
    %116 = arith.mulf %114, %115 : vector<128x8xf32>
    %cst_73 = arith.constant dense<0.000000e+00> : vector<128x128xf32>
    %117 = tpu.matmul %113, %50, %cst_73 {dimension_numbers = #tpu.dot_dimension_numbers<[1], [0], [0], [1], [0, 0, 1, 1], [], []>} : vector<128x8xf32>, vector<8x128xf32>, vector<128x128xf32> -> vector<128x128xf32>
    %118 = arith.mulf %78, %117 : vector<128x128xf32>
    %cst_74 = arith.constant dense<0.000000e+00> : vector<128x128xf32>
    %119 = tpu.matmul %116, %50, %cst_74 {dimension_numbers = #tpu.dot_dimension_numbers<[1], [0], [0], [1], [0, 0, 1, 1], [], []>} : vector<128x8xf32>, vector<8x128xf32>, vector<128x128xf32> -> vector<128x128xf32>
    %120 = arith.addf %118, %119 : vector<128x128xf32>
    %121 = arith.maximumf %110, %120 : vector<128x128xf32>
    %c0_75 = arith.constant 0 : index
    %c0_76 = arith.constant 0 : index
    %122 = vector.load %arg21[%c0_75, %c0_76] : memref<128x512xf32, #tpu.memory_space<vmem>>, vector<128x512xf32>
    %cst_77 = arith.constant dense<0.000000e+00> : vector<128x512xf32>
    %123 = tpu.matmul %121, %122, %cst_77 {dimension_numbers = #tpu.dot_dimension_numbers<[1], [0], [0], [1], [0, 0, 1, 1], [], []>} : vector<128x128xf32>, vector<128x512xf32>, vector<128x512xf32> -> vector<128x512xf32>
    %c0_78 = arith.constant 0 : index
    %c0_79 = arith.constant 0 : index
    %124 = vector.load %arg22[%c0_78, %c0_79] : memref<128x512xf32, #tpu.memory_space<vmem>>, vector<128x512xf32>
    %cst_80 = arith.constant dense<0.000000e+00> : vector<128x512xf32>
    %125 = tpu.matmul %0, %124, %cst_80 {dimension_numbers = #tpu.dot_dimension_numbers<[1], [0], [0], [1], [0, 0, 1, 1], [], []>} : vector<128x128xf32>, vector<128x512xf32>, vector<128x512xf32> -> vector<128x512xf32>
    %126 = arith.addf %123, %125 : vector<128x512xf32>
    %c0_81 = arith.constant 0 : index
    %c0_82 = arith.constant 0 : index
    %127 = vector.load %arg23[%c0_81, %c0_82] : memref<1x512xf32, #tpu.memory_space<vmem>>, vector<1x512xf32>
    %128 = vector.broadcast %127 : vector<1x512xf32> to vector<128x512xf32>
    %129 = arith.addf %126, %128 : vector<128x512xf32>
    %cst_83 = arith.constant 0.000000e+00 : f32
    %130 = vector.broadcast %cst_83 : f32 to vector<128x512xf32>
    %131 = arith.maximumf %129, %130 : vector<128x512xf32>
    %c0_84 = arith.constant 0 : index
    %c0_85 = arith.constant 0 : index
    %132 = vector.load %arg24[%c0_84, %c0_85] : memref<128x512xf32, #tpu.memory_space<vmem>>, vector<128x512xf32>
    tpu.vector_store %arg24[%c0_84, %c0_85], %131 {strides = array<i32>} : memref<128x512xf32, #tpu.memory_space<vmem>>, vector<128x512xf32>,
    return
  }
  func.func @transform_0(%arg0: i32) -> (i32, i32) {
    %c0_i32 = arith.constant 0 : i32
    %c0_i32_0 = arith.constant 0 : i32
    return %arg0, %c0_i32 : i32, i32
  }
  func.func @transform_1(%arg0: i32) -> (i32, i32) {
    %c0_i32 = arith.constant 0 : i32
    %c0_i32_0 = arith.constant 0 : i32
    %c0_i32_1 = arith.constant 0 : i32
    return %c0_i32, %c0_i32_0 : i32, i32
  }
  func.func @transform_2(%arg0: i32) -> (i32, i32) {
    %c0_i32 = arith.constant 0 : i32
    %c0_i32_0 = arith.constant 0 : i32
    %c0_i32_1 = arith.constant 0 : i32
    return %c0_i32, %c0_i32_0 : i32, i32
  }
  func.func @transform_3(%arg0: i32) -> (i32, i32) {
    %c0_i32 = arith.constant 0 : i32
    %c0_i32_0 = arith.constant 0 : i32
    %c0_i32_1 = arith.constant 0 : i32
    return %c0_i32, %c0_i32_0 : i32, i32
  }
  func.func @transform_4(%arg0: i32) -> (i32, i32) {
    %c0_i32 = arith.constant 0 : i32
    %c0_i32_0 = arith.constant 0 : i32
    %c0_i32_1 = arith.constant 0 : i32
    return %c0_i32, %c0_i32_0 : i32, i32
  }
  func.func @transform_5(%arg0: i32) -> (i32, i32) {
    %c0_i32 = arith.constant 0 : i32
    %c0_i32_0 = arith.constant 0 : i32
    %c0_i32_1 = arith.constant 0 : i32
    return %c0_i32, %c0_i32_0 : i32, i32
  }
  func.func @transform_6(%arg0: i32) -> (i32, i32) {
    %c0_i32 = arith.constant 0 : i32
    %c0_i32_0 = arith.constant 0 : i32
    %c0_i32_1 = arith.constant 0 : i32
    return %c0_i32, %c0_i32_0 : i32, i32
  }
  func.func @transform_7(%arg0: i32) -> (i32, i32) {
    %c0_i32 = arith.constant 0 : i32
    %c0_i32_0 = arith.constant 0 : i32
    %c0_i32_1 = arith.constant 0 : i32
    return %c0_i32, %c0_i32_0 : i32, i32
  }
  func.func @transform_8(%arg0: i32) -> (i32, i32) {
    %c0_i32 = arith.constant 0 : i32
    %c0_i32_0 = arith.constant 0 : i32
    %c0_i32_1 = arith.constant 0 : i32
    return %c0_i32, %c0_i32_0 : i32, i32
  }
  func.func @transform_9(%arg0: i32) -> (i32, i32) {
    %c0_i32 = arith.constant 0 : i32
    %c0_i32_0 = arith.constant 0 : i32
    %c0_i32_1 = arith.constant 0 : i32
    return %c0_i32, %c0_i32_0 : i32, i32
  }
  func.func @transform_10(%arg0: i32) -> (i32, i32) {
    %c0_i32 = arith.constant 0 : i32
    %c0_i32_0 = arith.constant 0 : i32
    %c0_i32_1 = arith.constant 0 : i32
    return %c0_i32, %c0_i32_0 : i32, i32
  }
  func.func @transform_11(%arg0: i32) -> (i32, i32) {
    %c0_i32 = arith.constant 0 : i32
    %c0_i32_0 = arith.constant 0 : i32
    %c0_i32_1 = arith.constant 0 : i32
    return %c0_i32, %c0_i32_0 : i32, i32
  }
  func.func @transform_12(%arg0: i32) -> (i32, i32) {
    %c0_i32 = arith.constant 0 : i32
    %c0_i32_0 = arith.constant 0 : i32
    %c0_i32_1 = arith.constant 0 : i32
    return %c0_i32, %c0_i32_0 : i32, i32
  }
  func.func @transform_13(%arg0: i32) -> (i32, i32) {
    %c0_i32 = arith.constant 0 : i32
    %c0_i32_0 = arith.constant 0 : i32
    %c0_i32_1 = arith.constant 0 : i32
    return %c0_i32, %c0_i32_0 : i32, i32
  }
  func.func @transform_14(%arg0: i32) -> (i32, i32) {
    %c0_i32 = arith.constant 0 : i32
    %c0_i32_0 = arith.constant 0 : i32
    %c0_i32_1 = arith.constant 0 : i32
    return %c0_i32, %c0_i32_0 : i32, i32
  }
  func.func @transform_15(%arg0: i32) -> (i32, i32) {
    %c0_i32 = arith.constant 0 : i32
    %c0_i32_0 = arith.constant 0 : i32
    %c0_i32_1 = arith.constant 0 : i32
    return %c0_i32, %c0_i32_0 : i32, i32
  }
  func.func @transform_16(%arg0: i32) -> (i32, i32) {
    %c0_i32 = arith.constant 0 : i32
    %c0_i32_0 = arith.constant 0 : i32
    %c0_i32_1 = arith.constant 0 : i32
    return %c0_i32, %c0_i32_0 : i32, i32
  }
  func.func @transform_17(%arg0: i32) -> (i32, i32) {
    %c0_i32 = arith.constant 0 : i32
    %c0_i32_0 = arith.constant 0 : i32
    %c0_i32_1 = arith.constant 0 : i32
    return %c0_i32, %c0_i32_0 : i32, i32
  }
  func.func @transform_18(%arg0: i32) -> (i32, i32) {
    %c0_i32 = arith.constant 0 : i32
    %c0_i32_0 = arith.constant 0 : i32
    %c0_i32_1 = arith.constant 0 : i32
    return %c0_i32, %c0_i32_0 : i32, i32
  }
  func.func @transform_19(%arg0: i32) -> (i32, i32) {
    %c0_i32 = arith.constant 0 : i32
    %c0_i32_0 = arith.constant 0 : i32
    %c0_i32_1 = arith.constant 0 : i32
    return %c0_i32, %c0_i32_0 : i32, i32
  }
  func.func @transform_20(%arg0: i32) -> (i32, i32) {
    %c0_i32 = arith.constant 0 : i32
    %c0_i32_0 = arith.constant 0 : i32
    %c0_i32_1 = arith.constant 0 : i32
    return %c0_i32, %c0_i32_0 : i32, i32
  }
  func.func @transform_21(%arg0: i32) -> (i32, i32) {
    %c0_i32 = arith.constant 0 : i32
    %c0_i32_0 = arith.constant 0 : i32
    %c0_i32_1 = arith.constant 0 : i32
    return %c0_i32, %c0_i32_0 : i32, i32
  }
  func.func @transform_22(%arg0: i32) -> (i32, i32) {
    %c0_i32 = arith.constant 0 : i32
    %c0_i32_0 = arith.constant 0 : i32
    %c0_i32_1 = arith.constant 0 : i32
    return %c0_i32, %c0_i32_0 : i32, i32
  }
  func.func @transform_23(%arg0: i32) -> (i32, i32) {
    %c0_i32 = arith.constant 0 : i32
    %c0_i32_0 = arith.constant 0 : i32
    return %arg0, %c0_i32 : i32, i32
  }
}

</mosaic_0001>

<llo_original>
// kernel: tpu_custom_call.1
$region0: #{tpu_custom_call.1}
  #allocation0 [shape = 'u32[]', space=smem, size = 0x4, offset = 0x4, fixed_abs, tag = 'smem constant byte address 0x4 - core index']
  #allocation1 [shape = 'u32[144,128]{1,0:T(1,128)}', space=vmem, size = 0x12000, scoped, tag = 'internal scratch']
  %s0 = inlined_call_operand.hbm [shape: f32[384,128], index: 0, kind: input, shape index: {}]
  %s1 = inlined_call_operand.vmem [shape: f32[128,128], index: 1, kind: input, shape index: {}]
  %s2 = inlined_call_operand.vmem [shape: f32[128,16], index: 2, kind: input, shape index: {}]
  %s3 = inlined_call_operand.vmem [shape: f32[128,8], index: 3, kind: input, shape index: {}]
  %s4 = inlined_call_operand.vmem [shape: f32[128,4], index: 4, kind: input, shape index: {}]
  %s5 = inlined_call_operand.vmem [shape: f32[16,4], index: 5, kind: input, shape index: {}]
  %s6 = inlined_call_operand.vmem [shape: f32[1,4], index: 6, kind: input, shape index: {}]
  %s7 = inlined_call_operand.hbm [shape: f32[4,16], index: 7, kind: input, shape index: {}]
  %s8 = inlined_call_operand.hbm [shape: f32[1,16], index: 8, kind: input, shape index: {}]
  %s9 = inlined_call_operand.vmem [shape: f32[16,128], index: 9, kind: input, shape index: {}]
  %s10 = inlined_call_operand.vmem [shape: f32[128,2], index: 10, kind: input, shape index: {}]
  %s11 = inlined_call_operand.vmem [shape: f32[8,2], index: 11, kind: input, shape index: {}]
  %s12 = inlined_call_operand.hbm [shape: f32[1,2], index: 12, kind: input, shape index: {}]
  %s13 = inlined_call_operand.hbm [shape: f32[2,8], index: 13, kind: input, shape index: {}]
  %s14 = inlined_call_operand.hbm [shape: f32[1,8], index: 14, kind: input, shape index: {}]
  %s15 = inlined_call_operand.hbm [shape: f32[8,128], index: 15, kind: input, shape index: {}]
  %s16 = inlined_call_operand.vmem [shape: f32[8,2], index: 16, kind: input, shape index: {}]
  %s17 = inlined_call_operand.hbm [shape: f32[1,2], index: 17, kind: input, shape index: {}]
  %s18 = inlined_call_operand.hbm [shape: f32[2,32], index: 18, kind: input, shape index: {}]
  %s19 = inlined_call_operand.hbm [shape: f32[1,32], index: 19, kind: input, shape index: {}]
  %s20 = inlined_call_operand.vmem [shape: f32[128,512], index: 20, kind: input, shape index: {}]
  %s21 = inlined_call_operand.hbm [shape: f32[128,512], index: 21, kind: input, shape index: {}]
  %s22 = inlined_call_operand.vmem [shape: f32[1,512], index: 22, kind: input, shape index: {}]
  %s23 = inlined_call_operand.hbm [shape: f32[384,512], index: 23, kind: output, shape index: {}]
  %s24 = sld [smem:[#allocation0]]
  $region169: #{tpu_custom_call.1} parent=0
    _
  %s26 = ssub.s32 1, %s24
  %s27 = scalar_select 0, %s26, %s24
  $region1: #{tpu_custom_call.1} parent=0
    #allocation2 [shape = 'u8[131072]{0}', space=vmem, size = 0x20000, scoped, tag = 'input window, operand 0']
    #allocation3 [shape = 's32[2]{0}', space=sflag, size = 0x8, scoped, tag = 'scoped memory for tpu_custom_call.1']
    #allocation4 [shape = 's32[2]{0}', space=sflag, size = 0x8, scoped, tag = 'scoped memory for tpu_custom_call.1']
    #allocation5 [shape = 'u8[2048]{0}', space=vmem, size = 0x800, scoped, tag = 'input window, operand 7, single buffered']
    #allocation6 [shape = 's32[1]{0}', space=sflag, size = 0x4, scoped, tag = 'scoped memory for tpu_custom_call.1']
    #allocation7 [shape = 'u8[512]{0}', space=vmem, size = 0x400, scoped, tag = 'input window, operand 8, single buffered']
    #allocation8 [shape = 'u8[512]{0}', space=vmem, size = 0x400, scoped, tag = 'input window, operand 12, single buffered']
    #allocation9 [shape = 's32[1]{0}', space=sflag, size = 0x4, scoped, tag = 'scoped memory for tpu_custom_call.1']
    #allocation10 [shape = 'u8[1024]{0}', space=vmem, size = 0x400, scoped, tag = 'input window, operand 13, single buffered']
    #allocation11 [shape = 'u8[512]{0}', space=vmem, size = 0x400, scoped, tag = 'input window, operand 14, single buffered']
    #allocation12 [shape = 's32[1]{0}', space=sflag, size = 0x4, scoped, tag = 'scoped memory for tpu_custom_call.1']
    #allocation13 [shape = 'u8[4096]{0}', space=vmem, size = 0x1000, scoped, tag = 'input window, operand 15, single buffered']
    #allocation14 [shape = 'u8[512]{0}', space=vmem, size = 0x400, scoped, tag = 'input window, operand 17, single buffered']
    #allocation15 [shape = 's32[1]{0}', space=sflag, size = 0x4, scoped, tag = 'scoped memory for tpu_custom_call.1']
    #allocation16 [shape = 'u8[1024]{0}', space=vmem, size = 0x400, scoped, tag = 'input window, operand 18, single buffered']
    #allocation17 [shape = 'u8[512]{0}', space=vmem, size = 0x400, scoped, tag = 'input window, operand 19, single buffered']
    #allocation18 [shape = 's32[1]{0}', space=sflag, size = 0x4, scoped, tag = 'scoped memory for tpu_custom_call.1']
    #allocation19 [shape = 'u8[262144]{0}', space=vmem, size = 0x40000, scoped, tag = 'input window, operand 21, single buffered']
    #allocation20 [shape = 'u8[524288]{0}', space=vmem, size = 0x80000, scoped, tag = 'output window, operand 0']
    %28 = vsyncpa [#allocation3], 0
    %s29 = scalar_lea.sflag [#allocation3], 1
    %30 = vsyncpa %s29, 0
    %31 = vsyncpa [#allocation6], 0
    %32 = vsyncpa [#allocation9], 0
    %33 = vsyncpa [#allocation12], 0
    %34 = vsyncpa [#allocation15], 0
    %35 = vsyncpa [#allocation18], 0
    %36 = vsyncpa [#allocation4], 0
    %s37 = scalar_lea.sflag [#allocation4], 1
    %38 = vsyncpa %s37, 0
    loop: start=0, step=1, limit=5
    $region2: #{tpu_custom_call.1} parent=1 // loop_pre_header
      _
    $region3: #{tpu_custom_call.1} parent=1 // loop_header
      %s40 = sphi 0, %s44
      %p41 = scmp.ge.s32.totalorder %s40, 5
      %s50 = sphi 0, %s52
      %s53 = sphi 0, %s50
      %s54 = sphi 0, %s53
      %s70 = sphi 0, %s54
      %s74 = sphi 0, %s74
      %s76 = sphi 0, %s74
      %s77 = sphi 0, %s76
      %s91 = sphi 0, %s77
      %s95 = sphi 0, %s95
      %s97 = sphi 0, %s95
      %s98 = sphi 0, %s97
      %s112 = sphi 0, %s98
      %s116 = sphi 0, %s116
      %s118 = sphi 0, %s116
      %s119 = sphi 0, %s118
      %s133 = sphi 0, %s119
      %s137 = sphi 0, %s137
      %s139 = sphi 0, %s137
      %s140 = sphi 0, %s139
      %s154 = sphi 0, %s140
      %s158 = sphi 0, %s158
      %s160 = sphi 0, %s158
      %s161 = sphi 0, %s160
      %s175 = sphi 0, %s161
      %s179 = sphi 0, %s179
      %s181 = sphi 0, %s179
      %s182 = sphi 0, %s181
      %s196 = sphi 0, %s182
      %s200 = sphi 0, %s200
      %s202 = sphi 0, %s200
      %s203 = sphi 0, %s202
      %s217 = sphi 0, %s203
      %s221 = sphi 0, %s221
      %s223 = sphi 0, %s221
      %s224 = sphi 0, %s223
      %s238 = sphi 0, %s224
      %s242 = sphi 0, %s242
      %s244 = sphi 0, %s242
      %s245 = sphi 0, %s244
      %s259 = sphi 0, %s245
      %s263 = sphi 0, %s263
      %s265 = sphi 0, %s263
      %s266 = sphi 0, %s265
      %s280 = sphi 0, %s266
      %s284 = sphi 0, %s284
      %s286 = sphi 0, %s284
      %s287 = sphi 0, %s286
      %s301 = sphi 0, %s287
      %s305 = sphi 0, %s305
      %s307 = sphi 0, %s305
      %s308 = sphi 0, %s307
      %s322 = sphi 0, %s308
      %s326 = sphi 0, %s326
      %s328 = sphi 0, %s326
      %s329 = sphi 0, %s328
      %s343 = sphi 0, %s329
      %s347 = sphi 0, %s347
      %s349 = sphi 0, %s347
      %s350 = sphi 0, %s349
      %s364 = sphi 0, %s350
      %s368 = sphi 0, %s368
      %s370 = sphi 0, %s368
      %s371 = sphi 0, %s370
      %s385 = sphi 0, %s371
      %s389 = sphi 0, %s389
      %s391 = sphi 0, %s389
      %s392 = sphi 0, %s391
      %s406 = sphi 0, %s392
      %s410 = sphi 0, %s410
      %s412 = sphi 0, %s410
      %s413 = sphi 0, %s412
      %s427 = sphi 0, %s413
      %s431 = sphi 0, %s431
      %s433 = sphi 0, %s431
      %s434 = sphi 0, %s433
      %s448 = sphi 0, %s434
      %s452 = sphi 0, %s452
      %s454 = sphi 0, %s452
      %s455 = sphi 0, %s454
      %s469 = sphi 0, %s455
      %s473 = sphi 0, %s473
      %s475 = sphi 0, %s473
      %s476 = sphi 0, %s475
      %s490 = sphi 0, %s476
      %s494 = sphi 0, %s494
      %s496 = sphi 0, %s494
      %s497 = sphi 0, %s496
      %s511 = sphi 0, %s497
      %s515 = sphi 0, %s515
      %s517 = sphi 0, %s515
      %s518 = sphi 0, %s517
      %s532 = sphi 0, %s518
      %s538 = sphi 0, %s540
      %s541 = sphi 0, %s538
      %s542 = sphi 0, %s541
      %s558 = sphi 0, %s542
    $region4: #{tpu_custom_call.1} parent=1 // loop_header_branch
      %43 = sbr.rel (%p41) target = $region8
    $region5: #{tpu_custom_call.1} parent=1 // loop_body
      %s45 = ssub.s32 %s40, 1
      %s46 = ssub.s32 %s40, 2
      %s47 = sadd.s32 %s40, 1
      %s48 = ssub.s32 %s40, %s47
      %p49 = scmp.eq.s32.totalorder %s48, 0
      %s51 = sadd.s32 %s50, 1
      %s52 = scalar_select %p49, %s50, %s51
      %p55 = pneg %p49
      %p56 = scmp.eq.s32.totalorder %s40, 2
      %p57 = por %p55, %p56
      %p58 = scmp.ne.s32.totalorder %s50, %s53
      %p59 = scmp.eq.s32.totalorder %s40, 0
      %p60 = por %p58, %p59
      %p61 = scmp.ne.s32.totalorder %s50, %s53
      %p62 = scmp.eq.s32.totalorder %s45, 2
      %p63 = por %p61, %p62
      %p64 = scmp.ne.s32.totalorder %s53, %s54
      %p65 = scmp.eq.s32.totalorder %s45, 0
      %p66 = por %p64, %p65
      %p67 = scmp.ne.s32.totalorder %s53, %s54
      %p68 = scmp.eq.s32.totalorder %s46, 2
      %p69 = por %p67, %p68
      %p71 = scmp.ne.s32.totalorder %s54, %s70
      %p72 = scmp.eq.s32.totalorder %s46, 0
      %p73 = por %p71, %p72
      %s75 = sadd.s32 %s74, 1
      %p78 = scmp.eq.s32.totalorder %s40, 2
      %p79 = scmp.ne.s32.totalorder %s74, %s76
      %p80 = scmp.eq.s32.totalorder %s40, 0
      %p81 = por %p79, %p80
      %p82 = scmp.ne.s32.totalorder %s74, %s76
      %p83 = scmp.eq.s32.totalorder %s45, 2
      %p84 = por %p82, %p83
      %p85 = scmp.ne.s32.totalorder %s76, %s77
      %p86 = scmp.eq.s32.totalorder %s45, 0
      %p87 = por %p85, %p86
      %p88 = scmp.ne.s32.totalorder %s76, %s77
      %p89 = scmp.eq.s32.totalorder %s46, 2
      %p90 = por %p88, %p89
      %p92 = scmp.ne.s32.totalorder %s77, %s91
      %p93 = scmp.eq.s32.totalorder %s46, 0
      %p94 = por %p92, %p93
      %s96 = sadd.s32 %s95, 1
      %p99 = scmp.eq.s32.totalorder %s40, 2
      %p100 = scmp.ne.s32.totalorder %s95, %s97
      %p101 = scmp.eq.s32.totalorder %s40, 0
      %p102 = por %p100, %p101
      %p103 = scmp.ne.s32.totalorder %s95, %s97
      %p104 = scmp.eq.s32.totalorder %s45, 2
      %p105 = por %p103, %p104
      %p106 = scmp.ne.s32.totalorder %s97, %s98
      %p107 = scmp.eq.s32.totalorder %s45, 0
      %p108 = por %p106, %p107
      %p109 = scmp.ne.s32.totalorder %s97, %s98
      %p110 = scmp.eq.s32.totalorder %s46, 2
      %p111 = por %p109, %p110
      %p113 = scmp.ne.s32.totalorder %s98, %s112
      %p114 = scmp.eq.s32.totalorder %s46, 0
      %p115 = por %p113, %p114
      %s117 = sadd.s32 %s116, 1
      %p120 = scmp.eq.s32.totalorder %s40, 2
      %p121 = scmp.ne.s32.totalorder %s116, %s118
      %p122 = scmp.eq.s32.totalorder %s40, 0
      %p123 = por %p121, %p122
      %p124 = scmp.ne.s32.totalorder %s116, %s118
      %p125 = scmp.eq.s32.totalorder %s45, 2
      %p126 = por %p124, %p125
      %p127 = scmp.ne.s32.totalorder %s118, %s119
      %p128 = scmp.eq.s32.totalorder %s45, 0
      %p129 = por %p127, %p128
      %p130 = scmp.ne.s32.totalorder %s118, %s119
      %p131 = scmp.eq.s32.totalorder %s46, 2
      %p132 = por %p130, %p131
      %p134 = scmp.ne.s32.totalorder %s119, %s133
      %p135 = scmp.eq.s32.totalorder %s46, 0
      %p136 = por %p134, %p135
      %s138 = sadd.s32 %s137, 1
      %p141 = scmp.eq.s32.totalorder %s40, 2
      %p142 = scmp.ne.s32.totalorder %s137, %s139
      %p143 = scmp.eq.s32.totalorder %s40, 0
      %p144 = por %p142, %p143
      %p145 = scmp.ne.s32.totalorder %s137, %s139
      %p146 = scmp.eq.s32.totalorder %s45, 2
      %p147 = por %p145, %p146
      %p148 = scmp.ne.s32.totalorder %s139, %s140
      %p149 = scmp.eq.s32.totalorder %s45, 0
      %p150 = por %p148, %p149
      %p151 = scmp.ne.s32.totalorder %s139, %s140
      %p152 = scmp.eq.s32.totalorder %s46, 2
      %p153 = por %p151, %p152
      %p155 = scmp.ne.s32.totalorder %s140, %s154
      %p156 = scmp.eq.s32.totalorder %s46, 0
      %p157 = por %p155, %p156
      %s159 = sadd.s32 %s158, 1
      %p162 = scmp.eq.s32.totalorder %s40, 2
      %p163 = scmp.ne.s32.totalorder %s158, %s160
      %p164 = scmp.eq.s32.totalorder %s40, 0
      %p165 = por %p163, %p164
      %p166 = scmp.ne.s32.totalorder %s158, %s160
      %p167 = scmp.eq.s32.totalorder %s45, 2
      %p168 = por %p166, %p167
      %p169 = scmp.ne.s32.totalorder %s160, %s161
      %p170 = scmp.eq.s32.totalorder %s45, 0
      %p171 = por %p169, %p170
      %p172 = scmp.ne.s32.totalorder %s160, %s161
      %p173 = scmp.eq.s32.totalorder %s46, 2
      %p174 = por %p172, %p173
      %p176 = scmp.ne.s32.totalorder %s161, %s175
      %p177 = scmp.eq.s32.totalorder %s46, 0
      %p178 = por %p176, %p177
      %s180 = sadd.s32 %s179, 1
      %p183 = scmp.eq.s32.totalorder %s40, 2
      %p184 = scmp.ne.s32.totalorder %s179, %s181
      %p185 = scmp.eq.s32.totalorder %s40, 0
      %p186 = por %p184, %p185
      %p187 = scmp.ne.s32.totalorder %s179, %s181
      %p188 = scmp.eq.s32.totalorder %s45, 2
      %p189 = por %p187, %p188
      %p190 = scmp.ne.s32.totalorder %s181, %s182
      %p191 = scmp.eq.s32.totalorder %s45, 0
      %p192 = por %p190, %p191
      %p193 = scmp.ne.s32.totalorder %s181, %s182
      %p194 = scmp.eq.s32.totalorder %s46, 2
      %p195 = por %p193, %p194
      %p197 = scmp.ne.s32.totalorder %s182, %s196
      %p198 = scmp.eq.s32.totalorder %s46, 0
      %p199 = por %p197, %p198
      %s201 = sadd.s32 %s200, 1
      %p204 = scmp.eq.s32.totalorder %s40, 2
      %p205 = scmp.ne.s32.totalorder %s200, %s202
      %p206 = scmp.eq.s32.totalorder %s40, 0
      %p207 = por %p205, %p206
      %p208 = scmp.ne.s32.totalorder %s200, %s202
      %p209 = scmp.eq.s32.totalorder %s45, 2
      %p210 = por %p208, %p209
      %p211 = scmp.ne.s32.totalorder %s202, %s203
      %p212 = scmp.eq.s32.totalorder %s45, 0
      %p213 = por %p211, %p212
      %p214 = scmp.ne.s32.totalorder %s202, %s203
      %p215 = scmp.eq.s32.totalorder %s46, 2
      %p216 = por %p214, %p215
      %p218 = scmp.ne.s32.totalorder %s203, %s217
      %p219 = scmp.eq.s32.totalorder %s46, 0
      %p220 = por %p218, %p219
      %s222 = sadd.s32 %s221, 1
      %p225 = scmp.eq.s32.totalorder %s40, 2
      %p226 = scmp.ne.s32.totalorder %s221, %s223
      %p227 = scmp.eq.s32.totalorder %s40, 0
      %p228 = por %p226, %p227
      %p229 = scmp.ne.s32.totalorder %s221, %s223
      %p230 = scmp.eq.s32.totalorder %s45, 2
      %p231 = por %p229, %p230
      %p232 = scmp.ne.s32.totalorder %s223, %s224
      %p233 = scmp.eq.s32.totalorder %s45, 0
      %p234 = por %p232, %p233
      %p235 = scmp.ne.s32.totalorder %s223, %s224
      %p236 = scmp.eq.s32.totalorder %s46, 2
      %p237 = por %p235, %p236
      %p239 = scmp.ne.s32.totalorder %s224, %s238
      %p240 = scmp.eq.s32.totalorder %s46, 0
      %p241 = por %p239, %p240
      %s243 = sadd.s32 %s242, 1
      %p246 = scmp.eq.s32.totalorder %s40, 2
      %p247 = scmp.ne.s32.totalorder %s242, %s244
      %p248 = scmp.eq.s32.totalorder %s40, 0
      %p249 = por %p247, %p248
      %p250 = scmp.ne.s32.totalorder %s242, %s244
      %p251 = scmp.eq.s32.totalorder %s45, 2
      %p252 = por %p250, %p251
      %p253 = scmp.ne.s32.totalorder %s244, %s245
      %p254 = scmp.eq.s32.totalorder %s45, 0
      %p255 = por %p253, %p254
      %p256 = scmp.ne.s32.totalorder %s244, %s245
      %p257 = scmp.eq.s32.totalorder %s46, 2
      %p258 = por %p256, %p257
      %p260 = scmp.ne.s32.totalorder %s245, %s259
      %p261 = scmp.eq.s32.totalorder %s46, 0
      %p262 = por %p260, %p261
      %s264 = sadd.s32 %s263, 1
      %p267 = scmp.eq.s32.totalorder %s40, 2
      %p268 = scmp.ne.s32.totalorder %s263, %s265
      %p269 = scmp.eq.s32.totalorder %s40, 0
      %p270 = por %p268, %p269
      %p271 = scmp.ne.s32.totalorder %s263, %s265
      %p272 = scmp.eq.s32.totalorder %s45, 2
      %p273 = por %p271, %p272
      %p274 = scmp.ne.s32.totalorder %s265, %s266
      %p275 = scmp.eq.s32.totalorder %s45, 0
      %p276 = por %p274, %p275
      %p277 = scmp.ne.s32.totalorder %s265, %s266
      %p278 = scmp.eq.s32.totalorder %s46, 2
      %p279 = por %p277, %p278
      %p281 = scmp.ne.s32.totalorder %s266, %s280
      %p282 = scmp.eq.s32.totalorder %s46, 0
      %p283 = por %p281, %p282
      %s285 = sadd.s32 %s284, 1
      %p288 = scmp.eq.s32.totalorder %s40, 2
      %p289 = scmp.ne.s32.totalorder %s284, %s286
      %p290 = scmp.eq.s32.totalorder %s40, 0
      %p291 = por %p289, %p290
      %p292 = scmp.ne.s32.totalorder %s284, %s286
      %p293 = scmp.eq.s32.totalorder %s45, 2
      %p294 = por %p292, %p293
      %p295 = scmp.ne.s32.totalorder %s286, %s287
      %p296 = scmp.eq.s32.totalorder %s45, 0
      %p297 = por %p295, %p296
      %p298 = scmp.ne.s32.totalorder %s286, %s287
      %p299 = scmp.eq.s32.totalorder %s46, 2
      %p300 = por %p298, %p299
      %p302 = scmp.ne.s32.totalorder %s287, %s301
      %p303 = scmp.eq.s32.totalorder %s46, 0
      %p304 = por %p302, %p303
      %s306 = sadd.s32 %s305, 1
      %p309 = scmp.eq.s32.totalorder %s40, 2
      %p310 = scmp.ne.s32.totalorder %s305, %s307
      %p311 = scmp.eq.s32.totalorder %s40, 0
      %p312 = por %p310, %p311
      %p313 = scmp.ne.s32.totalorder %s305, %s307
      %p314 = scmp.eq.s32.totalorder %s45, 2
      %p315 = por %p313, %p314
      %p316 = scmp.ne.s32.totalorder %s307, %s308
      %p317 = scmp.eq.s32.totalorder %s45, 0
      %p318 = por %p316, %p317
      %p319 = scmp.ne.s32.totalorder %s307, %s308
      %p320 = scmp.eq.s32.totalorder %s46, 2
      %p321 = por %p319, %p320
      %p323 = scmp.ne.s32.totalorder %s308, %s322
      %p324 = scmp.eq.s32.totalorder %s46, 0
      %p325 = por %p323, %p324
      %s327 = sadd.s32 %s326, 1
      %p330 = scmp.eq.s32.totalorder %s40, 2
      %p331 = scmp.ne.s32.totalorder %s326, %s328
      %p332 = scmp.eq.s32.totalorder %s40, 0
      %p333 = por %p331, %p332
      %p334 = scmp.ne.s32.totalorder %s326, %s328
      %p335 = scmp.eq.s32.totalorder %s45, 2
      %p336 = por %p334, %p335
      %p337 = scmp.ne.s32.totalorder %s328, %s329
      %p338 = scmp.eq.s32.totalorder %s45, 0
      %p339 = por %p337, %p338
      %p340 = scmp.ne.s32.totalorder %s328, %s329
      %p341 = scmp.eq.s32.totalorder %s46, 2
      %p342 = por %p340, %p341
      %p344 = scmp.ne.s32.totalorder %s329, %s343
      %p345 = scmp.eq.s32.totalorder %s46, 0
      %p346 = por %p344, %p345
      %s348 = sadd.s32 %s347, 1
      %p351 = scmp.eq.s32.totalorder %s40, 2
      %p352 = scmp.ne.s32.totalorder %s347, %s349
      %p353 = scmp.eq.s32.totalorder %s40, 0
      %p354 = por %p352, %p353
      %p355 = scmp.ne.s32.totalorder %s347, %s349
      %p356 = scmp.eq.s32.totalorder %s45, 2
      %p357 = por %p355, %p356
      %p358 = scmp.ne.s32.totalorder %s349, %s350
      %p359 = scmp.eq.s32.totalorder %s45, 0
      %p360 = por %p358, %p359
      %p361 = scmp.ne.s32.totalorder %s349, %s350
      %p362 = scmp.eq.s32.totalorder %s46, 2
      %p363 = por %p361, %p362
      %p365 = scmp.ne.s32.totalorder %s350, %s364
      %p366 = scmp.eq.s32.totalorder %s46, 0
      %p367 = por %p365, %p366
      %s369 = sadd.s32 %s368, 1
      %p372 = scmp.eq.s32.totalorder %s40, 2
      %p373 = scmp.ne.s32.totalorder %s368, %s370
      %p374 = scmp.eq.s32.totalorder %s40, 0
      %p375 = por %p373, %p374
      %p376 = scmp.ne.s32.totalorder %s368, %s370
      %p377 = scmp.eq.s32.totalorder %s45, 2
      %p378 = por %p376, %p377
      %p379 = scmp.ne.s32.totalorder %s370, %s371
      %p380 = scmp.eq.s32.totalorder %s45, 0
      %p381 = por %p379, %p380
      %p382 = scmp.ne.s32.totalorder %s370, %s371
      %p383 = scmp.eq.s32.totalorder %s46, 2
      %p384 = por %p382, %p383
      %p386 = scmp.ne.s32.totalorder %s371, %s385
      %p387 = scmp.eq.s32.totalorder %s46, 0
      %p388 = por %p386, %p387
      %s390 = sadd.s32 %s389, 1
      %p393 = scmp.eq.s32.totalorder %s40, 2
      %p394 = scmp.ne.s32.totalorder %s389, %s391
      %p395 = scmp.eq.s32.totalorder %s40, 0
      %p396 = por %p394, %p395
      %p397 = scmp.ne.s32.totalorder %s389, %s391
      %p398 = scmp.eq.s32.totalorder %s45, 2
      %p399 = por %p397, %p398
      %p400 = scmp.ne.s32.totalorder %s391, %s392
      %p401 = scmp.eq.s32.totalorder %s45, 0
      %p402 = por %p400, %p401
      %p403 = scmp.ne.s32.totalorder %s391, %s392
      %p404 = scmp.eq.s32.totalorder %s46, 2
      %p405 = por %p403, %p404
      %p407 = scmp.ne.s32.totalorder %s392, %s406
      %p408 = scmp.eq.s32.totalorder %s46, 0
      %p409 = por %p407, %p408
      %s411 = sadd.s32 %s410, 1
      %p414 = scmp.eq.s32.totalorder %s40, 2
      %p415 = scmp.ne.s32.totalorder %s410, %s412
      %p416 = scmp.eq.s32.totalorder %s40, 0
      %p417 = por %p415, %p416
      %p418 = scmp.ne.s32.totalorder %s410, %s412
      %p419 = scmp.eq.s32.totalorder %s45, 2
      %p420 = por %p418, %p419
      %p421 = scmp.ne.s32.totalorder %s412, %s413
      %p422 = scmp.eq.s32.totalorder %s45, 0
      %p423 = por %p421, %p422
      %p424 = scmp.ne.s32.totalorder %s412, %s413
      %p425 = scmp.eq.s32.totalorder %s46, 2
      %p426 = por %p424, %p425
      %p428 = scmp.ne.s32.totalorder %s413, %s427
      %p429 = scmp.eq.s32.totalorder %s46, 0
      %p430 = por %p428, %p429
      %s432 = sadd.s32 %s431, 1
      %p435 = scmp.eq.s32.totalorder %s40, 2
      %p436 = scmp.ne.s32.totalorder %s431, %s433
      %p437 = scmp.eq.s32.totalorder %s40, 0
      %p438 = por %p436, %p437
      %p439 = scmp.ne.s32.totalorder %s431, %s433
      %p440 = scmp.eq.s32.totalorder %s45, 2
      %p441 = por %p439, %p440
      %p442 = scmp.ne.s32.totalorder %s433, %s434
      %p443 = scmp.eq.s32.totalorder %s45, 0
      %p444 = por %p442, %p443
      %p445 = scmp.ne.s32.totalorder %s433, %s434
      %p446 = scmp.eq.s32.totalorder %s46, 2
      %p447 = por %p445, %p446
      %p449 = scmp.ne.s32.totalorder %s434, %s448
      %p450 = scmp.eq.s32.totalorder %s46, 0
      %p451 = por %p449, %p450
      %s453 = sadd.s32 %s452, 1
      %p456 = scmp.eq.s32.totalorder %s40, 2
      %p457 = scmp.ne.s32.totalorder %s452, %s454
      %p458 = scmp.eq.s32.totalorder %s40, 0
      %p459 = por %p457, %p458
      %p460 = scmp.ne.s32.totalorder %s452, %s454
      %p461 = scmp.eq.s32.totalorder %s45, 2
      %p462 = por %p460, %p461
      %p463 = scmp.ne.s32.totalorder %s454, %s455
      %p464 = scmp.eq.s32.totalorder %s45, 0
      %p465 = por %p463, %p464
      %p466 = scmp.ne.s32.totalorder %s454, %s455
      %p467 = scmp.eq.s32.totalorder %s46, 2
      %p468 = por %p466, %p467
      %p470 = scmp.ne.s32.totalorder %s455, %s469
      %p471 = scmp.eq.s32.totalorder %s46, 0
      %p472 = por %p470, %p471
      %s474 = sadd.s32 %s473, 1
      %p477 = scmp.eq.s32.totalorder %s40, 2
      %p478 = scmp.ne.s32.totalorder %s473, %s475
      %p479 = scmp.eq.s32.totalorder %s40, 0
      %p480 = por %p478, %p479
      %p481 = scmp.ne.s32.totalorder %s473, %s475
      %p482 = scmp.eq.s32.totalorder %s45, 2
      %p483 = por %p481, %p482
      %p484 = scmp.ne.s32.totalorder %s475, %s476
      %p485 = scmp.eq.s32.totalorder %s45, 0
      %p486 = por %p484, %p485
      %p487 = scmp.ne.s32.totalorder %s475, %s476
      %p488 = scmp.eq.s32.totalorder %s46, 2
      %p489 = por %p487, %p488
      %p491 = scmp.ne.s32.totalorder %s476, %s490
      %p492 = scmp.eq.s32.totalorder %s46, 0
      %p493 = por %p491, %p492
      %s495 = sadd.s32 %s494, 1
      %p498 = scmp.eq.s32.totalorder %s40, 2
      %p499 = scmp.ne.s32.totalorder %s494, %s496
      %p500 = scmp.eq.s32.totalorder %s40, 0
      %p501 = por %p499, %p500
      %p502 = scmp.ne.s32.totalorder %s494, %s496
      %p503 = scmp.eq.s32.totalorder %s45, 2
      %p504 = por %p502, %p503
      %p505 = scmp.ne.s32.totalorder %s496, %s497
      %p506 = scmp.eq.s32.totalorder %s45, 0
      %p507 = por %p505, %p506
      %p508 = scmp.ne.s32.totalorder %s496, %s497
      %p509 = scmp.eq.s32.totalorder %s46, 2
      %p510 = por %p508, %p509
      %p512 = scmp.ne.s32.totalorder %s497, %s511
      %p513 = scmp.eq.s32.totalorder %s46, 0
      %p514 = por %p512, %p513
      %s516 = sadd.s32 %s515, 1
      %p519 = scmp.eq.s32.totalorder %s40, 2
      %p520 = scmp.ne.s32.totalorder %s515, %s517
      %p521 = scmp.eq.s32.totalorder %s40, 0
      %p522 = por %p520, %p521
      %p523 = scmp.ne.s32.totalorder %s515, %s517
      %p524 = scmp.eq.s32.totalorder %s45, 2
      %p525 = por %p523, %p524
      %p526 = scmp.ne.s32.totalorder %s517, %s518
      %p527 = scmp.eq.s32.totalorder %s45, 0
      %p528 = por %p526, %p527
      %p529 = scmp.ne.s32.totalorder %s517, %s518
      %p530 = scmp.eq.s32.totalorder %s46, 2
      %p531 = por %p529, %p530
      %p533 = scmp.ne.s32.totalorder %s518, %s532
      %p534 = scmp.eq.s32.totalorder %s46, 0
      %p535 = por %p533, %p534
      %s536 = ssub.s32 %s40, %s47
      %p537 = scmp.eq.s32.totalorder %s536, 0
      %s539 = sadd.s32 %s538, 1
      %s540 = scalar_select %p537, %s538, %s539
      %p543 = pneg %p537
      %p544 = scmp.eq.s32.totalorder %s40, 2
      %p545 = por %p543, %p544
      %p546 = scmp.ne.s32.totalorder %s538, %s541
      %p547 = scmp.eq.s32.totalorder %s40, 0
      %p548 = por %p546, %p547
      %p549 = scmp.ne.s32.totalorder %s538, %s541
      %p550 = scmp.eq.s32.totalorder %s45, 2
      %p551 = por %p549, %p550
      %p552 = scmp.ne.s32.totalorder %s541, %s542
      %p553 = scmp.eq.s32.totalorder %s45, 0
      %p554 = por %p552, %p553
      %p555 = scmp.ne.s32.totalorder %s541, %s542
      %p556 = scmp.eq.s32.totalorder %s46, 2
      %p557 = por %p555, %p556
      %p559 = scmp.ne.s32.totalorder %s542, %s558
      %p560 = scmp.eq.s32.totalorder %s46, 0
      %p561 = por %p559, %p560
      %p562 = scmp.le.s32.totalorder 1, %s40
      %p563 = scmp.lt.s32.totalorder %s40, 4
      %p564 = pnand %p562, %p563
      %p565 = pneg %p564
      // Predicated region
      $region9: #{tpu_custom_call.1} parent=5 // pred_check
        _
      $region10: #{tpu_custom_call.1} parent=5 // pred_check_branch
        %567 = sbr.rel (%p564) target = $region12
      $region11: #{tpu_custom_call.1} parent=5 // pred_region
        %s568 = ssub.s32 %s40, 1
        // Predicated region
        $region13: #{tpu_custom_call.1} parent=11 // pred_check
          %p569 = pneg %p87
        $region14: #{tpu_custom_call.1} parent=11 // pred_check_branch
          %571 = sbr.rel (%p569) target = $region16
        $region15: #{tpu_custom_call.1} parent=11 // pred_region
          _
        $region16: #{tpu_custom_call.1} parent=11 // pred_fallthru
          _
        // Predicated region
        $region17: #{tpu_custom_call.1} parent=11 // pred_check
          %p572 = pneg %p108
        $region18: #{tpu_custom_call.1} parent=11 // pred_check_branch
          %574 = sbr.rel (%p572) target = $region20
        $region19: #{tpu_custom_call.1} parent=11 // pred_region
          _
        $region20: #{tpu_custom_call.1} parent=11 // pred_fallthru
          _
        // Predicated region
        $region21: #{tpu_custom_call.1} parent=11 // pred_check
          %p575 = pneg %p129
        $region22: #{tpu_custom_call.1} parent=11 // pred_check_branch
          %577 = sbr.rel (%p575) target = $region24
        $region23: #{tpu_custom_call.1} parent=11 // pred_region
          _
        $region24: #{tpu_custom_call.1} parent=11 // pred_fallthru
          _
        // Predicated region
        $region25: #{tpu_custom_call.1} parent=11 // pred_check
          %p578 = pneg %p150
        $region26: #{tpu_custom_call.1} parent=11 // pred_check_branch
          %580 = sbr.rel (%p578) target = $region28
        $region27: #{tpu_custom_call.1} parent=11 // pred_region
          _
        $region28: #{tpu_custom_call.1} parent=11 // pred_fallthru
          _
        // Predicated region
        $region29: #{tpu_custom_call.1} parent=11 // pred_check
          %p581 = pneg %p171
        $region30: #{tpu_custom_call.1} parent=11 // pred_check_branch
          %583 = sbr.rel (%p581) target = $region32
        $region31: #{tpu_custom_call.1} parent=11 // pred_region
          _
        $region32: #{tpu_custom_call.1} parent=11 // pred_fallthru
          _
        // Predicated region
        $region33: #{tpu_custom_call.1} parent=11 // pred_check
          %p584 = pneg %p192
        $region34: #{tpu_custom_call.1} parent=11 // pred_check_branch
          %586 = sbr.rel (%p584) target = $region36
        $region35: #{tpu_custom_call.1} parent=11 // pred_region
          _
        $region36: #{tpu_custom_call.1} parent=11 // pred_fallthru
          _
        // Predicated region
        $region37: #{tpu_custom_call.1} parent=11 // pred_check
          %p587 = pneg %p213
        $region38: #{tpu_custom_call.1} parent=11 // pred_check_branch
          %589 = sbr.rel (%p587) target = $region40
        $region39: #{tpu_custom_call.1} parent=11 // pred_region
          %s591 = ssub.s32 64, 64
          %592 = vsyncadd [#allocation6], %s591
          %s594 = sshll.u32 [#allocation5], 4
          %s595 = int_to_ptr.vmem [resolvable:$true] %s594
          %597 = dma.hbm_to_vmem [thread:$0]  %s7, 64, %s595, [#allocation6]
        $region40: #{tpu_custom_call.1} parent=11 // pred_fallthru
          _
        // Predicated region
        $region41: #{tpu_custom_call.1} parent=11 // pred_check
          %p598 = pneg %p234
        $region42: #{tpu_custom_call.1} parent=11 // pred_check_branch
          %600 = sbr.rel (%p598) target = $region44
        $region43: #{tpu_custom_call.1} parent=11 // pred_region
          %s602 = ssub.s32 16, 16
          %603 = vsyncadd [#allocation6], %s602
          %s605 = sshll.u32 [#allocation7], 4
          %s606 = int_to_ptr.vmem [resolvable:$true] %s605
          %608 = dma.hbm_to_vmem [thread:$0]  %s8, 16, %s606, [#allocation6]
        $region44: #{tpu_custom_call.1} parent=11 // pred_fallthru
          _
        // Predicated region
        $region45: #{tpu_custom_call.1} parent=11 // pred_check
          %p609 = pneg %p255
        $region46: #{tpu_custom_call.1} parent=11 // pred_check_branch
          %611 = sbr.rel (%p609) target = $region48
        $region47: #{tpu_custom_call.1} parent=11 // pred_region
          _
        $region48: #{tpu_custom_call.1} parent=11 // pred_fallthru
          _
        // Predicated region
        $region49: #{tpu_custom_call.1} parent=11 // pred_check
          %p612 = pneg %p276
        $region50: #{tpu_custom_call.1} parent=11 // pred_check_branch
          %614 = sbr.rel (%p612) target = $region52
        $region51: #{tpu_custom_call.1} parent=11 // pred_region
          _
        $region52: #{tpu_custom_call.1} parent=11 // pred_fallthru
          _
        // Predicated region
        $region53: #{tpu_custom_call.1} parent=11 // pred_check
          %p615 = pneg %p297
        $region54: #{tpu_custom_call.1} parent=11 // pred_check_branch
          %617 = sbr.rel (%p615) target = $region56
        $region55: #{tpu_custom_call.1} parent=11 // pred_region
          _
        $region56: #{tpu_custom_call.1} parent=11 // pred_fallthru
          _
        // Predicated region
        $region57: #{tpu_custom_call.1} parent=11 // pred_check
          %p618 = pneg %p318
        $region58: #{tpu_custom_call.1} parent=11 // pred_check_branch
          %620 = sbr.rel (%p618) target = $region60
        $region59: #{tpu_custom_call.1} parent=11 // pred_region
          %s622 = ssub.s32 16, 16
          %623 = vsyncadd [#allocation9], %s622
          %s625 = sshll.u32 [#allocation8], 4
          %s626 = int_to_ptr.vmem [resolvable:$true] %s625
          %628 = dma.hbm_to_vmem [thread:$0]  %s12, 16, %s626, [#allocation9]
        $region60: #{tpu_custom_call.1} parent=11 // pred_fallthru
          _
        // Predicated region
        $region61: #{tpu_custom_call.1} parent=11 // pred_check
          %p629 = pneg %p339
        $region62: #{tpu_custom_call.1} parent=11 // pred_check_branch
          %631 = sbr.rel (%p629) target = $region64
        $region63: #{tpu_custom_call.1} parent=11 // pred_region
          %s633 = ssub.s32 32, 32
          %634 = vsyncadd [#allocation9], %s633
          %s636 = sshll.u32 [#allocation10], 4
          %s637 = int_to_ptr.vmem [resolvable:$true] %s636
          %639 = dma.hbm_to_vmem [thread:$0]  %s13, 32, %s637, [#allocation9]
        $region64: #{tpu_custom_call.1} parent=11 // pred_fallthru
          _
        // Predicated region
        $region65: #{tpu_custom_call.1} parent=11 // pred_check
          %p640 = pneg %p360
        $region66: #{tpu_custom_call.1} parent=11 // pred_check_branch
          %642 = sbr.rel (%p640) target = $region68
        $region67: #{tpu_custom_call.1} parent=11 // pred_region
          %s644 = ssub.s32 16, 16
          %645 = vsyncadd [#allocation12], %s644
          %s647 = sshll.u32 [#allocation11], 4
          %s648 = int_to_ptr.vmem [resolvable:$true] %s647
          %650 = dma.hbm_to_vmem [thread:$0]  %s14, 16, %s648, [#allocation12]
        $region68: #{tpu_custom_call.1} parent=11 // pred_fallthru
          _
        // Predicated region
        $region69: #{tpu_custom_call.1} parent=11 // pred_check
          %p651 = pneg %p381
        $region70: #{tpu_custom_call.1} parent=11 // pred_check_branch
          %653 = sbr.rel (%p651) target = $region72
        $region71: #{tpu_custom_call.1} parent=11 // pred_region
          %s655 = ssub.s32 128, 128
          %656 = vsyncadd [#allocation12], %s655
          %s658 = sshll.u32 [#allocation13], 4
          %s659 = int_to_ptr.vmem [resolvable:$true] %s658
          %661 = dma.hbm_to_vmem [thread:$0]  %s15, 128, %s659, [#allocation12]
        $region72: #{tpu_custom_call.1} parent=11 // pred_fallthru
          _
        // Predicated region
        $region73: #{tpu_custom_call.1} parent=11 // pred_check
          %p662 = pneg %p402
        $region74: #{tpu_custom_call.1} parent=11 // pred_check_branch
          %664 = sbr.rel (%p662) target = $region76
        $region75: #{tpu_custom_call.1} parent=11 // pred_region
          _
        $region76: #{tpu_custom_call.1} parent=11 // pred_fallthru
          _
        // Predicated region
        $region77: #{tpu_custom_call.1} parent=11 // pred_check
          %p665 = pneg %p423
        $region78: #{tpu_custom_call.1} parent=11 // pred_check_branch
          %667 = sbr.rel (%p665) target = $region80
        $region79: #{tpu_custom_call.1} parent=11 // pred_region
          %s669 = ssub.s32 16, 16
          %670 = vsyncadd [#allocation15], %s669
          %s672 = sshll.u32 [#allocation14], 4
          %s673 = int_to_ptr.vmem [resolvable:$true] %s672
          %675 = dma.hbm_to_vmem [thread:$0]  %s17, 16, %s673, [#allocation15]
        $region80: #{tpu_custom_call.1} parent=11 // pred_fallthru
          _
        // Predicated region
        $region81: #{tpu_custom_call.1} parent=11 // pred_check
          %p676 = pneg %p444
        $region82: #{tpu_custom_call.1} parent=11 // pred_check_branch
          %678 = sbr.rel (%p676) target = $region84
        $region83: #{tpu_custom_call.1} parent=11 // pred_region
          %s680 = ssub.s32 32, 32
          %681 = vsyncadd [#allocation15], %s680
          %s683 = sshll.u32 [#allocation16], 4
          %s684 = int_to_ptr.vmem [resolvable:$true] %s683
          %686 = dma.hbm_to_vmem [thread:$0]  %s18, 32, %s684, [#allocation15]
        $region84: #{tpu_custom_call.1} parent=11 // pred_fallthru
          _
        // Predicated region
        $region85: #{tpu_custom_call.1} parent=11 // pred_check
          %p687 = pneg %p465
        $region86: #{tpu_custom_call.1} parent=11 // pred_check_branch
          %689 = sbr.rel (%p687) target = $region88
        $region87: #{tpu_custom_call.1} parent=11 // pred_region
          %s691 = ssub.s32 16, 16
          %692 = vsyncadd [#allocation18], %s691
          %s694 = sshll.u32 [#allocation17], 4
          %s695 = int_to_ptr.vmem [resolvable:$true] %s694
          %697 = dma.hbm_to_vmem [thread:$0]  %s19, 16, %s695, [#allocation18]
        $region88: #{tpu_custom_call.1} parent=11 // pred_fallthru
          _
        // Predicated region
        $region89: #{tpu_custom_call.1} parent=11 // pred_check
          %p698 = pneg %p486
        $region90: #{tpu_custom_call.1} parent=11 // pred_check_branch
          %700 = sbr.rel (%p698) target = $region92
        $region91: #{tpu_custom_call.1} parent=11 // pred_region
          _
        $region92: #{tpu_custom_call.1} parent=11 // pred_fallthru
          _
        // Predicated region
        $region93: #{tpu_custom_call.1} parent=11 // pred_check
          %p701 = pneg %p507
        $region94: #{tpu_custom_call.1} parent=11 // pred_check_branch
          %703 = sbr.rel (%p701) target = $region96
        $region95: #{tpu_custom_call.1} parent=11 // pred_region
          %s705 = ssub.s32 8192, 8192
          %706 = vsyncadd [#allocation18], %s705
          %s707 = sshll.u32 [#allocation19], 4
          %s708 = int_to_ptr.vmem [resolvable:$true] %s707
          %713 = dma.hbm_to_vmem [thread:$0]  %s21, 8192, %s708, [#allocation18], 512, 512, 32
        $region96: #{tpu_custom_call.1} parent=11 // pred_fallthru
          _
        // Predicated region
        $region97: #{tpu_custom_call.1} parent=11 // pred_check
          %p714 = pneg %p528
        $region98: #{tpu_custom_call.1} parent=11 // pred_check_branch
          %716 = sbr.rel (%p714) target = $region100
        $region99: #{tpu_custom_call.1} parent=11 // pred_region
          _
        $region100: #{tpu_custom_call.1} parent=11 // pred_fallthru
          _
      $region12: #{tpu_custom_call.1} parent=5 // pred_fallthru
        _
      %p717 = scmp.lt.s32.totalorder %s40, 3
      // Predicated region
      $region101: #{tpu_custom_call.1} parent=5 // pred_check
        %p718 = pneg %p717
      $region102: #{tpu_custom_call.1} parent=5 // pred_check_branch
        %720 = sbr.rel (%p718) target = $region104
      $region103: #{tpu_custom_call.1} parent=5 // pred_region
        // Predicated region
        $region105: #{tpu_custom_call.1} parent=103 // pred_check
          %p721 = pneg %p60
        $region106: #{tpu_custom_call.1} parent=103 // pred_check_branch
          %723 = sbr.rel (%p721) target = $region108
        $region107: #{tpu_custom_call.1} parent=103 // pred_region
          %s724 = sand.u32 %s50, 1
          %s725 = scalar_lea.sflag [#allocation3], %s724
          %s726 = sand.u32 %s50, 1
          %s727 = smul.addr %s726, 128
          %s728 = scalar_lea.vmem [#allocation2], %s727
          %s729 = smul.u32 16, %s40
          %s731 = ssub.s32 2048, 2048
          %732 = vsyncadd %s725, %s731
          %s733 = smul.addr %s729, 128
          %s734 = scalar_lea.hbm %s0, %s733
          %s735 = sshll.u32 %s728, 4
          %s736 = int_to_ptr.vmem [resolvable:$true] %s735
          %741 = dma.hbm_to_vmem [thread:$0]  %s734, 2048, %s736, %s725, 128, 128, 8
        $region108: #{tpu_custom_call.1} parent=103 // pred_fallthru
          _
      $region104: #{tpu_custom_call.1} parent=5 // pred_fallthru
        _
      %p742 = scmp.le.s32.totalorder 1, %s40
      %p743 = scmp.lt.s32.totalorder %s40, 4
      %p744 = pnand %p742, %p743
      %p745 = pneg %p744
      // Predicated region
      $region109: #{tpu_custom_call.1} parent=5 // pred_check
        _
      $region110: #{tpu_custom_call.1} parent=5 // pred_check_branch
        %747 = sbr.rel (%p744) target = $region112
      $region111: #{tpu_custom_call.1} parent=5 // pred_region
        %s748 = ssub.s32 %s40, 1
        %s749 = sand.u32 %s53, 1
        %s750 = scalar_lea.sflag [#allocation3], %s749
        %s751 = sand.u32 %s53, 1
        %s752 = smul.addr %s751, 128
        %s753 = scalar_lea.vmem [#allocation2], %s752
        // Predicated region
        $region113: #{tpu_custom_call.1} parent=111 // pred_check
          %p754 = pneg %p66
        $region114: #{tpu_custom_call.1} parent=111 // pred_check_branch
          %756 = sbr.rel (%p754) target = $region116
        $region115: #{tpu_custom_call.1} parent=111 // pred_region
          %757 = dma.done %s750, 2048
        $region116: #{tpu_custom_call.1} parent=111 // pred_fallthru
          _
        // Predicated region
        $region117: #{tpu_custom_call.1} parent=111 // pred_check
          %p758 = pneg %p213
        $region118: #{tpu_custom_call.1} parent=111 // pred_check_branch
          %760 = sbr.rel (%p758) target = $region120
        $region119: #{tpu_custom_call.1} parent=111 // pred_region
          %761 = dma.done [#allocation6], 64
        $region120: #{tpu_custom_call.1} parent=111 // pred_fallthru
          _
        // Predicated region
        $region121: #{tpu_custom_call.1} parent=111 // pred_check
          %p762 = pneg %p234
        $region122: #{tpu_custom_call.1} parent=111 // pred_check_branch
          %764 = sbr.rel (%p762) target = $region124
        $region123: #{tpu_custom_call.1} parent=111 // pred_region
          %765 = dma.done [#allocation6], 16
        $region124: #{tpu_custom_call.1} parent=111 // pred_fallthru
          _
        // Predicated region
        $region125: #{tpu_custom_call.1} parent=111 // pred_check
          %p766 = pneg %p318
        $region126: #{tpu_custom_call.1} parent=111 // pred_check_branch
          %768 = sbr.rel (%p766) target = $region128
        $region127: #{tpu_custom_call.1} parent=111 // pred_region
          %769 = dma.done [#allocation9], 16
        $region128: #{tpu_custom_call.1} parent=111 // pred_fallthru
          _
        // Predicated region
        $region129: #{tpu_custom_call.1} parent=111 // pred_check
          %p770 = pneg %p339
        $region130: #{tpu_custom_call.1} parent=111 // pred_check_branch
          %772 = sbr.rel (%p770) target = $region132
        $region131: #{tpu_custom_call.1} parent=111 // pred_region
          %773 = dma.done [#allocation9], 32
        $region132: #{tpu_custom_call.1} parent=111 // pred_fallthru
          _
        // Predicated region
        $region133: #{tpu_custom_call.1} parent=111 // pred_check
          %p774 = pneg %p360
        $region134: #{tpu_custom_call.1} parent=111 // pred_check_branch
          %776 = sbr.rel (%p774) target = $region136
        $region135: #{tpu_custom_call.1} parent=111 // pred_region
          %777 = dma.done [#allocation12], 16
        $region136: #{tpu_custom_call.1} parent=111 // pred_fallthru
          _
        // Predicated region
        $region137: #{tpu_custom_call.1} parent=111 // pred_check
          %p778 = pneg %p381
        $region138: #{tpu_custom_call.1} parent=111 // pred_check_branch
          %780 = sbr.rel (%p778) target = $region140
        $region139: #{tpu_custom_call.1} parent=111 // pred_region
          %781 = dma.done [#allocation12], 128
        $region140: #{tpu_custom_call.1} parent=111 // pred_fallthru
          _
        // Predicated region
        $region141: #{tpu_custom_call.1} parent=111 // pred_check
          %p782 = pneg %p423
        $region142: #{tpu_custom_call.1} parent=111 // pred_check_branch
          %784 = sbr.rel (%p782) target = $region144
        $region143: #{tpu_custom_call.1} parent=111 // pred_region
          %785 = dma.done [#allocation15], 16
        $region144: #{tpu_custom_call.1} parent=111 // pred_fallthru
          _
        // Predicated region
        $region145: #{tpu_custom_call.1} parent=111 // pred_check
          %p786 = pneg %p444
        $region146: #{tpu_custom_call.1} parent=111 // pred_check_branch
          %788 = sbr.rel (%p786) target = $region148
        $region147: #{tpu_custom_call.1} parent=111 // pred_region
          %789 = dma.done [#allocation15], 32
        $region148: #{tpu_custom_call.1} parent=111 // pred_fallthru
          _
        // Predicated region
        $region149: #{tpu_custom_call.1} parent=111 // pred_check
          %p790 = pneg %p465
        $region150: #{tpu_custom_call.1} parent=111 // pred_check_branch
          %792 = sbr.rel (%p790) target = $region152
        $region151: #{tpu_custom_call.1} parent=111 // pred_region
          %793 = dma.done [#allocation18], 16
        $region152: #{tpu_custom_call.1} parent=111 // pred_fallthru
          _
        // Predicated region
        $region153: #{tpu_custom_call.1} parent=111 // pred_check
          %p794 = pneg %p507
        $region154: #{tpu_custom_call.1} parent=111 // pred_check_branch
          %796 = sbr.rel (%p794) target = $region156
        $region155: #{tpu_custom_call.1} parent=111 // pred_region
          %797 = dma.done [#allocation18], 8192
        $region156: #{tpu_custom_call.1} parent=111 // pred_fallthru
          _
        %s798 = sand.u32 %s53, 1
        %s799 = scalar_lea.sflag [#allocation3], %s798
        %s800 = sand.u32 %s53, 1
        %s801 = smul.addr %s800, 128
        %s802 = scalar_lea.vmem [#allocation2], %s801
        %p803 = pneg %p66
        %p804 = pneg %p63
        %p805 = pneg %p87
        %p806 = pneg %p84
        %p807 = pneg %p108
        %p808 = pneg %p105
        %p809 = pneg %p129
        %p810 = pneg %p126
        %p811 = pneg %p150
        %p812 = pneg %p147
        %p813 = pneg %p171
        %p814 = pneg %p168
        %p815 = pneg %p192
        %p816 = pneg %p189
        %p817 = pneg %p213
        %p818 = pneg %p210
        %p819 = pneg %p234
        %p820 = pneg %p231
        %p821 = pneg %p255
        %p822 = pneg %p252
        %p823 = pneg %p276
        %p824 = pneg %p273
        %p825 = pneg %p297
        %p826 = pneg %p294
        %p827 = pneg %p318
        %p828 = pneg %p315
        %p829 = pneg %p339
        %p830 = pneg %p336
        %p831 = pneg %p360
        %p832 = pneg %p357
        %p833 = pneg %p381
        %p834 = pneg %p378
        %p835 = pneg %p402
        %p836 = pneg %p399
        %p837 = pneg %p423
        %p838 = pneg %p420
        %p839 = pneg %p444
        %p840 = pneg %p441
        %p841 = pneg %p465
        %p842 = pneg %p462
        %p843 = pneg %p486
        %p844 = pneg %p483
        %p845 = pneg %p507
        %p846 = pneg %p504
        %p847 = pneg %p528
        %p848 = pneg %p525
        %p849 = pneg %p554
        %p850 = pneg %p551
        %s851 = sand.u32 %s541, 1
        %s852 = scalar_lea.sflag [#allocation4], %s851
        %s853 = sand.u32 %s541, 1
        %s854 = smul.addr %s853, 512
        %s855 = scalar_lea.vmem [#allocation20], %s854
        %s856 = smul.u32 16, %s45
        %s857 = smul.u32 16, %s45
        %v858 = vld [vmem:[%s753] sm:$0xff]
        %v859 = vld [vmem:[%s753 + $0x8] sm:$0xff]
        %v860 = vld [vmem:[%s753 + $0x10] sm:$0xff]
        %v861 = vld [vmem:[%s753 + $0x18] sm:$0xff]
        %v862 = vld [vmem:[%s753 + $0x20] sm:$0xff]
        %v863 = vld [vmem:[%s753 + $0x28] sm:$0xff]
        %v864 = vld [vmem:[%s753 + $0x30] sm:$0xff]
        %v865 = vld [vmem:[%s753 + $0x38] sm:$0xff]
        %v866 = vld [vmem:[%s753 + $0x40] sm:$0xff]
        %v867 = vld [vmem:[%s753 + $0x48] sm:$0xff]
        %v868 = vld [vmem:[%s753 + $0x50] sm:$0xff]
        %v869 = vld [vmem:[%s753 + $0x58] sm:$0xff]
        %v870 = vld [vmem:[%s753 + $0x60] sm:$0xff]
        %v871 = vld [vmem:[%s753 + $0x68] sm:$0xff]
        %v872 = vld [vmem:[%s753 + $0x70] sm:$0xff]
        %v873 = vld [vmem:[%s753 + $0x78] sm:$0xff]
        %874 = vrot.lane.b32.xlu0 %v858, 8
        %v875 = vpop.permute.xlu0 %874
        %876 = vrot.lane.b32.xlu0 %v859, 8
        %v877 = vpop.permute.xlu0 %876
        %878 = vrot.lane.b32.xlu0 %v860, 8
        %v879 = vpop.permute.xlu0 %878
        %880 = vrot.lane.b32.xlu0 %v861, 8
        %v881 = vpop.permute.xlu0 %880
        %882 = vrot.lane.b32.xlu0 %v862, 8
        %v883 = vpop.permute.xlu0 %882
        %884 = vrot.lane.b32.xlu0 %v863, 8
        %v885 = vpop.permute.xlu0 %884
        %886 = vrot.lane.b32.xlu0 %v864, 8
        %v887 = vpop.permute.xlu0 %886
        %888 = vrot.lane.b32.xlu0 %v865, 8
        %v889 = vpop.permute.xlu0 %888
        %890 = vrot.lane.b32.xlu0 %v866, 8
        %v891 = vpop.permute.xlu0 %890
        %892 = vrot.lane.b32.xlu0 %v867, 8
        %v893 = vpop.permute.xlu0 %892
        %894 = vrot.lane.b32.xlu0 %v868, 8
        %v895 = vpop.permute.xlu0 %894
        %896 = vrot.lane.b32.xlu0 %v869, 8
        %v897 = vpop.permute.xlu0 %896
        %898 = vrot.lane.b32.xlu0 %v870, 8
        %v899 = vpop.permute.xlu0 %898
        %900 = vrot.lane.b32.xlu0 %v871, 8
        %v901 = vpop.permute.xlu0 %900
        %902 = vrot.lane.b32.xlu0 %v872, 8
        %v903 = vpop.permute.xlu0 %902
        %904 = vrot.lane.b32.xlu0 %v873, 8
        %v905 = vpop.permute.xlu0 %904
        %v906 = vmax.f32 %v858, %v875
        %v907 = vmax.f32 %v859, %v877
        %v908 = vmax.f32 %v860, %v879
        %v909 = vmax.f32 %v861, %v881
        %v910 = vmax.f32 %v862, %v883
        %v911 = vmax.f32 %v863, %v885
        %v912 = vmax.f32 %v864, %v887
        %v913 = vmax.f32 %v865, %v889
        %v914 = vmax.f32 %v866, %v891
        %v915 = vmax.f32 %v867, %v893
        %v916 = vmax.f32 %v868, %v895
        %v917 = vmax.f32 %v869, %v897
        %v918 = vmax.f32 %v870, %v899
        %v919 = vmax.f32 %v871, %v901
        %v920 = vmax.f32 %v872, %v903
        %v921 = vmax.f32 %v873, %v905
        %922 = vrot.lane.b32.xlu0 %v906, 16
        %v923 = vpop.permute.xlu0 %922
        %924 = vrot.lane.b32.xlu0 %v907, 16
        %v925 = vpop.permute.xlu0 %924
        %926 = vrot.lane.b32.xlu0 %v908, 16
        %v927 = vpop.permute.xlu0 %926
        %928 = vrot.lane.b32.xlu0 %v909, 16
        %v929 = vpop.permute.xlu0 %928
        %930 = vrot.lane.b32.xlu0 %v910, 16
        %v931 = vpop.permute.xlu0 %930
        %932 = vrot.lane.b32.xlu0 %v911, 16
        %v933 = vpop.permute.xlu0 %932
        %934 = vrot.lane.b32.xlu0 %v912, 16
        %v935 = vpop.permute.xlu0 %934
        %936 = vrot.lane.b32.xlu0 %v913, 16
        %v937 = vpop.permute.xlu0 %936
        %938 = vrot.lane.b32.xlu0 %v914, 16
        %v939 = vpop.permute.xlu0 %938
        %940 = vrot.lane.b32.xlu0 %v915, 16
        %v941 = vpop.permute.xlu0 %940
        %942 = vrot.lane.b32.xlu0 %v916, 16
        %v943 = vpop.permute.xlu0 %942
        %944 = vrot.lane.b32.xlu0 %v917, 16
        %v945 = vpop.permute.xlu0 %944
        %946 = vrot.lane.b32.xlu0 %v918, 16
        %v947 = vpop.permute.xlu0 %946
        %948 = vrot.lane.b32.xlu0 %v919, 16
        %v949 = vpop.permute.xlu0 %948
        %950 = vrot.lane.b32.xlu0 %v920, 16
        %v951 = vpop.permute.xlu0 %950
        %952 = vrot.lane.b32.xlu0 %v921, 16
        %v953 = vpop.permute.xlu0 %952
        %v954 = vmax.f32 %v906, %v923
        %v955 = vmax.f32 %v907, %v925
        %v956 = vmax.f32 %v908, %v927
        %v957 = vmax.f32 %v909, %v929
        %v958 = vmax.f32 %v910, %v931
        %v959 = vmax.f32 %v911, %v933
        %v960 = vmax.f32 %v912, %v935
        %v961 = vmax.f32 %v913, %v937
        %v962 = vmax.f32 %v914, %v939
        %v963 = vmax.f32 %v915, %v941
        %v964 = vmax.f32 %v916, %v943
        %v965 = vmax.f32 %v917, %v945
        %v966 = vmax.f32 %v918, %v947
        %v967 = vmax.f32 %v919, %v949
        %v968 = vmax.f32 %v920, %v951
        %v969 = vmax.f32 %v921, %v953
        %970 = vrot.lane.b32.xlu0 %v954, 32
        %v971 = vpop.permute.xlu0 %970
        %972 = vrot.lane.b32.xlu0 %v955, 32
        %v973 = vpop.permute.xlu0 %972
        %974 = vrot.lane.b32.xlu0 %v956, 32
        %v975 = vpop.permute.xlu0 %974
        %976 = vrot.lane.b32.xlu0 %v957, 32
        %v977 = vpop.permute.xlu0 %976
        %978 = vrot.lane.b32.xlu0 %v958, 32
        %v979 = vpop.permute.xlu0 %978
        %980 = vrot.lane.b32.xlu0 %v959, 32
        %v981 = vpop.permute.xlu0 %980
        %982 = vrot.lane.b32.xlu0 %v960, 32
        %v983 = vpop.permute.xlu0 %982
        %984 = vrot.lane.b32.xlu0 %v961, 32
        %v985 = vpop.permute.xlu0 %984
        %986 = vrot.lane.b32.xlu0 %v962, 32
        %v987 = vpop.permute.xlu0 %986
        %988 = vrot.lane.b32.xlu0 %v963, 32
        %v989 = vpop.permute.xlu0 %988
        %990 = vrot.lane.b32.xlu0 %v964, 32
        %v991 = vpop.permute.xlu0 %990
        %992 = vrot.lane.b32.xlu0 %v965, 32
        %v993 = vpop.permute.xlu0 %992
        %994 = vrot.lane.b32.xlu0 %v966, 32
        %v995 = vpop.permute.xlu0 %994
        %996 = vrot.lane.b32.xlu0 %v967, 32
        %v997 = vpop.permute.xlu0 %996
        %998 = vrot.lane.b32.xlu0 %v968, 32
        %v999 = vpop.permute.xlu0 %998
        %1000 = vrot.lane.b32.xlu0 %v969, 32
        %v1001 = vpop.permute.xlu0 %1000
        %v1002 = vmax.f32 %v954, %v971
        %v1003 = vmax.f32 %v955, %v973
        %v1004 = vmax.f32 %v956, %v975
        %v1005 = vmax.f32 %v957, %v977
        %v1006 = vmax.f32 %v958, %v979
        %v1007 = vmax.f32 %v959, %v981
        %v1008 = vmax.f32 %v960, %v983
        %v1009 = vmax.f32 %v961, %v985
        %v1010 = vmax.f32 %v962, %v987
        %v1011 = vmax.f32 %v963, %v989
        %v1012 = vmax.f32 %v964, %v991
        %v1013 = vmax.f32 %v965, %v993
        %v1014 = vmax.f32 %v966, %v995
        %v1015 = vmax.f32 %v967, %v997
        %v1016 = vmax.f32 %v968, %v999
        %v1017 = vmax.f32 %v969, %v1001
        %1018 = vrot.lane.b32.xlu0 %v1002, 64
        %v1019 = vpop.permute.xlu0 %1018
        %1020 = vrot.lane.b32.xlu0 %v1003, 64
        %v1021 = vpop.permute.xlu0 %1020
        %1022 = vrot.lane.b32.xlu0 %v1004, 64
        %v1023 = vpop.permute.xlu0 %1022
        %1024 = vrot.lane.b32.xlu0 %v1005, 64
        %v1025 = vpop.permute.xlu0 %1024
        %1026 = vrot.lane.b32.xlu0 %v1006, 64
        %v1027 = vpop.permute.xlu0 %1026
        %1028 = vrot.lane.b32.xlu0 %v1007, 64
        %v1029 = vpop.permute.xlu0 %1028
        %1030 = vrot.lane.b32.xlu0 %v1008, 64
        %v1031 = vpop.permute.xlu0 %1030
        %1032 = vrot.lane.b32.xlu0 %v1009, 64
        %v1033 = vpop.permute.xlu0 %1032
        %1034 = vrot.lane.b32.xlu0 %v1010, 64
        %v1035 = vpop.permute.xlu0 %1034
        %1036 = vrot.lane.b32.xlu0 %v1011, 64
        %v1037 = vpop.permute.xlu0 %1036
        %1038 = vrot.lane.b32.xlu0 %v1012, 64
        %v1039 = vpop.permute.xlu0 %1038
        %1040 = vrot.lane.b32.xlu0 %v1013, 64
        %v1041 = vpop.permute.xlu0 %1040
        %1042 = vrot.lane.b32.xlu0 %v1014, 64
        %v1043 = vpop.permute.xlu0 %1042
        %1044 = vrot.lane.b32.xlu0 %v1015, 64
        %v1045 = vpop.permute.xlu0 %1044
        %1046 = vrot.lane.b32.xlu0 %v1016, 64
        %v1047 = vpop.permute.xlu0 %1046
        %1048 = vrot.lane.b32.xlu0 %v1017, 64
        %v1049 = vpop.permute.xlu0 %1048
        %v1050 = vmax.f32 %v1002, %v1019
        %v1051 = vmax.f32 %v1003, %v1021
        %v1052 = vmax.f32 %v1004, %v1023
        %v1053 = vmax.f32 %v1005, %v1025
        %v1054 = vmax.f32 %v1006, %v1027
        %v1055 = vmax.f32 %v1007, %v1029
        %v1056 = vmax.f32 %v1008, %v1031
        %v1057 = vmax.f32 %v1009, %v1033
        %v1058 = vmax.f32 %v1010, %v1035
        %v1059 = vmax.f32 %v1011, %v1037
        %v1060 = vmax.f32 %v1012, %v1039
        %v1061 = vmax.f32 %v1013, %v1041
        %v1062 = vmax.f32 %v1014, %v1043
        %v1063 = vmax.f32 %v1015, %v1045
        %v1064 = vmax.f32 %v1016, %v1047
        %v1065 = vmax.f32 %v1017, %v1049
        %v1066 = vld [vmem:[%s1] sm:$0xff]
        %v1067 = vld [vmem:[%s1 + $0x8] sm:$0xff]
        %v1068 = vld [vmem:[%s1 + $0x10] sm:$0xff]
        %v1069 = vld [vmem:[%s1 + $0x18] sm:$0xff]
        %v1070 = vld [vmem:[%s1 + $0x20] sm:$0xff]
        %v1071 = vld [vmem:[%s1 + $0x28] sm:$0xff]
        %v1072 = vld [vmem:[%s1 + $0x30] sm:$0xff]
        %v1073 = vld [vmem:[%s1 + $0x38] sm:$0xff]
        %v1074 = vld [vmem:[%s1 + $0x40] sm:$0xff]
        %v1075 = vld [vmem:[%s1 + $0x48] sm:$0xff]
        %v1076 = vld [vmem:[%s1 + $0x50] sm:$0xff]
        %v1077 = vld [vmem:[%s1 + $0x58] sm:$0xff]
        %v1078 = vld [vmem:[%s1 + $0x60] sm:$0xff]
        %v1079 = vld [vmem:[%s1 + $0x68] sm:$0xff]
        %v1080 = vld [vmem:[%s1 + $0x70] sm:$0xff]
        %v1081 = vld [vmem:[%s1 + $0x78] sm:$0xff]
        %1082 = vmatprep.subr.mxu0 0.0
        %1083 = vmatpush1.msra.mxu0 %v1066
        %1084 = vmatprep.subr.mxu0 0.0
        %1085 = vmatpush1.msra.mxu0 %v1067
        %1086 = vmatprep.subr.mxu0 0.0
        %1087 = vmatpush1.msra.mxu0 %v1068
        %1088 = vmatprep.subr.mxu0 0.0
        %1089 = vmatpush1.msra.mxu0 %v1069
        %1090 = vmatprep.subr.mxu0 0.0
        %1091 = vmatpush1.msra.mxu0 %v1070
        %1092 = vmatprep.subr.mxu0 0.0
        %1093 = vmatpush1.msra.mxu0 %v1071
        %1094 = vmatprep.subr.mxu0 0.0
        %1095 = vmatpush1.msra.mxu0 %v1072
        %1096 = vmatprep.subr.mxu0 0.0
        %1097 = vmatpush1.msra.mxu0 %v1073
        %1098 = vmatprep.subr.mxu0 0.0
        %1099 = vmatpush1.msra.mxu0 %v1074
        %1100 = vmatprep.subr.mxu0 0.0
        %1101 = vmatpush1.msra.mxu0 %v1075
        %1102 = vmatprep.subr.mxu0 0.0
        %1103 = vmatpush1.msra.mxu0 %v1076
        %1104 = vmatprep.subr.mxu0 0.0
        %1105 = vmatpush1.msra.mxu0 %v1077
        %1106 = vmatprep.subr.mxu0 0.0
        %1107 = vmatpush1.msra.mxu0 %v1078
        %1108 = vmatprep.subr.mxu0 0.0
        %1109 = vmatpush1.msra.mxu0 %v1079
        %1110 = vmatprep.subr.mxu0 0.0
        %1111 = vmatpush1.msra.mxu0 %v1080
        %1112 = vmatprep.subr.mxu0 0.0
        %1113 = vmatpush1.msra.mxu0 %v1081
        %1114 = vmatprep.subr.mxu0 0.0
        %1115 = vmatpush1.msra.mxu0 0.0
        %1116 = vmatprep.subr.mxu0 0.0
        %1117 = vmatpush1.msra.mxu0 0.0
        %1118 = vmatprep.subr.mxu0 0.0
        %1119 = vmatpush1.msra.mxu0 0.0
        %1120 = vmatprep.subr.mxu0 0.0
        %1121 = vmatpush1.msra.mxu0 0.0
        %1122 = vmatprep.subr.mxu0 0.0
        %1123 = vmatpush1.msra.mxu0 0.0
        %1124 = vmatprep.subr.mxu0 0.0
        %1125 = vmatpush1.msra.mxu0 0.0
        %1126 = vmatprep.subr.mxu0 0.0
        %1127 = vmatpush1.msra.mxu0 0.0
        %1128 = vmatprep.subr.mxu0 0.0
        %1129 = vmatpush1.msra.mxu0 0.0
        %1130 = vmatprep.subr.mxu0 0.0
        %1131 = vmatpush1.msra.mxu0 0.0
        %1132 = vmatprep.subr.mxu0 0.0
        %1133 = vmatpush1.msra.mxu0 0.0
        %1134 = vmatprep.subr.mxu0 0.0
        %1135 = vmatpush1.msra.mxu0 0.0
        %1136 = vmatprep.subr.mxu0 0.0
        %1137 = vmatpush1.msra.mxu0 0.0
        %1138 = vmatprep.subr.mxu0 0.0
        %1139 = vmatpush1.msra.mxu0 0.0
        %1140 = vmatprep.subr.mxu0 0.0
        %1141 = vmatpush1.msra.mxu0 0.0
        %1142 = vmatprep.subr.mxu0 0.0
        %1143 = vmatpush1.msra.mxu0 0.0
        %1144 = vmatprep.subr.mxu0 0.0
        %1145 = vmatpush1.msra.mxu0 0.0
        %1146 = vmatprep.mubr.f32.mxu0 0.0
        %1147 = vmatmul.mubr.f32.gmra.mrb[0].mxu0 %v858
        %v1148 = vpop.f32.mrb[0].mxu0
        %v1149 = vadd.f32 0.0, %v1148
        %v1150 = vpop.f32.mrb[0].mxu0
        %1151 = vmatprep.mubr.f32.mxu0 0.0
        %1152 = vmatmul.mubr.f32.gmra.mrb[0].mxu0 %v859
        %v1153 = vpop.f32.mrb[0].mxu0
        %v1154 = vadd.f32 0.0, %v1153
        %v1155 = vpop.f32.mrb[0].mxu0
        %1156 = vmatprep.mubr.f32.mxu0 0.0
        %1157 = vmatmul.mubr.f32.gmra.mrb[0].mxu0 %v860
        %v1158 = vpop.f32.mrb[0].mxu0
        %v1159 = vadd.f32 0.0, %v1158
        %v1160 = vpop.f32.mrb[0].mxu0
        %1161 = vmatprep.mubr.f32.mxu0 0.0
        %1162 = vmatmul.mubr.f32.gmra.mrb[0].mxu0 %v861
        %v1163 = vpop.f32.mrb[0].mxu0
        %v1164 = vadd.f32 0.0, %v1163
        %v1165 = vpop.f32.mrb[0].mxu0
        %1166 = vmatprep.mubr.f32.mxu0 0.0
        %1167 = vmatmul.mubr.f32.gmra.mrb[0].mxu0 %v862
        %v1168 = vpop.f32.mrb[0].mxu0
        %v1169 = vadd.f32 0.0, %v1168
        %v1170 = vpop.f32.mrb[0].mxu0
        %1171 = vmatprep.mubr.f32.mxu0 0.0
        %1172 = vmatmul.mubr.f32.gmra.mrb[0].mxu0 %v863
        %v1173 = vpop.f32.mrb[0].mxu0
        %v1174 = vadd.f32 0.0, %v1173
        %v1175 = vpop.f32.mrb[0].mxu0
        %1176 = vmatprep.mubr.f32.mxu0 0.0
        %1177 = vmatmul.mubr.f32.gmra.mrb[0].mxu0 %v864
        %v1178 = vpop.f32.mrb[0].mxu0
        %v1179 = vadd.f32 0.0, %v1178
        %v1180 = vpop.f32.mrb[0].mxu0
        %1181 = vmatprep.mubr.f32.mxu0 0.0
        %1182 = vmatmul.mubr.f32.gmra.mrb[0].mxu0 %v865
        %v1183 = vpop.f32.mrb[0].mxu0
        %v1184 = vadd.f32 0.0, %v1183
        %v1185 = vpop.f32.mrb[0].mxu0
        %1186 = vmatprep.mubr.f32.mxu0 0.0
        %1187 = vmatmul.mubr.f32.gmra.mrb[0].mxu0 %v866
        %v1188 = vpop.f32.mrb[0].mxu0
        %v1189 = vadd.f32 0.0, %v1188
        %v1190 = vpop.f32.mrb[0].mxu0
        %1191 = vmatprep.mubr.f32.mxu0 0.0
        %1192 = vmatmul.mubr.f32.gmra.mrb[0].mxu0 %v867
        %v1193 = vpop.f32.mrb[0].mxu0
        %v1194 = vadd.f32 0.0, %v1193
        %v1195 = vpop.f32.mrb[0].mxu0
        %1196 = vmatprep.mubr.f32.mxu0 0.0
        %1197 = vmatmul.mubr.f32.gmra.mrb[0].mxu0 %v868
        %v1198 = vpop.f32.mrb[0].mxu0
        %v1199 = vadd.f32 0.0, %v1198
        %v1200 = vpop.f32.mrb[0].mxu0
        %1201 = vmatprep.mubr.f32.mxu0 0.0
        %1202 = vmatmul.mubr.f32.gmra.mrb[0].mxu0 %v869
        %v1203 = vpop.f32.mrb[0].mxu0
        %v1204 = vadd.f32 0.0, %v1203
        %v1205 = vpop.f32.mrb[0].mxu0
        %1206 = vmatprep.mubr.f32.mxu0 0.0
        %1207 = vmatmul.mubr.f32.gmra.mrb[0].mxu0 %v870
        %v1208 = vpop.f32.mrb[0].mxu0
        %v1209 = vadd.f32 0.0, %v1208
        %v1210 = vpop.f32.mrb[0].mxu0
        %1211 = vmatprep.mubr.f32.mxu0 0.0
        %1212 = vmatmul.mubr.f32.gmra.mrb[0].mxu0 %v871
        %v1213 = vpop.f32.mrb[0].mxu0
        %v1214 = vadd.f32 0.0, %v1213
        %v1215 = vpop.f32.mrb[0].mxu0
        %1216 = vmatprep.mubr.f32.mxu0 0.0
        %1217 = vmatmul.mubr.f32.gmra.mrb[0].mxu0 %v872
        %v1218 = vpop.f32.mrb[0].mxu0
        %v1219 = vadd.f32 0.0, %v1218
        %v1220 = vpop.f32.mrb[0].mxu0
        %1221 = vmatprep.mubr.f32.mxu0 0.0
        %1222 = vmatmul.mubr.f32.gmra.mrb[0].mxu0 %v873
        %v1223 = vpop.f32.mrb[0].mxu0
        %v1224 = vadd.f32 0.0, %v1223
        %v1225 = vpop.f32.mrb[0].mxu0
        %1226 = vdwg.mxu0
        %1227 = vrot.lane.b32.xlu0 %v1149, 16
        %v1228 = vpop.permute.xlu0 %1227
        %1229 = vrot.lane.b32.xlu0 %v1154, 16
        %v1230 = vpop.permute.xlu0 %1229
        %1231 = vrot.lane.b32.xlu0 %v1159, 16
        %v1232 = vpop.permute.xlu0 %1231
        %1233 = vrot.lane.b32.xlu0 %v1164, 16
        %v1234 = vpop.permute.xlu0 %1233
        %1235 = vrot.lane.b32.xlu0 %v1169, 16
        %v1236 = vpop.permute.xlu0 %1235
        %1237 = vrot.lane.b32.xlu0 %v1174, 16
        %v1238 = vpop.permute.xlu0 %1237
        %1239 = vrot.lane.b32.xlu0 %v1179, 16
        %v1240 = vpop.permute.xlu0 %1239
        %1241 = vrot.lane.b32.xlu0 %v1184, 16
        %v1242 = vpop.permute.xlu0 %1241
        %1243 = vrot.lane.b32.xlu0 %v1189, 16
        %v1244 = vpop.permute.xlu0 %1243
        %1245 = vrot.lane.b32.xlu0 %v1194, 16
        %v1246 = vpop.permute.xlu0 %1245
        %1247 = vrot.lane.b32.xlu0 %v1199, 16
        %v1248 = vpop.permute.xlu0 %1247
        %1249 = vrot.lane.b32.xlu0 %v1204, 16
        %v1250 = vpop.permute.xlu0 %1249
        %1251 = vrot.lane.b32.xlu0 %v1209, 16
        %v1252 = vpop.permute.xlu0 %1251
        %1253 = vrot.lane.b32.xlu0 %v1214, 16
        %v1254 = vpop.permute.xlu0 %1253
        %1255 = vrot.lane.b32.xlu0 %v1219, 16
        %v1256 = vpop.permute.xlu0 %1255
        %1257 = vrot.lane.b32.xlu0 %v1224, 16
        %v1258 = vpop.permute.xlu0 %1257
        %v1259 = vmax.f32 %v1149, %v1228
        %v1260 = vmax.f32 %v1154, %v1230
        %v1261 = vmax.f32 %v1159, %v1232
        %v1262 = vmax.f32 %v1164, %v1234
        %v1263 = vmax.f32 %v1169, %v1236
        %v1264 = vmax.f32 %v1174, %v1238
        %v1265 = vmax.f32 %v1179, %v1240
        %v1266 = vmax.f32 %v1184, %v1242
        %v1267 = vmax.f32 %v1189, %v1244
        %v1268 = vmax.f32 %v1194, %v1246
        %v1269 = vmax.f32 %v1199, %v1248
        %v1270 = vmax.f32 %v1204, %v1250
        %v1271 = vmax.f32 %v1209, %v1252
        %v1272 = vmax.f32 %v1214, %v1254
        %v1273 = vmax.f32 %v1219, %v1256
        %v1274 = vmax.f32 %v1224, %v1258
        %1275 = vrot.lane.b32.xlu0 %v1259, 32
        %v1276 = vpop.permute.xlu0 %1275
        %1277 = vrot.lane.b32.xlu0 %v1260, 32
        %v1278 = vpop.permute.xlu0 %1277
        %1279 = vrot.lane.b32.xlu0 %v1261, 32
        %v1280 = vpop.permute.xlu0 %1279
        %1281 = vrot.lane.b32.xlu0 %v1262, 32
        %v1282 = vpop.permute.xlu0 %1281
        %1283 = vrot.lane.b32.xlu0 %v1263, 32
        %v1284 = vpop.permute.xlu0 %1283
        %1285 = vrot.lane.b32.xlu0 %v1264, 32
        %v1286 = vpop.permute.xlu0 %1285
        %1287 = vrot.lane.b32.xlu0 %v1265, 32
        %v1288 = vpop.permute.xlu0 %1287
        %1289 = vrot.lane.b32.xlu0 %v1266, 32
        %v1290 = vpop.permute.xlu0 %1289
        %1291 = vrot.lane.b32.xlu0 %v1267, 32
        %v1292 = vpop.permute.xlu0 %1291
        %1293 = vrot.lane.b32.xlu0 %v1268, 32
        %v1294 = vpop.permute.xlu0 %1293
        %1295 = vrot.lane.b32.xlu0 %v1269, 32
        %v1296 = vpop.permute.xlu0 %1295
        %1297 = vrot.lane.b32.xlu0 %v1270, 32
        %v1298 = vpop.permute.xlu0 %1297
        %1299 = vrot.lane.b32.xlu0 %v1271, 32
        %v1300 = vpop.permute.xlu0 %1299
        %1301 = vrot.lane.b32.xlu0 %v1272, 32
        %v1302 = vpop.permute.xlu0 %1301
        %1303 = vrot.lane.b32.xlu0 %v1273, 32
        %v1304 = vpop.permute.xlu0 %1303
        %1305 = vrot.lane.b32.xlu0 %v1274, 32
        %v1306 = vpop.permute.xlu0 %1305
        %v1307 = vmax.f32 %v1259, %v1276
        %v1308 = vmax.f32 %v1260, %v1278
        %v1309 = vmax.f32 %v1261, %v1280
        %v1310 = vmax.f32 %v1262, %v1282
        %v1311 = vmax.f32 %v1263, %v1284
        %v1312 = vmax.f32 %v1264, %v1286
        %v1313 = vmax.f32 %v1265, %v1288
        %v1314 = vmax.f32 %v1266, %v1290
        %v1315 = vmax.f32 %v1267, %v1292
        %v1316 = vmax.f32 %v1268, %v1294
        %v1317 = vmax.f32 %v1269, %v1296
        %v1318 = vmax.f32 %v1270, %v1298
        %v1319 = vmax.f32 %v1271, %v1300
        %v1320 = vmax.f32 %v1272, %v1302
        %v1321 = vmax.f32 %v1273, %v1304
        %v1322 = vmax.f32 %v1274, %v1306
        %1323 = vrot.lane.b32.xlu0 %v1307, 64
        %v1324 = vpop.permute.xlu0 %1323
        %1325 = vrot.lane.b32.xlu0 %v1308, 64
        %v1326 = vpop.permute.xlu0 %1325
        %1327 = vrot.lane.b32.xlu0 %v1309, 64
        %v1328 = vpop.permute.xlu0 %1327
        %1329 = vrot.lane.b32.xlu0 %v1310, 64
        %v1330 = vpop.permute.xlu0 %1329
        %1331 = vrot.lane.b32.xlu0 %v1311, 64
        %v1332 = vpop.permute.xlu0 %1331
        %1333 = vrot.lane.b32.xlu0 %v1312, 64
        %v1334 = vpop.permute.xlu0 %1333
        %1335 = vrot.lane.b32.xlu0 %v1313, 64
        %v1336 = vpop.permute.xlu0 %1335
        %1337 = vrot.lane.b32.xlu0 %v1314, 64
        %v1338 = vpop.permute.xlu0 %1337
        %1339 = vrot.lane.b32.xlu0 %v1315, 64
        %v1340 = vpop.permute.xlu0 %1339
        %1341 = vrot.lane.b32.xlu0 %v1316, 64
        %v1342 = vpop.permute.xlu0 %1341
        %1343 = vrot.lane.b32.xlu0 %v1317, 64
        %v1344 = vpop.permute.xlu0 %1343
        %1345 = vrot.lane.b32.xlu0 %v1318, 64
        %v1346 = vpop.permute.xlu0 %1345
        %1347 = vrot.lane.b32.xlu0 %v1319, 64
        %v1348 = vpop.permute.xlu0 %1347
        %1349 = vrot.lane.b32.xlu0 %v1320, 64
        %v1350 = vpop.permute.xlu0 %1349
        %1351 = vrot.lane.b32.xlu0 %v1321, 64
        %v1352 = vpop.permute.xlu0 %1351
        %1353 = vrot.lane.b32.xlu0 %v1322, 64
        %v1354 = vpop.permute.xlu0 %1353
        %v1355 = vmax.f32 %v1307, %v1324
        %v1356 = vmax.f32 %v1308, %v1326
        %v1357 = vmax.f32 %v1309, %v1328
        %v1358 = vmax.f32 %v1310, %v1330
        %v1359 = vmax.f32 %v1311, %v1332
        %v1360 = vmax.f32 %v1312, %v1334
        %v1361 = vmax.f32 %v1313, %v1336
        %v1362 = vmax.f32 %v1314, %v1338
        %v1363 = vmax.f32 %v1315, %v1340
        %v1364 = vmax.f32 %v1316, %v1342
        %v1365 = vmax.f32 %v1317, %v1344
        %v1366 = vmax.f32 %v1318, %v1346
        %v1367 = vmax.f32 %v1319, %v1348
        %v1368 = vmax.f32 %v1320, %v1350
        %v1369 = vmax.f32 %v1321, %v1352
        %v1370 = vmax.f32 %v1322, %v1354
        %v1371 = vld [vmem:[%s3] sm:$0xff]
        %v1372 = vld [vmem:[%s3 + $0x8] sm:$0xff]
        %v1373 = vld [vmem:[%s3 + $0x10] sm:$0xff]
        %v1374 = vld [vmem:[%s3 + $0x18] sm:$0xff]
        %v1375 = vld [vmem:[%s3 + $0x20] sm:$0xff]
        %v1376 = vld [vmem:[%s3 + $0x28] sm:$0xff]
        %v1377 = vld [vmem:[%s3 + $0x30] sm:$0xff]
        %v1378 = vld [vmem:[%s3 + $0x38] sm:$0xff]
        %v1379 = vld [vmem:[%s3 + $0x40] sm:$0xff]
        %v1380 = vld [vmem:[%s3 + $0x48] sm:$0xff]
        %v1381 = vld [vmem:[%s3 + $0x50] sm:$0xff]
        %v1382 = vld [vmem:[%s3 + $0x58] sm:$0xff]
        %v1383 = vld [vmem:[%s3 + $0x60] sm:$0xff]
        %v1384 = vld [vmem:[%s3 + $0x68] sm:$0xff]
        %v1385 = vld [vmem:[%s3 + $0x70] sm:$0xff]
        %v1386 = vld [vmem:[%s3 + $0x78] sm:$0xff]
        %v1387 = vld [vmem:[%s2] sm:$0xff]
        %v1388 = vld [vmem:[%s2 + $0x8] sm:$0xff]
        %v1389 = vld [vmem:[%s2 + $0x10] sm:$0xff]
        %v1390 = vld [vmem:[%s2 + $0x18] sm:$0xff]
        %v1391 = vld [vmem:[%s2 + $0x20] sm:$0xff]
        %v1392 = vld [vmem:[%s2 + $0x28] sm:$0xff]
        %v1393 = vld [vmem:[%s2 + $0x30] sm:$0xff]
        %v1394 = vld [vmem:[%s2 + $0x38] sm:$0xff]
        %v1395 = vld [vmem:[%s2 + $0x40] sm:$0xff]
        %v1396 = vld [vmem:[%s2 + $0x48] sm:$0xff]
        %v1397 = vld [vmem:[%s2 + $0x50] sm:$0xff]
        %v1398 = vld [vmem:[%s2 + $0x58] sm:$0xff]
        %v1399 = vld [vmem:[%s2 + $0x60] sm:$0xff]
        %v1400 = vld [vmem:[%s2 + $0x68] sm:$0xff]
        %v1401 = vld [vmem:[%s2 + $0x70] sm:$0xff]
        %v1402 = vld [vmem:[%s2 + $0x78] sm:$0xff]
        %1403 = vmatprep.subr.mxu0 0.0
        %1404 = vmatpush1.msra.mxu0 %v1387
        %1405 = vmatprep.subr.mxu0 0.0
        %1406 = vmatpush1.msra.mxu0 %v1388
        %1407 = vmatprep.subr.mxu0 0.0
        %1408 = vmatpush1.msra.mxu0 %v1389
        %1409 = vmatprep.subr.mxu0 0.0
        %1410 = vmatpush1.msra.mxu0 %v1390
        %1411 = vmatprep.subr.mxu0 0.0
        %1412 = vmatpush1.msra.mxu0 %v1391
        %1413 = vmatprep.subr.mxu0 0.0
        %1414 = vmatpush1.msra.mxu0 %v1392
        %1415 = vmatprep.subr.mxu0 0.0
        %1416 = vmatpush1.msra.mxu0 %v1393
        %1417 = vmatprep.subr.mxu0 0.0
        %1418 = vmatpush1.msra.mxu0 %v1394
        %1419 = vmatprep.subr.mxu0 0.0
        %1420 = vmatpush1.msra.mxu0 %v1395
        %1421 = vmatprep.subr.mxu0 0.0
        %1422 = vmatpush1.msra.mxu0 %v1396
        %1423 = vmatprep.subr.mxu0 0.0
        %1424 = vmatpush1.msra.mxu0 %v1397
        %1425 = vmatprep.subr.mxu0 0.0
        %1426 = vmatpush1.msra.mxu0 %v1398
        %1427 = vmatprep.subr.mxu0 0.0
        %1428 = vmatpush1.msra.mxu0 %v1399
        %1429 = vmatprep.subr.mxu0 0.0
        %1430 = vmatpush1.msra.mxu0 %v1400
        %1431 = vmatprep.subr.mxu0 0.0
        %1432 = vmatpush1.msra.mxu0 %v1401
        %1433 = vmatprep.subr.mxu0 0.0
        %1434 = vmatpush1.msra.mxu0 %v1402
        %1435 = vmatprep.subr.mxu0 0.0
        %1436 = vmatpush1.msra.mxu0 0.0
        %1437 = vmatprep.subr.mxu0 0.0
        %1438 = vmatpush1.msra.mxu0 0.0
        %1439 = vmatprep.subr.mxu0 0.0
        %1440 = vmatpush1.msra.mxu0 0.0
        %1441 = vmatprep.subr.mxu0 0.0
        %1442 = vmatpush1.msra.mxu0 0.0
        %1443 = vmatprep.subr.mxu0 0.0
        %1444 = vmatpush1.msra.mxu0 0.0
        %1445 = vmatprep.subr.mxu0 0.0
        %1446 = vmatpush1.msra.mxu0 0.0
        %1447 = vmatprep.subr.mxu0 0.0
        %1448 = vmatpush1.msra.mxu0 0.0
        %1449 = vmatprep.subr.mxu0 0.0
        %1450 = vmatpush1.msra.mxu0 0.0
        %1451 = vmatprep.subr.mxu0 0.0
        %1452 = vmatpush1.msra.mxu0 0.0
        %1453 = vmatprep.subr.mxu0 0.0
        %1454 = vmatpush1.msra.mxu0 0.0
        %1455 = vmatprep.subr.mxu0 0.0
        %1456 = vmatpush1.msra.mxu0 0.0
        %1457 = vmatprep.subr.mxu0 0.0
        %1458 = vmatpush1.msra.mxu0 0.0
        %1459 = vmatprep.subr.mxu0 0.0
        %1460 = vmatpush1.msra.mxu0 0.0
        %1461 = vmatprep.subr.mxu0 0.0
        %1462 = vmatpush1.msra.mxu0 0.0
        %1463 = vmatprep.subr.mxu0 0.0
        %1464 = vmatpush1.msra.mxu0 0.0
        %1465 = vmatprep.subr.mxu0 0.0
        %1466 = vmatpush1.msra.mxu0 0.0
        %1467 = vmatprep.mubr.f32.mxu0 0.0
        %1468 = vmatmul.mubr.f32.gmra.mrb[0].mxu0 %v858
        %v1469 = vpop.f32.mrb[0].mxu0
        %v1470 = vadd.f32 0.0, %v1469
        %v1471 = vpop.f32.mrb[0].mxu0
        %1472 = vmatprep.mubr.f32.mxu0 0.0
        %1473 = vmatmul.mubr.f32.gmra.mrb[0].mxu0 %v859
        %v1474 = vpop.f32.mrb[0].mxu0
        %v1475 = vadd.f32 0.0, %v1474
        %v1476 = vpop.f32.mrb[0].mxu0
        %1477 = vmatprep.mubr.f32.mxu0 0.0
        %1478 = vmatmul.mubr.f32.gmra.mrb[0].mxu0 %v860
        %v1479 = vpop.f32.mrb[0].mxu0
        %v1480 = vadd.f32 0.0, %v1479
        %v1481 = vpop.f32.mrb[0].mxu0
        %1482 = vmatprep.mubr.f32.mxu0 0.0
        %1483 = vmatmul.mubr.f32.gmra.mrb[0].mxu0 %v861
        %v1484 = vpop.f32.mrb[0].mxu0
        %v1485 = vadd.f32 0.0, %v1484
        %v1486 = vpop.f32.mrb[0].mxu0
        %1487 = vmatprep.mubr.f32.mxu0 0.0
        %1488 = vmatmul.mubr.f32.gmra.mrb[0].mxu0 %v862
        %v1489 = vpop.f32.mrb[0].mxu0
        %v1490 = vadd.f32 0.0, %v1489
        %v1491 = vpop.f32.mrb[0].mxu0
        %1492 = vmatprep.mubr.f32.mxu0 0.0
        %1493 = vmatmul.mubr.f32.gmra.mrb[0].mxu0 %v863
        %v1494 = vpop.f32.mrb[0].mxu0
        %v1495 = vadd.f32 0.0, %v1494
        %v1496 = vpop.f32.mrb[0].mxu0
        %1497 = vmatprep.mubr.f32.mxu0 0.0
        %1498 = vmatmul.mubr.f32.gmra.mrb[0].mxu0 %v864
        %v1499 = vpop.f32.mrb[0].mxu0
        %v1500 = vadd.f32 0.0, %v1499
        %v1501 = vpop.f32.mrb[0].mxu0
        %1502 = vmatprep.mubr.f32.mxu0 0.0
        %1503 = vmatmul.mubr.f32.gmra.mrb[0].mxu0 %v865
        %v1504 = vpop.f32.mrb[0].mxu0
        %v1505 = vadd.f32 0.0, %v1504
        %v1506 = vpop.f32.mrb[0].mxu0
        %1507 = vmatprep.mubr.f32.mxu0 0.0
        %1508 = vmatmul.mubr.f32.gmra.mrb[0].mxu0 %v866
        %v1509 = vpop.f32.mrb[0].mxu0
        %v1510 = vadd.f32 0.0, %v1509
        %v1511 = vpop.f32.mrb[0].mxu0
        %1512 = vmatprep.mubr.f32.mxu0 0.0
        %1513 = vmatmul.mubr.f32.gmra.mrb[0].mxu0 %v867
        %v1514 = vpop.f32.mrb[0].mxu0
        %v1515 = vadd.f32 0.0, %v1514
        %v1516 = vpop.f32.mrb[0].mxu0
        %1517 = vmatprep.mubr.f32.mxu0 0.0
        %1518 = vmatmul.mubr.f32.gmra.mrb[0].mxu0 %v868
        %v1519 = vpop.f32.mrb[0].mxu0
        %v1520 = vadd.f32 0.0, %v1519
        %v1521 = vpop.f32.mrb[0].mxu0
        %1522 = vmatprep.mubr.f32.mxu0 0.0
        %1523 = vmatmul.mubr.f32.gmra.mrb[0].mxu0 %v869
        %v1524 = vpop.f32.mrb[0].mxu0
        %v1525 = vadd.f32 0.0, %v1524
        %v1526 = vpop.f32.mrb[0].mxu0
        %1527 = vmatprep.mubr.f32.mxu0 0.0
        %1528 = vmatmul.mubr.f32.gmra.mrb[0].mxu0 %v870
        %v1529 = vpop.f32.mrb[0].mxu0
        %v1530 = vadd.f32 0.0, %v1529
        %v1531 = vpop.f32.mrb[0].mxu0
        %1532 = vmatprep.mubr.f32.mxu0 0.0
        %1533 = vmatmul.mubr.f32.gmra.mrb[0].mxu0 %v871
        %v1534 = vpop.f32.mrb[0].mxu0
        %v1535 = vadd.f32 0.0, %v1534
        %v1536 = vpop.f32.mrb[0].mxu0
        %1537 = vmatprep.mubr.f32.mxu0 0.0
        %1538 = vmatmul.mubr.f32.gmra.mrb[0].mxu0 %v872
        %v1539 = vpop.f32.mrb[0].mxu0
        %v1540 = vadd.f32 0.0, %v1539
        %v1541 = vpop.f32.mrb[0].mxu0
        %1542 = vmatprep.mubr.f32.mxu0 0.0
        %1543 = vmatmul.mubr.f32.gmra.mrb[0].mxu0 %v873
        %v1544 = vpop.f32.mrb[0].mxu0
        %v1545 = vadd.f32 0.0, %v1544
        %v1546 = vpop.f32.mrb[0].mxu0
        %1547 = vdwg.mxu0
        %1548 = vmatprep.subr.mxu0 0.0
        %1549 = vmatpush1.msra.mxu0 %v1371
        %1550 = vmatprep.subr.mxu0 0.0
        %1551 = vmatpush1.msra.mxu0 %v1372
        %1552 = vmatprep.subr.mxu0 0.0
        %1553 = vmatpush1.msra.mxu0 %v1373
        %1554 = vmatprep.subr.mxu0 0.0
        %1555 = vmatpush1.msra.mxu0 %v1374
        %1556 = vmatprep.subr.mxu0 0.0
        %1557 = vmatpush1.msra.mxu0 %v1375
        %1558 = vmatprep.subr.mxu0 0.0
        %1559 = vmatpush1.msra.mxu0 %v1376
        %1560 = vmatprep.subr.mxu0 0.0
        %1561 = vmatpush1.msra.mxu0 %v1377
        %1562 = vmatprep.subr.mxu0 0.0
        %1563 = vmatpush1.msra.mxu0 %v1378
        %1564 = vmatprep.subr.mxu0 0.0
        %1565 = vmatpush1.msra.mxu0 %v1379
        %1566 = vmatprep.subr.mxu0 0.0
        %1567 = vmatpush1.msra.mxu0 %v1380
        %1568 = vmatprep.subr.mxu0 0.0
        %1569 = vmatpush1.msra.mxu0 %v1381
        %1570 = vmatprep.subr.mxu0 0.0
        %1571 = vmatpush1.msra.mxu0 %v1382
        %1572 = vmatprep.subr.mxu0 0.0
        %1573 = vmatpush1.msra.mxu0 %v1383
        %1574 = vmatprep.subr.mxu0 0.0
        %1575 = vmatpush1.msra.mxu0 %v1384
        %1576 = vmatprep.subr.mxu0 0.0
        %1577 = vmatpush1.msra.mxu0 %v1385
        %1578 = vmatprep.subr.mxu0 0.0
        %1579 = vmatpush1.msra.mxu0 %v1386
        %1580 = vmatprep.subr.mxu0 0.0
        %1581 = vmatpush1.msra.mxu0 0.0
        %1582 = vmatprep.subr.mxu0 0.0
        %1583 = vmatpush1.msra.mxu0 0.0
        %1584 = vmatprep.subr.mxu0 0.0
        %1585 = vmatpush1.msra.mxu0 0.0
        %1586 = vmatprep.subr.mxu0 0.0
        %1587 = vmatpush1.msra.mxu0 0.0
        %1588 = vmatprep.subr.mxu0 0.0
        %1589 = vmatpush1.msra.mxu0 0.0
        %1590 = vmatprep.subr.mxu0 0.0
        %1591 = vmatpush1.msra.mxu0 0.0
        %1592 = vmatprep.subr.mxu0 0.0
        %1593 = vmatpush1.msra.mxu0 0.0
        %1594 = vmatprep.subr.mxu0 0.0
        %1595 = vmatpush1.msra.mxu0 0.0
        %1596 = vmatprep.subr.mxu0 0.0
        %1597 = vmatpush1.msra.mxu0 0.0
        %1598 = vmatprep.subr.mxu0 0.0
        %1599 = vmatpush1.msra.mxu0 0.0
        %1600 = vmatprep.subr.mxu0 0.0
        %1601 = vmatpush1.msra.mxu0 0.0
        %1602 = vmatprep.subr.mxu0 0.0
        %1603 = vmatpush1.msra.mxu0 0.0
        %1604 = vmatprep.subr.mxu0 0.0
        %1605 = vmatpush1.msra.mxu0 0.0
        %1606 = vmatprep.subr.mxu0 0.0
        %1607 = vmatpush1.msra.mxu0 0.0
        %1608 = vmatprep.subr.mxu0 0.0
        %1609 = vmatpush1.msra.mxu0 0.0
        %1610 = vmatprep.subr.mxu0 0.0
        %1611 = vmatpush1.msra.mxu0 0.0
        %1612 = vmatprep.mubr.f32.mxu0 0.0
        %1613 = vmatmul.mubr.f32.gmra.mrb[0].mxu0 %v858
        %v1614 = vpop.f32.mrb[0].mxu0
        %v1615 = vadd.f32 0.0, %v1614
        %v1616 = vpop.f32.mrb[0].mxu0
        %1617 = vmatprep.mubr.f32.mxu0 0.0
        %1618 = vmatmul.mubr.f32.gmra.mrb[0].mxu0 %v859
        %v1619 = vpop.f32.mrb[0].mxu0
        %v1620 = vadd.f32 0.0, %v1619
        %v1621 = vpop.f32.mrb[0].mxu0
        %1622 = vmatprep.mubr.f32.mxu0 0.0
        %1623 = vmatmul.mubr.f32.gmra.mrb[0].mxu0 %v860
        %v1624 = vpop.f32.mrb[0].mxu0
        %v1625 = vadd.f32 0.0, %v1624
        %v1626 = vpop.f32.mrb[0].mxu0
        %1627 = vmatprep.mubr.f32.mxu0 0.0
        %1628 = vmatmul.mubr.f32.gmra.mrb[0].mxu0 %v861
        %v1629 = vpop.f32.mrb[0].mxu0
        %v1630 = vadd.f32 0.0, %v1629
        %v1631 = vpop.f32.mrb[0].mxu0
        %1632 = vmatprep.mubr.f32.mxu0 0.0
        %1633 = vmatmul.mubr.f32.gmra.mrb[0].mxu0 %v862
        %v1634 = vpop.f32.mrb[0].mxu0
        %v1635 = vadd.f32 0.0, %v1634
        %v1636 = vpop.f32.mrb[0].mxu0
        %1637 = vmatprep.mubr.f32.mxu0 0.0
        %1638 = vmatmul.mubr.f32.gmra.mrb[0].mxu0 %v863
        %v1639 = vpop.f32.mrb[0].mxu0
        %v1640 = vadd.f32 0.0, %v1639
        %v1641 = vpop.f32.mrb[0].mxu0
        %1642 = vmatprep.mubr.f32.mxu0 0.0
        %1643 = vmatmul.mubr.f32.gmra.mrb[0].mxu0 %v864
        %v1644 = vpop.f32.mrb[0].mxu0
        %v1645 = vadd.f32 0.0, %v1644
        %v1646 = vpop.f32.mrb[0].mxu0
        %1647 = vmatprep.mubr.f32.mxu0 0.0
        %1648 = vmatmul.mubr.f32.gmra.mrb[0].mxu0 %v865
        %v1649 = vpop.f32.mrb[0].mxu0
        %v1650 = vadd.f32 0.0, %v1649
        %v1651 = vpop.f32.mrb[0].mxu0
        %1652 = vmatprep.mubr.f32.mxu0 0.0
        %1653 = vmatmul.mubr.f32.gmra.mrb[0].mxu0 %v866
        %v1654 = vpop.f32.mrb[0].mxu0
        %v1655 = vadd.f32 0.0, %v1654
        %v1656 = vpop.f32.mrb[0].mxu0
        %1657 = vmatprep.mubr.f32.mxu0 0.0
        %1658 = vmatmul.mubr.f32.gmra.mrb[0].mxu0 %v867
        %v1659 = vpop.f32.mrb[0].mxu0
        %v1660 = vadd.f32 0.0, %v1659
        %v1661 = vpop.f32.mrb[0].mxu0
        %1662 = vmatprep.mubr.f32.mxu0 0.0
        %1663 = vmatmul.mubr.f32.gmra.mrb[0].mxu0 %v868
        %v1664 = vpop.f32.mrb[0].mxu0
        %v1665 = vadd.f32 0.0, %v1664
        %v1666 = vpop.f32.mrb[0].mxu0
        %1667 = vmatprep.mubr.f32.mxu0 0.0
        %1668 = vmatmul.mubr.f32.gmra.mrb[0].mxu0 %v869
        %v1669 = vpop.f32.mrb[0].mxu0
        %v1670 = vadd.f32 0.0, %v1669
        %v1671 = vpop.f32.mrb[0].mxu0
        %1672 = vmatprep.mubr.f32.mxu0 0.0
        %1673 = vmatmul.mubr.f32.gmra.mrb[0].mxu0 %v870
        %v1674 = vpop.f32.mrb[0].mxu0
        %v1675 = vadd.f32 0.0, %v1674
        %v1676 = vpop.f32.mrb[0].mxu0
        %1677 = vmatprep.mubr.f32.mxu0 0.0
        %1678 = vmatmul.mubr.f32.gmra.mrb[0].mxu0 %v871
        %v1679 = vpop.f32.mrb[0].mxu0
        %v1680 = vadd.f32 0.0, %v1679
        %v1681 = vpop.f32.mrb[0].mxu0
        %1682 = vmatprep.mubr.f32.mxu0 0.0
        %1683 = vmatmul.mubr.f32.gmra.mrb[0].mxu0 %v872
        %v1684 = vpop.f32.mrb[0].mxu0
        %v1685 = vadd.f32 0.0, %v1684
        %v1686 = vpop.f32.mrb[0].mxu0
        %1687 = vmatprep.mubr.f32.mxu0 0.0
        %1688 = vmatmul.mubr.f32.gmra.mrb[0].mxu0 %v873
        %v1689 = vpop.f32.mrb[0].mxu0
        %v1690 = vadd.f32 0.0, %v1689
        %v1691 = vpop.f32.mrb[0].mxu0
        %1692 = vdwg.mxu0
        %v1693 = vld [vmem:[%s6] sm:$0x1]
        %v1694 = vld [vmem:[%s4] sm:$0xff]
        %v1695 = vld [vmem:[%s4 + $0x8] sm:$0xff]
        %v1696 = vld [vmem:[%s4 + $0x10] sm:$0xff]
        %v1697 = vld [vmem:[%s4 + $0x18] sm:$0xff]
        %v1698 = vld [vmem:[%s4 + $0x20] sm:$0xff]
        %v1699 = vld [vmem:[%s4 + $0x28] sm:$0xff]
        %v1700 = vld [vmem:[%s4 + $0x30] sm:$0xff]
        %v1701 = vld [vmem:[%s4 + $0x38] sm:$0xff]
        %v1702 = vld [vmem:[%s4 + $0x40] sm:$0xff]
        %v1703 = vld [vmem:[%s4 + $0x48] sm:$0xff]
        %v1704 = vld [vmem:[%s4 + $0x50] sm:$0xff]
        %v1705 = vld [vmem:[%s4 + $0x58] sm:$0xff]
        %v1706 = vld [vmem:[%s4 + $0x60] sm:$0xff]
        %v1707 = vld [vmem:[%s4 + $0x68] sm:$0xff]
        %v1708 = vld [vmem:[%s4 + $0x70] sm:$0xff]
        %v1709 = vld [vmem:[%s4 + $0x78] sm:$0xff]
        %v1711 = vlaneseq
        %v1712 = vshrl.u32 %v1711, 7
        %v1713 = vsub.s32 0, %v1712
        %v1714 = vrot.slane %v1693, %v1713
        %1716 = vmatprep.subr.mxu0 0.0
        %1717 = vmatpush1.msra.mxu0 %v1694
        %1718 = vmatprep.subr.mxu0 0.0
        %1719 = vmatpush1.msra.mxu0 %v1695
        %1720 = vmatprep.subr.mxu0 0.0
        %1721 = vmatpush1.msra.mxu0 %v1696
        %1722 = vmatprep.subr.mxu0 0.0
        %1723 = vmatpush1.msra.mxu0 %v1697
        %1724 = vmatprep.subr.mxu0 0.0
        %1725 = vmatpush1.msra.mxu0 %v1698
        %1726 = vmatprep.subr.mxu0 0.0
        %1727 = vmatpush1.msra.mxu0 %v1699
        %1728 = vmatprep.subr.mxu0 0.0
        %1729 = vmatpush1.msra.mxu0 %v1700
        %1730 = vmatprep.subr.mxu0 0.0
        %1731 = vmatpush1.msra.mxu0 %v1701
        %1732 = vmatprep.subr.mxu0 0.0
        %1733 = vmatpush1.msra.mxu0 %v1702
        %1734 = vmatprep.subr.mxu0 0.0
        %1735 = vmatpush1.msra.mxu0 %v1703
        %1736 = vmatprep.subr.mxu0 0.0
        %1737 = vmatpush1.msra.mxu0 %v1704
        %1738 = vmatprep.subr.mxu0 0.0
        %1739 = vmatpush1.msra.mxu0 %v1705
        %1740 = vmatprep.subr.mxu0 0.0
        %1741 = vmatpush1.msra.mxu0 %v1706
        %1742 = vmatprep.subr.mxu0 0.0
        %1743 = vmatpush1.msra.mxu0 %v1707
        %1744 = vmatprep.subr.mxu0 0.0
        %1745 = vmatpush1.msra.mxu0 %v1708
        %1746 = vmatprep.subr.mxu0 0.0
        %1747 = vmatpush1.msra.mxu0 %v1709
        %1748 = vmatprep.subr.mxu0 0.0
        %1749 = vmatpush1.msra.mxu0 0.0
        %1750 = vmatprep.subr.mxu0 0.0
        %1751 = vmatpush1.msra.mxu0 0.0
        %1752 = vmatprep.subr.mxu0 0.0
        %1753 = vmatpush1.msra.mxu0 0.0
        %1754 = vmatprep.subr.mxu0 0.0
        %1755 = vmatpush1.msra.mxu0 0.0
        %1756 = vmatprep.subr.mxu0 0.0
        %1757 = vmatpush1.msra.mxu0 0.0
        %1758 = vmatprep.subr.mxu0 0.0
        %1759 = vmatpush1.msra.mxu0 0.0
        %1760 = vmatprep.subr.mxu0 0.0
        %1761 = vmatpush1.msra.mxu0 0.0
        %1762 = vmatprep.subr.mxu0 0.0
        %1763 = vmatpush1.msra.mxu0 0.0
        %1764 = vmatprep.subr.mxu0 0.0
        %1765 = vmatpush1.msra.mxu0 0.0
        %1766 = vmatprep.subr.mxu0 0.0
        %1767 = vmatpush1.msra.mxu0 0.0
        %1768 = vmatprep.subr.mxu0 0.0
        %1769 = vmatpush1.msra.mxu0 0.0
        %1770 = vmatprep.subr.mxu0 0.0
        %1771 = vmatpush1.msra.mxu0 0.0
        %1772 = vmatprep.subr.mxu0 0.0
        %1773 = vmatpush1.msra.mxu0 0.0
        %1774 = vmatprep.subr.mxu0 0.0
        %1775 = vmatpush1.msra.mxu0 0.0
        %1776 = vmatprep.subr.mxu0 0.0
        %1777 = vmatpush1.msra.mxu0 0.0
        %1778 = vmatprep.subr.mxu0 0.0
        %1779 = vmatpush1.msra.mxu0 0.0
        %1780 = vmatprep.mubr.f32.mxu0 0.0
        %1781 = vmatmul.mubr.f32.gmra.mrb[0].mxu0 %v1355
        %v1782 = vpop.f32.mrb[0].mxu0
        %v1783 = vadd.f32 %v1714, %v1782
        %v1784 = vpop.f32.mrb[0].mxu0
        %1785 = vmatprep.mubr.f32.mxu0 0.0
        %1786 = vmatmul.mubr.f32.gmra.mrb[0].mxu0 %v1356
        %v1787 = vpop.f32.mrb[0].mxu0
        %v1788 = vadd.f32 %v1714, %v1787
        %v1789 = vpop.f32.mrb[0].mxu0
        %1790 = vmatprep.mubr.f32.mxu0 0.0
        %1791 = vmatmul.mubr.f32.gmra.mrb[0].mxu0 %v1357
        %v1792 = vpop.f32.mrb[0].mxu0
        %v1793 = vadd.f32 %v1714, %v1792
        %v1794 = vpop.f32.mrb[0].mxu0
        %1795 = vmatprep.mubr.f32.mxu0 0.0
        %1796 = vmatmul.mubr.f32.gmra.mrb[0].mxu0 %v1358
        %v1797 = vpop.f32.mrb[0].mxu0
        %v1798 = vadd.f32 %v1714, %v1797
        %v1799 = vpop.f32.mrb[0].mxu0
        %1800 = vmatprep.mubr.f32.mxu0 0.0
        %1801 = vmatmul.mubr.f32.gmra.mrb[0].mxu0 %v1359
        %v1802 = vpop.f32.mrb[0].mxu0
        %v1803 = vadd.f32 %v1714, %v1802
        %v1804 = vpop.f32.mrb[0].mxu0
        %1805 = vmatprep.mubr.f32.mxu0 0.0
        %1806 = vmatmul.mubr.f32.gmra.mrb[0].mxu0 %v1360
        %v1807 = vpop.f32.mrb[0].mxu0
        %v1808 = vadd.f32 %v1714, %v1807
        %v1809 = vpop.f32.mrb[0].mxu0
        %1810 = vmatprep.mubr.f32.mxu0 0.0
        %1811 = vmatmul.mubr.f32.gmra.mrb[0].mxu0 %v1361
        %v1812 = vpop.f32.mrb[0].mxu0
        %v1813 = vadd.f32 %v1714, %v1812
        %v1814 = vpop.f32.mrb[0].mxu0
        %1815 = vmatprep.mubr.f32.mxu0 0.0
        %1816 = vmatmul.mubr.f32.gmra.mrb[0].mxu0 %v1362
        %v1817 = vpop.f32.mrb[0].mxu0
        %v1818 = vadd.f32 %v1714, %v1817
        %v1819 = vpop.f32.mrb[0].mxu0
        %1820 = vmatprep.mubr.f32.mxu0 0.0
        %1821 = vmatmul.mubr.f32.gmra.mrb[0].mxu0 %v1363
        %v1822 = vpop.f32.mrb[0].mxu0
        %v1823 = vadd.f32 %v1714, %v1822
        %v1824 = vpop.f32.mrb[0].mxu0
        %1825 = vmatprep.mubr.f32.mxu0 0.0
        %1826 = vmatmul.mubr.f32.gmra.mrb[0].mxu0 %v1364
        %v1827 = vpop.f32.mrb[0].mxu0
        %v1828 = vadd.f32 %v1714, %v1827
        %v1829 = vpop.f32.mrb[0].mxu0
        %1830 = vmatprep.mubr.f32.mxu0 0.0
        %1831 = vmatmul.mubr.f32.gmra.mrb[0].mxu0 %v1365
        %v1832 = vpop.f32.mrb[0].mxu0
        %v1833 = vadd.f32 %v1714, %v1832
        %v1834 = vpop.f32.mrb[0].mxu0
        %1835 = vmatprep.mubr.f32.mxu0 0.0
        %1836 = vmatmul.mubr.f32.gmra.mrb[0].mxu0 %v1366
        %v1837 = vpop.f32.mrb[0].mxu0
        %v1838 = vadd.f32 %v1714, %v1837
        %v1839 = vpop.f32.mrb[0].mxu0
        %1840 = vmatprep.mubr.f32.mxu0 0.0
        %1841 = vmatmul.mubr.f32.gmra.mrb[0].mxu0 %v1367
        %v1842 = vpop.f32.mrb[0].mxu0
        %v1843 = vadd.f32 %v1714, %v1842
        %v1844 = vpop.f32.mrb[0].mxu0
        %1845 = vmatprep.mubr.f32.mxu0 0.0
        %1846 = vmatmul.mubr.f32.gmra.mrb[0].mxu0 %v1368
        %v1847 = vpop.f32.mrb[0].mxu0
        %v1848 = vadd.f32 %v1714, %v1847
        %v1849 = vpop.f32.mrb[0].mxu0
        %1850 = vmatprep.mubr.f32.mxu0 0.0
        %1851 = vmatmul.mubr.f32.gmra.mrb[0].mxu0 %v1369
        %v1852 = vpop.f32.mrb[0].mxu0
        %v1853 = vadd.f32 %v1714, %v1852
        %v1854 = vpop.f32.mrb[0].mxu0
        %1855 = vmatprep.mubr.f32.mxu0 0.0
        %1856 = vmatmul.mubr.f32.gmra.mrb[0].mxu0 %v1370
        %v1857 = vpop.f32.mrb[0].mxu0
        %v1858 = vadd.f32 %v1714, %v1857
        %v1859 = vpop.f32.mrb[0].mxu0
        %1860 = vdwg.mxu0
        %v1861 = vmax.f32 %v1783, 0.0
        %v1862 = vmax.f32 %v1788, 0.0
        %v1863 = vmax.f32 %v1793, 0.0
        %v1864 = vmax.f32 %v1798, 0.0
        %v1865 = vmax.f32 %v1803, 0.0
        %v1866 = vmax.f32 %v1808, 0.0
        %v1867 = vmax.f32 %v1813, 0.0
        %v1868 = vmax.f32 %v1818, 0.0
        %v1869 = vmax.f32 %v1823, 0.0
        %v1870 = vmax.f32 %v1828, 0.0
        %v1871 = vmax.f32 %v1833, 0.0
        %v1872 = vmax.f32 %v1838, 0.0
        %v1873 = vmax.f32 %v1843, 0.0
        %v1874 = vmax.f32 %v1848, 0.0
        %v1875 = vmax.f32 %v1853, 0.0
        %v1876 = vmax.f32 %v1858, 0.0
        %v1877 = vld [vmem:[%s5] sm:$0xff]
        %v1878 = vld [vmem:[%s5 + $0x8] sm:$0xff]
        %vm1879 = vcmask 130048
        %v1881 = vsel %vm1879, %v1470, 0
        %v1884 = vsel %vm1879, %v1475, 0
        %v1887 = vsel %vm1879, %v1480, 0
        %v1890 = vsel %vm1879, %v1485, 0
        %v1893 = vsel %vm1879, %v1490, 0
        %v1896 = vsel %vm1879, %v1495, 0
        %v1899 = vsel %vm1879, %v1500, 0
        %v1902 = vsel %vm1879, %v1505, 0
        %v1905 = vsel %vm1879, %v1510, 0
        %v1908 = vsel %vm1879, %v1515, 0
        %v1911 = vsel %vm1879, %v1520, 0
        %v1914 = vsel %vm1879, %v1525, 0
        %v1917 = vsel %vm1879, %v1530, 0
        %v1920 = vsel %vm1879, %v1535, 0
        %v1923 = vsel %vm1879, %v1540, 0
        %v1926 = vsel %vm1879, %v1545, 0
        %1928 = vmatprep.subr.mxu0 0.0
        %1929 = vmatpush1.msra.mxu0 %v1877
        %1930 = vmatprep.subr.mxu0 0.0
        %1931 = vmatpush1.msra.mxu0 %v1878
        %1932 = vmatprep.subr.mxu0 0.0
        %1933 = vmatpush1.msra.mxu0 0.0
        %1934 = vmatprep.subr.mxu0 0.0
        %1935 = vmatpush1.msra.mxu0 0.0
        %1936 = vmatprep.subr.mxu0 0.0
        %1937 = vmatpush1.msra.mxu0 0.0
        %1938 = vmatprep.subr.mxu0 0.0
        %1939 = vmatpush1.msra.mxu0 0.0
        %1940 = vmatprep.subr.mxu0 0.0
        %1941 = vmatpush1.msra.mxu0 0.0
        %1942 = vmatprep.subr.mxu0 0.0
        %1943 = vmatpush1.msra.mxu0 0.0
        %1944 = vmatprep.subr.mxu0 0.0
        %1945 = vmatpush1.msra.mxu0 0.0
        %1946 = vmatprep.subr.mxu0 0.0
        %1947 = vmatpush1.msra.mxu0 0.0
        %1948 = vmatprep.subr.mxu0 0.0
        %1949 = vmatpush1.msra.mxu0 0.0
        %1950 = vmatprep.subr.mxu0 0.0
        %1951 = vmatpush1.msra.mxu0 0.0
        %1952 = vmatprep.subr.mxu0 0.0
        %1953 = vmatpush1.msra.mxu0 0.0
        %1954 = vmatprep.subr.mxu0 0.0
        %1955 = vmatpush1.msra.mxu0 0.0
        %1956 = vmatprep.subr.mxu0 0.0
        %1957 = vmatpush1.msra.mxu0 0.0
        %1958 = vmatprep.subr.mxu0 0.0
        %1959 = vmatpush1.msra.mxu0 0.0
        %1960 = vmatprep.subr.mxu0 0.0
        %1961 = vmatpush1.msra.mxu0 0.0
        %1962 = vmatprep.subr.mxu0 0.0
        %1963 = vmatpush1.msra.mxu0 0.0
        %1964 = vmatprep.subr.mxu0 0.0
        %1965 = vmatpush1.msra.mxu0 0.0
        %1966 = vmatprep.subr.mxu0 0.0
        %1967 = vmatpush1.msra.mxu0 0.0
        %1968 = vmatprep.subr.mxu0 0.0
        %1969 = vmatpush1.msra.mxu0 0.0
        %1970 = vmatprep.subr.mxu0 0.0
        %1971 = vmatpush1.msra.mxu0 0.0
        %1972 = vmatprep.subr.mxu0 0.0
        %1973 = vmatpush1.msra.mxu0 0.0
        %1974 = vmatprep.subr.mxu0 0.0
        %1975 = vmatpush1.msra.mxu0 0.0
        %1976 = vmatprep.subr.mxu0 0.0
        %1977 = vmatpush1.msra.mxu0 0.0
        %1978 = vmatprep.subr.mxu0 0.0
        %1979 = vmatpush1.msra.mxu0 0.0
        %1980 = vmatprep.subr.mxu0 0.0
        %1981 = vmatpush1.msra.mxu0 0.0
        %1982 = vmatprep.subr.mxu0 0.0
        %1983 = vmatpush1.msra.mxu0 0.0
        %1984 = vmatprep.subr.mxu0 0.0
        %1985 = vmatpush1.msra.mxu0 0.0
        %1986 = vmatprep.subr.mxu0 0.0
        %1987 = vmatpush1.msra.mxu0 0.0
        %1988 = vmatprep.subr.mxu0 0.0
        %1989 = vmatpush1.msra.mxu0 0.0
        %1990 = vmatprep.subr.mxu0 0.0
        %1991 = vmatpush1.msra.mxu0 0.0
        %1992 = vmatprep.mubr.f32.mxu0 0.0
        %1993 = vmatmul.mubr.f32.gmra.mrb[0].mxu0 %v1881
        %v1994 = vpop.f32.mrb[0].mxu0
        %v1995 = vadd.f32 %v1714, %v1994
        %v1996 = vpop.f32.mrb[0].mxu0
        %1997 = vmatprep.mubr.f32.mxu0 0.0
        %1998 = vmatmul.mubr.f32.gmra.mrb[0].mxu0 %v1884
        %v1999 = vpop.f32.mrb[0].mxu0
        %v2000 = vadd.f32 %v1714, %v1999
        %v2001 = vpop.f32.mrb[0].mxu0
        %2002 = vmatprep.mubr.f32.mxu0 0.0
        %2003 = vmatmul.mubr.f32.gmra.mrb[0].mxu0 %v1887
        %v2004 = vpop.f32.mrb[0].mxu0
        %v2005 = vadd.f32 %v1714, %v2004
        %v2006 = vpop.f32.mrb[0].mxu0
        %2007 = vmatprep.mubr.f32.mxu0 0.0
        %2008 = vmatmul.mubr.f32.gmra.mrb[0].mxu0 %v1890
        %v2009 = vpop.f32.mrb[0].mxu0
        %v2010 = vadd.f32 %v1714, %v2009
        %v2011 = vpop.f32.mrb[0].mxu0
        %2012 = vmatprep.mubr.f32.mxu0 0.0
        %2013 = vmatmul.mubr.f32.gmra.mrb[0].mxu0 %v1893
        %v2014 = vpop.f32.mrb[0].mxu0
        %v2015 = vadd.f32 %v1714, %v2014
        %v2016 = vpop.f32.mrb[0].mxu0
        %2017 = vmatprep.mubr.f32.mxu0 0.0
        %2018 = vmatmul.mubr.f32.gmra.mrb[0].mxu0 %v1896
        %v2019 = vpop.f32.mrb[0].mxu0
        %v2020 = vadd.f32 %v1714, %v2019
        %v2021 = vpop.f32.mrb[0].mxu0
        %2022 = vmatprep.mubr.f32.mxu0 0.0
        %2023 = vmatmul.mubr.f32.gmra.mrb[0].mxu0 %v1899
        %v2024 = vpop.f32.mrb[0].mxu0
        %v2025 = vadd.f32 %v1714, %v2024
        %v2026 = vpop.f32.mrb[0].mxu0
        %2027 = vmatprep.mubr.f32.mxu0 0.0
        %2028 = vmatmul.mubr.f32.gmra.mrb[0].mxu0 %v1902
        %v2029 = vpop.f32.mrb[0].mxu0
        %v2030 = vadd.f32 %v1714, %v2029
        %v2031 = vpop.f32.mrb[0].mxu0
        %2032 = vmatprep.mubr.f32.mxu0 0.0
        %2033 = vmatmul.mubr.f32.gmra.mrb[0].mxu0 %v1905
        %v2034 = vpop.f32.mrb[0].mxu0
        %v2035 = vadd.f32 %v1714, %v2034
        %v2036 = vpop.f32.mrb[0].mxu0
        %2037 = vmatprep.mubr.f32.mxu0 0.0
        %2038 = vmatmul.mubr.f32.gmra.mrb[0].mxu0 %v1908
        %v2039 = vpop.f32.mrb[0].mxu0
        %v2040 = vadd.f32 %v1714, %v2039
        %v2041 = vpop.f32.mrb[0].mxu0
        %2042 = vmatprep.mubr.f32.mxu0 0.0
        %2043 = vmatmul.mubr.f32.gmra.mrb[0].mxu0 %v1911
        %v2044 = vpop.f32.mrb[0].mxu0
        %v2045 = vadd.f32 %v1714, %v2044
        %v2046 = vpop.f32.mrb[0].mxu0
        %2047 = vmatprep.mubr.f32.mxu0 0.0
        %2048 = vmatmul.mubr.f32.gmra.mrb[0].mxu0 %v1914
        %v2049 = vpop.f32.mrb[0].mxu0
        %v2050 = vadd.f32 %v1714, %v2049
        %v2051 = vpop.f32.mrb[0].mxu0
        %2052 = vmatprep.mubr.f32.mxu0 0.0
        %2053 = vmatmul.mubr.f32.gmra.mrb[0].mxu0 %v1917
        %v2054 = vpop.f32.mrb[0].mxu0
        %v2055 = vadd.f32 %v1714, %v2054
        %v2056 = vpop.f32.mrb[0].mxu0
        %2057 = vmatprep.mubr.f32.mxu0 0.0
        %2058 = vmatmul.mubr.f32.gmra.mrb[0].mxu0 %v1920
        %v2059 = vpop.f32.mrb[0].mxu0
        %v2060 = vadd.f32 %v1714, %v2059
        %v2061 = vpop.f32.mrb[0].mxu0
        %2062 = vmatprep.mubr.f32.mxu0 0.0
        %2063 = vmatmul.mubr.f32.gmra.mrb[0].mxu0 %v1923
        %v2064 = vpop.f32.mrb[0].mxu0
        %v2065 = vadd.f32 %v1714, %v2064
        %v2066 = vpop.f32.mrb[0].mxu0
        %2067 = vmatprep.mubr.f32.mxu0 0.0
        %2068 = vmatmul.mubr.f32.gmra.mrb[0].mxu0 %v1926
        %v2069 = vpop.f32.mrb[0].mxu0
        %v2070 = vadd.f32 %v1714, %v2069
        %v2071 = vpop.f32.mrb[0].mxu0
        %2072 = vdwg.mxu0
        %v2073 = vmax.f32 %v1995, 0.0
        %v2074 = vmax.f32 %v2000, 0.0
        %v2075 = vmax.f32 %v2005, 0.0
        %v2076 = vmax.f32 %v2010, 0.0
        %v2077 = vmax.f32 %v2015, 0.0
        %v2078 = vmax.f32 %v2020, 0.0
        %v2079 = vmax.f32 %v2025, 0.0
        %v2080 = vmax.f32 %v2030, 0.0
        %v2081 = vmax.f32 %v2035, 0.0
        %v2082 = vmax.f32 %v2040, 0.0
        %v2083 = vmax.f32 %v2045, 0.0
        %v2084 = vmax.f32 %v2050, 0.0
        %v2085 = vmax.f32 %v2055, 0.0
        %v2086 = vmax.f32 %v2060, 0.0
        %v2087 = vmax.f32 %v2065, 0.0
        %v2088 = vmax.f32 %v2070, 0.0
        %v2089 = vadd.f32 %v1861, %v2073
        %v2090 = vadd.f32 %v1862, %v2074
        %v2091 = vadd.f32 %v1863, %v2075
        %v2092 = vadd.f32 %v1864, %v2076
        %v2093 = vadd.f32 %v1865, %v2077
        %v2094 = vadd.f32 %v1866, %v2078
        %v2095 = vadd.f32 %v1867, %v2079
        %v2096 = vadd.f32 %v1868, %v2080
        %v2097 = vadd.f32 %v1869, %v2081
        %v2098 = vadd.f32 %v1870, %v2082
        %v2099 = vadd.f32 %v1871, %v2083
        %v2100 = vadd.f32 %v1872, %v2084
        %v2101 = vadd.f32 %v1873, %v2085
        %v2102 = vadd.f32 %v1874, %v2086
        %v2103 = vadd.f32 %v1875, %v2087
        %v2104 = vadd.f32 %v1876, %v2088
        %v2105 = vld [vmem:[#allocation5] sm:$0xf]
        %v2106 = vld [vmem:[#allocation7] sm:$0x1]
        %v2107 = vmul.f32 %v2106, 2.0
        %v2109 = vlaneseq
        %v2110 = vshrl.u32 %v2109, 7
        %v2111 = vsub.s32 0, %v2110
        %v2112 = vrot.slane %v2107, %v2111
        %vm2114 = vcmask 31744
        %v2116 = vsel %vm2114, %v2089, 0
        %v2119 = vsel %vm2114, %v2090, 0
        %v2122 = vsel %vm2114, %v2091, 0
        %v2125 = vsel %vm2114, %v2092, 0
        %v2128 = vsel %vm2114, %v2093, 0
        %v2131 = vsel %vm2114, %v2094, 0
        %v2134 = vsel %vm2114, %v2095, 0
        %v2137 = vsel %vm2114, %v2096, 0
        %v2140 = vsel %vm2114, %v2097, 0
        %v2143 = vsel %vm2114, %v2098, 0
        %v2146 = vsel %vm2114, %v2099, 0
        %v2149 = vsel %vm2114, %v2100, 0
        %v2152 = vsel %vm2114, %v2101, 0
        %v2155 = vsel %vm2114, %v2102, 0
        %v2158 = vsel %vm2114, %v2103, 0
        %v2161 = vsel %vm2114, %v2104, 0
        %vm2163 = vcmask 1043456
        %v2165 = vsel %vm2163, %v2105, 0
        %2167 = vmatprep.subr.mxu0 0.0
        %2168 = vmatpush1.msra.mxu0 %v2165
        %2169 = vmatprep.subr.mxu0 0.0
        %2170 = vmatpush1.msra.mxu0 0.0
        %2171 = vmatprep.subr.mxu0 0.0
        %2172 = vmatpush1.msra.mxu0 0.0
        %2173 = vmatprep.subr.mxu0 0.0
        %2174 = vmatpush1.msra.mxu0 0.0
        %2175 = vmatprep.subr.mxu0 0.0
        %2176 = vmatpush1.msra.mxu0 0.0
        %2177 = vmatprep.subr.mxu0 0.0
        %2178 = vmatpush1.msra.mxu0 0.0
        %2179 = vmatprep.subr.mxu0 0.0
        %2180 = vmatpush1.msra.mxu0 0.0
        %2181 = vmatprep.subr.mxu0 0.0
        %2182 = vmatpush1.msra.mxu0 0.0
        %2183 = vmatprep.subr.mxu0 0.0
        %2184 = vmatpush1.msra.mxu0 0.0
        %2185 = vmatprep.subr.mxu0 0.0
        %2186 = vmatpush1.msra.mxu0 0.0
        %2187 = vmatprep.subr.mxu0 0.0
        %2188 = vmatpush1.msra.mxu0 0.0
        %2189 = vmatprep.subr.mxu0 0.0
        %2190 = vmatpush1.msra.mxu0 0.0
        %2191 = vmatprep.subr.mxu0 0.0
        %2192 = vmatpush1.msra.mxu0 0.0
        %2193 = vmatprep.subr.mxu0 0.0
        %2194 = vmatpush1.msra.mxu0 0.0
        %2195 = vmatprep.subr.mxu0 0.0
        %2196 = vmatpush1.msra.mxu0 0.0
        %2197 = vmatprep.subr.mxu0 0.0
        %2198 = vmatpush1.msra.mxu0 0.0
        %2199 = vmatprep.subr.mxu0 0.0
        %2200 = vmatpush1.msra.mxu0 0.0
        %2201 = vmatprep.subr.mxu0 0.0
        %2202 = vmatpush1.msra.mxu0 0.0
        %2203 = vmatprep.subr.mxu0 0.0
        %2204 = vmatpush1.msra.mxu0 0.0
        %2205 = vmatprep.subr.mxu0 0.0
        %2206 = vmatpush1.msra.mxu0 0.0
        %2207 = vmatprep.subr.mxu0 0.0
        %2208 = vmatpush1.msra.mxu0 0.0
        %2209 = vmatprep.subr.mxu0 0.0
        %2210 = vmatpush1.msra.mxu0 0.0
        %2211 = vmatprep.subr.mxu0 0.0
        %2212 = vmatpush1.msra.mxu0 0.0
        %2213 = vmatprep.subr.mxu0 0.0
        %2214 = vmatpush1.msra.mxu0 0.0
        %2215 = vmatprep.subr.mxu0 0.0
        %2216 = vmatpush1.msra.mxu0 0.0
        %2217 = vmatprep.subr.mxu0 0.0
        %2218 = vmatpush1.msra.mxu0 0.0
        %2219 = vmatprep.subr.mxu0 0.0
        %2220 = vmatpush1.msra.mxu0 0.0
        %2221 = vmatprep.subr.mxu0 0.0
        %2222 = vmatpush1.msra.mxu0 0.0
        %2223 = vmatprep.subr.mxu0 0.0
        %2224 = vmatpush1.msra.mxu0 0.0
        %2225 = vmatprep.subr.mxu0 0.0
        %2226 = vmatpush1.msra.mxu0 0.0
        %2227 = vmatprep.subr.mxu0 0.0
        %2228 = vmatpush1.msra.mxu0 0.0
        %2229 = vmatprep.subr.mxu0 0.0
        %2230 = vmatpush1.msra.mxu0 0.0
        %2231 = vmatprep.mubr.f32.mxu0 0.0
        %2232 = vmatmul.mubr.f32.gmra.mrb[0].mxu0 %v2116
        %v2233 = vpop.f32.mrb[0].mxu0
        %v2234 = vadd.f32 %v2112, %v2233
        %v2235 = vpop.f32.mrb[0].mxu0
        %2236 = vmatprep.mubr.f32.mxu0 0.0
        %2237 = vmatmul.mubr.f32.gmra.mrb[0].mxu0 %v2119
        %v2238 = vpop.f32.mrb[0].mxu0
        %v2239 = vadd.f32 %v2112, %v2238
        %v2240 = vpop.f32.mrb[0].mxu0
        %2241 = vmatprep.mubr.f32.mxu0 0.0
        %2242 = vmatmul.mubr.f32.gmra.mrb[0].mxu0 %v2122
        %v2243 = vpop.f32.mrb[0].mxu0
        %v2244 = vadd.f32 %v2112, %v2243
        %v2245 = vpop.f32.mrb[0].mxu0
        %2246 = vmatprep.mubr.f32.mxu0 0.0
        %2247 = vmatmul.mubr.f32.gmra.mrb[0].mxu0 %v2125
        %v2248 = vpop.f32.mrb[0].mxu0
        %v2249 = vadd.f32 %v2112, %v2248
        %v2250 = vpop.f32.mrb[0].mxu0
        %2251 = vmatprep.mubr.f32.mxu0 0.0
        %2252 = vmatmul.mubr.f32.gmra.mrb[0].mxu0 %v2128
        %v2253 = vpop.f32.mrb[0].mxu0
        %v2254 = vadd.f32 %v2112, %v2253
        %v2255 = vpop.f32.mrb[0].mxu0
        %2256 = vmatprep.mubr.f32.mxu0 0.0
        %2257 = vmatmul.mubr.f32.gmra.mrb[0].mxu0 %v2131
        %v2258 = vpop.f32.mrb[0].mxu0
        %v2259 = vadd.f32 %v2112, %v2258
        %v2260 = vpop.f32.mrb[0].mxu0
        %2261 = vmatprep.mubr.f32.mxu0 0.0
        %2262 = vmatmul.mubr.f32.gmra.mrb[0].mxu0 %v2134
        %v2263 = vpop.f32.mrb[0].mxu0
        %v2264 = vadd.f32 %v2112, %v2263
        %v2265 = vpop.f32.mrb[0].mxu0
        %2266 = vmatprep.mubr.f32.mxu0 0.0
        %2267 = vmatmul.mubr.f32.gmra.mrb[0].mxu0 %v2137
        %v2268 = vpop.f32.mrb[0].mxu0
        %v2269 = vadd.f32 %v2112, %v2268
        %v2270 = vpop.f32.mrb[0].mxu0
        %2271 = vmatprep.mubr.f32.mxu0 0.0
        %2272 = vmatmul.mubr.f32.gmra.mrb[0].mxu0 %v2140
        %v2273 = vpop.f32.mrb[0].mxu0
        %v2274 = vadd.f32 %v2112, %v2273
        %v2275 = vpop.f32.mrb[0].mxu0
        %2276 = vmatprep.mubr.f32.mxu0 0.0
        %2277 = vmatmul.mubr.f32.gmra.mrb[0].mxu0 %v2143
        %v2278 = vpop.f32.mrb[0].mxu0
        %v2279 = vadd.f32 %v2112, %v2278
        %v2280 = vpop.f32.mrb[0].mxu0
        %2281 = vmatprep.mubr.f32.mxu0 0.0
        %2282 = vmatmul.mubr.f32.gmra.mrb[0].mxu0 %v2146
        %v2283 = vpop.f32.mrb[0].mxu0
        %v2284 = vadd.f32 %v2112, %v2283
        %v2285 = vpop.f32.mrb[0].mxu0
        %2286 = vmatprep.mubr.f32.mxu0 0.0
        %2287 = vmatmul.mubr.f32.gmra.mrb[0].mxu0 %v2149
        %v2288 = vpop.f32.mrb[0].mxu0
        %v2289 = vadd.f32 %v2112, %v2288
        %v2290 = vpop.f32.mrb[0].mxu0
        %2291 = vmatprep.mubr.f32.mxu0 0.0
        %2292 = vmatmul.mubr.f32.gmra.mrb[0].mxu0 %v2152
        %v2293 = vpop.f32.mrb[0].mxu0
        %v2294 = vadd.f32 %v2112, %v2293
        %v2295 = vpop.f32.mrb[0].mxu0
        %2296 = vmatprep.mubr.f32.mxu0 0.0
        %2297 = vmatmul.mubr.f32.gmra.mrb[0].mxu0 %v2155
        %v2298 = vpop.f32.mrb[0].mxu0
        %v2299 = vadd.f32 %v2112, %v2298
        %v2300 = vpop.f32.mrb[0].mxu0
        %2301 = vmatprep.mubr.f32.mxu0 0.0
        %2302 = vmatmul.mubr.f32.gmra.mrb[0].mxu0 %v2158
        %v2303 = vpop.f32.mrb[0].mxu0
        %v2304 = vadd.f32 %v2112, %v2303
        %v2305 = vpop.f32.mrb[0].mxu0
        %2306 = vmatprep.mubr.f32.mxu0 0.0
        %2307 = vmatmul.mubr.f32.gmra.mrb[0].mxu0 %v2161
        %v2308 = vpop.f32.mrb[0].mxu0
        %v2309 = vadd.f32 %v2112, %v2308
        %v2310 = vpop.f32.mrb[0].mxu0
        %2311 = vdwg.mxu0
        %v2312 = vxor.u32 %v2234, 2147483648
        %v2313 = vxor.u32 %v2239, 2147483648
        %v2314 = vxor.u32 %v2244, 2147483648
        %v2315 = vxor.u32 %v2249, 2147483648
        %v2316 = vxor.u32 %v2254, 2147483648
        %v2317 = vxor.u32 %v2259, 2147483648
        %v2318 = vxor.u32 %v2264, 2147483648
        %v2319 = vxor.u32 %v2269, 2147483648
        %v2320 = vxor.u32 %v2274, 2147483648
        %v2321 = vxor.u32 %v2279, 2147483648
        %v2322 = vxor.u32 %v2284, 2147483648
        %v2323 = vxor.u32 %v2289, 2147483648
        %v2324 = vxor.u32 %v2294, 2147483648
        %v2325 = vxor.u32 %v2299, 2147483648
        %v2326 = vxor.u32 %v2304, 2147483648
        %v2327 = vxor.u32 %v2309, 2147483648
        %v2328 = vmul.f32 %v2312, 1.442695
        %v2329 = vpow.pop %v2328
        %v2330 = vmul.f32 %v2313, 1.442695
        %v2331 = vpow.pop %v2330
        %v2332 = vmul.f32 %v2314, 1.442695
        %v2333 = vpow.pop %v2332
        %v2334 = vmul.f32 %v2315, 1.442695
        %v2335 = vpow.pop %v2334
        %v2336 = vmul.f32 %v2316, 1.442695
        %v2337 = vpow.pop %v2336
        %v2338 = vmul.f32 %v2317, 1.442695
        %v2339 = vpow.pop %v2338
        %v2340 = vmul.f32 %v2318, 1.442695
        %v2341 = vpow.pop %v2340
        %v2342 = vmul.f32 %v2319, 1.442695
        %v2343 = vpow.pop %v2342
        %v2344 = vmul.f32 %v2320, 1.442695
        %v2345 = vpow.pop %v2344
        %v2346 = vmul.f32 %v2321, 1.442695
        %v2347 = vpow.pop %v2346
        %v2348 = vmul.f32 %v2322, 1.442695
        %v2349 = vpow.pop %v2348
        %v2350 = vmul.f32 %v2323, 1.442695
        %v2351 = vpow.pop %v2350
        %v2352 = vmul.f32 %v2324, 1.442695
        %v2353 = vpow.pop %v2352
        %v2354 = vmul.f32 %v2325, 1.442695
        %v2355 = vpow.pop %v2354
        %v2356 = vmul.f32 %v2326, 1.442695
        %v2357 = vpow.pop %v2356
        %v2358 = vmul.f32 %v2327, 1.442695
        %v2359 = vpow.pop %v2358
        %v2360 = vadd.f32 %v2329, 1.0
        %v2361 = vadd.f32 %v2331, 1.0
        %v2362 = vadd.f32 %v2333, 1.0
        %v2363 = vadd.f32 %v2335, 1.0
        %v2364 = vadd.f32 %v2337, 1.0
        %v2365 = vadd.f32 %v2339, 1.0
        %v2366 = vadd.f32 %v2341, 1.0
        %v2367 = vadd.f32 %v2343, 1.0
        %v2368 = vadd.f32 %v2345, 1.0
        %v2369 = vadd.f32 %v2347, 1.0
        %v2370 = vadd.f32 %v2349, 1.0
        %v2371 = vadd.f32 %v2351, 1.0
        %v2372 = vadd.f32 %v2353, 1.0
        %v2373 = vadd.f32 %v2355, 1.0
        %v2374 = vadd.f32 %v2357, 1.0
        %v2375 = vadd.f32 %v2359, 1.0
        %v2376 = vrcp.pop %v2360
        %v2377 = vmul.f32 1.0, %v2376
        %v2378 = vrcp.pop %v2361
        %v2379 = vmul.f32 1.0, %v2378
        %v2380 = vrcp.pop %v2362
        %v2381 = vmul.f32 1.0, %v2380
        %v2382 = vrcp.pop %v2363
        %v2383 = vmul.f32 1.0, %v2382
        %v2384 = vrcp.pop %v2364
        %v2385 = vmul.f32 1.0, %v2384
        %v2386 = vrcp.pop %v2365
        %v2387 = vmul.f32 1.0, %v2386
        %v2388 = vrcp.pop %v2366
        %v2389 = vmul.f32 1.0, %v2388
        %v2390 = vrcp.pop %v2367
        %v2391 = vmul.f32 1.0, %v2390
        %v2392 = vrcp.pop %v2368
        %v2393 = vmul.f32 1.0, %v2392
        %v2394 = vrcp.pop %v2369
        %v2395 = vmul.f32 1.0, %v2394
        %v2396 = vrcp.pop %v2370
        %v2397 = vmul.f32 1.0, %v2396
        %v2398 = vrcp.pop %v2371
        %v2399 = vmul.f32 1.0, %v2398
        %v2400 = vrcp.pop %v2372
        %v2401 = vmul.f32 1.0, %v2400
        %v2402 = vrcp.pop %v2373
        %v2403 = vmul.f32 1.0, %v2402
        %v2404 = vrcp.pop %v2374
        %v2405 = vmul.f32 1.0, %v2404
        %v2406 = vrcp.pop %v2375
        %v2407 = vmul.f32 1.0, %v2406
        %v2408 = vld [vmem:[%s9] sm:$0xff]
        %v2409 = vld [vmem:[%s9 + $0x8] sm:$0xff]
        %v2411 = vsel %vm1879, %v2377, 0
        %v2414 = vsel %vm1879, %v2379, 0
        %v2417 = vsel %vm1879, %v2381, 0
        %v2420 = vsel %vm1879, %v2383, 0
        %v2423 = vsel %vm1879, %v2385, 0
        %v2426 = vsel %vm1879, %v2387, 0
        %v2429 = vsel %vm1879, %v2389, 0
        %v2432 = vsel %vm1879, %v2391, 0
        %v2435 = vsel %vm1879, %v2393, 0
        %v2438 = vsel %vm1879, %v2395, 0
        %v2441 = vsel %vm1879, %v2397, 0
        %v2444 = vsel %vm1879, %v2399, 0
        %v2447 = vsel %vm1879, %v2401, 0
        %v2450 = vsel %vm1879, %v2403, 0
        %v2453 = vsel %vm1879, %v2405, 0
        %v2456 = vsel %vm1879, %v2407, 0
        %2458 = vmatprep.subr.mxu0 0.0
        %2459 = vmatpush1.msra.mxu0 %v2408
        %2460 = vmatprep.subr.mxu0 0.0
        %2461 = vmatpush1.msra.mxu0 %v2409
        %2462 = vmatprep.subr.mxu0 0.0
        %2463 = vmatpush1.msra.mxu0 0.0
        %2464 = vmatprep.subr.mxu0 0.0
        %2465 = vmatpush1.msra.mxu0 0.0
        %2466 = vmatprep.subr.mxu0 0.0
        %2467 = vmatpush1.msra.mxu0 0.0
        %2468 = vmatprep.subr.mxu0 0.0
        %2469 = vmatpush1.msra.mxu0 0.0
        %2470 = vmatprep.subr.mxu0 0.0
        %2471 = vmatpush1.msra.mxu0 0.0
        %2472 = vmatprep.subr.mxu0 0.0
        %2473 = vmatpush1.msra.mxu0 0.0
        %2474 = vmatprep.subr.mxu0 0.0
        %2475 = vmatpush1.msra.mxu0 0.0
        %2476 = vmatprep.subr.mxu0 0.0
        %2477 = vmatpush1.msra.mxu0 0.0
        %2478 = vmatprep.subr.mxu0 0.0
        %2479 = vmatpush1.msra.mxu0 0.0
        %2480 = vmatprep.subr.mxu0 0.0
        %2481 = vmatpush1.msra.mxu0 0.0
        %2482 = vmatprep.subr.mxu0 0.0
        %2483 = vmatpush1.msra.mxu0 0.0
        %2484 = vmatprep.subr.mxu0 0.0
        %2485 = vmatpush1.msra.mxu0 0.0
        %2486 = vmatprep.subr.mxu0 0.0
        %2487 = vmatpush1.msra.mxu0 0.0
        %2488 = vmatprep.subr.mxu0 0.0
        %2489 = vmatpush1.msra.mxu0 0.0
        %2490 = vmatprep.subr.mxu0 0.0
        %2491 = vmatpush1.msra.mxu0 0.0
        %2492 = vmatprep.subr.mxu0 0.0
        %2493 = vmatpush1.msra.mxu0 0.0
        %2494 = vmatprep.subr.mxu0 0.0
        %2495 = vmatpush1.msra.mxu0 0.0
        %2496 = vmatprep.subr.mxu0 0.0
        %2497 = vmatpush1.msra.mxu0 0.0
        %2498 = vmatprep.subr.mxu0 0.0
        %2499 = vmatpush1.msra.mxu0 0.0
        %2500 = vmatprep.subr.mxu0 0.0
        %2501 = vmatpush1.msra.mxu0 0.0
        %2502 = vmatprep.subr.mxu0 0.0
        %2503 = vmatpush1.msra.mxu0 0.0
        %2504 = vmatprep.subr.mxu0 0.0
        %2505 = vmatpush1.msra.mxu0 0.0
        %2506 = vmatprep.subr.mxu0 0.0
        %2507 = vmatpush1.msra.mxu0 0.0
        %2508 = vmatprep.subr.mxu0 0.0
        %2509 = vmatpush1.msra.mxu0 0.0
        %2510 = vmatprep.subr.mxu0 0.0
        %2511 = vmatpush1.msra.mxu0 0.0
        %2512 = vmatprep.subr.mxu0 0.0
        %2513 = vmatpush1.msra.mxu0 0.0
        %2514 = vmatprep.subr.mxu0 0.0
        %2515 = vmatpush1.msra.mxu0 0.0
        %2516 = vmatprep.subr.mxu0 0.0
        %2517 = vmatpush1.msra.mxu0 0.0
        %2518 = vmatprep.subr.mxu0 0.0
        %2519 = vmatpush1.msra.mxu0 0.0
        %2520 = vmatprep.subr.mxu0 0.0
        %2521 = vmatpush1.msra.mxu0 0.0
        %2522 = vmatprep.mubr.f32.mxu0 0.0
        %2523 = vmatmul.mubr.f32.gmra.mrb[0].mxu0 %v2411
        %v2524 = vpop.f32.mrb[0].mxu0
        %v2525 = vadd.f32 0.0, %v2524
        %v2526 = vpop.f32.mrb[0].mxu0
        %2527 = vmatprep.mubr.f32.mxu0 0.0
        %2528 = vmatmul.mubr.f32.gmra.mrb[0].mxu0 %v2414
        %v2529 = vpop.f32.mrb[0].mxu0
        %v2530 = vadd.f32 0.0, %v2529
        %v2531 = vpop.f32.mrb[0].mxu0
        %2532 = vmatprep.mubr.f32.mxu0 0.0
        %2533 = vmatmul.mubr.f32.gmra.mrb[0].mxu0 %v2417
        %v2534 = vpop.f32.mrb[0].mxu0
        %v2535 = vadd.f32 0.0, %v2534
        %v2536 = vpop.f32.mrb[0].mxu0
        %2537 = vmatprep.mubr.f32.mxu0 0.0
        %2538 = vmatmul.mubr.f32.gmra.mrb[0].mxu0 %v2420
        %v2539 = vpop.f32.mrb[0].mxu0
        %v2540 = vadd.f32 0.0, %v2539
        %v2541 = vpop.f32.mrb[0].mxu0
        %2542 = vmatprep.mubr.f32.mxu0 0.0
        %2543 = vmatmul.mubr.f32.gmra.mrb[0].mxu0 %v2423
        %v2544 = vpop.f32.mrb[0].mxu0
        %v2545 = vadd.f32 0.0, %v2544
        %v2546 = vpop.f32.mrb[0].mxu0
        %2547 = vmatprep.mubr.f32.mxu0 0.0
        %2548 = vmatmul.mubr.f32.gmra.mrb[0].mxu0 %v2426
        %v2549 = vpop.f32.mrb[0].mxu0
        %v2550 = vadd.f32 0.0, %v2549
        %v2551 = vpop.f32.mrb[0].mxu0
        %2552 = vmatprep.mubr.f32.mxu0 0.0
        %2553 = vmatmul.mubr.f32.gmra.mrb[0].mxu0 %v2429
        %v2554 = vpop.f32.mrb[0].mxu0
        %v2555 = vadd.f32 0.0, %v2554
        %v2556 = vpop.f32.mrb[0].mxu0
        %2557 = vmatprep.mubr.f32.mxu0 0.0
        %2558 = vmatmul.mubr.f32.gmra.mrb[0].mxu0 %v2432
        %v2559 = vpop.f32.mrb[0].mxu0
        %v2560 = vadd.f32 0.0, %v2559
        %v2561 = vpop.f32.mrb[0].mxu0
        %2562 = vmatprep.mubr.f32.mxu0 0.0
        %2563 = vmatmul.mubr.f32.gmra.mrb[0].mxu0 %v2435
        %v2564 = vpop.f32.mrb[0].mxu0
        %v2565 = vadd.f32 0.0, %v2564
        %v2566 = vpop.f32.mrb[0].mxu0
        %2567 = vmatprep.mubr.f32.mxu0 0.0
        %2568 = vmatmul.mubr.f32.gmra.mrb[0].mxu0 %v2438
        %v2569 = vpop.f32.mrb[0].mxu0
        %v2570 = vadd.f32 0.0, %v2569
        %v2571 = vpop.f32.mrb[0].mxu0
        %2572 = vmatprep.mubr.f32.mxu0 0.0
        %2573 = vmatmul.mubr.f32.gmra.mrb[0].mxu0 %v2441
        %v2574 = vpop.f32.mrb[0].mxu0
        %v2575 = vadd.f32 0.0, %v2574
        %v2576 = vpop.f32.mrb[0].mxu0
        %2577 = vmatprep.mubr.f32.mxu0 0.0
        %2578 = vmatmul.mubr.f32.gmra.mrb[0].mxu0 %v2444
        %v2579 = vpop.f32.mrb[0].mxu0
        %v2580 = vadd.f32 0.0, %v2579
        %v2581 = vpop.f32.mrb[0].mxu0
        %2582 = vmatprep.mubr.f32.mxu0 0.0
        %2583 = vmatmul.mubr.f32.gmra.mrb[0].mxu0 %v2447
        %v2584 = vpop.f32.mrb[0].mxu0
        %v2585 = vadd.f32 0.0, %v2584
        %v2586 = vpop.f32.mrb[0].mxu0
        %2587 = vmatprep.mubr.f32.mxu0 0.0
        %2588 = vmatmul.mubr.f32.gmra.mrb[0].mxu0 %v2450
        %v2589 = vpop.f32.mrb[0].mxu0
        %v2590 = vadd.f32 0.0, %v2589
        %v2591 = vpop.f32.mrb[0].mxu0
        %2592 = vmatprep.mubr.f32.mxu0 0.0
        %2593 = vmatmul.mubr.f32.gmra.mrb[0].mxu0 %v2453
        %v2594 = vpop.f32.mrb[0].mxu0
        %v2595 = vadd.f32 0.0, %v2594
        %v2596 = vpop.f32.mrb[0].mxu0
        %2597 = vmatprep.mubr.f32.mxu0 0.0
        %2598 = vmatmul.mubr.f32.gmra.mrb[0].mxu0 %v2456
        %v2599 = vpop.f32.mrb[0].mxu0
        %v2600 = vadd.f32 0.0, %v2599
        %v2601 = vpop.f32.mrb[0].mxu0
        %2602 = vdwg.mxu0
        %v2603 = vld [vmem:[#allocation8] sm:$0x1]
        %v2604 = vld [vmem:[#allocation13] sm:$0xff]
        %v2605 = vld [vmem:[%s10] sm:$0xff]
        %v2606 = vld [vmem:[%s10 + $0x8] sm:$0xff]
        %v2607 = vld [vmem:[%s10 + $0x10] sm:$0xff]
        %v2608 = vld [vmem:[%s10 + $0x18] sm:$0xff]
        %v2609 = vld [vmem:[%s10 + $0x20] sm:$0xff]
        %v2610 = vld [vmem:[%s10 + $0x28] sm:$0xff]
        %v2611 = vld [vmem:[%s10 + $0x30] sm:$0xff]
        %v2612 = vld [vmem:[%s10 + $0x38] sm:$0xff]
        %v2613 = vld [vmem:[%s10 + $0x40] sm:$0xff]
        %v2614 = vld [vmem:[%s10 + $0x48] sm:$0xff]
        %v2615 = vld [vmem:[%s10 + $0x50] sm:$0xff]
        %v2616 = vld [vmem:[%s10 + $0x58] sm:$0xff]
        %v2617 = vld [vmem:[%s10 + $0x60] sm:$0xff]
        %v2618 = vld [vmem:[%s10 + $0x68] sm:$0xff]
        %v2619 = vld [vmem:[%s10 + $0x70] sm:$0xff]
        %v2620 = vld [vmem:[%s10 + $0x78] sm:$0xff]
        %v2622 = vlaneseq
        %v2623 = vshrl.u32 %v2622, 7
        %v2624 = vsub.s32 0, %v2623
        %v2625 = vrot.slane %v2603, %v2624
        %2627 = vmatprep.subr.mxu0 0.0
        %2628 = vmatpush1.msra.mxu0 %v2605
        %2629 = vmatprep.subr.mxu0 0.0
        %2630 = vmatpush1.msra.mxu0 %v2606
        %2631 = vmatprep.subr.mxu0 0.0
        %2632 = vmatpush1.msra.mxu0 %v2607
        %2633 = vmatprep.subr.mxu0 0.0
        %2634 = vmatpush1.msra.mxu0 %v2608
        %2635 = vmatprep.subr.mxu0 0.0
        %2636 = vmatpush1.msra.mxu0 %v2609
        %2637 = vmatprep.subr.mxu0 0.0
        %2638 = vmatpush1.msra.mxu0 %v2610
        %2639 = vmatprep.subr.mxu0 0.0
        %2640 = vmatpush1.msra.mxu0 %v2611
        %2641 = vmatprep.subr.mxu0 0.0
        %2642 = vmatpush1.msra.mxu0 %v2612
        %2643 = vmatprep.subr.mxu0 0.0
        %2644 = vmatpush1.msra.mxu0 %v2613
        %2645 = vmatprep.subr.mxu0 0.0
        %2646 = vmatpush1.msra.mxu0 %v2614
        %2647 = vmatprep.subr.mxu0 0.0
        %2648 = vmatpush1.msra.mxu0 %v2615
        %2649 = vmatprep.subr.mxu0 0.0
        %2650 = vmatpush1.msra.mxu0 %v2616
        %2651 = vmatprep.subr.mxu0 0.0
        %2652 = vmatpush1.msra.mxu0 %v2617
        %2653 = vmatprep.subr.mxu0 0.0
        %2654 = vmatpush1.msra.mxu0 %v2618
        %2655 = vmatprep.subr.mxu0 0.0
        %2656 = vmatpush1.msra.mxu0 %v2619
        %2657 = vmatprep.subr.mxu0 0.0
        %2658 = vmatpush1.msra.mxu0 %v2620
        %2659 = vmatprep.subr.mxu0 0.0
        %2660 = vmatpush1.msra.mxu0 0.0
        %2661 = vmatprep.subr.mxu0 0.0
        %2662 = vmatpush1.msra.mxu0 0.0
        %2663 = vmatprep.subr.mxu0 0.0
        %2664 = vmatpush1.msra.mxu0 0.0
        %2665 = vmatprep.subr.mxu0 0.0
        %2666 = vmatpush1.msra.mxu0 0.0
        %2667 = vmatprep.subr.mxu0 0.0
        %2668 = vmatpush1.msra.mxu0 0.0
        %2669 = vmatprep.subr.mxu0 0.0
        %2670 = vmatpush1.msra.mxu0 0.0
        %2671 = vmatprep.subr.mxu0 0.0
        %2672 = vmatpush1.msra.mxu0 0.0
        %2673 = vmatprep.subr.mxu0 0.0
        %2674 = vmatpush1.msra.mxu0 0.0
        %2675 = vmatprep.subr.mxu0 0.0
        %2676 = vmatpush1.msra.mxu0 0.0
        %2677 = vmatprep.subr.mxu0 0.0
        %2678 = vmatpush1.msra.mxu0 0.0
        %2679 = vmatprep.subr.mxu0 0.0
        %2680 = vmatpush1.msra.mxu0 0.0
        %2681 = vmatprep.subr.mxu0 0.0
        %2682 = vmatpush1.msra.mxu0 0.0
        %2683 = vmatprep.subr.mxu0 0.0
        %2684 = vmatpush1.msra.mxu0 0.0
        %2685 = vmatprep.subr.mxu0 0.0
        %2686 = vmatpush1.msra.mxu0 0.0
        %2687 = vmatprep.subr.mxu0 0.0
        %2688 = vmatpush1.msra.mxu0 0.0
        %2689 = vmatprep.subr.mxu0 0.0
        %2690 = vmatpush1.msra.mxu0 0.0
        %2691 = vmatprep.mubr.f32.mxu0 0.0
        %2692 = vmatmul.mubr.f32.gmra.mrb[0].mxu0 %v1050
        %v2693 = vpop.f32.mrb[0].mxu0
        %v2694 = vadd.f32 %v2625, %v2693
        %v2695 = vpop.f32.mrb[0].mxu0
        %2696 = vmatprep.mubr.f32.mxu0 0.0
        %2697 = vmatmul.mubr.f32.gmra.mrb[0].mxu0 %v1051
        %v2698 = vpop.f32.mrb[0].mxu0
        %v2699 = vadd.f32 %v2625, %v2698
        %v2700 = vpop.f32.mrb[0].mxu0
        %2701 = vmatprep.mubr.f32.mxu0 0.0
        %2702 = vmatmul.mubr.f32.gmra.mrb[0].mxu0 %v1052
        %v2703 = vpop.f32.mrb[0].mxu0
        %v2704 = vadd.f32 %v2625, %v2703
        %v2705 = vpop.f32.mrb[0].mxu0
        %2706 = vmatprep.mubr.f32.mxu0 0.0
        %2707 = vmatmul.mubr.f32.gmra.mrb[0].mxu0 %v1053
        %v2708 = vpop.f32.mrb[0].mxu0
        %v2709 = vadd.f32 %v2625, %v2708
        %v2710 = vpop.f32.mrb[0].mxu0
        %2711 = vmatprep.mubr.f32.mxu0 0.0
        %2712 = vmatmul.mubr.f32.gmra.mrb[0].mxu0 %v1054
        %v2713 = vpop.f32.mrb[0].mxu0
        %v2714 = vadd.f32 %v2625, %v2713
        %v2715 = vpop.f32.mrb[0].mxu0
        %2716 = vmatprep.mubr.f32.mxu0 0.0
        %2717 = vmatmul.mubr.f32.gmra.mrb[0].mxu0 %v1055
        %v2718 = vpop.f32.mrb[0].mxu0
        %v2719 = vadd.f32 %v2625, %v2718
        %v2720 = vpop.f32.mrb[0].mxu0
        %2721 = vmatprep.mubr.f32.mxu0 0.0
        %2722 = vmatmul.mubr.f32.gmra.mrb[0].mxu0 %v1056
        %v2723 = vpop.f32.mrb[0].mxu0
        %v2724 = vadd.f32 %v2625, %v2723
        %v2725 = vpop.f32.mrb[0].mxu0
        %2726 = vmatprep.mubr.f32.mxu0 0.0
        %2727 = vmatmul.mubr.f32.gmra.mrb[0].mxu0 %v1057
        %v2728 = vpop.f32.mrb[0].mxu0
        %v2729 = vadd.f32 %v2625, %v2728
        %v2730 = vpop.f32.mrb[0].mxu0
        %2731 = vmatprep.mubr.f32.mxu0 0.0
        %2732 = vmatmul.mubr.f32.gmra.mrb[0].mxu0 %v1058
        %v2733 = vpop.f32.mrb[0].mxu0
        %v2734 = vadd.f32 %v2625, %v2733
        %v2735 = vpop.f32.mrb[0].mxu0
        %2736 = vmatprep.mubr.f32.mxu0 0.0
        %2737 = vmatmul.mubr.f32.gmra.mrb[0].mxu0 %v1059
        %v2738 = vpop.f32.mrb[0].mxu0
        %v2739 = vadd.f32 %v2625, %v2738
        %v2740 = vpop.f32.mrb[0].mxu0
        %2741 = vmatprep.mubr.f32.mxu0 0.0
        %2742 = vmatmul.mubr.f32.gmra.mrb[0].mxu0 %v1060
        %v2743 = vpop.f32.mrb[0].mxu0
        %v2744 = vadd.f32 %v2625, %v2743
        %v2745 = vpop.f32.mrb[0].mxu0
        %2746 = vmatprep.mubr.f32.mxu0 0.0
        %2747 = vmatmul.mubr.f32.gmra.mrb[0].mxu0 %v1061
        %v2748 = vpop.f32.mrb[0].mxu0
        %v2749 = vadd.f32 %v2625, %v2748
        %v2750 = vpop.f32.mrb[0].mxu0
        %2751 = vmatprep.mubr.f32.mxu0 0.0
        %2752 = vmatmul.mubr.f32.gmra.mrb[0].mxu0 %v1062
        %v2753 = vpop.f32.mrb[0].mxu0
        %v2754 = vadd.f32 %v2625, %v2753
        %v2755 = vpop.f32.mrb[0].mxu0
        %2756 = vmatprep.mubr.f32.mxu0 0.0
        %2757 = vmatmul.mubr.f32.gmra.mrb[0].mxu0 %v1063
        %v2758 = vpop.f32.mrb[0].mxu0
        %v2759 = vadd.f32 %v2625, %v2758
        %v2760 = vpop.f32.mrb[0].mxu0
        %2761 = vmatprep.mubr.f32.mxu0 0.0
        %2762 = vmatmul.mubr.f32.gmra.mrb[0].mxu0 %v1064
        %v2763 = vpop.f32.mrb[0].mxu0
        %v2764 = vadd.f32 %v2625, %v2763
        %v2765 = vpop.f32.mrb[0].mxu0
        %2766 = vmatprep.mubr.f32.mxu0 0.0
        %2767 = vmatmul.mubr.f32.gmra.mrb[0].mxu0 %v1065
        %v2768 = vpop.f32.mrb[0].mxu0
        %v2769 = vadd.f32 %v2625, %v2768
        %v2770 = vpop.f32.mrb[0].mxu0
        %2771 = vdwg.mxu0
        %v2772 = vmax.f32 %v2694, 0.0
        %v2773 = vmax.f32 %v2699, 0.0
        %v2774 = vmax.f32 %v2704, 0.0
        %v2775 = vmax.f32 %v2709, 0.0
        %v2776 = vmax.f32 %v2714, 0.0
        %v2777 = vmax.f32 %v2719, 0.0
        %v2778 = vmax.f32 %v2724, 0.0
        %v2779 = vmax.f32 %v2729, 0.0
        %v2780 = vmax.f32 %v2734, 0.0
        %v2781 = vmax.f32 %v2739, 0.0
        %v2782 = vmax.f32 %v2744, 0.0
        %v2783 = vmax.f32 %v2749, 0.0
        %v2784 = vmax.f32 %v2754, 0.0
        %v2785 = vmax.f32 %v2759, 0.0
        %v2786 = vmax.f32 %v2764, 0.0
        %v2787 = vmax.f32 %v2769, 0.0
        %v2788 = vld [vmem:[%s11] sm:$0xff]
        %vm2789 = vcmask 64512
        %v2791 = vsel %vm2789, %v1615, 0
        %v2794 = vsel %vm2789, %v1620, 0
        %v2797 = vsel %vm2789, %v1625, 0
        %v2800 = vsel %vm2789, %v1630, 0
        %v2803 = vsel %vm2789, %v1635, 0
        %v2806 = vsel %vm2789, %v1640, 0
        %v2809 = vsel %vm2789, %v1645, 0
        %v2812 = vsel %vm2789, %v1650, 0
        %v2815 = vsel %vm2789, %v1655, 0
        %v2818 = vsel %vm2789, %v1660, 0
        %v2821 = vsel %vm2789, %v1665, 0
        %v2824 = vsel %vm2789, %v1670, 0
        %v2827 = vsel %vm2789, %v1675, 0
        %v2830 = vsel %vm2789, %v1680, 0
        %v2833 = vsel %vm2789, %v1685, 0
        %v2836 = vsel %vm2789, %v1690, 0
        %2838 = vmatprep.subr.mxu0 0.0
        %2839 = vmatpush1.msra.mxu0 %v2788
        %2840 = vmatprep.subr.mxu0 0.0
        %2841 = vmatpush1.msra.mxu0 0.0
        %2842 = vmatprep.subr.mxu0 0.0
        %2843 = vmatpush1.msra.mxu0 0.0
        %2844 = vmatprep.subr.mxu0 0.0
        %2845 = vmatpush1.msra.mxu0 0.0
        %2846 = vmatprep.subr.mxu0 0.0
        %2847 = vmatpush1.msra.mxu0 0.0
        %2848 = vmatprep.subr.mxu0 0.0
        %2849 = vmatpush1.msra.mxu0 0.0
        %2850 = vmatprep.subr.mxu0 0.0
        %2851 = vmatpush1.msra.mxu0 0.0
        %2852 = vmatprep.subr.mxu0 0.0
        %2853 = vmatpush1.msra.mxu0 0.0
        %2854 = vmatprep.subr.mxu0 0.0
        %2855 = vmatpush1.msra.mxu0 0.0
        %2856 = vmatprep.subr.mxu0 0.0
        %2857 = vmatpush1.msra.mxu0 0.0
        %2858 = vmatprep.subr.mxu0 0.0
        %2859 = vmatpush1.msra.mxu0 0.0
        %2860 = vmatprep.subr.mxu0 0.0
        %2861 = vmatpush1.msra.mxu0 0.0
        %2862 = vmatprep.subr.mxu0 0.0
        %2863 = vmatpush1.msra.mxu0 0.0
        %2864 = vmatprep.subr.mxu0 0.0
        %2865 = vmatpush1.msra.mxu0 0.0
        %2866 = vmatprep.subr.mxu0 0.0
        %2867 = vmatpush1.msra.mxu0 0.0
        %2868 = vmatprep.subr.mxu0 0.0
        %2869 = vmatpush1.msra.mxu0 0.0
        %2870 = vmatprep.subr.mxu0 0.0
        %2871 = vmatpush1.msra.mxu0 0.0
        %2872 = vmatprep.subr.mxu0 0.0
        %2873 = vmatpush1.msra.mxu0 0.0
        %2874 = vmatprep.subr.mxu0 0.0
        %2875 = vmatpush1.msra.mxu0 0.0
        %2876 = vmatprep.subr.mxu0 0.0
        %2877 = vmatpush1.msra.mxu0 0.0
        %2878 = vmatprep.subr.mxu0 0.0
        %2879 = vmatpush1.msra.mxu0 0.0
        %2880 = vmatprep.subr.mxu0 0.0
        %2881 = vmatpush1.msra.mxu0 0.0
        %2882 = vmatprep.subr.mxu0 0.0
        %2883 = vmatpush1.msra.mxu0 0.0
        %2884 = vmatprep.subr.mxu0 0.0
        %2885 = vmatpush1.msra.mxu0 0.0
        %2886 = vmatprep.subr.mxu0 0.0
        %2887 = vmatpush1.msra.mxu0 0.0
        %2888 = vmatprep.subr.mxu0 0.0
        %2889 = vmatpush1.msra.mxu0 0.0
        %2890 = vmatprep.subr.mxu0 0.0
        %2891 = vmatpush1.msra.mxu0 0.0
        %2892 = vmatprep.subr.mxu0 0.0
        %2893 = vmatpush1.msra.mxu0 0.0
        %2894 = vmatprep.subr.mxu0 0.0
        %2895 = vmatpush1.msra.mxu0 0.0
        %2896 = vmatprep.subr.mxu0 0.0
        %2897 = vmatpush1.msra.mxu0 0.0
        %2898 = vmatprep.subr.mxu0 0.0
        %2899 = vmatpush1.msra.mxu0 0.0
        %2900 = vmatprep.subr.mxu0 0.0
        %2901 = vmatpush1.msra.mxu0 0.0
        %2902 = vmatprep.mubr.f32.mxu0 0.0
        %2903 = vmatmul.mubr.f32.gmra.mrb[0].mxu0 %v2791
        %v2904 = vpop.f32.mrb[0].mxu0
        %v2905 = vadd.f32 %v2625, %v2904
        %v2906 = vpop.f32.mrb[0].mxu0
        %2907 = vmatprep.mubr.f32.mxu0 0.0
        %2908 = vmatmul.mubr.f32.gmra.mrb[0].mxu0 %v2794
        %v2909 = vpop.f32.mrb[0].mxu0
        %v2910 = vadd.f32 %v2625, %v2909
        %v2911 = vpop.f32.mrb[0].mxu0
        %2912 = vmatprep.mubr.f32.mxu0 0.0
        %2913 = vmatmul.mubr.f32.gmra.mrb[0].mxu0 %v2797
        %v2914 = vpop.f32.mrb[0].mxu0
        %v2915 = vadd.f32 %v2625, %v2914
        %v2916 = vpop.f32.mrb[0].mxu0
        %2917 = vmatprep.mubr.f32.mxu0 0.0
        %2918 = vmatmul.mubr.f32.gmra.mrb[0].mxu0 %v2800
        %v2919 = vpop.f32.mrb[0].mxu0
        %v2920 = vadd.f32 %v2625, %v2919
        %v2921 = vpop.f32.mrb[0].mxu0
        %2922 = vmatprep.mubr.f32.mxu0 0.0
        %2923 = vmatmul.mubr.f32.gmra.mrb[0].mxu0 %v2803
        %v2924 = vpop.f32.mrb[0].mxu0
        %v2925 = vadd.f32 %v2625, %v2924
        %v2926 = vpop.f32.mrb[0].mxu0
        %2927 = vmatprep.mubr.f32.mxu0 0.0
        %2928 = vmatmul.mubr.f32.gmra.mrb[0].mxu0 %v2806
        %v2929 = vpop.f32.mrb[0].mxu0
        %v2930 = vadd.f32 %v2625, %v2929
        %v2931 = vpop.f32.mrb[0].mxu0
        %2932 = vmatprep.mubr.f32.mxu0 0.0
        %2933 = vmatmul.mubr.f32.gmra.mrb[0].mxu0 %v2809
        %v2934 = vpop.f32.mrb[0].mxu0
        %v2935 = vadd.f32 %v2625, %v2934
        %v2936 = vpop.f32.mrb[0].mxu0
        %2937 = vmatprep.mubr.f32.mxu0 0.0
        %2938 = vmatmul.mubr.f32.gmra.mrb[0].mxu0 %v2812
        %v2939 = vpop.f32.mrb[0].mxu0
        %v2940 = vadd.f32 %v2625, %v2939
        %v2941 = vpop.f32.mrb[0].mxu0
        %2942 = vmatprep.mubr.f32.mxu0 0.0
        %2943 = vmatmul.mubr.f32.gmra.mrb[0].mxu0 %v2815
        %v2944 = vpop.f32.mrb[0].mxu0
        %v2945 = vadd.f32 %v2625, %v2944
        %v2946 = vpop.f32.mrb[0].mxu0
        %2947 = vmatprep.mubr.f32.mxu0 0.0
        %2948 = vmatmul.mubr.f32.gmra.mrb[0].mxu0 %v2818
        %v2949 = vpop.f32.mrb[0].mxu0
        %v2950 = vadd.f32 %v2625, %v2949
        %v2951 = vpop.f32.mrb[0].mxu0
        %2952 = vmatprep.mubr.f32.mxu0 0.0
        %2953 = vmatmul.mubr.f32.gmra.mrb[0].mxu0 %v2821
        %v2954 = vpop.f32.mrb[0].mxu0
        %v2955 = vadd.f32 %v2625, %v2954
        %v2956 = vpop.f32.mrb[0].mxu0
        %2957 = vmatprep.mubr.f32.mxu0 0.0
        %2958 = vmatmul.mubr.f32.gmra.mrb[0].mxu0 %v2824
        %v2959 = vpop.f32.mrb[0].mxu0
        %v2960 = vadd.f32 %v2625, %v2959
        %v2961 = vpop.f32.mrb[0].mxu0
        %2962 = vmatprep.mubr.f32.mxu0 0.0
        %2963 = vmatmul.mubr.f32.gmra.mrb[0].mxu0 %v2827
        %v2964 = vpop.f32.mrb[0].mxu0
        %v2965 = vadd.f32 %v2625, %v2964
        %v2966 = vpop.f32.mrb[0].mxu0
        %2967 = vmatprep.mubr.f32.mxu0 0.0
        %2968 = vmatmul.mubr.f32.gmra.mrb[0].mxu0 %v2830
        %v2969 = vpop.f32.mrb[0].mxu0
        %v2970 = vadd.f32 %v2625, %v2969
        %v2971 = vpop.f32.mrb[0].mxu0
        %2972 = vmatprep.mubr.f32.mxu0 0.0
        %2973 = vmatmul.mubr.f32.gmra.mrb[0].mxu0 %v2833
        %v2974 = vpop.f32.mrb[0].mxu0
        %v2975 = vadd.f32 %v2625, %v2974
        %v2976 = vpop.f32.mrb[0].mxu0
        %2977 = vmatprep.mubr.f32.mxu0 0.0
        %2978 = vmatmul.mubr.f32.gmra.mrb[0].mxu0 %v2836
        %v2979 = vpop.f32.mrb[0].mxu0
        %v2980 = vadd.f32 %v2625, %v2979
        %v2981 = vpop.f32.mrb[0].mxu0
        %2982 = vdwg.mxu0
        %v2983 = vmax.f32 %v2905, 0.0
        %v2984 = vmax.f32 %v2910, 0.0
        %v2985 = vmax.f32 %v2915, 0.0
        %v2986 = vmax.f32 %v2920, 0.0
        %v2987 = vmax.f32 %v2925, 0.0
        %v2988 = vmax.f32 %v2930, 0.0
        %v2989 = vmax.f32 %v2935, 0.0
        %v2990 = vmax.f32 %v2940, 0.0
        %v2991 = vmax.f32 %v2945, 0.0
        %v2992 = vmax.f32 %v2950, 0.0
        %v2993 = vmax.f32 %v2955, 0.0
        %v2994 = vmax.f32 %v2960, 0.0
        %v2995 = vmax.f32 %v2965, 0.0
        %v2996 = vmax.f32 %v2970, 0.0
        %v2997 = vmax.f32 %v2975, 0.0
        %v2998 = vmax.f32 %v2980, 0.0
        %v2999 = vadd.f32 %v2772, %v2983
        %v3000 = vadd.f32 %v2773, %v2984
        %v3001 = vadd.f32 %v2774, %v2985
        %v3002 = vadd.f32 %v2775, %v2986
        %v3003 = vadd.f32 %v2776, %v2987
        %v3004 = vadd.f32 %v2777, %v2988
        %v3005 = vadd.f32 %v2778, %v2989
        %v3006 = vadd.f32 %v2779, %v2990
        %v3007 = vadd.f32 %v2780, %v2991
        %v3008 = vadd.f32 %v2781, %v2992
        %v3009 = vadd.f32 %v2782, %v2993
        %v3010 = vadd.f32 %v2783, %v2994
        %v3011 = vadd.f32 %v2784, %v2995
        %v3012 = vadd.f32 %v2785, %v2996
        %v3013 = vadd.f32 %v2786, %v2997
        %v3014 = vadd.f32 %v2787, %v2998
        %v3015 = vld [vmem:[#allocation10] sm:$0x3]
        %v3016 = vld [vmem:[#allocation11] sm:$0x1]
        %v3017 = vmul.f32 %v3016, 2.0
        %v3019 = vlaneseq
        %v3020 = vshrl.u32 %v3019, 7
        %v3021 = vsub.s32 0, %v3020
        %v3022 = vrot.slane %v3017, %v3021
        %vm3024 = vcmask 15360
        %v3026 = vsel %vm3024, %v2999, 0
        %v3029 = vsel %vm3024, %v3000, 0
        %v3032 = vsel %vm3024, %v3001, 0
        %v3035 = vsel %vm3024, %v3002, 0
        %v3038 = vsel %vm3024, %v3003, 0
        %v3041 = vsel %vm3024, %v3004, 0
        %v3044 = vsel %vm3024, %v3005, 0
        %v3047 = vsel %vm3024, %v3006, 0
        %v3050 = vsel %vm3024, %v3007, 0
        %v3053 = vsel %vm3024, %v3008, 0
        %v3056 = vsel %vm3024, %v3009, 0
        %v3059 = vsel %vm3024, %v3010, 0
        %v3062 = vsel %vm3024, %v3011, 0
        %v3065 = vsel %vm3024, %v3012, 0
        %v3068 = vsel %vm3024, %v3013, 0
        %v3071 = vsel %vm3024, %v3014, 0
        %vm3073 = vcmask 1041408
        %v3075 = vsel %vm3073, %v3015, 0
        %3077 = vmatprep.subr.mxu0 0.0
        %3078 = vmatpush1.msra.mxu0 %v3075
        %3079 = vmatprep.subr.mxu0 0.0
        %3080 = vmatpush1.msra.mxu0 0.0
        %3081 = vmatprep.subr.mxu0 0.0
        %3082 = vmatpush1.msra.mxu0 0.0
        %3083 = vmatprep.subr.mxu0 0.0
        %3084 = vmatpush1.msra.mxu0 0.0
        %3085 = vmatprep.subr.mxu0 0.0
        %3086 = vmatpush1.msra.mxu0 0.0
        %3087 = vmatprep.subr.mxu0 0.0
        %3088 = vmatpush1.msra.mxu0 0.0
        %3089 = vmatprep.subr.mxu0 0.0
        %3090 = vmatpush1.msra.mxu0 0.0
        %3091 = vmatprep.subr.mxu0 0.0
        %3092 = vmatpush1.msra.mxu0 0.0
        %3093 = vmatprep.subr.mxu0 0.0
        %3094 = vmatpush1.msra.mxu0 0.0
        %3095 = vmatprep.subr.mxu0 0.0
        %3096 = vmatpush1.msra.mxu0 0.0
        %3097 = vmatprep.subr.mxu0 0.0
        %3098 = vmatpush1.msra.mxu0 0.0
        %3099 = vmatprep.subr.mxu0 0.0
        %3100 = vmatpush1.msra.mxu0 0.0
        %3101 = vmatprep.subr.mxu0 0.0
        %3102 = vmatpush1.msra.mxu0 0.0
        %3103 = vmatprep.subr.mxu0 0.0
        %3104 = vmatpush1.msra.mxu0 0.0
        %3105 = vmatprep.subr.mxu0 0.0
        %3106 = vmatpush1.msra.mxu0 0.0
        %3107 = vmatprep.subr.mxu0 0.0
        %3108 = vmatpush1.msra.mxu0 0.0
        %3109 = vmatprep.subr.mxu0 0.0
        %3110 = vmatpush1.msra.mxu0 0.0
        %3111 = vmatprep.subr.mxu0 0.0
        %3112 = vmatpush1.msra.mxu0 0.0
        %3113 = vmatprep.subr.mxu0 0.0
        %3114 = vmatpush1.msra.mxu0 0.0
        %3115 = vmatprep.subr.mxu0 0.0
        %3116 = vmatpush1.msra.mxu0 0.0
        %3117 = vmatprep.subr.mxu0 0.0
        %3118 = vmatpush1.msra.mxu0 0.0
        %3119 = vmatprep.subr.mxu0 0.0
        %3120 = vmatpush1.msra.mxu0 0.0
        %3121 = vmatprep.subr.mxu0 0.0
        %3122 = vmatpush1.msra.mxu0 0.0
        %3123 = vmatprep.subr.mxu0 0.0
        %3124 = vmatpush1.msra.mxu0 0.0
        %3125 = vmatprep.subr.mxu0 0.0
        %3126 = vmatpush1.msra.mxu0 0.0
        %3127 = vmatprep.subr.mxu0 0.0
        %3128 = vmatpush1.msra.mxu0 0.0
        %3129 = vmatprep.subr.mxu0 0.0
        %3130 = vmatpush1.msra.mxu0 0.0
        %3131 = vmatprep.subr.mxu0 0.0
        %3132 = vmatpush1.msra.mxu0 0.0
        %3133 = vmatprep.subr.mxu0 0.0
        %3134 = vmatpush1.msra.mxu0 0.0
        %3135 = vmatprep.subr.mxu0 0.0
        %3136 = vmatpush1.msra.mxu0 0.0
        %3137 = vmatprep.subr.mxu0 0.0
        %3138 = vmatpush1.msra.mxu0 0.0
        %3139 = vmatprep.subr.mxu0 0.0
        %3140 = vmatpush1.msra.mxu0 0.0
        %3141 = vmatprep.mubr.f32.mxu0 0.0
        %3142 = vmatmul.mubr.f32.gmra.mrb[0].mxu0 %v3026
        %v3143 = vpop.f32.mrb[0].mxu0
        %v3144 = vadd.f32 %v3022, %v3143
        %v3145 = vpop.f32.mrb[0].mxu0
        %3146 = vmatprep.mubr.f32.mxu0 0.0
        %3147 = vmatmul.mubr.f32.gmra.mrb[0].mxu0 %v3029
        %v3148 = vpop.f32.mrb[0].mxu0
        %v3149 = vadd.f32 %v3022, %v3148
        %v3150 = vpop.f32.mrb[0].mxu0
        %3151 = vmatprep.mubr.f32.mxu0 0.0
        %3152 = vmatmul.mubr.f32.gmra.mrb[0].mxu0 %v3032
        %v3153 = vpop.f32.mrb[0].mxu0
        %v3154 = vadd.f32 %v3022, %v3153
        %v3155 = vpop.f32.mrb[0].mxu0
        %3156 = vmatprep.mubr.f32.mxu0 0.0
        %3157 = vmatmul.mubr.f32.gmra.mrb[0].mxu0 %v3035
        %v3158 = vpop.f32.mrb[0].mxu0
        %v3159 = vadd.f32 %v3022, %v3158
        %v3160 = vpop.f32.mrb[0].mxu0
        %3161 = vmatprep.mubr.f32.mxu0 0.0
        %3162 = vmatmul.mubr.f32.gmra.mrb[0].mxu0 %v3038
        %v3163 = vpop.f32.mrb[0].mxu0
        %v3164 = vadd.f32 %v3022, %v3163
        %v3165 = vpop.f32.mrb[0].mxu0
        %3166 = vmatprep.mubr.f32.mxu0 0.0
        %3167 = vmatmul.mubr.f32.gmra.mrb[0].mxu0 %v3041
        %v3168 = vpop.f32.mrb[0].mxu0
        %v3169 = vadd.f32 %v3022, %v3168
        %v3170 = vpop.f32.mrb[0].mxu0
        %3171 = vmatprep.mubr.f32.mxu0 0.0
        %3172 = vmatmul.mubr.f32.gmra.mrb[0].mxu0 %v3044
        %v3173 = vpop.f32.mrb[0].mxu0
        %v3174 = vadd.f32 %v3022, %v3173
        %v3175 = vpop.f32.mrb[0].mxu0
        %3176 = vmatprep.mubr.f32.mxu0 0.0
        %3177 = vmatmul.mubr.f32.gmra.mrb[0].mxu0 %v3047
        %v3178 = vpop.f32.mrb[0].mxu0
        %v3179 = vadd.f32 %v3022, %v3178
        %v3180 = vpop.f32.mrb[0].mxu0
        %3181 = vmatprep.mubr.f32.mxu0 0.0
        %3182 = vmatmul.mubr.f32.gmra.mrb[0].mxu0 %v3050
        %v3183 = vpop.f32.mrb[0].mxu0
        %v3184 = vadd.f32 %v3022, %v3183
        %v3185 = vpop.f32.mrb[0].mxu0
        %3186 = vmatprep.mubr.f32.mxu0 0.0
        %3187 = vmatmul.mubr.f32.gmra.mrb[0].mxu0 %v3053
        %v3188 = vpop.f32.mrb[0].mxu0
        %v3189 = vadd.f32 %v3022, %v3188
        %v3190 = vpop.f32.mrb[0].mxu0
        %3191 = vmatprep.mubr.f32.mxu0 0.0
        %3192 = vmatmul.mubr.f32.gmra.mrb[0].mxu0 %v3056
        %v3193 = vpop.f32.mrb[0].mxu0
        %v3194 = vadd.f32 %v3022, %v3193
        %v3195 = vpop.f32.mrb[0].mxu0
        %3196 = vmatprep.mubr.f32.mxu0 0.0
        %3197 = vmatmul.mubr.f32.gmra.mrb[0].mxu0 %v3059
        %v3198 = vpop.f32.mrb[0].mxu0
        %v3199 = vadd.f32 %v3022, %v3198
        %v3200 = vpop.f32.mrb[0].mxu0
        %3201 = vmatprep.mubr.f32.mxu0 0.0
        %3202 = vmatmul.mubr.f32.gmra.mrb[0].mxu0 %v3062
        %v3203 = vpop.f32.mrb[0].mxu0
        %v3204 = vadd.f32 %v3022, %v3203
        %v3205 = vpop.f32.mrb[0].mxu0
        %3206 = vmatprep.mubr.f32.mxu0 0.0
        %3207 = vmatmul.mubr.f32.gmra.mrb[0].mxu0 %v3065
        %v3208 = vpop.f32.mrb[0].mxu0
        %v3209 = vadd.f32 %v3022, %v3208
        %v3210 = vpop.f32.mrb[0].mxu0
        %3211 = vmatprep.mubr.f32.mxu0 0.0
        %3212 = vmatmul.mubr.f32.gmra.mrb[0].mxu0 %v3068
        %v3213 = vpop.f32.mrb[0].mxu0
        %v3214 = vadd.f32 %v3022, %v3213
        %v3215 = vpop.f32.mrb[0].mxu0
        %3216 = vmatprep.mubr.f32.mxu0 0.0
        %3217 = vmatmul.mubr.f32.gmra.mrb[0].mxu0 %v3071
        %v3218 = vpop.f32.mrb[0].mxu0
        %v3219 = vadd.f32 %v3022, %v3218
        %v3220 = vpop.f32.mrb[0].mxu0
        %3221 = vdwg.mxu0
        %v3222 = vxor.u32 %v3144, 2147483648
        %v3223 = vxor.u32 %v3149, 2147483648
        %v3224 = vxor.u32 %v3154, 2147483648
        %v3225 = vxor.u32 %v3159, 2147483648
        %v3226 = vxor.u32 %v3164, 2147483648
        %v3227 = vxor.u32 %v3169, 2147483648
        %v3228 = vxor.u32 %v3174, 2147483648
        %v3229 = vxor.u32 %v3179, 2147483648
        %v3230 = vxor.u32 %v3184, 2147483648
        %v3231 = vxor.u32 %v3189, 2147483648
        %v3232 = vxor.u32 %v3194, 2147483648
        %v3233 = vxor.u32 %v3199, 2147483648
        %v3234 = vxor.u32 %v3204, 2147483648
        %v3235 = vxor.u32 %v3209, 2147483648
        %v3236 = vxor.u32 %v3214, 2147483648
        %v3237 = vxor.u32 %v3219, 2147483648
        %v3238 = vmul.f32 %v3222, 1.442695
        %v3239 = vpow.pop %v3238
        %v3240 = vmul.f32 %v3223, 1.442695
        %v3241 = vpow.pop %v3240
        %v3242 = vmul.f32 %v3224, 1.442695
        %v3243 = vpow.pop %v3242
        %v3244 = vmul.f32 %v3225, 1.442695
        %v3245 = vpow.pop %v3244
        %v3246 = vmul.f32 %v3226, 1.442695
        %v3247 = vpow.pop %v3246
        %v3248 = vmul.f32 %v3227, 1.442695
        %v3249 = vpow.pop %v3248
        %v3250 = vmul.f32 %v3228, 1.442695
        %v3251 = vpow.pop %v3250
        %v3252 = vmul.f32 %v3229, 1.442695
        %v3253 = vpow.pop %v3252
        %v3254 = vmul.f32 %v3230, 1.442695
        %v3255 = vpow.pop %v3254
        %v3256 = vmul.f32 %v3231, 1.442695
        %v3257 = vpow.pop %v3256
        %v3258 = vmul.f32 %v3232, 1.442695
        %v3259 = vpow.pop %v3258
        %v3260 = vmul.f32 %v3233, 1.442695
        %v3261 = vpow.pop %v3260
        %v3262 = vmul.f32 %v3234, 1.442695
        %v3263 = vpow.pop %v3262
        %v3264 = vmul.f32 %v3235, 1.442695
        %v3265 = vpow.pop %v3264
        %v3266 = vmul.f32 %v3236, 1.442695
        %v3267 = vpow.pop %v3266
        %v3268 = vmul.f32 %v3237, 1.442695
        %v3269 = vpow.pop %v3268
        %v3270 = vadd.f32 %v3239, 1.0
        %v3271 = vadd.f32 %v3241, 1.0
        %v3272 = vadd.f32 %v3243, 1.0
        %v3273 = vadd.f32 %v3245, 1.0
        %v3274 = vadd.f32 %v3247, 1.0
        %v3275 = vadd.f32 %v3249, 1.0
        %v3276 = vadd.f32 %v3251, 1.0
        %v3277 = vadd.f32 %v3253, 1.0
        %v3278 = vadd.f32 %v3255, 1.0
        %v3279 = vadd.f32 %v3257, 1.0
        %v3280 = vadd.f32 %v3259, 1.0
        %v3281 = vadd.f32 %v3261, 1.0
        %v3282 = vadd.f32 %v3263, 1.0
        %v3283 = vadd.f32 %v3265, 1.0
        %v3284 = vadd.f32 %v3267, 1.0
        %v3285 = vadd.f32 %v3269, 1.0
        %v3286 = vrcp.pop %v3270
        %v3287 = vmul.f32 1.0, %v3286
        %v3288 = vrcp.pop %v3271
        %v3289 = vmul.f32 1.0, %v3288
        %v3290 = vrcp.pop %v3272
        %v3291 = vmul.f32 1.0, %v3290
        %v3292 = vrcp.pop %v3273
        %v3293 = vmul.f32 1.0, %v3292
        %v3294 = vrcp.pop %v3274
        %v3295 = vmul.f32 1.0, %v3294
        %v3296 = vrcp.pop %v3275
        %v3297 = vmul.f32 1.0, %v3296
        %v3298 = vrcp.pop %v3276
        %v3299 = vmul.f32 1.0, %v3298
        %v3300 = vrcp.pop %v3277
        %v3301 = vmul.f32 1.0, %v3300
        %v3302 = vrcp.pop %v3278
        %v3303 = vmul.f32 1.0, %v3302
        %v3304 = vrcp.pop %v3279
        %v3305 = vmul.f32 1.0, %v3304
        %v3306 = vrcp.pop %v3280
        %v3307 = vmul.f32 1.0, %v3306
        %v3308 = vrcp.pop %v3281
        %v3309 = vmul.f32 1.0, %v3308
        %v3310 = vrcp.pop %v3282
        %v3311 = vmul.f32 1.0, %v3310
        %v3312 = vrcp.pop %v3283
        %v3313 = vmul.f32 1.0, %v3312
        %v3314 = vrcp.pop %v3284
        %v3315 = vmul.f32 1.0, %v3314
        %v3316 = vrcp.pop %v3285
        %v3317 = vmul.f32 1.0, %v3316
        %v3319 = vsel %vm2789, %v3287, 0
        %v3322 = vsel %vm2789, %v3289, 0
        %v3325 = vsel %vm2789, %v3291, 0
        %v3328 = vsel %vm2789, %v3293, 0
        %v3331 = vsel %vm2789, %v3295, 0
        %v3334 = vsel %vm2789, %v3297, 0
        %v3337 = vsel %vm2789, %v3299, 0
        %v3340 = vsel %vm2789, %v3301, 0
        %v3343 = vsel %vm2789, %v3303, 0
        %v3346 = vsel %vm2789, %v3305, 0
        %v3349 = vsel %vm2789, %v3307, 0
        %v3352 = vsel %vm2789, %v3309, 0
        %v3355 = vsel %vm2789, %v3311, 0
        %v3358 = vsel %vm2789, %v3313, 0
        %v3361 = vsel %vm2789, %v3315, 0
        %v3364 = vsel %vm2789, %v3317, 0
        %3366 = vmatprep.subr.mxu0 0.0
        %3367 = vmatpush1.msra.mxu0 %v2604
        %3368 = vmatprep.subr.mxu0 0.0
        %3369 = vmatpush1.msra.mxu0 0.0
        %3370 = vmatprep.subr.mxu0 0.0
        %3371 = vmatpush1.msra.mxu0 0.0
        %3372 = vmatprep.subr.mxu0 0.0
        %3373 = vmatpush1.msra.mxu0 0.0
        %3374 = vmatprep.subr.mxu0 0.0
        %3375 = vmatpush1.msra.mxu0 0.0
        %3376 = vmatprep.subr.mxu0 0.0
        %3377 = vmatpush1.msra.mxu0 0.0
        %3378 = vmatprep.subr.mxu0 0.0
        %3379 = vmatpush1.msra.mxu0 0.0
        %3380 = vmatprep.subr.mxu0 0.0
        %3381 = vmatpush1.msra.mxu0 0.0
        %3382 = vmatprep.subr.mxu0 0.0
        %3383 = vmatpush1.msra.mxu0 0.0
        %3384 = vmatprep.subr.mxu0 0.0
        %3385 = vmatpush1.msra.mxu0 0.0
        %3386 = vmatprep.subr.mxu0 0.0
        %3387 = vmatpush1.msra.mxu0 0.0
        %3388 = vmatprep.subr.mxu0 0.0
        %3389 = vmatpush1.msra.mxu0 0.0
        %3390 = vmatprep.subr.mxu0 0.0
        %3391 = vmatpush1.msra.mxu0 0.0
        %3392 = vmatprep.subr.mxu0 0.0
        %3393 = vmatpush1.msra.mxu0 0.0
        %3394 = vmatprep.subr.mxu0 0.0
        %3395 = vmatpush1.msra.mxu0 0.0
        %3396 = vmatprep.subr.mxu0 0.0
        %3397 = vmatpush1.msra.mxu0 0.0
        %3398 = vmatprep.subr.mxu0 0.0
        %3399 = vmatpush1.msra.mxu0 0.0
        %3400 = vmatprep.subr.mxu0 0.0
        %3401 = vmatpush1.msra.mxu0 0.0
        %3402 = vmatprep.subr.mxu0 0.0
        %3403 = vmatpush1.msra.mxu0 0.0
        %3404 = vmatprep.subr.mxu0 0.0
        %3405 = vmatpush1.msra.mxu0 0.0
        %3406 = vmatprep.subr.mxu0 0.0
        %3407 = vmatpush1.msra.mxu0 0.0
        %3408 = vmatprep.subr.mxu0 0.0
        %3409 = vmatpush1.msra.mxu0 0.0
        %3410 = vmatprep.subr.mxu0 0.0
        %3411 = vmatpush1.msra.mxu0 0.0
        %3412 = vmatprep.subr.mxu0 0.0
        %3413 = vmatpush1.msra.mxu0 0.0
        %3414 = vmatprep.subr.mxu0 0.0
        %3415 = vmatpush1.msra.mxu0 0.0
        %3416 = vmatprep.subr.mxu0 0.0
        %3417 = vmatpush1.msra.mxu0 0.0
        %3418 = vmatprep.subr.mxu0 0.0
        %3419 = vmatpush1.msra.mxu0 0.0
        %3420 = vmatprep.subr.mxu0 0.0
        %3421 = vmatpush1.msra.mxu0 0.0
        %3422 = vmatprep.subr.mxu0 0.0
        %3423 = vmatpush1.msra.mxu0 0.0
        %3424 = vmatprep.subr.mxu0 0.0
        %3425 = vmatpush1.msra.mxu0 0.0
        %3426 = vmatprep.subr.mxu0 0.0
        %3427 = vmatpush1.msra.mxu0 0.0
        %3428 = vmatprep.subr.mxu0 0.0
        %3429 = vmatpush1.msra.mxu0 0.0
        %3430 = vmatprep.mubr.f32.mxu0 0.0
        %3431 = vmatmul.mubr.f32.gmra.mrb[0].mxu0 %v3319
        %v3432 = vpop.f32.mrb[0].mxu0
        %v3433 = vadd.f32 0.0, %v3432
        %v3434 = vpop.f32.mrb[0].mxu0
        %3435 = vmatprep.mubr.f32.mxu0 0.0
        %3436 = vmatmul.mubr.f32.gmra.mrb[0].mxu0 %v3322
        %v3437 = vpop.f32.mrb[0].mxu0
        %v3438 = vadd.f32 0.0, %v3437
        %v3439 = vpop.f32.mrb[0].mxu0
        %3440 = vmatprep.mubr.f32.mxu0 0.0
        %3441 = vmatmul.mubr.f32.gmra.mrb[0].mxu0 %v3325
        %v3442 = vpop.f32.mrb[0].mxu0
        %v3443 = vadd.f32 0.0, %v3442
        %v3444 = vpop.f32.mrb[0].mxu0
        %3445 = vmatprep.mubr.f32.mxu0 0.0
        %3446 = vmatmul.mubr.f32.gmra.mrb[0].mxu0 %v3328
        %v3447 = vpop.f32.mrb[0].mxu0
        %v3448 = vadd.f32 0.0, %v3447
        %v3449 = vpop.f32.mrb[0].mxu0
        %3450 = vmatprep.mubr.f32.mxu0 0.0
        %3451 = vmatmul.mubr.f32.gmra.mrb[0].mxu0 %v3331
        %v3452 = vpop.f32.mrb[0].mxu0
        %v3453 = vadd.f32 0.0, %v3452
        %v3454 = vpop.f32.mrb[0].mxu0
        %3455 = vmatprep.mubr.f32.mxu0 0.0
        %3456 = vmatmul.mubr.f32.gmra.mrb[0].mxu0 %v3334
        %v3457 = vpop.f32.mrb[0].mxu0
        %v3458 = vadd.f32 0.0, %v3457
        %v3459 = vpop.f32.mrb[0].mxu0
        %3460 = vmatprep.mubr.f32.mxu0 0.0
        %3461 = vmatmul.mubr.f32.gmra.mrb[0].mxu0 %v3337
        %v3462 = vpop.f32.mrb[0].mxu0
        %v3463 = vadd.f32 0.0, %v3462
        %v3464 = vpop.f32.mrb[0].mxu0
        %3465 = vmatprep.mubr.f32.mxu0 0.0
        %3466 = vmatmul.mubr.f32.gmra.mrb[0].mxu0 %v3340
        %v3467 = vpop.f32.mrb[0].mxu0
        %v3468 = vadd.f32 0.0, %v3467
        %v3469 = vpop.f32.mrb[0].mxu0
        %3470 = vmatprep.mubr.f32.mxu0 0.0
        %3471 = vmatmul.mubr.f32.gmra.mrb[0].mxu0 %v3343
        %v3472 = vpop.f32.mrb[0].mxu0
        %v3473 = vadd.f32 0.0, %v3472
        %v3474 = vpop.f32.mrb[0].mxu0
        %3475 = vmatprep.mubr.f32.mxu0 0.0
        %3476 = vmatmul.mubr.f32.gmra.mrb[0].mxu0 %v3346
        %v3477 = vpop.f32.mrb[0].mxu0
        %v3478 = vadd.f32 0.0, %v3477
        %v3479 = vpop.f32.mrb[0].mxu0
        %3480 = vmatprep.mubr.f32.mxu0 0.0
        %3481 = vmatmul.mubr.f32.gmra.mrb[0].mxu0 %v3349
        %v3482 = vpop.f32.mrb[0].mxu0
        %v3483 = vadd.f32 0.0, %v3482
        %v3484 = vpop.f32.mrb[0].mxu0
        %3485 = vmatprep.mubr.f32.mxu0 0.0
        %3486 = vmatmul.mubr.f32.gmra.mrb[0].mxu0 %v3352
        %v3487 = vpop.f32.mrb[0].mxu0
        %v3488 = vadd.f32 0.0, %v3487
        %v3489 = vpop.f32.mrb[0].mxu0
        %3490 = vmatprep.mubr.f32.mxu0 0.0
        %3491 = vmatmul.mubr.f32.gmra.mrb[0].mxu0 %v3355
        %v3492 = vpop.f32.mrb[0].mxu0
        %v3493 = vadd.f32 0.0, %v3492
        %v3494 = vpop.f32.mrb[0].mxu0
        %3495 = vmatprep.mubr.f32.mxu0 0.0
        %3496 = vmatmul.mubr.f32.gmra.mrb[0].mxu0 %v3358
        %v3497 = vpop.f32.mrb[0].mxu0
        %v3498 = vadd.f32 0.0, %v3497
        %v3499 = vpop.f32.mrb[0].mxu0
        %3500 = vmatprep.mubr.f32.mxu0 0.0
        %3501 = vmatmul.mubr.f32.gmra.mrb[0].mxu0 %v3361
        %v3502 = vpop.f32.mrb[0].mxu0
        %v3503 = vadd.f32 0.0, %v3502
        %v3504 = vpop.f32.mrb[0].mxu0
        %3505 = vmatprep.mubr.f32.mxu0 0.0
        %3506 = vmatmul.mubr.f32.gmra.mrb[0].mxu0 %v3364
        %v3507 = vpop.f32.mrb[0].mxu0
        %v3508 = vadd.f32 0.0, %v3507
        %v3509 = vpop.f32.mrb[0].mxu0
        %3510 = vdwg.mxu0
        %v3511 = vmul.f32 %v2525, %v3433
        %v3512 = vmul.f32 %v2530, %v3438
        %v3513 = vmul.f32 %v2535, %v3443
        %v3514 = vmul.f32 %v2540, %v3448
        %v3515 = vmul.f32 %v2545, %v3453
        %v3516 = vmul.f32 %v2550, %v3458
        %v3517 = vmul.f32 %v2555, %v3463
        %v3518 = vmul.f32 %v2560, %v3468
        %v3519 = vmul.f32 %v2565, %v3473
        %v3520 = vmul.f32 %v2570, %v3478
        %v3521 = vmul.f32 %v2575, %v3483
        %v3522 = vmul.f32 %v2580, %v3488
        %v3523 = vmul.f32 %v2585, %v3493
        %v3524 = vmul.f32 %v2590, %v3498
        %v3525 = vmul.f32 %v2595, %v3503
        %v3526 = vmul.f32 %v2600, %v3508
        %v3527 = vmul.f32 %v858, %v3511
        %v3528 = vmul.f32 %v859, %v3512
        %v3529 = vmul.f32 %v860, %v3513
        %v3530 = vmul.f32 %v861, %v3514
        %v3531 = vmul.f32 %v862, %v3515
        %v3532 = vmul.f32 %v863, %v3516
        %v3533 = vmul.f32 %v864, %v3517
        %v3534 = vmul.f32 %v865, %v3518
        %v3535 = vmul.f32 %v866, %v3519
        %v3536 = vmul.f32 %v867, %v3520
        %v3537 = vmul.f32 %v868, %v3521
        %v3538 = vmul.f32 %v869, %v3522
        %v3539 = vmul.f32 %v870, %v3523
        %v3540 = vmul.f32 %v871, %v3524
        %v3541 = vmul.f32 %v872, %v3525
        %v3542 = vmul.f32 %v873, %v3526
        %3543 = vmatprep.subr.mxu0 0.0
        %3544 = vmatpush1.msra.mxu0 %v1371
        %3545 = vmatprep.subr.mxu0 0.0
        %3546 = vmatpush1.msra.mxu0 %v1372
        %3547 = vmatprep.subr.mxu0 0.0
        %3548 = vmatpush1.msra.mxu0 %v1373
        %3549 = vmatprep.subr.mxu0 0.0
        %3550 = vmatpush1.msra.mxu0 %v1374
        %3551 = vmatprep.subr.mxu0 0.0
        %3552 = vmatpush1.msra.mxu0 %v1375
        %3553 = vmatprep.subr.mxu0 0.0
        %3554 = vmatpush1.msra.mxu0 %v1376
        %3555 = vmatprep.subr.mxu0 0.0
        %3556 = vmatpush1.msra.mxu0 %v1377
        %3557 = vmatprep.subr.mxu0 0.0
        %3558 = vmatpush1.msra.mxu0 %v1378
        %3559 = vmatprep.subr.mxu0 0.0
        %3560 = vmatpush1.msra.mxu0 %v1379
        %3561 = vmatprep.subr.mxu0 0.0
        %3562 = vmatpush1.msra.mxu0 %v1380
        %3563 = vmatprep.subr.mxu0 0.0
        %3564 = vmatpush1.msra.mxu0 %v1381
        %3565 = vmatprep.subr.mxu0 0.0
        %3566 = vmatpush1.msra.mxu0 %v1382
        %3567 = vmatprep.subr.mxu0 0.0
        %3568 = vmatpush1.msra.mxu0 %v1383
        %3569 = vmatprep.subr.mxu0 0.0
        %3570 = vmatpush1.msra.mxu0 %v1384
        %3571 = vmatprep.subr.mxu0 0.0
        %3572 = vmatpush1.msra.mxu0 %v1385
        %3573 = vmatprep.subr.mxu0 0.0
        %3574 = vmatpush1.msra.mxu0 %v1386
        %3575 = vmatprep.subr.mxu0 0.0
        %3576 = vmatpush1.msra.mxu0 0.0
        %3577 = vmatprep.subr.mxu0 0.0
        %3578 = vmatpush1.msra.mxu0 0.0
        %3579 = vmatprep.subr.mxu0 0.0
        %3580 = vmatpush1.msra.mxu0 0.0
        %3581 = vmatprep.subr.mxu0 0.0
        %3582 = vmatpush1.msra.mxu0 0.0
        %3583 = vmatprep.subr.mxu0 0.0
        %3584 = vmatpush1.msra.mxu0 0.0
        %3585 = vmatprep.subr.mxu0 0.0
        %3586 = vmatpush1.msra.mxu0 0.0
        %3587 = vmatprep.subr.mxu0 0.0
        %3588 = vmatpush1.msra.mxu0 0.0
        %3589 = vmatprep.subr.mxu0 0.0
        %3590 = vmatpush1.msra.mxu0 0.0
        %3591 = vmatprep.subr.mxu0 0.0
        %3592 = vmatpush1.msra.mxu0 0.0
        %3593 = vmatprep.subr.mxu0 0.0
        %3594 = vmatpush1.msra.mxu0 0.0
        %3595 = vmatprep.subr.mxu0 0.0
        %3596 = vmatpush1.msra.mxu0 0.0
        %3597 = vmatprep.subr.mxu0 0.0
        %3598 = vmatpush1.msra.mxu0 0.0
        %3599 = vmatprep.subr.mxu0 0.0
        %3600 = vmatpush1.msra.mxu0 0.0
        %3601 = vmatprep.subr.mxu0 0.0
        %3602 = vmatpush1.msra.mxu0 0.0
        %3603 = vmatprep.subr.mxu0 0.0
        %3604 = vmatpush1.msra.mxu0 0.0
        %3605 = vmatprep.subr.mxu0 0.0
        %3606 = vmatpush1.msra.mxu0 0.0
        %3607 = vmatprep.mubr.f32.mxu0 0.0
        %3608 = vmatmul.mubr.f32.gmra.mrb[0].mxu0 %v3527
        %v3609 = vpop.f32.mrb[0].mxu0
        %v3610 = vadd.f32 0.0, %v3609
        %v3611 = vpop.f32.mrb[0].mxu0
        %3612 = vmatprep.mubr.f32.mxu0 0.0
        %3613 = vmatmul.mubr.f32.gmra.mrb[0].mxu0 %v3528
        %v3614 = vpop.f32.mrb[0].mxu0
        %v3615 = vadd.f32 0.0, %v3614
        %v3616 = vpop.f32.mrb[0].mxu0
        %3617 = vmatprep.mubr.f32.mxu0 0.0
        %3618 = vmatmul.mubr.f32.gmra.mrb[0].mxu0 %v3529
        %v3619 = vpop.f32.mrb[0].mxu0
        %v3620 = vadd.f32 0.0, %v3619
        %v3621 = vpop.f32.mrb[0].mxu0
        %3622 = vmatprep.mubr.f32.mxu0 0.0
        %3623 = vmatmul.mubr.f32.gmra.mrb[0].mxu0 %v3530
        %v3624 = vpop.f32.mrb[0].mxu0
        %v3625 = vadd.f32 0.0, %v3624
        %v3626 = vpop.f32.mrb[0].mxu0
        %3627 = vmatprep.mubr.f32.mxu0 0.0
        %3628 = vmatmul.mubr.f32.gmra.mrb[0].mxu0 %v3531
        %v3629 = vpop.f32.mrb[0].mxu0
        %v3630 = vadd.f32 0.0, %v3629
        %v3631 = vpop.f32.mrb[0].mxu0
        %3632 = vmatprep.mubr.f32.mxu0 0.0
        %3633 = vmatmul.mubr.f32.gmra.mrb[0].mxu0 %v3532
        %v3634 = vpop.f32.mrb[0].mxu0
        %v3635 = vadd.f32 0.0, %v3634
        %v3636 = vpop.f32.mrb[0].mxu0
        %3637 = vmatprep.mubr.f32.mxu0 0.0
        %3638 = vmatmul.mubr.f32.gmra.mrb[0].mxu0 %v3533
        %v3639 = vpop.f32.mrb[0].mxu0
        %v3640 = vadd.f32 0.0, %v3639
        %v3641 = vpop.f32.mrb[0].mxu0
        %3642 = vmatprep.mubr.f32.mxu0 0.0
        %3643 = vmatmul.mubr.f32.gmra.mrb[0].mxu0 %v3534
        %v3644 = vpop.f32.mrb[0].mxu0
        %v3645 = vadd.f32 0.0, %v3644
        %v3646 = vpop.f32.mrb[0].mxu0
        %3647 = vmatprep.mubr.f32.mxu0 0.0
        %3648 = vmatmul.mubr.f32.gmra.mrb[0].mxu0 %v3535
        %v3649 = vpop.f32.mrb[0].mxu0
        %v3650 = vadd.f32 0.0, %v3649
        %v3651 = vpop.f32.mrb[0].mxu0
        %3652 = vmatprep.mubr.f32.mxu0 0.0
        %3653 = vmatmul.mubr.f32.gmra.mrb[0].mxu0 %v3536
        %v3654 = vpop.f32.mrb[0].mxu0
        %v3655 = vadd.f32 0.0, %v3654
        %v3656 = vpop.f32.mrb[0].mxu0
        %3657 = vmatprep.mubr.f32.mxu0 0.0
        %3658 = vmatmul.mubr.f32.gmra.mrb[0].mxu0 %v3537
        %v3659 = vpop.f32.mrb[0].mxu0
        %v3660 = vadd.f32 0.0, %v3659
        %v3661 = vpop.f32.mrb[0].mxu0
        %3662 = vmatprep.mubr.f32.mxu0 0.0
        %3663 = vmatmul.mubr.f32.gmra.mrb[0].mxu0 %v3538
        %v3664 = vpop.f32.mrb[0].mxu0
        %v3665 = vadd.f32 0.0, %v3664
        %v3666 = vpop.f32.mrb[0].mxu0
        %3667 = vmatprep.mubr.f32.mxu0 0.0
        %3668 = vmatmul.mubr.f32.gmra.mrb[0].mxu0 %v3539
        %v3669 = vpop.f32.mrb[0].mxu0
        %v3670 = vadd.f32 0.0, %v3669
        %v3671 = vpop.f32.mrb[0].mxu0
        %3672 = vmatprep.mubr.f32.mxu0 0.0
        %3673 = vmatmul.mubr.f32.gmra.mrb[0].mxu0 %v3540
        %v3674 = vpop.f32.mrb[0].mxu0
        %v3675 = vadd.f32 0.0, %v3674
        %v3676 = vpop.f32.mrb[0].mxu0
        %3677 = vmatprep.mubr.f32.mxu0 0.0
        %3678 = vmatmul.mubr.f32.gmra.mrb[0].mxu0 %v3541
        %v3679 = vpop.f32.mrb[0].mxu0
        %v3680 = vadd.f32 0.0, %v3679
        %v3681 = vpop.f32.mrb[0].mxu0
        %3682 = vmatprep.mubr.f32.mxu0 0.0
        %3683 = vmatmul.mubr.f32.gmra.mrb[0].mxu0 %v3542
        %v3684 = vpop.f32.mrb[0].mxu0
        %v3685 = vadd.f32 0.0, %v3684
        %v3686 = vpop.f32.mrb[0].mxu0
        %3687 = vdwg.mxu0
        %v3688 = vld [vmem:[%s16] sm:$0xff]
        %v3689 = vld [vmem:[#allocation14] sm:$0x1]
        %v3691 = vlaneseq
        %v3692 = vshrl.u32 %v3691, 7
        %v3693 = vsub.s32 0, %v3692
        %v3694 = vrot.slane %v3689, %v3693
        %v3697 = vsel %vm2789, %v3610, 0
        %v3700 = vsel %vm2789, %v3615, 0
        %v3703 = vsel %vm2789, %v3620, 0
        %v3706 = vsel %vm2789, %v3625, 0
        %v3709 = vsel %vm2789, %v3630, 0
        %v3712 = vsel %vm2789, %v3635, 0
        %v3715 = vsel %vm2789, %v3640, 0
        %v3718 = vsel %vm2789, %v3645, 0
        %v3721 = vsel %vm2789, %v3650, 0
        %v3724 = vsel %vm2789, %v3655, 0
        %v3727 = vsel %vm2789, %v3660, 0
        %v3730 = vsel %vm2789, %v3665, 0
        %v3733 = vsel %vm2789, %v3670, 0
        %v3736 = vsel %vm2789, %v3675, 0
        %v3739 = vsel %vm2789, %v3680, 0
        %v3742 = vsel %vm2789, %v3685, 0
        %3744 = vmatprep.subr.mxu0 0.0
        %3745 = vmatpush1.msra.mxu0 %v3688
        %3746 = vmatprep.subr.mxu0 0.0
        %3747 = vmatpush1.msra.mxu0 0.0
        %3748 = vmatprep.subr.mxu0 0.0
        %3749 = vmatpush1.msra.mxu0 0.0
        %3750 = vmatprep.subr.mxu0 0.0
        %3751 = vmatpush1.msra.mxu0 0.0
        %3752 = vmatprep.subr.mxu0 0.0
        %3753 = vmatpush1.msra.mxu0 0.0
        %3754 = vmatprep.subr.mxu0 0.0
        %3755 = vmatpush1.msra.mxu0 0.0
        %3756 = vmatprep.subr.mxu0 0.0
        %3757 = vmatpush1.msra.mxu0 0.0
        %3758 = vmatprep.subr.mxu0 0.0
        %3759 = vmatpush1.msra.mxu0 0.0
        %3760 = vmatprep.subr.mxu0 0.0
        %3761 = vmatpush1.msra.mxu0 0.0
        %3762 = vmatprep.subr.mxu0 0.0
        %3763 = vmatpush1.msra.mxu0 0.0
        %3764 = vmatprep.subr.mxu0 0.0
        %3765 = vmatpush1.msra.mxu0 0.0
        %3766 = vmatprep.subr.mxu0 0.0
        %3767 = vmatpush1.msra.mxu0 0.0
        %3768 = vmatprep.subr.mxu0 0.0
        %3769 = vmatpush1.msra.mxu0 0.0
        %3770 = vmatprep.subr.mxu0 0.0
        %3771 = vmatpush1.msra.mxu0 0.0
        %3772 = vmatprep.subr.mxu0 0.0
        %3773 = vmatpush1.msra.mxu0 0.0
        %3774 = vmatprep.subr.mxu0 0.0
        %3775 = vmatpush1.msra.mxu0 0.0
        %3776 = vmatprep.subr.mxu0 0.0
        %3777 = vmatpush1.msra.mxu0 0.0
        %3778 = vmatprep.subr.mxu0 0.0
        %3779 = vmatpush1.msra.mxu0 0.0
        %3780 = vmatprep.subr.mxu0 0.0
        %3781 = vmatpush1.msra.mxu0 0.0
        %3782 = vmatprep.subr.mxu0 0.0
        %3783 = vmatpush1.msra.mxu0 0.0
        %3784 = vmatprep.subr.mxu0 0.0
        %3785 = vmatpush1.msra.mxu0 0.0
        %3786 = vmatprep.subr.mxu0 0.0
        %3787 = vmatpush1.msra.mxu0 0.0
        %3788 = vmatprep.subr.mxu0 0.0
        %3789 = vmatpush1.msra.mxu0 0.0
        %3790 = vmatprep.subr.mxu0 0.0
        %3791 = vmatpush1.msra.mxu0 0.0
        %3792 = vmatprep.subr.mxu0 0.0
        %3793 = vmatpush1.msra.mxu0 0.0
        %3794 = vmatprep.subr.mxu0 0.0
        %3795 = vmatpush1.msra.mxu0 0.0
        %3796 = vmatprep.subr.mxu0 0.0
        %3797 = vmatpush1.msra.mxu0 0.0
        %3798 = vmatprep.subr.mxu0 0.0
        %3799 = vmatpush1.msra.mxu0 0.0
        %3800 = vmatprep.subr.mxu0 0.0
        %3801 = vmatpush1.msra.mxu0 0.0
        %3802 = vmatprep.subr.mxu0 0.0
        %3803 = vmatpush1.msra.mxu0 0.0
        %3804 = vmatprep.subr.mxu0 0.0
        %3805 = vmatpush1.msra.mxu0 0.0
        %3806 = vmatprep.subr.mxu0 0.0
        %3807 = vmatpush1.msra.mxu0 0.0
        %3808 = vmatprep.mubr.f32.mxu0 0.0
        %3809 = vmatmul.mubr.f32.gmra.mrb[0].mxu0 %v3697
        %v3810 = vpop.f32.mrb[0].mxu0
        %v3811 = vadd.f32 %v3694, %v3810
        %v3812 = vpop.f32.mrb[0].mxu0
        %3813 = vmatprep.mubr.f32.mxu0 0.0
        %3814 = vmatmul.mubr.f32.gmra.mrb[0].mxu0 %v3700
        %v3815 = vpop.f32.mrb[0].mxu0
        %v3816 = vadd.f32 %v3694, %v3815
        %v3817 = vpop.f32.mrb[0].mxu0
        %3818 = vmatprep.mubr.f32.mxu0 0.0
        %3819 = vmatmul.mubr.f32.gmra.mrb[0].mxu0 %v3703
        %v3820 = vpop.f32.mrb[0].mxu0
        %v3821 = vadd.f32 %v3694, %v3820
        %v3822 = vpop.f32.mrb[0].mxu0
        %3823 = vmatprep.mubr.f32.mxu0 0.0
        %3824 = vmatmul.mubr.f32.gmra.mrb[0].mxu0 %v3706
        %v3825 = vpop.f32.mrb[0].mxu0
        %v3826 = vadd.f32 %v3694, %v3825
        %v3827 = vpop.f32.mrb[0].mxu0
        %3828 = vmatprep.mubr.f32.mxu0 0.0
        %3829 = vmatmul.mubr.f32.gmra.mrb[0].mxu0 %v3709
        %v3830 = vpop.f32.mrb[0].mxu0
        %v3831 = vadd.f32 %v3694, %v3830
        %v3832 = vpop.f32.mrb[0].mxu0
        %3833 = vmatprep.mubr.f32.mxu0 0.0
        %3834 = vmatmul.mubr.f32.gmra.mrb[0].mxu0 %v3712
        %v3835 = vpop.f32.mrb[0].mxu0
        %v3836 = vadd.f32 %v3694, %v3835
        %v3837 = vpop.f32.mrb[0].mxu0
        %3838 = vmatprep.mubr.f32.mxu0 0.0
        %3839 = vmatmul.mubr.f32.gmra.mrb[0].mxu0 %v3715
        %v3840 = vpop.f32.mrb[0].mxu0
        %v3841 = vadd.f32 %v3694, %v3840
        %v3842 = vpop.f32.mrb[0].mxu0
        %3843 = vmatprep.mubr.f32.mxu0 0.0
        %3844 = vmatmul.mubr.f32.gmra.mrb[0].mxu0 %v3718
        %v3845 = vpop.f32.mrb[0].mxu0
        %v3846 = vadd.f32 %v3694, %v3845
        %v3847 = vpop.f32.mrb[0].mxu0
        %3848 = vmatprep.mubr.f32.mxu0 0.0
        %3849 = vmatmul.mubr.f32.gmra.mrb[0].mxu0 %v3721
        %v3850 = vpop.f32.mrb[0].mxu0
        %v3851 = vadd.f32 %v3694, %v3850
        %v3852 = vpop.f32.mrb[0].mxu0
        %3853 = vmatprep.mubr.f32.mxu0 0.0
        %3854 = vmatmul.mubr.f32.gmra.mrb[0].mxu0 %v3724
        %v3855 = vpop.f32.mrb[0].mxu0
        %v3856 = vadd.f32 %v3694, %v3855
        %v3857 = vpop.f32.mrb[0].mxu0
        %3858 = vmatprep.mubr.f32.mxu0 0.0
        %3859 = vmatmul.mubr.f32.gmra.mrb[0].mxu0 %v3727
        %v3860 = vpop.f32.mrb[0].mxu0
        %v3861 = vadd.f32 %v3694, %v3860
        %v3862 = vpop.f32.mrb[0].mxu0
        %3863 = vmatprep.mubr.f32.mxu0 0.0
        %3864 = vmatmul.mubr.f32.gmra.mrb[0].mxu0 %v3730
        %v3865 = vpop.f32.mrb[0].mxu0
        %v3866 = vadd.f32 %v3694, %v3865
        %v3867 = vpop.f32.mrb[0].mxu0
        %3868 = vmatprep.mubr.f32.mxu0 0.0
        %3869 = vmatmul.mubr.f32.gmra.mrb[0].mxu0 %v3733
        %v3870 = vpop.f32.mrb[0].mxu0
        %v3871 = vadd.f32 %v3694, %v3870
        %v3872 = vpop.f32.mrb[0].mxu0
        %3873 = vmatprep.mubr.f32.mxu0 0.0
        %3874 = vmatmul.mubr.f32.gmra.mrb[0].mxu0 %v3736
        %v3875 = vpop.f32.mrb[0].mxu0
        %v3876 = vadd.f32 %v3694, %v3875
        %v3877 = vpop.f32.mrb[0].mxu0
        %3878 = vmatprep.mubr.f32.mxu0 0.0
        %3879 = vmatmul.mubr.f32.gmra.mrb[0].mxu0 %v3739
        %v3880 = vpop.f32.mrb[0].mxu0
        %v3881 = vadd.f32 %v3694, %v3880
        %v3882 = vpop.f32.mrb[0].mxu0
        %3883 = vmatprep.mubr.f32.mxu0 0.0
        %3884 = vmatmul.mubr.f32.gmra.mrb[0].mxu0 %v3742
        %v3885 = vpop.f32.mrb[0].mxu0
        %v3886 = vadd.f32 %v3694, %v3885
        %v3887 = vpop.f32.mrb[0].mxu0
        %3888 = vdwg.mxu0
        %v3889 = vmax.f32 %v3811, 0.0
        %v3890 = vmax.f32 %v3816, 0.0
        %v3891 = vmax.f32 %v3821, 0.0
        %v3892 = vmax.f32 %v3826, 0.0
        %v3893 = vmax.f32 %v3831, 0.0
        %v3894 = vmax.f32 %v3836, 0.0
        %v3895 = vmax.f32 %v3841, 0.0
        %v3896 = vmax.f32 %v3846, 0.0
        %v3897 = vmax.f32 %v3851, 0.0
        %v3898 = vmax.f32 %v3856, 0.0
        %v3899 = vmax.f32 %v3861, 0.0
        %v3900 = vmax.f32 %v3866, 0.0
        %v3901 = vmax.f32 %v3871, 0.0
        %v3902 = vmax.f32 %v3876, 0.0
        %v3903 = vmax.f32 %v3881, 0.0
        %v3904 = vmax.f32 %v3886, 0.0
        %v3905 = vld [vmem:[#allocation16] sm:$0x3]
        %v3906 = vld [vmem:[#allocation17] sm:$0x1]
        %v3908 = vlaneseq
        %v3909 = vshrl.u32 %v3908, 7
        %v3910 = vsub.s32 0, %v3909
        %v3911 = vrot.slane %v3906, %v3910
        %v3914 = vsel %vm3024, %v3889, 0
        %v3917 = vsel %vm3024, %v3890, 0
        %v3920 = vsel %vm3024, %v3891, 0
        %v3923 = vsel %vm3024, %v3892, 0
        %v3926 = vsel %vm3024, %v3893, 0
        %v3929 = vsel %vm3024, %v3894, 0
        %v3932 = vsel %vm3024, %v3895, 0
        %v3935 = vsel %vm3024, %v3896, 0
        %v3938 = vsel %vm3024, %v3897, 0
        %v3941 = vsel %vm3024, %v3898, 0
        %v3944 = vsel %vm3024, %v3899, 0
        %v3947 = vsel %vm3024, %v3900, 0
        %v3950 = vsel %vm3024, %v3901, 0
        %v3953 = vsel %vm3024, %v3902, 0
        %v3956 = vsel %vm3024, %v3903, 0
        %v3959 = vsel %vm3024, %v3904, 0
        %v3962 = vsel %vm3073, %v3905, 0
        %3964 = vmatprep.subr.mxu0 0.0
        %3965 = vmatpush1.msra.mxu0 %v3962
        %3966 = vmatprep.subr.mxu0 0.0
        %3967 = vmatpush1.msra.mxu0 0.0
        %3968 = vmatprep.subr.mxu0 0.0
        %3969 = vmatpush1.msra.mxu0 0.0
        %3970 = vmatprep.subr.mxu0 0.0
        %3971 = vmatpush1.msra.mxu0 0.0
        %3972 = vmatprep.subr.mxu0 0.0
        %3973 = vmatpush1.msra.mxu0 0.0
        %3974 = vmatprep.subr.mxu0 0.0
        %3975 = vmatpush1.msra.mxu0 0.0
        %3976 = vmatprep.subr.mxu0 0.0
        %3977 = vmatpush1.msra.mxu0 0.0
        %3978 = vmatprep.subr.mxu0 0.0
        %3979 = vmatpush1.msra.mxu0 0.0
        %3980 = vmatprep.subr.mxu0 0.0
        %3981 = vmatpush1.msra.mxu0 0.0
        %3982 = vmatprep.subr.mxu0 0.0
        %3983 = vmatpush1.msra.mxu0 0.0
        %3984 = vmatprep.subr.mxu0 0.0
        %3985 = vmatpush1.msra.mxu0 0.0
        %3986 = vmatprep.subr.mxu0 0.0
        %3987 = vmatpush1.msra.mxu0 0.0
        %3988 = vmatprep.subr.mxu0 0.0
        %3989 = vmatpush1.msra.mxu0 0.0
        %3990 = vmatprep.subr.mxu0 0.0
        %3991 = vmatpush1.msra.mxu0 0.0
        %3992 = vmatprep.subr.mxu0 0.0
        %3993 = vmatpush1.msra.mxu0 0.0
        %3994 = vmatprep.subr.mxu0 0.0
        %3995 = vmatpush1.msra.mxu0 0.0
        %3996 = vmatprep.subr.mxu0 0.0
        %3997 = vmatpush1.msra.mxu0 0.0
        %3998 = vmatprep.subr.mxu0 0.0
        %3999 = vmatpush1.msra.mxu0 0.0
        %4000 = vmatprep.subr.mxu0 0.0
        %4001 = vmatpush1.msra.mxu0 0.0
        %4002 = vmatprep.subr.mxu0 0.0
        %4003 = vmatpush1.msra.mxu0 0.0
        %4004 = vmatprep.subr.mxu0 0.0
        %4005 = vmatpush1.msra.mxu0 0.0
        %4006 = vmatprep.subr.mxu0 0.0
        %4007 = vmatpush1.msra.mxu0 0.0
        %4008 = vmatprep.subr.mxu0 0.0
        %4009 = vmatpush1.msra.mxu0 0.0
        %4010 = vmatprep.subr.mxu0 0.0
        %4011 = vmatpush1.msra.mxu0 0.0
        %4012 = vmatprep.subr.mxu0 0.0
        %4013 = vmatpush1.msra.mxu0 0.0
        %4014 = vmatprep.subr.mxu0 0.0
        %4015 = vmatpush1.msra.mxu0 0.0
        %4016 = vmatprep.subr.mxu0 0.0
        %4017 = vmatpush1.msra.mxu0 0.0
        %4018 = vmatprep.subr.mxu0 0.0
        %4019 = vmatpush1.msra.mxu0 0.0
        %4020 = vmatprep.subr.mxu0 0.0
        %4021 = vmatpush1.msra.mxu0 0.0
        %4022 = vmatprep.subr.mxu0 0.0
        %4023 = vmatpush1.msra.mxu0 0.0
        %4024 = vmatprep.subr.mxu0 0.0
        %4025 = vmatpush1.msra.mxu0 0.0
        %4026 = vmatprep.subr.mxu0 0.0
        %4027 = vmatpush1.msra.mxu0 0.0
        %4028 = vmatprep.mubr.f32.mxu0 0.0
        %4029 = vmatmul.mubr.f32.gmra.mrb[0].mxu0 %v3914
        %v4030 = vpop.f32.mrb[0].mxu0
        %v4031 = vadd.f32 %v3911, %v4030
        %v4032 = vpop.f32.mrb[0].mxu0
        %4033 = vmatprep.mubr.f32.mxu0 0.0
        %4034 = vmatmul.mubr.f32.gmra.mrb[0].mxu0 %v3917
        %v4035 = vpop.f32.mrb[0].mxu0
        %v4036 = vadd.f32 %v3911, %v4035
        %v4037 = vpop.f32.mrb[0].mxu0
        %4038 = vmatprep.mubr.f32.mxu0 0.0
        %4039 = vmatmul.mubr.f32.gmra.mrb[0].mxu0 %v3920
        %v4040 = vpop.f32.mrb[0].mxu0
        %v4041 = vadd.f32 %v3911, %v4040
        %v4042 = vpop.f32.mrb[0].mxu0
        %4043 = vmatprep.mubr.f32.mxu0 0.0
        %4044 = vmatmul.mubr.f32.gmra.mrb[0].mxu0 %v3923
        %v4045 = vpop.f32.mrb[0].mxu0
        %v4046 = vadd.f32 %v3911, %v4045
        %v4047 = vpop.f32.mrb[0].mxu0
        %4048 = vmatprep.mubr.f32.mxu0 0.0
        %4049 = vmatmul.mubr.f32.gmra.mrb[0].mxu0 %v3926
        %v4050 = vpop.f32.mrb[0].mxu0
        %v4051 = vadd.f32 %v3911, %v4050
        %v4052 = vpop.f32.mrb[0].mxu0
        %4053 = vmatprep.mubr.f32.mxu0 0.0
        %4054 = vmatmul.mubr.f32.gmra.mrb[0].mxu0 %v3929
        %v4055 = vpop.f32.mrb[0].mxu0
        %v4056 = vadd.f32 %v3911, %v4055
        %v4057 = vpop.f32.mrb[0].mxu0
        %4058 = vmatprep.mubr.f32.mxu0 0.0
        %4059 = vmatmul.mubr.f32.gmra.mrb[0].mxu0 %v3932
        %v4060 = vpop.f32.mrb[0].mxu0
        %v4061 = vadd.f32 %v3911, %v4060
        %v4062 = vpop.f32.mrb[0].mxu0
        %4063 = vmatprep.mubr.f32.mxu0 0.0
        %4064 = vmatmul.mubr.f32.gmra.mrb[0].mxu0 %v3935
        %v4065 = vpop.f32.mrb[0].mxu0
        %v4066 = vadd.f32 %v3911, %v4065
        %v4067 = vpop.f32.mrb[0].mxu0
        %4068 = vmatprep.mubr.f32.mxu0 0.0
        %4069 = vmatmul.mubr.f32.gmra.mrb[0].mxu0 %v3938
        %v4070 = vpop.f32.mrb[0].mxu0
        %v4071 = vadd.f32 %v3911, %v4070
        %v4072 = vpop.f32.mrb[0].mxu0
        %4073 = vmatprep.mubr.f32.mxu0 0.0
        %4074 = vmatmul.mubr.f32.gmra.mrb[0].mxu0 %v3941
        %v4075 = vpop.f32.mrb[0].mxu0
        %v4076 = vadd.f32 %v3911, %v4075
        %v4077 = vpop.f32.mrb[0].mxu0
        %4078 = vmatprep.mubr.f32.mxu0 0.0
        %4079 = vmatmul.mubr.f32.gmra.mrb[0].mxu0 %v3944
        %v4080 = vpop.f32.mrb[0].mxu0
        %v4081 = vadd.f32 %v3911, %v4080
        %v4082 = vpop.f32.mrb[0].mxu0
        %4083 = vmatprep.mubr.f32.mxu0 0.0
        %4084 = vmatmul.mubr.f32.gmra.mrb[0].mxu0 %v3947
        %v4085 = vpop.f32.mrb[0].mxu0
        %v4086 = vadd.f32 %v3911, %v4085
        %v4087 = vpop.f32.mrb[0].mxu0
        %4088 = vmatprep.mubr.f32.mxu0 0.0
        %4089 = vmatmul.mubr.f32.gmra.mrb[0].mxu0 %v3950
        %v4090 = vpop.f32.mrb[0].mxu0
        %v4091 = vadd.f32 %v3911, %v4090
        %v4092 = vpop.f32.mrb[0].mxu0
        %4093 = vmatprep.mubr.f32.mxu0 0.0
        %4094 = vmatmul.mubr.f32.gmra.mrb[0].mxu0 %v3953
        %v4095 = vpop.f32.mrb[0].mxu0
        %v4096 = vadd.f32 %v3911, %v4095
        %v4097 = vpop.f32.mrb[0].mxu0
        %4098 = vmatprep.mubr.f32.mxu0 0.0
        %4099 = vmatmul.mubr.f32.gmra.mrb[0].mxu0 %v3956
        %v4100 = vpop.f32.mrb[0].mxu0
        %v4101 = vadd.f32 %v3911, %v4100
        %v4102 = vpop.f32.mrb[0].mxu0
        %4103 = vmatprep.mubr.f32.mxu0 0.0
        %4104 = vmatmul.mubr.f32.gmra.mrb[0].mxu0 %v3959
        %v4105 = vpop.f32.mrb[0].mxu0
        %v4106 = vadd.f32 %v3911, %v4105
        %v4107 = vpop.f32.mrb[0].mxu0
        %4108 = vdwg.mxu0
        %v4109 = vxor.u32 %v4031, 2147483648
        %v4110 = vxor.u32 %v4036, 2147483648
        %v4111 = vxor.u32 %v4041, 2147483648
        %v4112 = vxor.u32 %v4046, 2147483648
        %v4113 = vxor.u32 %v4051, 2147483648
        %v4114 = vxor.u32 %v4056, 2147483648
        %v4115 = vxor.u32 %v4061, 2147483648
        %v4116 = vxor.u32 %v4066, 2147483648
        %v4117 = vxor.u32 %v4071, 2147483648
        %v4118 = vxor.u32 %v4076, 2147483648
        %v4119 = vxor.u32 %v4081, 2147483648
        %v4120 = vxor.u32 %v4086, 2147483648
        %v4121 = vxor.u32 %v4091, 2147483648
        %v4122 = vxor.u32 %v4096, 2147483648
        %v4123 = vxor.u32 %v4101, 2147483648
        %v4124 = vxor.u32 %v4106, 2147483648
        %v4125 = vmul.f32 %v4109, 1.442695
        %v4126 = vpow.pop %v4125
        %v4127 = vmul.f32 %v4110, 1.442695
        %v4128 = vpow.pop %v4127
        %v4129 = vmul.f32 %v4111, 1.442695
        %v4130 = vpow.pop %v4129
        %v4131 = vmul.f32 %v4112, 1.442695
        %v4132 = vpow.pop %v4131
        %v4133 = vmul.f32 %v4113, 1.442695
        %v4134 = vpow.pop %v4133
        %v4135 = vmul.f32 %v4114, 1.442695
        %v4136 = vpow.pop %v4135
        %v4137 = vmul.f32 %v4115, 1.442695
        %v4138 = vpow.pop %v4137
        %v4139 = vmul.f32 %v4116, 1.442695
        %v4140 = vpow.pop %v4139
        %v4141 = vmul.f32 %v4117, 1.442695
        %v4142 = vpow.pop %v4141
        %v4143 = vmul.f32 %v4118, 1.442695
        %v4144 = vpow.pop %v4143
        %v4145 = vmul.f32 %v4119, 1.442695
        %v4146 = vpow.pop %v4145
        %v4147 = vmul.f32 %v4120, 1.442695
        %v4148 = vpow.pop %v4147
        %v4149 = vmul.f32 %v4121, 1.442695
        %v4150 = vpow.pop %v4149
        %v4151 = vmul.f32 %v4122, 1.442695
        %v4152 = vpow.pop %v4151
        %v4153 = vmul.f32 %v4123, 1.442695
        %v4154 = vpow.pop %v4153
        %v4155 = vmul.f32 %v4124, 1.442695
        %v4156 = vpow.pop %v4155
        %v4157 = vadd.f32 %v4126, 1.0
        %v4158 = vadd.f32 %v4128, 1.0
        %v4159 = vadd.f32 %v4130, 1.0
        %v4160 = vadd.f32 %v4132, 1.0
        %v4161 = vadd.f32 %v4134, 1.0
        %v4162 = vadd.f32 %v4136, 1.0
        %v4163 = vadd.f32 %v4138, 1.0
        %v4164 = vadd.f32 %v4140, 1.0
        %v4165 = vadd.f32 %v4142, 1.0
        %v4166 = vadd.f32 %v4144, 1.0
        %v4167 = vadd.f32 %v4146, 1.0
        %v4168 = vadd.f32 %v4148, 1.0
        %v4169 = vadd.f32 %v4150, 1.0
        %v4170 = vadd.f32 %v4152, 1.0
        %v4171 = vadd.f32 %v4154, 1.0
        %v4172 = vadd.f32 %v4156, 1.0
        %v4173 = vrcp.pop %v4157
        %v4174 = vmul.f32 1.0, %v4173
        %v4175 = vrcp.pop %v4158
        %v4176 = vmul.f32 1.0, %v4175
        %v4177 = vrcp.pop %v4159
        %v4178 = vmul.f32 1.0, %v4177
        %v4179 = vrcp.pop %v4160
        %v4180 = vmul.f32 1.0, %v4179
        %v4181 = vrcp.pop %v4161
        %v4182 = vmul.f32 1.0, %v4181
        %v4183 = vrcp.pop %v4162
        %v4184 = vmul.f32 1.0, %v4183
        %v4185 = vrcp.pop %v4163
        %v4186 = vmul.f32 1.0, %v4185
        %v4187 = vrcp.pop %v4164
        %v4188 = vmul.f32 1.0, %v4187
        %v4189 = vrcp.pop %v4165
        %v4190 = vmul.f32 1.0, %v4189
        %v4191 = vrcp.pop %v4166
        %v4192 = vmul.f32 1.0, %v4191
        %v4193 = vrcp.pop %v4167
        %v4194 = vmul.f32 1.0, %v4193
        %v4195 = vrcp.pop %v4168
        %v4196 = vmul.f32 1.0, %v4195
        %v4197 = vrcp.pop %v4169
        %v4198 = vmul.f32 1.0, %v4197
        %v4199 = vrcp.pop %v4170
        %v4200 = vmul.f32 1.0, %v4199
        %v4201 = vrcp.pop %v4171
        %v4202 = vmul.f32 1.0, %v4201
        %v4203 = vrcp.pop %v4172
        %v4204 = vmul.f32 1.0, %v4203
        %v4205 = vmul.f32 %v4174, 2.0
        %v4206 = vmul.f32 %v4176, 2.0
        %v4207 = vmul.f32 %v4178, 2.0
        %v4208 = vmul.f32 %v4180, 2.0
        %v4209 = vmul.f32 %v4182, 2.0
        %v4210 = vmul.f32 %v4184, 2.0
        %v4211 = vmul.f32 %v4186, 2.0
        %v4212 = vmul.f32 %v4188, 2.0
        %v4213 = vmul.f32 %v4190, 2.0
        %v4214 = vmul.f32 %v4192, 2.0
        %v4215 = vmul.f32 %v4194, 2.0
        %v4216 = vmul.f32 %v4196, 2.0
        %v4217 = vmul.f32 %v4198, 2.0
        %v4218 = vmul.f32 %v4200, 2.0
        %v4219 = vmul.f32 %v4202, 2.0
        %v4220 = vmul.f32 %v4204, 2.0
        %v4221 = vsub.f32 %v4205, 1.0
        %v4222 = vsub.f32 %v4206, 1.0
        %v4223 = vsub.f32 %v4207, 1.0
        %v4224 = vsub.f32 %v4208, 1.0
        %v4225 = vsub.f32 %v4209, 1.0
        %v4226 = vsub.f32 %v4210, 1.0
        %v4227 = vsub.f32 %v4211, 1.0
        %v4228 = vsub.f32 %v4212, 1.0
        %v4229 = vsub.f32 %v4213, 1.0
        %v4230 = vsub.f32 %v4214, 1.0
        %v4231 = vsub.f32 %v4215, 1.0
        %v4232 = vsub.f32 %v4216, 1.0
        %v4233 = vsub.f32 %v4217, 1.0
        %v4234 = vsub.f32 %v4218, 1.0
        %v4235 = vsub.f32 %v4219, 1.0
        %v4236 = vsub.f32 %v4220, 1.0
        %v4237 = vadd.f32 %v4221, 1.0
        %v4238 = vadd.f32 %v4222, 1.0
        %v4239 = vadd.f32 %v4223, 1.0
        %v4240 = vadd.f32 %v4224, 1.0
        %v4241 = vadd.f32 %v4225, 1.0
        %v4242 = vadd.f32 %v4226, 1.0
        %v4243 = vadd.f32 %v4227, 1.0
        %v4244 = vadd.f32 %v4228, 1.0
        %v4245 = vadd.f32 %v4229, 1.0
        %v4246 = vadd.f32 %v4230, 1.0
        %v4247 = vadd.f32 %v4231, 1.0
        %v4248 = vadd.f32 %v4232, 1.0
        %v4249 = vadd.f32 %v4233, 1.0
        %v4250 = vadd.f32 %v4234, 1.0
        %v4251 = vadd.f32 %v4235, 1.0
        %v4252 = vadd.f32 %v4236, 1.0
        %v4253 = vmul.f32 %v4221, 0.5
        %v4254 = vmul.f32 %v4222, 0.5
        %v4255 = vmul.f32 %v4223, 0.5
        %v4256 = vmul.f32 %v4224, 0.5
        %v4257 = vmul.f32 %v4225, 0.5
        %v4258 = vmul.f32 %v4226, 0.5
        %v4259 = vmul.f32 %v4227, 0.5
        %v4260 = vmul.f32 %v4228, 0.5
        %v4261 = vmul.f32 %v4229, 0.5
        %v4262 = vmul.f32 %v4230, 0.5
        %v4263 = vmul.f32 %v4231, 0.5
        %v4264 = vmul.f32 %v4232, 0.5
        %v4265 = vmul.f32 %v4233, 0.5
        %v4266 = vmul.f32 %v4234, 0.5
        %v4267 = vmul.f32 %v4235, 0.5
        %v4268 = vmul.f32 %v4236, 0.5
        %v4270 = vsel %vm2789, %v4237, 0
        %v4273 = vsel %vm2789, %v4238, 0
        %v4276 = vsel %vm2789, %v4239, 0
        %v4279 = vsel %vm2789, %v4240, 0
        %v4282 = vsel %vm2789, %v4241, 0
        %v4285 = vsel %vm2789, %v4242, 0
        %v4288 = vsel %vm2789, %v4243, 0
        %v4291 = vsel %vm2789, %v4244, 0
        %v4294 = vsel %vm2789, %v4245, 0
        %v4297 = vsel %vm2789, %v4246, 0
        %v4300 = vsel %vm2789, %v4247, 0
        %v4303 = vsel %vm2789, %v4248, 0
        %v4306 = vsel %vm2789, %v4249, 0
        %v4309 = vsel %vm2789, %v4250, 0
        %v4312 = vsel %vm2789, %v4251, 0
        %v4315 = vsel %vm2789, %v4252, 0
        %4317 = vmatprep.subr.mxu0 0.0
        %4318 = vmatpush1.msra.mxu0 %v2604
        %4319 = vmatprep.subr.mxu0 0.0
        %4320 = vmatpush1.msra.mxu0 0.0
        %4321 = vmatprep.subr.mxu0 0.0
        %4322 = vmatpush1.msra.mxu0 0.0
        %4323 = vmatprep.subr.mxu0 0.0
        %4324 = vmatpush1.msra.mxu0 0.0
        %4325 = vmatprep.subr.mxu0 0.0
        %4326 = vmatpush1.msra.mxu0 0.0
        %4327 = vmatprep.subr.mxu0 0.0
        %4328 = vmatpush1.msra.mxu0 0.0
        %4329 = vmatprep.subr.mxu0 0.0
        %4330 = vmatpush1.msra.mxu0 0.0
        %4331 = vmatprep.subr.mxu0 0.0
        %4332 = vmatpush1.msra.mxu0 0.0
        %4333 = vmatprep.subr.mxu0 0.0
        %4334 = vmatpush1.msra.mxu0 0.0
        %4335 = vmatprep.subr.mxu0 0.0
        %4336 = vmatpush1.msra.mxu0 0.0
        %4337 = vmatprep.subr.mxu0 0.0
        %4338 = vmatpush1.msra.mxu0 0.0
        %4339 = vmatprep.subr.mxu0 0.0
        %4340 = vmatpush1.msra.mxu0 0.0
        %4341 = vmatprep.subr.mxu0 0.0
        %4342 = vmatpush1.msra.mxu0 0.0
        %4343 = vmatprep.subr.mxu0 0.0
        %4344 = vmatpush1.msra.mxu0 0.0
        %4345 = vmatprep.subr.mxu0 0.0
        %4346 = vmatpush1.msra.mxu0 0.0
        %4347 = vmatprep.subr.mxu0 0.0
        %4348 = vmatpush1.msra.mxu0 0.0
        %4349 = vmatprep.subr.mxu0 0.0
        %4350 = vmatpush1.msra.mxu0 0.0
        %4351 = vmatprep.subr.mxu0 0.0
        %4352 = vmatpush1.msra.mxu0 0.0
        %4353 = vmatprep.subr.mxu0 0.0
        %4354 = vmatpush1.msra.mxu0 0.0
        %4355 = vmatprep.subr.mxu0 0.0
        %4356 = vmatpush1.msra.mxu0 0.0
        %4357 = vmatprep.subr.mxu0 0.0
        %4358 = vmatpush1.msra.mxu0 0.0
        %4359 = vmatprep.subr.mxu0 0.0
        %4360 = vmatpush1.msra.mxu0 0.0
        %4361 = vmatprep.subr.mxu0 0.0
        %4362 = vmatpush1.msra.mxu0 0.0
        %4363 = vmatprep.subr.mxu0 0.0
        %4364 = vmatpush1.msra.mxu0 0.0
        %4365 = vmatprep.subr.mxu0 0.0
        %4366 = vmatpush1.msra.mxu0 0.0
        %4367 = vmatprep.subr.mxu0 0.0
        %4368 = vmatpush1.msra.mxu0 0.0
        %4369 = vmatprep.subr.mxu0 0.0
        %4370 = vmatpush1.msra.mxu0 0.0
        %4371 = vmatprep.subr.mxu0 0.0
        %4372 = vmatpush1.msra.mxu0 0.0
        %4373 = vmatprep.subr.mxu0 0.0
        %4374 = vmatpush1.msra.mxu0 0.0
        %4375 = vmatprep.subr.mxu0 0.0
        %4376 = vmatpush1.msra.mxu0 0.0
        %4377 = vmatprep.subr.mxu0 0.0
        %4378 = vmatpush1.msra.mxu0 0.0
        %4379 = vmatprep.subr.mxu0 0.0
        %4380 = vmatpush1.msra.mxu0 0.0
        %4381 = vmatprep.mubr.f32.mxu0 0.0
        %4382 = vmatmul.mubr.f32.gmra.mrb[0].mxu0 %v4270
        %v4383 = vpop.f32.mrb[0].mxu0
        %v4384 = vadd.f32 0.0, %v4383
        %v4385 = vpop.f32.mrb[0].mxu0
        %4386 = vmatprep.mubr.f32.mxu0 0.0
        %4387 = vmatmul.mubr.f32.gmra.mrb[0].mxu0 %v4273
        %v4388 = vpop.f32.mrb[0].mxu0
        %v4389 = vadd.f32 0.0, %v4388
        %v4390 = vpop.f32.mrb[0].mxu0
        %4391 = vmatprep.mubr.f32.mxu0 0.0
        %4392 = vmatmul.mubr.f32.gmra.mrb[0].mxu0 %v4276
        %v4393 = vpop.f32.mrb[0].mxu0
        %v4394 = vadd.f32 0.0, %v4393
        %v4395 = vpop.f32.mrb[0].mxu0
        %4396 = vmatprep.mubr.f32.mxu0 0.0
        %4397 = vmatmul.mubr.f32.gmra.mrb[0].mxu0 %v4279
        %v4398 = vpop.f32.mrb[0].mxu0
        %v4399 = vadd.f32 0.0, %v4398
        %v4400 = vpop.f32.mrb[0].mxu0
        %4401 = vmatprep.mubr.f32.mxu0 0.0
        %4402 = vmatmul.mubr.f32.gmra.mrb[0].mxu0 %v4282
        %v4403 = vpop.f32.mrb[0].mxu0
        %v4404 = vadd.f32 0.0, %v4403
        %v4405 = vpop.f32.mrb[0].mxu0
        %4406 = vmatprep.mubr.f32.mxu0 0.0
        %4407 = vmatmul.mubr.f32.gmra.mrb[0].mxu0 %v4285
        %v4408 = vpop.f32.mrb[0].mxu0
        %v4409 = vadd.f32 0.0, %v4408
        %v4410 = vpop.f32.mrb[0].mxu0
        %4411 = vmatprep.mubr.f32.mxu0 0.0
        %4412 = vmatmul.mubr.f32.gmra.mrb[0].mxu0 %v4288
        %v4413 = vpop.f32.mrb[0].mxu0
        %v4414 = vadd.f32 0.0, %v4413
        %v4415 = vpop.f32.mrb[0].mxu0
        %4416 = vmatprep.mubr.f32.mxu0 0.0
        %4417 = vmatmul.mubr.f32.gmra.mrb[0].mxu0 %v4291
        %v4418 = vpop.f32.mrb[0].mxu0
        %v4419 = vadd.f32 0.0, %v4418
        %v4420 = vpop.f32.mrb[0].mxu0
        %4421 = vmatprep.mubr.f32.mxu0 0.0
        %4422 = vmatmul.mubr.f32.gmra.mrb[0].mxu0 %v4294
        %v4423 = vpop.f32.mrb[0].mxu0
        %v4424 = vadd.f32 0.0, %v4423
        %v4425 = vpop.f32.mrb[0].mxu0
        %4426 = vmatprep.mubr.f32.mxu0 0.0
        %4427 = vmatmul.mubr.f32.gmra.mrb[0].mxu0 %v4297
        %v4428 = vpop.f32.mrb[0].mxu0
        %v4429 = vadd.f32 0.0, %v4428
        %v4430 = vpop.f32.mrb[0].mxu0
        %4431 = vmatprep.mubr.f32.mxu0 0.0
        %4432 = vmatmul.mubr.f32.gmra.mrb[0].mxu0 %v4300
        %v4433 = vpop.f32.mrb[0].mxu0
        %v4434 = vadd.f32 0.0, %v4433
        %v4435 = vpop.f32.mrb[0].mxu0
        %4436 = vmatprep.mubr.f32.mxu0 0.0
        %4437 = vmatmul.mubr.f32.gmra.mrb[0].mxu0 %v4303
        %v4438 = vpop.f32.mrb[0].mxu0
        %v4439 = vadd.f32 0.0, %v4438
        %v4440 = vpop.f32.mrb[0].mxu0
        %4441 = vmatprep.mubr.f32.mxu0 0.0
        %4442 = vmatmul.mubr.f32.gmra.mrb[0].mxu0 %v4306
        %v4443 = vpop.f32.mrb[0].mxu0
        %v4444 = vadd.f32 0.0, %v4443
        %v4445 = vpop.f32.mrb[0].mxu0
        %4446 = vmatprep.mubr.f32.mxu0 0.0
        %4447 = vmatmul.mubr.f32.gmra.mrb[0].mxu0 %v4309
        %v4448 = vpop.f32.mrb[0].mxu0
        %v4449 = vadd.f32 0.0, %v4448
        %v4450 = vpop.f32.mrb[0].mxu0
        %4451 = vmatprep.mubr.f32.mxu0 0.0
        %4452 = vmatmul.mubr.f32.gmra.mrb[0].mxu0 %v4312
        %v4453 = vpop.f32.mrb[0].mxu0
        %v4454 = vadd.f32 0.0, %v4453
        %v4455 = vpop.f32.mrb[0].mxu0
        %4456 = vmatprep.mubr.f32.mxu0 0.0
        %4457 = vmatmul.mubr.f32.gmra.mrb[0].mxu0 %v4315
        %v4458 = vpop.f32.mrb[0].mxu0
        %v4459 = vadd.f32 0.0, %v4458
        %v4460 = vpop.f32.mrb[0].mxu0
        %4461 = vdwg.mxu0
        %v4462 = vmul.f32 %v3527, %v4384
        %v4463 = vmul.f32 %v3528, %v4389
        %v4464 = vmul.f32 %v3529, %v4394
        %v4465 = vmul.f32 %v3530, %v4399
        %v4466 = vmul.f32 %v3531, %v4404
        %v4467 = vmul.f32 %v3532, %v4409
        %v4468 = vmul.f32 %v3533, %v4414
        %v4469 = vmul.f32 %v3534, %v4419
        %v4470 = vmul.f32 %v3535, %v4424
        %v4471 = vmul.f32 %v3536, %v4429
        %v4472 = vmul.f32 %v3537, %v4434
        %v4473 = vmul.f32 %v3538, %v4439
        %v4474 = vmul.f32 %v3539, %v4444
        %v4475 = vmul.f32 %v3540, %v4449
        %v4476 = vmul.f32 %v3541, %v4454
        %v4477 = vmul.f32 %v3542, %v4459
        %4494 = vrot.lane.b32.xlu0 %v4253, 112
        %v4495 = vpop.permute.xlu0 %4494
        %4496 = vrot.lane.b32.xlu0 %v4254, 112
        %v4497 = vpop.permute.xlu0 %4496
        %4498 = vrot.lane.b32.xlu0 %v4255, 112
        %v4499 = vpop.permute.xlu0 %4498
        %4500 = vrot.lane.b32.xlu0 %v4256, 112
        %v4501 = vpop.permute.xlu0 %4500
        %4502 = vrot.lane.b32.xlu0 %v4257, 112
        %v4503 = vpop.permute.xlu0 %4502
        %4504 = vrot.lane.b32.xlu0 %v4258, 112
        %v4505 = vpop.permute.xlu0 %4504
        %4506 = vrot.lane.b32.xlu0 %v4259, 112
        %v4507 = vpop.permute.xlu0 %4506
        %4508 = vrot.lane.b32.xlu0 %v4260, 112
        %v4509 = vpop.permute.xlu0 %4508
        %4510 = vrot.lane.b32.xlu0 %v4261, 112
        %v4511 = vpop.permute.xlu0 %4510
        %4512 = vrot.lane.b32.xlu0 %v4262, 112
        %v4513 = vpop.permute.xlu0 %4512
        %4514 = vrot.lane.b32.xlu0 %v4263, 112
        %v4515 = vpop.permute.xlu0 %4514
        %4516 = vrot.lane.b32.xlu0 %v4264, 112
        %v4517 = vpop.permute.xlu0 %4516
        %4518 = vrot.lane.b32.xlu0 %v4265, 112
        %v4519 = vpop.permute.xlu0 %4518
        %4520 = vrot.lane.b32.xlu0 %v4266, 112
        %v4521 = vpop.permute.xlu0 %4520
        %4522 = vrot.lane.b32.xlu0 %v4267, 112
        %v4523 = vpop.permute.xlu0 %4522
        %4524 = vrot.lane.b32.xlu0 %v4268, 112
        %v4525 = vpop.permute.xlu0 %4524
        %v4526 = vsel %vm2789, %v4495, 0
        %v4528 = vsel %vm2789, %v4497, 0
        %v4530 = vsel %vm2789, %v4499, 0
        %v4532 = vsel %vm2789, %v4501, 0
        %v4534 = vsel %vm2789, %v4503, 0
        %v4536 = vsel %vm2789, %v4505, 0
        %v4538 = vsel %vm2789, %v4507, 0
        %v4540 = vsel %vm2789, %v4509, 0
        %v4542 = vsel %vm2789, %v4511, 0
        %v4544 = vsel %vm2789, %v4513, 0
        %v4546 = vsel %vm2789, %v4515, 0
        %v4548 = vsel %vm2789, %v4517, 0
        %v4550 = vsel %vm2789, %v4519, 0
        %v4552 = vsel %vm2789, %v4521, 0
        %v4554 = vsel %vm2789, %v4523, 0
        %v4556 = vsel %vm2789, %v4525, 0
        %4558 = vmatprep.subr.mxu0 0.0
        %4559 = vmatpush1.msra.mxu0 %v2604
        %4560 = vmatprep.subr.mxu0 0.0
        %4561 = vmatpush1.msra.mxu0 0.0
        %4562 = vmatprep.subr.mxu0 0.0
        %4563 = vmatpush1.msra.mxu0 0.0
        %4564 = vmatprep.subr.mxu0 0.0
        %4565 = vmatpush1.msra.mxu0 0.0
        %4566 = vmatprep.subr.mxu0 0.0
        %4567 = vmatpush1.msra.mxu0 0.0
        %4568 = vmatprep.subr.mxu0 0.0
        %4569 = vmatpush1.msra.mxu0 0.0
        %4570 = vmatprep.subr.mxu0 0.0
        %4571 = vmatpush1.msra.mxu0 0.0
        %4572 = vmatprep.subr.mxu0 0.0
        %4573 = vmatpush1.msra.mxu0 0.0
        %4574 = vmatprep.subr.mxu0 0.0
        %4575 = vmatpush1.msra.mxu0 0.0
        %4576 = vmatprep.subr.mxu0 0.0
        %4577 = vmatpush1.msra.mxu0 0.0
        %4578 = vmatprep.subr.mxu0 0.0
        %4579 = vmatpush1.msra.mxu0 0.0
        %4580 = vmatprep.subr.mxu0 0.0
        %4581 = vmatpush1.msra.mxu0 0.0
        %4582 = vmatprep.subr.mxu0 0.0
        %4583 = vmatpush1.msra.mxu0 0.0
        %4584 = vmatprep.subr.mxu0 0.0
        %4585 = vmatpush1.msra.mxu0 0.0
        %4586 = vmatprep.subr.mxu0 0.0
        %4587 = vmatpush1.msra.mxu0 0.0
        %4588 = vmatprep.subr.mxu0 0.0
        %4589 = vmatpush1.msra.mxu0 0.0
        %4590 = vmatprep.subr.mxu0 0.0
        %4591 = vmatpush1.msra.mxu0 0.0
        %4592 = vmatprep.subr.mxu0 0.0
        %4593 = vmatpush1.msra.mxu0 0.0
        %4594 = vmatprep.subr.mxu0 0.0
        %4595 = vmatpush1.msra.mxu0 0.0
        %4596 = vmatprep.subr.mxu0 0.0
        %4597 = vmatpush1.msra.mxu0 0.0
        %4598 = vmatprep.subr.mxu0 0.0
        %4599 = vmatpush1.msra.mxu0 0.0
        %4600 = vmatprep.subr.mxu0 0.0
        %4601 = vmatpush1.msra.mxu0 0.0
        %4602 = vmatprep.subr.mxu0 0.0
        %4603 = vmatpush1.msra.mxu0 0.0
        %4604 = vmatprep.subr.mxu0 0.0
        %4605 = vmatpush1.msra.mxu0 0.0
        %4606 = vmatprep.subr.mxu0 0.0
        %4607 = vmatpush1.msra.mxu0 0.0
        %4608 = vmatprep.subr.mxu0 0.0
        %4609 = vmatpush1.msra.mxu0 0.0
        %4610 = vmatprep.subr.mxu0 0.0
        %4611 = vmatpush1.msra.mxu0 0.0
        %4612 = vmatprep.subr.mxu0 0.0
        %4613 = vmatpush1.msra.mxu0 0.0
        %4614 = vmatprep.subr.mxu0 0.0
        %4615 = vmatpush1.msra.mxu0 0.0
        %4616 = vmatprep.subr.mxu0 0.0
        %4617 = vmatpush1.msra.mxu0 0.0
        %4618 = vmatprep.subr.mxu0 0.0
        %4619 = vmatpush1.msra.mxu0 0.0
        %4620 = vmatprep.subr.mxu0 0.0
        %4621 = vmatpush1.msra.mxu0 0.0
        %4622 = vmatprep.mubr.f32.mxu0 0.0
        %4623 = vmatmul.mubr.f32.gmra.mrb[0].mxu0 %v4526
        %v4624 = vpop.f32.mrb[0].mxu0
        %v4625 = vadd.f32 0.0, %v4624
        %v4626 = vpop.f32.mrb[0].mxu0
        %4627 = vmatprep.mubr.f32.mxu0 0.0
        %4628 = vmatmul.mubr.f32.gmra.mrb[0].mxu0 %v4528
        %v4629 = vpop.f32.mrb[0].mxu0
        %v4630 = vadd.f32 0.0, %v4629
        %v4631 = vpop.f32.mrb[0].mxu0
        %4632 = vmatprep.mubr.f32.mxu0 0.0
        %4633 = vmatmul.mubr.f32.gmra.mrb[0].mxu0 %v4530
        %v4634 = vpop.f32.mrb[0].mxu0
        %v4635 = vadd.f32 0.0, %v4634
        %v4636 = vpop.f32.mrb[0].mxu0
        %4637 = vmatprep.mubr.f32.mxu0 0.0
        %4638 = vmatmul.mubr.f32.gmra.mrb[0].mxu0 %v4532
        %v4639 = vpop.f32.mrb[0].mxu0
        %v4640 = vadd.f32 0.0, %v4639
        %v4641 = vpop.f32.mrb[0].mxu0
        %4642 = vmatprep.mubr.f32.mxu0 0.0
        %4643 = vmatmul.mubr.f32.gmra.mrb[0].mxu0 %v4534
        %v4644 = vpop.f32.mrb[0].mxu0
        %v4645 = vadd.f32 0.0, %v4644
        %v4646 = vpop.f32.mrb[0].mxu0
        %4647 = vmatprep.mubr.f32.mxu0 0.0
        %4648 = vmatmul.mubr.f32.gmra.mrb[0].mxu0 %v4536
        %v4649 = vpop.f32.mrb[0].mxu0
        %v4650 = vadd.f32 0.0, %v4649
        %v4651 = vpop.f32.mrb[0].mxu0
        %4652 = vmatprep.mubr.f32.mxu0 0.0
        %4653 = vmatmul.mubr.f32.gmra.mrb[0].mxu0 %v4538
        %v4654 = vpop.f32.mrb[0].mxu0
        %v4655 = vadd.f32 0.0, %v4654
        %v4656 = vpop.f32.mrb[0].mxu0
        %4657 = vmatprep.mubr.f32.mxu0 0.0
        %4658 = vmatmul.mubr.f32.gmra.mrb[0].mxu0 %v4540
        %v4659 = vpop.f32.mrb[0].mxu0
        %v4660 = vadd.f32 0.0, %v4659
        %v4661 = vpop.f32.mrb[0].mxu0
        %4662 = vmatprep.mubr.f32.mxu0 0.0
        %4663 = vmatmul.mubr.f32.gmra.mrb[0].mxu0 %v4542
        %v4664 = vpop.f32.mrb[0].mxu0
        %v4665 = vadd.f32 0.0, %v4664
        %v4666 = vpop.f32.mrb[0].mxu0
        %4667 = vmatprep.mubr.f32.mxu0 0.0
        %4668 = vmatmul.mubr.f32.gmra.mrb[0].mxu0 %v4544
        %v4669 = vpop.f32.mrb[0].mxu0
        %v4670 = vadd.f32 0.0, %v4669
        %v4671 = vpop.f32.mrb[0].mxu0
        %4672 = vmatprep.mubr.f32.mxu0 0.0
        %4673 = vmatmul.mubr.f32.gmra.mrb[0].mxu0 %v4546
        %v4674 = vpop.f32.mrb[0].mxu0
        %v4675 = vadd.f32 0.0, %v4674
        %v4676 = vpop.f32.mrb[0].mxu0
        %4677 = vmatprep.mubr.f32.mxu0 0.0
        %4678 = vmatmul.mubr.f32.gmra.mrb[0].mxu0 %v4548
        %v4679 = vpop.f32.mrb[0].mxu0
        %v4680 = vadd.f32 0.0, %v4679
        %v4681 = vpop.f32.mrb[0].mxu0
        %4682 = vmatprep.mubr.f32.mxu0 0.0
        %4683 = vmatmul.mubr.f32.gmra.mrb[0].mxu0 %v4550
        %v4684 = vpop.f32.mrb[0].mxu0
        %v4685 = vadd.f32 0.0, %v4684
        %v4686 = vpop.f32.mrb[0].mxu0
        %4687 = vmatprep.mubr.f32.mxu0 0.0
        %4688 = vmatmul.mubr.f32.gmra.mrb[0].mxu0 %v4552
        %v4689 = vpop.f32.mrb[0].mxu0
        %v4690 = vadd.f32 0.0, %v4689
        %v4691 = vpop.f32.mrb[0].mxu0
        %4692 = vmatprep.mubr.f32.mxu0 0.0
        %4693 = vmatmul.mubr.f32.gmra.mrb[0].mxu0 %v4554
        %v4694 = vpop.f32.mrb[0].mxu0
        %v4695 = vadd.f32 0.0, %v4694
        %v4696 = vpop.f32.mrb[0].mxu0
        %4697 = vmatprep.mubr.f32.mxu0 0.0
        %4698 = vmatmul.mubr.f32.gmra.mrb[0].mxu0 %v4556
        %v4699 = vpop.f32.mrb[0].mxu0
        %v4700 = vadd.f32 0.0, %v4699
        %v4701 = vpop.f32.mrb[0].mxu0
        %4702 = vdwg.mxu0
        %v4703 = vadd.f32 %v4462, %v4625
        %v4704 = vadd.f32 %v4463, %v4630
        %v4705 = vadd.f32 %v4464, %v4635
        %v4706 = vadd.f32 %v4465, %v4640
        %v4707 = vadd.f32 %v4466, %v4645
        %v4708 = vadd.f32 %v4467, %v4650
        %v4709 = vadd.f32 %v4468, %v4655
        %v4710 = vadd.f32 %v4469, %v4660
        %v4711 = vadd.f32 %v4470, %v4665
        %v4712 = vadd.f32 %v4471, %v4670
        %v4713 = vadd.f32 %v4472, %v4675
        %v4714 = vadd.f32 %v4473, %v4680
        %v4715 = vadd.f32 %v4474, %v4685
        %v4716 = vadd.f32 %v4475, %v4690
        %v4717 = vadd.f32 %v4476, %v4695
        %v4718 = vadd.f32 %v4477, %v4700
        %v4719 = vadd.f32 %v4221, 0.0
        %v4720 = vadd.f32 %v4222, 0.0
        %v4721 = vadd.f32 %v4223, 0.0
        %v4722 = vadd.f32 %v4224, 0.0
        %v4723 = vadd.f32 %v4225, 0.0
        %v4724 = vadd.f32 %v4226, 0.0
        %v4725 = vadd.f32 %v4227, 0.0
        %v4726 = vadd.f32 %v4228, 0.0
        %v4727 = vadd.f32 %v4229, 0.0
        %v4728 = vadd.f32 %v4230, 0.0
        %v4729 = vadd.f32 %v4231, 0.0
        %v4730 = vadd.f32 %v4232, 0.0
        %v4731 = vadd.f32 %v4233, 0.0
        %v4732 = vadd.f32 %v4234, 0.0
        %v4733 = vadd.f32 %v4235, 0.0
        %v4734 = vadd.f32 %v4236, 0.0
        %4751 = vrot.lane.b32.xlu0 %v4719, 120
        %v4752 = vpop.permute.xlu0 %4751
        %4753 = vrot.lane.b32.xlu0 %v4720, 120
        %v4754 = vpop.permute.xlu0 %4753
        %4755 = vrot.lane.b32.xlu0 %v4721, 120
        %v4756 = vpop.permute.xlu0 %4755
        %4757 = vrot.lane.b32.xlu0 %v4722, 120
        %v4758 = vpop.permute.xlu0 %4757
        %4759 = vrot.lane.b32.xlu0 %v4723, 120
        %v4760 = vpop.permute.xlu0 %4759
        %4761 = vrot.lane.b32.xlu0 %v4724, 120
        %v4762 = vpop.permute.xlu0 %4761
        %4763 = vrot.lane.b32.xlu0 %v4725, 120
        %v4764 = vpop.permute.xlu0 %4763
        %4765 = vrot.lane.b32.xlu0 %v4726, 120
        %v4766 = vpop.permute.xlu0 %4765
        %4767 = vrot.lane.b32.xlu0 %v4727, 120
        %v4768 = vpop.permute.xlu0 %4767
        %4769 = vrot.lane.b32.xlu0 %v4728, 120
        %v4770 = vpop.permute.xlu0 %4769
        %4771 = vrot.lane.b32.xlu0 %v4729, 120
        %v4772 = vpop.permute.xlu0 %4771
        %4773 = vrot.lane.b32.xlu0 %v4730, 120
        %v4774 = vpop.permute.xlu0 %4773
        %4775 = vrot.lane.b32.xlu0 %v4731, 120
        %v4776 = vpop.permute.xlu0 %4775
        %4777 = vrot.lane.b32.xlu0 %v4732, 120
        %v4778 = vpop.permute.xlu0 %4777
        %4779 = vrot.lane.b32.xlu0 %v4733, 120
        %v4780 = vpop.permute.xlu0 %4779
        %4781 = vrot.lane.b32.xlu0 %v4734, 120
        %v4782 = vpop.permute.xlu0 %4781
        %v4783 = vsel %vm2789, %v4752, 0
        %v4785 = vsel %vm2789, %v4754, 0
        %v4787 = vsel %vm2789, %v4756, 0
        %v4789 = vsel %vm2789, %v4758, 0
        %v4791 = vsel %vm2789, %v4760, 0
        %v4793 = vsel %vm2789, %v4762, 0
        %v4795 = vsel %vm2789, %v4764, 0
        %v4797 = vsel %vm2789, %v4766, 0
        %v4799 = vsel %vm2789, %v4768, 0
        %v4801 = vsel %vm2789, %v4770, 0
        %v4803 = vsel %vm2789, %v4772, 0
        %v4805 = vsel %vm2789, %v4774, 0
        %v4807 = vsel %vm2789, %v4776, 0
        %v4809 = vsel %vm2789, %v4778, 0
        %v4811 = vsel %vm2789, %v4780, 0
        %v4813 = vsel %vm2789, %v4782, 0
        %4815 = vmatprep.subr.mxu0 0.0
        %4816 = vmatpush1.msra.mxu0 %v2604
        %4817 = vmatprep.subr.mxu0 0.0
        %4818 = vmatpush1.msra.mxu0 0.0
        %4819 = vmatprep.subr.mxu0 0.0
        %4820 = vmatpush1.msra.mxu0 0.0
        %4821 = vmatprep.subr.mxu0 0.0
        %4822 = vmatpush1.msra.mxu0 0.0
        %4823 = vmatprep.subr.mxu0 0.0
        %4824 = vmatpush1.msra.mxu0 0.0
        %4825 = vmatprep.subr.mxu0 0.0
        %4826 = vmatpush1.msra.mxu0 0.0
        %4827 = vmatprep.subr.mxu0 0.0
        %4828 = vmatpush1.msra.mxu0 0.0
        %4829 = vmatprep.subr.mxu0 0.0
        %4830 = vmatpush1.msra.mxu0 0.0
        %4831 = vmatprep.subr.mxu0 0.0
        %4832 = vmatpush1.msra.mxu0 0.0
        %4833 = vmatprep.subr.mxu0 0.0
        %4834 = vmatpush1.msra.mxu0 0.0
        %4835 = vmatprep.subr.mxu0 0.0
        %4836 = vmatpush1.msra.mxu0 0.0
        %4837 = vmatprep.subr.mxu0 0.0
        %4838 = vmatpush1.msra.mxu0 0.0
        %4839 = vmatprep.subr.mxu0 0.0
        %4840 = vmatpush1.msra.mxu0 0.0
        %4841 = vmatprep.subr.mxu0 0.0
        %4842 = vmatpush1.msra.mxu0 0.0
        %4843 = vmatprep.subr.mxu0 0.0
        %4844 = vmatpush1.msra.mxu0 0.0
        %4845 = vmatprep.subr.mxu0 0.0
        %4846 = vmatpush1.msra.mxu0 0.0
        %4847 = vmatprep.subr.mxu0 0.0
        %4848 = vmatpush1.msra.mxu0 0.0
        %4849 = vmatprep.subr.mxu0 0.0
        %4850 = vmatpush1.msra.mxu0 0.0
        %4851 = vmatprep.subr.mxu0 0.0
        %4852 = vmatpush1.msra.mxu0 0.0
        %4853 = vmatprep.subr.mxu0 0.0
        %4854 = vmatpush1.msra.mxu0 0.0
        %4855 = vmatprep.subr.mxu0 0.0
        %4856 = vmatpush1.msra.mxu0 0.0
        %4857 = vmatprep.subr.mxu0 0.0
        %4858 = vmatpush1.msra.mxu0 0.0
        %4859 = vmatprep.subr.mxu0 0.0
        %4860 = vmatpush1.msra.mxu0 0.0
        %4861 = vmatprep.subr.mxu0 0.0
        %4862 = vmatpush1.msra.mxu0 0.0
        %4863 = vmatprep.subr.mxu0 0.0
        %4864 = vmatpush1.msra.mxu0 0.0
        %4865 = vmatprep.subr.mxu0 0.0
        %4866 = vmatpush1.msra.mxu0 0.0
        %4867 = vmatprep.subr.mxu0 0.0
        %4868 = vmatpush1.msra.mxu0 0.0
        %4869 = vmatprep.subr.mxu0 0.0
        %4870 = vmatpush1.msra.mxu0 0.0
        %4871 = vmatprep.subr.mxu0 0.0
        %4872 = vmatpush1.msra.mxu0 0.0
        %4873 = vmatprep.subr.mxu0 0.0
        %4874 = vmatpush1.msra.mxu0 0.0
        %4875 = vmatprep.subr.mxu0 0.0
        %4876 = vmatpush1.msra.mxu0 0.0
        %4877 = vmatprep.subr.mxu0 0.0
        %4878 = vmatpush1.msra.mxu0 0.0
        %4879 = vmatprep.mubr.f32.mxu0 0.0
        %4880 = vmatmul.mubr.f32.gmra.mrb[0].mxu0 %v4783
        %v4881 = vpop.f32.mrb[0].mxu0
        %v4882 = vadd.f32 0.0, %v4881
        %v4883 = vpop.f32.mrb[0].mxu0
        %4884 = vmatprep.mubr.f32.mxu0 0.0
        %4885 = vmatmul.mubr.f32.gmra.mrb[0].mxu0 %v4785
        %v4886 = vpop.f32.mrb[0].mxu0
        %v4887 = vadd.f32 0.0, %v4886
        %v4888 = vpop.f32.mrb[0].mxu0
        %4889 = vmatprep.mubr.f32.mxu0 0.0
        %4890 = vmatmul.mubr.f32.gmra.mrb[0].mxu0 %v4787
        %v4891 = vpop.f32.mrb[0].mxu0
        %v4892 = vadd.f32 0.0, %v4891
        %v4893 = vpop.f32.mrb[0].mxu0
        %4894 = vmatprep.mubr.f32.mxu0 0.0
        %4895 = vmatmul.mubr.f32.gmra.mrb[0].mxu0 %v4789
        %v4896 = vpop.f32.mrb[0].mxu0
        %v4897 = vadd.f32 0.0, %v4896
        %v4898 = vpop.f32.mrb[0].mxu0
        %4899 = vmatprep.mubr.f32.mxu0 0.0
        %4900 = vmatmul.mubr.f32.gmra.mrb[0].mxu0 %v4791
        %v4901 = vpop.f32.mrb[0].mxu0
        %v4902 = vadd.f32 0.0, %v4901
        %v4903 = vpop.f32.mrb[0].mxu0
        %4904 = vmatprep.mubr.f32.mxu0 0.0
        %4905 = vmatmul.mubr.f32.gmra.mrb[0].mxu0 %v4793
        %v4906 = vpop.f32.mrb[0].mxu0
        %v4907 = vadd.f32 0.0, %v4906
        %v4908 = vpop.f32.mrb[0].mxu0
        %4909 = vmatprep.mubr.f32.mxu0 0.0
        %4910 = vmatmul.mubr.f32.gmra.mrb[0].mxu0 %v4795
        %v4911 = vpop.f32.mrb[0].mxu0
        %v4912 = vadd.f32 0.0, %v4911
        %v4913 = vpop.f32.mrb[0].mxu0
        %4914 = vmatprep.mubr.f32.mxu0 0.0
        %4915 = vmatmul.mubr.f32.gmra.mrb[0].mxu0 %v4797
        %v4916 = vpop.f32.mrb[0].mxu0
        %v4917 = vadd.f32 0.0, %v4916
        %v4918 = vpop.f32.mrb[0].mxu0
        %4919 = vmatprep.mubr.f32.mxu0 0.0
        %4920 = vmatmul.mubr.f32.gmra.mrb[0].mxu0 %v4799
        %v4921 = vpop.f32.mrb[0].mxu0
        %v4922 = vadd.f32 0.0, %v4921
        %v4923 = vpop.f32.mrb[0].mxu0
        %4924 = vmatprep.mubr.f32.mxu0 0.0
        %4925 = vmatmul.mubr.f32.gmra.mrb[0].mxu0 %v4801
        %v4926 = vpop.f32.mrb[0].mxu0
        %v4927 = vadd.f32 0.0, %v4926
        %v4928 = vpop.f32.mrb[0].mxu0
        %4929 = vmatprep.mubr.f32.mxu0 0.0
        %4930 = vmatmul.mubr.f32.gmra.mrb[0].mxu0 %v4803
        %v4931 = vpop.f32.mrb[0].mxu0
        %v4932 = vadd.f32 0.0, %v4931
        %v4933 = vpop.f32.mrb[0].mxu0
        %4934 = vmatprep.mubr.f32.mxu0 0.0
        %4935 = vmatmul.mubr.f32.gmra.mrb[0].mxu0 %v4805
        %v4936 = vpop.f32.mrb[0].mxu0
        %v4937 = vadd.f32 0.0, %v4936
        %v4938 = vpop.f32.mrb[0].mxu0
        %4939 = vmatprep.mubr.f32.mxu0 0.0
        %4940 = vmatmul.mubr.f32.gmra.mrb[0].mxu0 %v4807
        %v4941 = vpop.f32.mrb[0].mxu0
        %v4942 = vadd.f32 0.0, %v4941
        %v4943 = vpop.f32.mrb[0].mxu0
        %4944 = vmatprep.mubr.f32.mxu0 0.0
        %4945 = vmatmul.mubr.f32.gmra.mrb[0].mxu0 %v4809
        %v4946 = vpop.f32.mrb[0].mxu0
        %v4947 = vadd.f32 0.0, %v4946
        %v4948 = vpop.f32.mrb[0].mxu0
        %4949 = vmatprep.mubr.f32.mxu0 0.0
        %4950 = vmatmul.mubr.f32.gmra.mrb[0].mxu0 %v4811
        %v4951 = vpop.f32.mrb[0].mxu0
        %v4952 = vadd.f32 0.0, %v4951
        %v4953 = vpop.f32.mrb[0].mxu0
        %4954 = vmatprep.mubr.f32.mxu0 0.0
        %4955 = vmatmul.mubr.f32.gmra.mrb[0].mxu0 %v4813
        %v4956 = vpop.f32.mrb[0].mxu0
        %v4957 = vadd.f32 0.0, %v4956
        %v4958 = vpop.f32.mrb[0].mxu0
        %4959 = vdwg.mxu0
        %v4960 = vmul.f32 %v3527, %v4882
        %v4961 = vmul.f32 %v3528, %v4887
        %v4962 = vmul.f32 %v3529, %v4892
        %v4963 = vmul.f32 %v3530, %v4897
        %v4964 = vmul.f32 %v3531, %v4902
        %v4965 = vmul.f32 %v3532, %v4907
        %v4966 = vmul.f32 %v3533, %v4912
        %v4967 = vmul.f32 %v3534, %v4917
        %v4968 = vmul.f32 %v3535, %v4922
        %v4969 = vmul.f32 %v3536, %v4927
        %v4970 = vmul.f32 %v3537, %v4932
        %v4971 = vmul.f32 %v3538, %v4937
        %v4972 = vmul.f32 %v3539, %v4942
        %v4973 = vmul.f32 %v3540, %v4947
        %v4974 = vmul.f32 %v3541, %v4952
        %v4975 = vmul.f32 %v3542, %v4957
        %4976 = vrot.lane.b32.xlu0 %v4253, 104
        %v4977 = vpop.permute.xlu0 %4976
        %4978 = vrot.lane.b32.xlu0 %v4254, 104
        %v4979 = vpop.permute.xlu0 %4978
        %4980 = vrot.lane.b32.xlu0 %v4255, 104
        %v4981 = vpop.permute.xlu0 %4980
        %4982 = vrot.lane.b32.xlu0 %v4256, 104
        %v4983 = vpop.permute.xlu0 %4982
        %4984 = vrot.lane.b32.xlu0 %v4257, 104
        %v4985 = vpop.permute.xlu0 %4984
        %4986 = vrot.lane.b32.xlu0 %v4258, 104
        %v4987 = vpop.permute.xlu0 %4986
        %4988 = vrot.lane.b32.xlu0 %v4259, 104
        %v4989 = vpop.permute.xlu0 %4988
        %4990 = vrot.lane.b32.xlu0 %v4260, 104
        %v4991 = vpop.permute.xlu0 %4990
        %4992 = vrot.lane.b32.xlu0 %v4261, 104
        %v4993 = vpop.permute.xlu0 %4992
        %4994 = vrot.lane.b32.xlu0 %v4262, 104
        %v4995 = vpop.permute.xlu0 %4994
        %4996 = vrot.lane.b32.xlu0 %v4263, 104
        %v4997 = vpop.permute.xlu0 %4996
        %4998 = vrot.lane.b32.xlu0 %v4264, 104
        %v4999 = vpop.permute.xlu0 %4998
        %5000 = vrot.lane.b32.xlu0 %v4265, 104
        %v5001 = vpop.permute.xlu0 %5000
        %5002 = vrot.lane.b32.xlu0 %v4266, 104
        %v5003 = vpop.permute.xlu0 %5002
        %5004 = vrot.lane.b32.xlu0 %v4267, 104
        %v5005 = vpop.permute.xlu0 %5004
        %5006 = vrot.lane.b32.xlu0 %v4268, 104
        %v5007 = vpop.permute.xlu0 %5006
        %v5008 = vsel %vm2789, %v4977, 0
        %v5010 = vsel %vm2789, %v4979, 0
        %v5012 = vsel %vm2789, %v4981, 0
        %v5014 = vsel %vm2789, %v4983, 0
        %v5016 = vsel %vm2789, %v4985, 0
        %v5018 = vsel %vm2789, %v4987, 0
        %v5020 = vsel %vm2789, %v4989, 0
        %v5022 = vsel %vm2789, %v4991, 0
        %v5024 = vsel %vm2789, %v4993, 0
        %v5026 = vsel %vm2789, %v4995, 0
        %v5028 = vsel %vm2789, %v4997, 0
        %v5030 = vsel %vm2789, %v4999, 0
        %v5032 = vsel %vm2789, %v5001, 0
        %v5034 = vsel %vm2789, %v5003, 0
        %v5036 = vsel %vm2789, %v5005, 0
        %v5038 = vsel %vm2789, %v5007, 0
        %5040 = vmatprep.subr.mxu0 0.0
        %5041 = vmatpush1.msra.mxu0 %v2604
        %5042 = vmatprep.subr.mxu0 0.0
        %5043 = vmatpush1.msra.mxu0 0.0
        %5044 = vmatprep.subr.mxu0 0.0
        %5045 = vmatpush1.msra.mxu0 0.0
        %5046 = vmatprep.subr.mxu0 0.0
        %5047 = vmatpush1.msra.mxu0 0.0
        %5048 = vmatprep.subr.mxu0 0.0
        %5049 = vmatpush1.msra.mxu0 0.0
        %5050 = vmatprep.subr.mxu0 0.0
        %5051 = vmatpush1.msra.mxu0 0.0
        %5052 = vmatprep.subr.mxu0 0.0
        %5053 = vmatpush1.msra.mxu0 0.0
        %5054 = vmatprep.subr.mxu0 0.0
        %5055 = vmatpush1.msra.mxu0 0.0
        %5056 = vmatprep.subr.mxu0 0.0
        %5057 = vmatpush1.msra.mxu0 0.0
        %5058 = vmatprep.subr.mxu0 0.0
        %5059 = vmatpush1.msra.mxu0 0.0
        %5060 = vmatprep.subr.mxu0 0.0
        %5061 = vmatpush1.msra.mxu0 0.0
        %5062 = vmatprep.subr.mxu0 0.0
        %5063 = vmatpush1.msra.mxu0 0.0
        %5064 = vmatprep.subr.mxu0 0.0
        %5065 = vmatpush1.msra.mxu0 0.0
        %5066 = vmatprep.subr.mxu0 0.0
        %5067 = vmatpush1.msra.mxu0 0.0
        %5068 = vmatprep.subr.mxu0 0.0
        %5069 = vmatpush1.msra.mxu0 0.0
        %5070 = vmatprep.subr.mxu0 0.0
        %5071 = vmatpush1.msra.mxu0 0.0
        %5072 = vmatprep.subr.mxu0 0.0
        %5073 = vmatpush1.msra.mxu0 0.0
        %5074 = vmatprep.subr.mxu0 0.0
        %5075 = vmatpush1.msra.mxu0 0.0
        %5076 = vmatprep.subr.mxu0 0.0
        %5077 = vmatpush1.msra.mxu0 0.0
        %5078 = vmatprep.subr.mxu0 0.0
        %5079 = vmatpush1.msra.mxu0 0.0
        %5080 = vmatprep.subr.mxu0 0.0
        %5081 = vmatpush1.msra.mxu0 0.0
        %5082 = vmatprep.subr.mxu0 0.0
        %5083 = vmatpush1.msra.mxu0 0.0
        %5084 = vmatprep.subr.mxu0 0.0
        %5085 = vmatpush1.msra.mxu0 0.0
        %5086 = vmatprep.subr.mxu0 0.0
        %5087 = vmatpush1.msra.mxu0 0.0
        %5088 = vmatprep.subr.mxu0 0.0
        %5089 = vmatpush1.msra.mxu0 0.0
        %5090 = vmatprep.subr.mxu0 0.0
        %5091 = vmatpush1.msra.mxu0 0.0
        %5092 = vmatprep.subr.mxu0 0.0
        %5093 = vmatpush1.msra.mxu0 0.0
        %5094 = vmatprep.subr.mxu0 0.0
        %5095 = vmatpush1.msra.mxu0 0.0
        %5096 = vmatprep.subr.mxu0 0.0
        %5097 = vmatpush1.msra.mxu0 0.0
        %5098 = vmatprep.subr.mxu0 0.0
        %5099 = vmatpush1.msra.mxu0 0.0
        %5100 = vmatprep.subr.mxu0 0.0
        %5101 = vmatpush1.msra.mxu0 0.0
        %5102 = vmatprep.subr.mxu0 0.0
        %5103 = vmatpush1.msra.mxu0 0.0
        %5104 = vmatprep.mubr.f32.mxu0 0.0
        %5105 = vmatmul.mubr.f32.gmra.mrb[0].mxu0 %v5008
        %v5106 = vpop.f32.mrb[0].mxu0
        %v5107 = vadd.f32 0.0, %v5106
        %v5108 = vpop.f32.mrb[0].mxu0
        %5109 = vmatprep.mubr.f32.mxu0 0.0
        %5110 = vmatmul.mubr.f32.gmra.mrb[0].mxu0 %v5010
        %v5111 = vpop.f32.mrb[0].mxu0
        %v5112 = vadd.f32 0.0, %v5111
        %v5113 = vpop.f32.mrb[0].mxu0
        %5114 = vmatprep.mubr.f32.mxu0 0.0
        %5115 = vmatmul.mubr.f32.gmra.mrb[0].mxu0 %v5012
        %v5116 = vpop.f32.mrb[0].mxu0
        %v5117 = vadd.f32 0.0, %v5116
        %v5118 = vpop.f32.mrb[0].mxu0
        %5119 = vmatprep.mubr.f32.mxu0 0.0
        %5120 = vmatmul.mubr.f32.gmra.mrb[0].mxu0 %v5014
        %v5121 = vpop.f32.mrb[0].mxu0
        %v5122 = vadd.f32 0.0, %v5121
        %v5123 = vpop.f32.mrb[0].mxu0
        %5124 = vmatprep.mubr.f32.mxu0 0.0
        %5125 = vmatmul.mubr.f32.gmra.mrb[0].mxu0 %v5016
        %v5126 = vpop.f32.mrb[0].mxu0
        %v5127 = vadd.f32 0.0, %v5126
        %v5128 = vpop.f32.mrb[0].mxu0
        %5129 = vmatprep.mubr.f32.mxu0 0.0
        %5130 = vmatmul.mubr.f32.gmra.mrb[0].mxu0 %v5018
        %v5131 = vpop.f32.mrb[0].mxu0
        %v5132 = vadd.f32 0.0, %v5131
        %v5133 = vpop.f32.mrb[0].mxu0
        %5134 = vmatprep.mubr.f32.mxu0 0.0
        %5135 = vmatmul.mubr.f32.gmra.mrb[0].mxu0 %v5020
        %v5136 = vpop.f32.mrb[0].mxu0
        %v5137 = vadd.f32 0.0, %v5136
        %v5138 = vpop.f32.mrb[0].mxu0
        %5139 = vmatprep.mubr.f32.mxu0 0.0
        %5140 = vmatmul.mubr.f32.gmra.mrb[0].mxu0 %v5022
        %v5141 = vpop.f32.mrb[0].mxu0
        %v5142 = vadd.f32 0.0, %v5141
        %v5143 = vpop.f32.mrb[0].mxu0
        %5144 = vmatprep.mubr.f32.mxu0 0.0
        %5145 = vmatmul.mubr.f32.gmra.mrb[0].mxu0 %v5024
        %v5146 = vpop.f32.mrb[0].mxu0
        %v5147 = vadd.f32 0.0, %v5146
        %v5148 = vpop.f32.mrb[0].mxu0
        %5149 = vmatprep.mubr.f32.mxu0 0.0
        %5150 = vmatmul.mubr.f32.gmra.mrb[0].mxu0 %v5026
        %v5151 = vpop.f32.mrb[0].mxu0
        %v5152 = vadd.f32 0.0, %v5151
        %v5153 = vpop.f32.mrb[0].mxu0
        %5154 = vmatprep.mubr.f32.mxu0 0.0
        %5155 = vmatmul.mubr.f32.gmra.mrb[0].mxu0 %v5028
        %v5156 = vpop.f32.mrb[0].mxu0
        %v5157 = vadd.f32 0.0, %v5156
        %v5158 = vpop.f32.mrb[0].mxu0
        %5159 = vmatprep.mubr.f32.mxu0 0.0
        %5160 = vmatmul.mubr.f32.gmra.mrb[0].mxu0 %v5030
        %v5161 = vpop.f32.mrb[0].mxu0
        %v5162 = vadd.f32 0.0, %v5161
        %v5163 = vpop.f32.mrb[0].mxu0
        %5164 = vmatprep.mubr.f32.mxu0 0.0
        %5165 = vmatmul.mubr.f32.gmra.mrb[0].mxu0 %v5032
        %v5166 = vpop.f32.mrb[0].mxu0
        %v5167 = vadd.f32 0.0, %v5166
        %v5168 = vpop.f32.mrb[0].mxu0
        %5169 = vmatprep.mubr.f32.mxu0 0.0
        %5170 = vmatmul.mubr.f32.gmra.mrb[0].mxu0 %v5034
        %v5171 = vpop.f32.mrb[0].mxu0
        %v5172 = vadd.f32 0.0, %v5171
        %v5173 = vpop.f32.mrb[0].mxu0
        %5174 = vmatprep.mubr.f32.mxu0 0.0
        %5175 = vmatmul.mubr.f32.gmra.mrb[0].mxu0 %v5036
        %v5176 = vpop.f32.mrb[0].mxu0
        %v5177 = vadd.f32 0.0, %v5176
        %v5178 = vpop.f32.mrb[0].mxu0
        %5179 = vmatprep.mubr.f32.mxu0 0.0
        %5180 = vmatmul.mubr.f32.gmra.mrb[0].mxu0 %v5038
        %v5181 = vpop.f32.mrb[0].mxu0
        %v5182 = vadd.f32 0.0, %v5181
        %v5183 = vpop.f32.mrb[0].mxu0
        %5184 = vdwg.mxu0
        %v5185 = vadd.f32 %v4960, %v5107
        %v5186 = vadd.f32 %v4961, %v5112
        %v5187 = vadd.f32 %v4962, %v5117
        %v5188 = vadd.f32 %v4963, %v5122
        %v5189 = vadd.f32 %v4964, %v5127
        %v5190 = vadd.f32 %v4965, %v5132
        %v5191 = vadd.f32 %v4966, %v5137
        %v5192 = vadd.f32 %v4967, %v5142
        %v5193 = vadd.f32 %v4968, %v5147
        %v5194 = vadd.f32 %v4969, %v5152
        %v5195 = vadd.f32 %v4970, %v5157
        %v5196 = vadd.f32 %v4971, %v5162
        %v5197 = vadd.f32 %v4972, %v5167
        %v5198 = vadd.f32 %v4973, %v5172
        %v5199 = vadd.f32 %v4974, %v5177
        %v5200 = vadd.f32 %v4975, %v5182
        %v5201 = vmax.f32 %v4703, %v5185
        %v5202 = vmax.f32 %v4704, %v5186
        %v5203 = vmax.f32 %v4705, %v5187
        %v5204 = vmax.f32 %v4706, %v5188
        %v5205 = vmax.f32 %v4707, %v5189
        %v5206 = vmax.f32 %v4708, %v5190
        %v5207 = vmax.f32 %v4709, %v5191
        %v5208 = vmax.f32 %v4710, %v5192
        %v5209 = vmax.f32 %v4711, %v5193
        %v5210 = vmax.f32 %v4712, %v5194
        %v5211 = vmax.f32 %v4713, %v5195
        %v5212 = vmax.f32 %v4714, %v5196
        %v5213 = vmax.f32 %v4715, %v5197
        %v5214 = vmax.f32 %v4716, %v5198
        %v5215 = vmax.f32 %v4717, %v5199
        %v5216 = vmax.f32 %v4718, %v5200
        %v5217 = vld [vmem:[%s20] sm:$0xff]
        %v5218 = vld [vmem:[%s20 + $0x8] sm:$0xff]
        %v5219 = vld [vmem:[%s20 + $0x10] sm:$0xff]
        %v5220 = vld [vmem:[%s20 + $0x18] sm:$0xff]
        %v5221 = vld [vmem:[%s20 + $0x20] sm:$0xff]
        %v5222 = vld [vmem:[%s20 + $0x28] sm:$0xff]
        %v5223 = vld [vmem:[%s20 + $0x30] sm:$0xff]
        %v5224 = vld [vmem:[%s20 + $0x38] sm:$0xff]
        %v5225 = vld [vmem:[%s20 + $0x40] sm:$0xff]
        %v5226 = vld [vmem:[%s20 + $0x48] sm:$0xff]
        %v5227 = vld [vmem:[%s20 + $0x50] sm:$0xff]
        %v5228 = vld [vmem:[%s20 + $0x58] sm:$0xff]
        %v5229 = vld [vmem:[%s20 + $0x60] sm:$0xff]
        %v5230 = vld [vmem:[%s20 + $0x68] sm:$0xff]
        %v5231 = vld [vmem:[%s20 + $0x70] sm:$0xff]
        %v5232 = vld [vmem:[%s20 + $0x78] sm:$0xff]
        %v5233 = vld [vmem:[%s20 + $0x80] sm:$0xff]
        %v5234 = vld [vmem:[%s20 + $0x88] sm:$0xff]
        %v5235 = vld [vmem:[%s20 + $0x90] sm:$0xff]
        %v5236 = vld [vmem:[%s20 + $0x98] sm:$0xff]
        %v5237 = vld [vmem:[%s20 + $0xa0] sm:$0xff]
        %v5238 = vld [vmem:[%s20 + $0xa8] sm:$0xff]
        %v5239 = vld [vmem:[%s20 + $0xb0] sm:$0xff]
        %v5240 = vld [vmem:[%s20 + $0xb8] sm:$0xff]
        %v5241 = vld [vmem:[%s20 + $0xc0] sm:$0xff]
        %v5242 = vld [vmem:[%s20 + $0xc8] sm:$0xff]
        %v5243 = vld [vmem:[%s20 + $0xd0] sm:$0xff]
        %v5244 = vld [vmem:[%s20 + $0xd8] sm:$0xff]
        %v5245 = vld [vmem:[%s20 + $0xe0] sm:$0xff]
        %v5246 = vld [vmem:[%s20 + $0xe8] sm:$0xff]
        %v5247 = vld [vmem:[%s20 + $0xf0] sm:$0xff]
        %v5248 = vld [vmem:[%s20 + $0xf8] sm:$0xff]
        %v5249 = vld [vmem:[%s20 + $0x100] sm:$0xff]
        %v5250 = vld [vmem:[%s20 + $0x108] sm:$0xff]
        %v5251 = vld [vmem:[%s20 + $0x110] sm:$0xff]
        %v5252 = vld [vmem:[%s20 + $0x118] sm:$0xff]
        %v5253 = vld [vmem:[%s20 + $0x120] sm:$0xff]
        %v5254 = vld [vmem:[%s20 + $0x128] sm:$0xff]
        %v5255 = vld [vmem:[%s20 + $0x130] sm:$0xff]
        %v5256 = vld [vmem:[%s20 + $0x138] sm:$0xff]
        %v5257 = vld [vmem:[%s20 + $0x140] sm:$0xff]
        %v5258 = vld [vmem:[%s20 + $0x148] sm:$0xff]
        %v5259 = vld [vmem:[%s20 + $0x150] sm:$0xff]
        %v5260 = vld [vmem:[%s20 + $0x158] sm:$0xff]
        %v5261 = vld [vmem:[%s20 + $0x160] sm:$0xff]
        %v5262 = vld [vmem:[%s20 + $0x168] sm:$0xff]
        %v5263 = vld [vmem:[%s20 + $0x170] sm:$0xff]
        %v5264 = vld [vmem:[%s20 + $0x178] sm:$0xff]
        %v5265 = vld [vmem:[%s20 + $0x180] sm:$0xff]
        %v5266 = vld [vmem:[%s20 + $0x188] sm:$0xff]
        %v5267 = vld [vmem:[%s20 + $0x190] sm:$0xff]
        %v5268 = vld [vmem:[%s20 + $0x198] sm:$0xff]
        %v5269 = vld [vmem:[%s20 + $0x1a0] sm:$0xff]
        %v5270 = vld [vmem:[%s20 + $0x1a8] sm:$0xff]
        %v5271 = vld [vmem:[%s20 + $0x1b0] sm:$0xff]
        %v5272 = vld [vmem:[%s20 + $0x1b8] sm:$0xff]
        %v5273 = vld [vmem:[%s20 + $0x1c0] sm:$0xff]
        %v5274 = vld [vmem:[%s20 + $0x1c8] sm:$0xff]
        %v5275 = vld [vmem:[%s20 + $0x1d0] sm:$0xff]
        %v5276 = vld [vmem:[%s20 + $0x1d8] sm:$0xff]
        %v5277 = vld [vmem:[%s20 + $0x1e0] sm:$0xff]
        %v5278 = vld [vmem:[%s20 + $0x1e8] sm:$0xff]
        %v5279 = vld [vmem:[%s20 + $0x1f0] sm:$0xff]
        %v5280 = vld [vmem:[%s20 + $0x1f8] sm:$0xff]
        %v5281 = vld [vmem:[#allocation19] sm:$0xff]
        %v5282 = vld [vmem:[#allocation19 + $0x8] sm:$0xff]
        %v5283 = vld [vmem:[#allocation19 + $0x10] sm:$0xff]
        %v5284 = vld [vmem:[#allocation19 + $0x18] sm:$0xff]
        %v5285 = vld [vmem:[#allocation19 + $0x20] sm:$0xff]
        %v5286 = vld [vmem:[#allocation19 + $0x28] sm:$0xff]
        %v5287 = vld [vmem:[#allocation19 + $0x30] sm:$0xff]
        %v5288 = vld [vmem:[#allocation19 + $0x38] sm:$0xff]
        %v5289 = vld [vmem:[#allocation19 + $0x40] sm:$0xff]
        %v5290 = vld [vmem:[#allocation19 + $0x48] sm:$0xff]
        %v5291 = vld [vmem:[#allocation19 + $0x50] sm:$0xff]
        %v5292 = vld [vmem:[#allocation19 + $0x58] sm:$0xff]
        %v5293 = vld [vmem:[#allocation19 + $0x60] sm:$0xff]
        %v5294 = vld [vmem:[#allocation19 + $0x68] sm:$0xff]
        %v5295 = vld [vmem:[#allocation19 + $0x70] sm:$0xff]
        %v5296 = vld [vmem:[#allocation19 + $0x78] sm:$0xff]
        %v5297 = vld [vmem:[#allocation19 + $0x80] sm:$0xff]
        %v5298 = vld [vmem:[#allocation19 + $0x88] sm:$0xff]
        %v5299 = vld [vmem:[#allocation19 + $0x90] sm:$0xff]
        %v5300 = vld [vmem:[#allocation19 + $0x98] sm:$0xff]
        %v5301 = vld [vmem:[#allocation19 + $0xa0] sm:$0xff]
        %v5302 = vld [vmem:[#allocation19 + $0xa8] sm:$0xff]
        %v5303 = vld [vmem:[#allocation19 + $0xb0] sm:$0xff]
        %v5304 = vld [vmem:[#allocation19 + $0xb8] sm:$0xff]
        %v5305 = vld [vmem:[#allocation19 + $0xc0] sm:$0xff]
        %v5306 = vld [vmem:[#allocation19 + $0xc8] sm:$0xff]
        %v5307 = vld [vmem:[#allocation19 + $0xd0] sm:$0xff]
        %v5308 = vld [vmem:[#allocation19 + $0xd8] sm:$0xff]
        %v5309 = vld [vmem:[#allocation19 + $0xe0] sm:$0xff]
        %v5310 = vld [vmem:[#allocation19 + $0xe8] sm:$0xff]
        %v5311 = vld [vmem:[#allocation19 + $0xf0] sm:$0xff]
        %v5312 = vld [vmem:[#allocation19 + $0xf8] sm:$0xff]
        %v5313 = vld [vmem:[#allocation19 + $0x100] sm:$0xff]
        %v5314 = vld [vmem:[#allocation19 + $0x108] sm:$0xff]
        %v5315 = vld [vmem:[#allocation19 + $0x110] sm:$0xff]
        %v5316 = vld [vmem:[#allocation19 + $0x118] sm:$0xff]
        %v5317 = vld [vmem:[#allocation19 + $0x120] sm:$0xff]
        %v5318 = vld [vmem:[#allocation19 + $0x128] sm:$0xff]
        %v5319 = vld [vmem:[#allocation19 + $0x130] sm:$0xff]
        %v5320 = vld [vmem:[#allocation19 + $0x138] sm:$0xff]
        %v5321 = vld [vmem:[#allocation19 + $0x140] sm:$0xff]
        %v5322 = vld [vmem:[#allocation19 + $0x148] sm:$0xff]
        %v5323 = vld [vmem:[#allocation19 + $0x150] sm:$0xff]
        %v5324 = vld [vmem:[#allocation19 + $0x158] sm:$0xff]
        %v5325 = vld [vmem:[#allocation19 + $0x160] sm:$0xff]
        %v5326 = vld [vmem:[#allocation19 + $0x168] sm:$0xff]
        %v5327 = vld [vmem:[#allocation19 + $0x170] sm:$0xff]
        %v5328 = vld [vmem:[#allocation19 + $0x178] sm:$0xff]
        %v5329 = vld [vmem:[#allocation19 + $0x180] sm:$0xff]
        %v5330 = vld [vmem:[#allocation19 + $0x188] sm:$0xff]
        %v5331 = vld [vmem:[#allocation19 + $0x190] sm:$0xff]
        %v5332 = vld [vmem:[#allocation19 + $0x198] sm:$0xff]
        %v5333 = vld [vmem:[#allocation19 + $0x1a0] sm:$0xff]
        %v5334 = vld [vmem:[#allocation19 + $0x1a8] sm:$0xff]
        %v5335 = vld [vmem:[#allocation19 + $0x1b0] sm:$0xff]
        %v5336 = vld [vmem:[#allocation19 + $0x1b8] sm:$0xff]
        %v5337 = vld [vmem:[#allocation19 + $0x1c0] sm:$0xff]
        %v5338 = vld [vmem:[#allocation19 + $0x1c8] sm:$0xff]
        %v5339 = vld [vmem:[#allocation19 + $0x1d0] sm:$0xff]
        %v5340 = vld [vmem:[#allocation19 + $0x1d8] sm:$0xff]
        %v5341 = vld [vmem:[#allocation19 + $0x1e0] sm:$0xff]
        %v5342 = vld [vmem:[#allocation19 + $0x1e8] sm:$0xff]
        %v5343 = vld [vmem:[#allocation19 + $0x1f0] sm:$0xff]
        %v5344 = vld [vmem:[#allocation19 + $0x1f8] sm:$0xff]
        %5345 = vmatprep.subr.mxu0 %v5282
        %5346 = vmatpush1.msra.mxu0 %v5281
        %5347 = vmatprep.subr.mxu0 %v5286
        %5348 = vmatpush1.msra.mxu0 %v5285
        %5349 = vmatprep.subr.mxu0 %v5290
        %5350 = vmatpush1.msra.mxu0 %v5289
        %5351 = vmatprep.subr.mxu0 %v5294
        %5352 = vmatpush1.msra.mxu0 %v5293
        %5353 = vmatprep.subr.mxu0 %v5298
        %5354 = vmatpush1.msra.mxu0 %v5297
        %5355 = vmatprep.subr.mxu0 %v5302
        %5356 = vmatpush1.msra.mxu0 %v5301
        %5357 = vmatprep.subr.mxu0 %v5306
        %5358 = vmatpush1.msra.mxu0 %v5305
        %5359 = vmatprep.subr.mxu0 %v5310
        %5360 = vmatpush1.msra.mxu0 %v5309
        %5361 = vmatprep.subr.mxu0 %v5314
        %5362 = vmatpush1.msra.mxu0 %v5313
        %5363 = vmatprep.subr.mxu0 %v5318
        %5364 = vmatpush1.msra.mxu0 %v5317
        %5365 = vmatprep.subr.mxu0 %v5322
        %5366 = vmatpush1.msra.mxu0 %v5321
        %5367 = vmatprep.subr.mxu0 %v5326
        %5368 = vmatpush1.msra.mxu0 %v5325
        %5369 = vmatprep.subr.mxu0 %v5330
        %5370 = vmatpush1.msra.mxu0 %v5329
        %5371 = vmatprep.subr.mxu0 %v5334
        %5372 = vmatpush1.msra.mxu0 %v5333
        %5373 = vmatprep.subr.mxu0 %v5338
        %5374 = vmatpush1.msra.mxu0 %v5337
        %5375 = vmatprep.subr.mxu0 %v5342
        %5376 = vmatpush1.msra.mxu0 %v5341
        %5377 = vmatprep.subr.mxu0 0.0
        %5378 = vmatpush1.msra.mxu0 0.0
        %5379 = vmatprep.subr.mxu0 0.0
        %5380 = vmatpush1.msra.mxu0 0.0
        %5381 = vmatprep.subr.mxu0 0.0
        %5382 = vmatpush1.msra.mxu0 0.0
        %5383 = vmatprep.subr.mxu0 0.0
        %5384 = vmatpush1.msra.mxu0 0.0
        %5385 = vmatprep.subr.mxu0 0.0
        %5386 = vmatpush1.msra.mxu0 0.0
        %5387 = vmatprep.subr.mxu0 0.0
        %5388 = vmatpush1.msra.mxu0 0.0
        %5389 = vmatprep.subr.mxu0 0.0
        %5390 = vmatpush1.msra.mxu0 0.0
        %5391 = vmatprep.subr.mxu0 0.0
        %5392 = vmatpush1.msra.mxu0 0.0
        %5393 = vmatprep.subr.mxu0 0.0
        %5394 = vmatpush1.msra.mxu0 0.0
        %5395 = vmatprep.subr.mxu0 0.0
        %5396 = vmatpush1.msra.mxu0 0.0
        %5397 = vmatprep.subr.mxu0 0.0
        %5398 = vmatpush1.msra.mxu0 0.0
        %5399 = vmatprep.subr.mxu0 0.0
        %5400 = vmatpush1.msra.mxu0 0.0
        %5401 = vmatprep.subr.mxu0 0.0
        %5402 = vmatpush1.msra.mxu0 0.0
        %5403 = vmatprep.subr.mxu0 0.0
        %5404 = vmatpush1.msra.mxu0 0.0
        %5405 = vmatprep.subr.mxu0 0.0
        %5406 = vmatpush1.msra.mxu0 0.0
        %5407 = vmatprep.subr.mxu0 0.0
        %5408 = vmatpush1.msra.mxu0 0.0
        %5409 = vmatprep.mubr.f32.mxu0 0.0
        %5410 = vmatmul.mubr.f32.gmra.mrb[0].mxu0 %v858
        %v5411 = vpop.f32.mrb[0].mxu0
        %v5412 = vadd.f32 0.0, %v5411
        %v5413 = vpop.f32.mrb[0].mxu0
        %v5414 = vadd.f32 0.0, %v5413
        %5415 = vmatprep.mubr.f32.mxu0 0.0
        %5416 = vmatmul.mubr.f32.gmra.mrb[0].mxu0 %v859
        %v5417 = vpop.f32.mrb[0].mxu0
        %v5418 = vadd.f32 0.0, %v5417
        %v5419 = vpop.f32.mrb[0].mxu0
        %v5420 = vadd.f32 0.0, %v5419
        %5421 = vmatprep.mubr.f32.mxu0 0.0
        %5422 = vmatmul.mubr.f32.gmra.mrb[0].mxu0 %v860
        %v5423 = vpop.f32.mrb[0].mxu0
        %v5424 = vadd.f32 0.0, %v5423
        %v5425 = vpop.f32.mrb[0].mxu0
        %v5426 = vadd.f32 0.0, %v5425
        %5427 = vmatprep.mubr.f32.mxu0 0.0
        %5428 = vmatmul.mubr.f32.gmra.mrb[0].mxu0 %v861
        %v5429 = vpop.f32.mrb[0].mxu0
        %v5430 = vadd.f32 0.0, %v5429
        %v5431 = vpop.f32.mrb[0].mxu0
        %v5432 = vadd.f32 0.0, %v5431
        %5433 = vmatprep.mubr.f32.mxu0 0.0
        %5434 = vmatmul.mubr.f32.gmra.mrb[0].mxu0 %v862
        %v5435 = vpop.f32.mrb[0].mxu0
        %v5436 = vadd.f32 0.0, %v5435
        %v5437 = vpop.f32.mrb[0].mxu0
        %v5438 = vadd.f32 0.0, %v5437
        %5439 = vmatprep.mubr.f32.mxu0 0.0
        %5440 = vmatmul.mubr.f32.gmra.mrb[0].mxu0 %v863
        %v5441 = vpop.f32.mrb[0].mxu0
        %v5442 = vadd.f32 0.0, %v5441
        %v5443 = vpop.f32.mrb[0].mxu0
        %v5444 = vadd.f32 0.0, %v5443
        %5445 = vmatprep.mubr.f32.mxu0 0.0
        %5446 = vmatmul.mubr.f32.gmra.mrb[0].mxu0 %v864
        %v5447 = vpop.f32.mrb[0].mxu0
        %v5448 = vadd.f32 0.0, %v5447
        %v5449 = vpop.f32.mrb[0].mxu0
        %v5450 = vadd.f32 0.0, %v5449
        %5451 = vmatprep.mubr.f32.mxu0 0.0
        %5452 = vmatmul.mubr.f32.gmra.mrb[0].mxu0 %v865
        %v5453 = vpop.f32.mrb[0].mxu0
        %v5454 = vadd.f32 0.0, %v5453
        %v5455 = vpop.f32.mrb[0].mxu0
        %v5456 = vadd.f32 0.0, %v5455
        %5457 = vmatprep.mubr.f32.mxu0 0.0
        %5458 = vmatmul.mubr.f32.gmra.mrb[0].mxu0 %v866
        %v5459 = vpop.f32.mrb[0].mxu0
        %v5460 = vadd.f32 0.0, %v5459
        %v5461 = vpop.f32.mrb[0].mxu0
        %v5462 = vadd.f32 0.0, %v5461
        %5463 = vmatprep.mubr.f32.mxu0 0.0
        %5464 = vmatmul.mubr.f32.gmra.mrb[0].mxu0 %v867
        %v5465 = vpop.f32.mrb[0].mxu0
        %v5466 = vadd.f32 0.0, %v5465
        %v5467 = vpop.f32.mrb[0].mxu0
        %v5468 = vadd.f32 0.0, %v5467
        %5469 = vmatprep.mubr.f32.mxu0 0.0
        %5470 = vmatmul.mubr.f32.gmra.mrb[0].mxu0 %v868
        %v5471 = vpop.f32.mrb[0].mxu0
        %v5472 = vadd.f32 0.0, %v5471
        %v5473 = vpop.f32.mrb[0].mxu0
        %v5474 = vadd.f32 0.0, %v5473
        %5475 = vmatprep.mubr.f32.mxu0 0.0
        %5476 = vmatmul.mubr.f32.gmra.mrb[0].mxu0 %v869
        %v5477 = vpop.f32.mrb[0].mxu0
        %v5478 = vadd.f32 0.0, %v5477
        %v5479 = vpop.f32.mrb[0].mxu0
        %v5480 = vadd.f32 0.0, %v5479
        %5481 = vmatprep.mubr.f32.mxu0 0.0
        %5482 = vmatmul.mubr.f32.gmra.mrb[0].mxu0 %v870
        %v5483 = vpop.f32.mrb[0].mxu0
        %v5484 = vadd.f32 0.0, %v5483
        %v5485 = vpop.f32.mrb[0].mxu0
        %v5486 = vadd.f32 0.0, %v5485
        %5487 = vmatprep.mubr.f32.mxu0 0.0
        %5488 = vmatmul.mubr.f32.gmra.mrb[0].mxu0 %v871
        %v5489 = vpop.f32.mrb[0].mxu0
        %v5490 = vadd.f32 0.0, %v5489
        %v5491 = vpop.f32.mrb[0].mxu0
        %v5492 = vadd.f32 0.0, %v5491
        %5493 = vmatprep.mubr.f32.mxu0 0.0
        %5494 = vmatmul.mubr.f32.gmra.mrb[0].mxu0 %v872
        %v5495 = vpop.f32.mrb[0].mxu0
        %v5496 = vadd.f32 0.0, %v5495
        %v5497 = vpop.f32.mrb[0].mxu0
        %v5498 = vadd.f32 0.0, %v5497
        %5499 = vmatprep.mubr.f32.mxu0 0.0
        %5500 = vmatmul.mubr.f32.gmra.mrb[0].mxu0 %v873
        %v5501 = vpop.f32.mrb[0].mxu0
        %v5502 = vadd.f32 0.0, %v5501
        %v5503 = vpop.f32.mrb[0].mxu0
        %v5504 = vadd.f32 0.0, %v5503
        %5505 = vdwg.mxu0
        %5506 = vmatprep.subr.mxu0 %v5284
        %5507 = vmatpush1.msra.mxu0 %v5283
        %5508 = vmatprep.subr.mxu0 %v5288
        %5509 = vmatpush1.msra.mxu0 %v5287
        %5510 = vmatprep.subr.mxu0 %v5292
        %5511 = vmatpush1.msra.mxu0 %v5291
        %5512 = vmatprep.subr.mxu0 %v5296
        %5513 = vmatpush1.msra.mxu0 %v5295
        %5514 = vmatprep.subr.mxu0 %v5300
        %5515 = vmatpush1.msra.mxu0 %v5299
        %5516 = vmatprep.subr.mxu0 %v5304
        %5517 = vmatpush1.msra.mxu0 %v5303
        %5518 = vmatprep.subr.mxu0 %v5308
        %5519 = vmatpush1.msra.mxu0 %v5307
        %5520 = vmatprep.subr.mxu0 %v5312
        %5521 = vmatpush1.msra.mxu0 %v5311
        %5522 = vmatprep.subr.mxu0 %v5316
        %5523 = vmatpush1.msra.mxu0 %v5315
        %5524 = vmatprep.subr.mxu0 %v5320
        %5525 = vmatpush1.msra.mxu0 %v5319
        %5526 = vmatprep.subr.mxu0 %v5324
        %5527 = vmatpush1.msra.mxu0 %v5323
        %5528 = vmatprep.subr.mxu0 %v5328
        %5529 = vmatpush1.msra.mxu0 %v5327
        %5530 = vmatprep.subr.mxu0 %v5332
        %5531 = vmatpush1.msra.mxu0 %v5331
        %5532 = vmatprep.subr.mxu0 %v5336
        %5533 = vmatpush1.msra.mxu0 %v5335
        %5534 = vmatprep.subr.mxu0 %v5340
        %5535 = vmatpush1.msra.mxu0 %v5339
        %5536 = vmatprep.subr.mxu0 %v5344
        %5537 = vmatpush1.msra.mxu0 %v5343
        %5538 = vmatprep.subr.mxu0 0.0
        %5539 = vmatpush1.msra.mxu0 0.0
        %5540 = vmatprep.subr.mxu0 0.0
        %5541 = vmatpush1.msra.mxu0 0.0
        %5542 = vmatprep.subr.mxu0 0.0
        %5543 = vmatpush1.msra.mxu0 0.0
        %5544 = vmatprep.subr.mxu0 0.0
        %5545 = vmatpush1.msra.mxu0 0.0
        %5546 = vmatprep.subr.mxu0 0.0
        %5547 = vmatpush1.msra.mxu0 0.0
        %5548 = vmatprep.subr.mxu0 0.0
        %5549 = vmatpush1.msra.mxu0 0.0
        %5550 = vmatprep.subr.mxu0 0.0
        %5551 = vmatpush1.msra.mxu0 0.0
        %5552 = vmatprep.subr.mxu0 0.0
        %5553 = vmatpush1.msra.mxu0 0.0
        %5554 = vmatprep.subr.mxu0 0.0
        %5555 = vmatpush1.msra.mxu0 0.0
        %5556 = vmatprep.subr.mxu0 0.0
        %5557 = vmatpush1.msra.mxu0 0.0
        %5558 = vmatprep.subr.mxu0 0.0
        %5559 = vmatpush1.msra.mxu0 0.0
        %5560 = vmatprep.subr.mxu0 0.0
        %5561 = vmatpush1.msra.mxu0 0.0
        %5562 = vmatprep.subr.mxu0 0.0
        %5563 = vmatpush1.msra.mxu0 0.0
        %5564 = vmatprep.subr.mxu0 0.0
        %5565 = vmatpush1.msra.mxu0 0.0
        %5566 = vmatprep.subr.mxu0 0.0
        %5567 = vmatpush1.msra.mxu0 0.0
        %5568 = vmatprep.subr.mxu0 0.0
        %5569 = vmatpush1.msra.mxu0 0.0
        %5570 = vmatprep.mubr.f32.mxu0 0.0
        %5571 = vmatmul.mubr.f32.gmra.mrb[0].mxu0 %v858
        %v5572 = vpop.f32.mrb[0].mxu0
        %v5573 = vadd.f32 0.0, %v5572
        %v5574 = vpop.f32.mrb[0].mxu0
        %v5575 = vadd.f32 0.0, %v5574
        %5576 = vmatprep.mubr.f32.mxu0 0.0
        %5577 = vmatmul.mubr.f32.gmra.mrb[0].mxu0 %v859
        %v5578 = vpop.f32.mrb[0].mxu0
        %v5579 = vadd.f32 0.0, %v5578
        %v5580 = vpop.f32.mrb[0].mxu0
        %v5581 = vadd.f32 0.0, %v5580
        %5582 = vmatprep.mubr.f32.mxu0 0.0
        %5583 = vmatmul.mubr.f32.gmra.mrb[0].mxu0 %v860
        %v5584 = vpop.f32.mrb[0].mxu0
        %v5585 = vadd.f32 0.0, %v5584
        %v5586 = vpop.f32.mrb[0].mxu0
        %v5587 = vadd.f32 0.0, %v5586
        %5588 = vmatprep.mubr.f32.mxu0 0.0
        %5589 = vmatmul.mubr.f32.gmra.mrb[0].mxu0 %v861
        %v5590 = vpop.f32.mrb[0].mxu0
        %v5591 = vadd.f32 0.0, %v5590
        %v5592 = vpop.f32.mrb[0].mxu0
        %v5593 = vadd.f32 0.0, %v5592
        %5594 = vmatprep.mubr.f32.mxu0 0.0
        %5595 = vmatmul.mubr.f32.gmra.mrb[0].mxu0 %v862
        %v5596 = vpop.f32.mrb[0].mxu0
        %v5597 = vadd.f32 0.0, %v5596
        %v5598 = vpop.f32.mrb[0].mxu0
        %v5599 = vadd.f32 0.0, %v5598
        %5600 = vmatprep.mubr.f32.mxu0 0.0
        %5601 = vmatmul.mubr.f32.gmra.mrb[0].mxu0 %v863
        %v5602 = vpop.f32.mrb[0].mxu0
        %v5603 = vadd.f32 0.0, %v5602
        %v5604 = vpop.f32.mrb[0].mxu0
        %v5605 = vadd.f32 0.0, %v5604
        %5606 = vmatprep.mubr.f32.mxu0 0.0
        %5607 = vmatmul.mubr.f32.gmra.mrb[0].mxu0 %v864
        %v5608 = vpop.f32.mrb[0].mxu0
        %v5609 = vadd.f32 0.0, %v5608
        %v5610 = vpop.f32.mrb[0].mxu0
        %v5611 = vadd.f32 0.0, %v5610
        %5612 = vmatprep.mubr.f32.mxu0 0.0
        %5613 = vmatmul.mubr.f32.gmra.mrb[0].mxu0 %v865
        %v5614 = vpop.f32.mrb[0].mxu0
        %v5615 = vadd.f32 0.0, %v5614
        %v5616 = vpop.f32.mrb[0].mxu0
        %v5617 = vadd.f32 0.0, %v5616
        %5618 = vmatprep.mubr.f32.mxu0 0.0
        %5619 = vmatmul.mubr.f32.gmra.mrb[0].mxu0 %v866
        %v5620 = vpop.f32.mrb[0].mxu0
        %v5621 = vadd.f32 0.0, %v5620
        %v5622 = vpop.f32.mrb[0].mxu0
        %v5623 = vadd.f32 0.0, %v5622
        %5624 = vmatprep.mubr.f32.mxu0 0.0
        %5625 = vmatmul.mubr.f32.gmra.mrb[0].mxu0 %v867
        %v5626 = vpop.f32.mrb[0].mxu0
        %v5627 = vadd.f32 0.0, %v5626
        %v5628 = vpop.f32.mrb[0].mxu0
        %v5629 = vadd.f32 0.0, %v5628
        %5630 = vmatprep.mubr.f32.mxu0 0.0
        %5631 = vmatmul.mubr.f32.gmra.mrb[0].mxu0 %v868
        %v5632 = vpop.f32.mrb[0].mxu0
        %v5633 = vadd.f32 0.0, %v5632
        %v5634 = vpop.f32.mrb[0].mxu0
        %v5635 = vadd.f32 0.0, %v5634
        %5636 = vmatprep.mubr.f32.mxu0 0.0
        %5637 = vmatmul.mubr.f32.gmra.mrb[0].mxu0 %v869
        %v5638 = vpop.f32.mrb[0].mxu0
        %v5639 = vadd.f32 0.0, %v5638
        %v5640 = vpop.f32.mrb[0].mxu0
        %v5641 = vadd.f32 0.0, %v5640
        %5642 = vmatprep.mubr.f32.mxu0 0.0
        %5643 = vmatmul.mubr.f32.gmra.mrb[0].mxu0 %v870
        %v5644 = vpop.f32.mrb[0].mxu0
        %v5645 = vadd.f32 0.0, %v5644
        %v5646 = vpop.f32.mrb[0].mxu0
        %v5647 = vadd.f32 0.0, %v5646
        %5648 = vmatprep.mubr.f32.mxu0 0.0
        %5649 = vmatmul.mubr.f32.gmra.mrb[0].mxu0 %v871
        %v5650 = vpop.f32.mrb[0].mxu0
        %v5651 = vadd.f32 0.0, %v5650
        %v5652 = vpop.f32.mrb[0].mxu0
        %v5653 = vadd.f32 0.0, %v5652
        %5654 = vmatprep.mubr.f32.mxu0 0.0
        %5655 = vmatmul.mubr.f32.gmra.mrb[0].mxu0 %v872
        %v5656 = vpop.f32.mrb[0].mxu0
        %v5657 = vadd.f32 0.0, %v5656
        %v5658 = vpop.f32.mrb[0].mxu0
        %v5659 = vadd.f32 0.0, %v5658
        %5660 = vmatprep.mubr.f32.mxu0 0.0
        %5661 = vmatmul.mubr.f32.gmra.mrb[0].mxu0 %v873
        %v5662 = vpop.f32.mrb[0].mxu0
        %v5663 = vadd.f32 0.0, %v5662
        %v5664 = vpop.f32.mrb[0].mxu0
        %v5665 = vadd.f32 0.0, %v5664
        %5666 = vdwg.mxu0
        %5667 = vmatprep.subr.mxu0 %v5218
        %5668 = vmatpush1.msra.mxu0 %v5217
        %5669 = vmatprep.subr.mxu0 %v5222
        %5670 = vmatpush1.msra.mxu0 %v5221
        %5671 = vmatprep.subr.mxu0 %v5226
        %5672 = vmatpush1.msra.mxu0 %v5225
        %5673 = vmatprep.subr.mxu0 %v5230
        %5674 = vmatpush1.msra.mxu0 %v5229
        %5675 = vmatprep.subr.mxu0 %v5234
        %5676 = vmatpush1.msra.mxu0 %v5233
        %5677 = vmatprep.subr.mxu0 %v5238
        %5678 = vmatpush1.msra.mxu0 %v5237
        %5679 = vmatprep.subr.mxu0 %v5242
        %5680 = vmatpush1.msra.mxu0 %v5241
        %5681 = vmatprep.subr.mxu0 %v5246
        %5682 = vmatpush1.msra.mxu0 %v5245
        %5683 = vmatprep.subr.mxu0 %v5250
        %5684 = vmatpush1.msra.mxu0 %v5249
        %5685 = vmatprep.subr.mxu0 %v5254
        %5686 = vmatpush1.msra.mxu0 %v5253
        %5687 = vmatprep.subr.mxu0 %v5258
        %5688 = vmatpush1.msra.mxu0 %v5257
        %5689 = vmatprep.subr.mxu0 %v5262
        %5690 = vmatpush1.msra.mxu0 %v5261
        %5691 = vmatprep.subr.mxu0 %v5266
        %5692 = vmatpush1.msra.mxu0 %v5265
        %5693 = vmatprep.subr.mxu0 %v5270
        %5694 = vmatpush1.msra.mxu0 %v5269
        %5695 = vmatprep.subr.mxu0 %v5274
        %5696 = vmatpush1.msra.mxu0 %v5273
        %5697 = vmatprep.subr.mxu0 %v5278
        %5698 = vmatpush1.msra.mxu0 %v5277
        %5699 = vmatprep.subr.mxu0 0.0
        %5700 = vmatpush1.msra.mxu0 0.0
        %5701 = vmatprep.subr.mxu0 0.0
        %5702 = vmatpush1.msra.mxu0 0.0
        %5703 = vmatprep.subr.mxu0 0.0
        %5704 = vmatpush1.msra.mxu0 0.0
        %5705 = vmatprep.subr.mxu0 0.0
        %5706 = vmatpush1.msra.mxu0 0.0
        %5707 = vmatprep.subr.mxu0 0.0
        %5708 = vmatpush1.msra.mxu0 0.0
        %5709 = vmatprep.subr.mxu0 0.0
        %5710 = vmatpush1.msra.mxu0 0.0
        %5711 = vmatprep.subr.mxu0 0.0
        %5712 = vmatpush1.msra.mxu0 0.0
        %5713 = vmatprep.subr.mxu0 0.0
        %5714 = vmatpush1.msra.mxu0 0.0
        %5715 = vmatprep.subr.mxu0 0.0
        %5716 = vmatpush1.msra.mxu0 0.0
        %5717 = vmatprep.subr.mxu0 0.0
        %5718 = vmatpush1.msra.mxu0 0.0
        %5719 = vmatprep.subr.mxu0 0.0
        %5720 = vmatpush1.msra.mxu0 0.0
        %5721 = vmatprep.subr.mxu0 0.0
        %5722 = vmatpush1.msra.mxu0 0.0
        %5723 = vmatprep.subr.mxu0 0.0
        %5724 = vmatpush1.msra.mxu0 0.0
        %5725 = vmatprep.subr.mxu0 0.0
        %5726 = vmatpush1.msra.mxu0 0.0
        %5727 = vmatprep.subr.mxu0 0.0
        %5728 = vmatpush1.msra.mxu0 0.0
        %5729 = vmatprep.subr.mxu0 0.0
        %5730 = vmatpush1.msra.mxu0 0.0
        %5731 = vmatprep.mubr.f32.mxu0 0.0
        %5732 = vmatmul.mubr.f32.gmra.mrb[0].mxu0 %v5201
        %v5733 = vpop.f32.mrb[0].mxu0
        %v5734 = vadd.f32 %v5412, %v5733
        %v5735 = vpop.f32.mrb[0].mxu0
        %v5736 = vadd.f32 %v5414, %v5735
        %5737 = vmatprep.mubr.f32.mxu0 0.0
        %5738 = vmatmul.mubr.f32.gmra.mrb[0].mxu0 %v5202
        %v5739 = vpop.f32.mrb[0].mxu0
        %v5740 = vadd.f32 %v5418, %v5739
        %v5741 = vpop.f32.mrb[0].mxu0
        %v5742 = vadd.f32 %v5420, %v5741
        %5743 = vmatprep.mubr.f32.mxu0 0.0
        %5744 = vmatmul.mubr.f32.gmra.mrb[0].mxu0 %v5203
        %v5745 = vpop.f32.mrb[0].mxu0
        %v5746 = vadd.f32 %v5424, %v5745
        %v5747 = vpop.f32.mrb[0].mxu0
        %v5748 = vadd.f32 %v5426, %v5747
        %5749 = vmatprep.mubr.f32.mxu0 0.0
        %5750 = vmatmul.mubr.f32.gmra.mrb[0].mxu0 %v5204
        %v5751 = vpop.f32.mrb[0].mxu0
        %v5752 = vadd.f32 %v5430, %v5751
        %v5753 = vpop.f32.mrb[0].mxu0
        %v5754 = vadd.f32 %v5432, %v5753
        %5755 = vmatprep.mubr.f32.mxu0 0.0
        %5756 = vmatmul.mubr.f32.gmra.mrb[0].mxu0 %v5205
        %v5757 = vpop.f32.mrb[0].mxu0
        %v5758 = vadd.f32 %v5436, %v5757
        %v5759 = vpop.f32.mrb[0].mxu0
        %v5760 = vadd.f32 %v5438, %v5759
        %5761 = vmatprep.mubr.f32.mxu0 0.0
        %5762 = vmatmul.mubr.f32.gmra.mrb[0].mxu0 %v5206
        %v5763 = vpop.f32.mrb[0].mxu0
        %v5764 = vadd.f32 %v5442, %v5763
        %v5765 = vpop.f32.mrb[0].mxu0
        %v5766 = vadd.f32 %v5444, %v5765
        %5767 = vmatprep.mubr.f32.mxu0 0.0
        %5768 = vmatmul.mubr.f32.gmra.mrb[0].mxu0 %v5207
        %v5769 = vpop.f32.mrb[0].mxu0
        %v5770 = vadd.f32 %v5448, %v5769
        %v5771 = vpop.f32.mrb[0].mxu0
        %v5772 = vadd.f32 %v5450, %v5771
        %5773 = vmatprep.mubr.f32.mxu0 0.0
        %5774 = vmatmul.mubr.f32.gmra.mrb[0].mxu0 %v5208
        %v5775 = vpop.f32.mrb[0].mxu0
        %v5776 = vadd.f32 %v5454, %v5775
        %v5777 = vpop.f32.mrb[0].mxu0
        %v5778 = vadd.f32 %v5456, %v5777
        %5779 = vmatprep.mubr.f32.mxu0 0.0
        %5780 = vmatmul.mubr.f32.gmra.mrb[0].mxu0 %v5209
        %v5781 = vpop.f32.mrb[0].mxu0
        %v5782 = vadd.f32 %v5460, %v5781
        %v5783 = vpop.f32.mrb[0].mxu0
        %v5784 = vadd.f32 %v5462, %v5783
        %5785 = vmatprep.mubr.f32.mxu0 0.0
        %5786 = vmatmul.mubr.f32.gmra.mrb[0].mxu0 %v5210
        %v5787 = vpop.f32.mrb[0].mxu0
        %v5788 = vadd.f32 %v5466, %v5787
        %v5789 = vpop.f32.mrb[0].mxu0
        %v5790 = vadd.f32 %v5468, %v5789
        %5791 = vmatprep.mubr.f32.mxu0 0.0
        %5792 = vmatmul.mubr.f32.gmra.mrb[0].mxu0 %v5211
        %v5793 = vpop.f32.mrb[0].mxu0
        %v5794 = vadd.f32 %v5472, %v5793
        %v5795 = vpop.f32.mrb[0].mxu0
        %v5796 = vadd.f32 %v5474, %v5795
        %5797 = vmatprep.mubr.f32.mxu0 0.0
        %5798 = vmatmul.mubr.f32.gmra.mrb[0].mxu0 %v5212
        %v5799 = vpop.f32.mrb[0].mxu0
        %v5800 = vadd.f32 %v5478, %v5799
        %v5801 = vpop.f32.mrb[0].mxu0
        %v5802 = vadd.f32 %v5480, %v5801
        %5803 = vmatprep.mubr.f32.mxu0 0.0
        %5804 = vmatmul.mubr.f32.gmra.mrb[0].mxu0 %v5213
        %v5805 = vpop.f32.mrb[0].mxu0
        %v5806 = vadd.f32 %v5484, %v5805
        %v5807 = vpop.f32.mrb[0].mxu0
        %v5808 = vadd.f32 %v5486, %v5807
        %5809 = vmatprep.mubr.f32.mxu0 0.0
        %5810 = vmatmul.mubr.f32.gmra.mrb[0].mxu0 %v5214
        %v5811 = vpop.f32.mrb[0].mxu0
        %v5812 = vadd.f32 %v5490, %v5811
        %v5813 = vpop.f32.mrb[0].mxu0
        %v5814 = vadd.f32 %v5492, %v5813
        %5815 = vmatprep.mubr.f32.mxu0 0.0
        %5816 = vmatmul.mubr.f32.gmra.mrb[0].mxu0 %v5215
        %v5817 = vpop.f32.mrb[0].mxu0
        %v5818 = vadd.f32 %v5496, %v5817
        %v5819 = vpop.f32.mrb[0].mxu0
        %v5820 = vadd.f32 %v5498, %v5819
        %5821 = vmatprep.mubr.f32.mxu0 0.0
        %5822 = vmatmul.mubr.f32.gmra.mrb[0].mxu0 %v5216
        %v5823 = vpop.f32.mrb[0].mxu0
        %v5824 = vadd.f32 %v5502, %v5823
        %v5825 = vpop.f32.mrb[0].mxu0
        %v5826 = vadd.f32 %v5504, %v5825
        %5827 = vdwg.mxu0
        %5828 = vmatprep.subr.mxu0 %v5220
        %5829 = vmatpush1.msra.mxu0 %v5219
        %5830 = vmatprep.subr.mxu0 %v5224
        %5831 = vmatpush1.msra.mxu0 %v5223
        %5832 = vmatprep.subr.mxu0 %v5228
        %5833 = vmatpush1.msra.mxu0 %v5227
        %5834 = vmatprep.subr.mxu0 %v5232
        %5835 = vmatpush1.msra.mxu0 %v5231
        %5836 = vmatprep.subr.mxu0 %v5236
        %5837 = vmatpush1.msra.mxu0 %v5235
        %5838 = vmatprep.subr.mxu0 %v5240
        %5839 = vmatpush1.msra.mxu0 %v5239
        %5840 = vmatprep.subr.mxu0 %v5244
        %5841 = vmatpush1.msra.mxu0 %v5243
        %5842 = vmatprep.subr.mxu0 %v5248
        %5843 = vmatpush1.msra.mxu0 %v5247
        %5844 = vmatprep.subr.mxu0 %v5252
        %5845 = vmatpush1.msra.mxu0 %v5251
        %5846 = vmatprep.subr.mxu0 %v5256
        %5847 = vmatpush1.msra.mxu0 %v5255
        %5848 = vmatprep.subr.mxu0 %v5260
        %5849 = vmatpush1.msra.mxu0 %v5259
        %5850 = vmatprep.subr.mxu0 %v5264
        %5851 = vmatpush1.msra.mxu0 %v5263
        %5852 = vmatprep.subr.mxu0 %v5268
        %5853 = vmatpush1.msra.mxu0 %v5267
        %5854 = vmatprep.subr.mxu0 %v5272
        %5855 = vmatpush1.msra.mxu0 %v5271
        %5856 = vmatprep.subr.mxu0 %v5276
        %5857 = vmatpush1.msra.mxu0 %v5275
        %5858 = vmatprep.subr.mxu0 %v5280
        %5859 = vmatpush1.msra.mxu0 %v5279
        %5860 = vmatprep.subr.mxu0 0.0
        %5861 = vmatpush1.msra.mxu0 0.0
        %5862 = vmatprep.subr.mxu0 0.0
        %5863 = vmatpush1.msra.mxu0 0.0
        %5864 = vmatprep.subr.mxu0 0.0
        %5865 = vmatpush1.msra.mxu0 0.0
        %5866 = vmatprep.subr.mxu0 0.0
        %5867 = vmatpush1.msra.mxu0 0.0
        %5868 = vmatprep.subr.mxu0 0.0
        %5869 = vmatpush1.msra.mxu0 0.0
        %5870 = vmatprep.subr.mxu0 0.0
        %5871 = vmatpush1.msra.mxu0 0.0
        %5872 = vmatprep.subr.mxu0 0.0
        %5873 = vmatpush1.msra.mxu0 0.0
        %5874 = vmatprep.subr.mxu0 0.0
        %5875 = vmatpush1.msra.mxu0 0.0
        %5876 = vmatprep.subr.mxu0 0.0
        %5877 = vmatpush1.msra.mxu0 0.0
        %5878 = vmatprep.subr.mxu0 0.0
        %5879 = vmatpush1.msra.mxu0 0.0
        %5880 = vmatprep.subr.mxu0 0.0
        %5881 = vmatpush1.msra.mxu0 0.0
        %5882 = vmatprep.subr.mxu0 0.0
        %5883 = vmatpush1.msra.mxu0 0.0
        %5884 = vmatprep.subr.mxu0 0.0
        %5885 = vmatpush1.msra.mxu0 0.0
        %5886 = vmatprep.subr.mxu0 0.0
        %5887 = vmatpush1.msra.mxu0 0.0
        %5888 = vmatprep.subr.mxu0 0.0
        %5889 = vmatpush1.msra.mxu0 0.0
        %5890 = vmatprep.subr.mxu0 0.0
        %5891 = vmatpush1.msra.mxu0 0.0
        %5892 = vmatprep.mubr.f32.mxu0 0.0
        %5893 = vmatmul.mubr.f32.gmra.mrb[0].mxu0 %v5201
        %v5894 = vpop.f32.mrb[0].mxu0
        %v5895 = vadd.f32 %v5573, %v5894
        %v5896 = vpop.f32.mrb[0].mxu0
        %v5897 = vadd.f32 %v5575, %v5896
        %5898 = vmatprep.mubr.f32.mxu0 0.0
        %5899 = vmatmul.mubr.f32.gmra.mrb[0].mxu0 %v5202
        %v5900 = vpop.f32.mrb[0].mxu0
        %v5901 = vadd.f32 %v5579, %v5900
        %v5902 = vpop.f32.mrb[0].mxu0
        %v5903 = vadd.f32 %v5581, %v5902
        %5904 = vmatprep.mubr.f32.mxu0 0.0
        %5905 = vmatmul.mubr.f32.gmra.mrb[0].mxu0 %v5203
        %v5906 = vpop.f32.mrb[0].mxu0
        %v5907 = vadd.f32 %v5585, %v5906
        %v5908 = vpop.f32.mrb[0].mxu0
        %v5909 = vadd.f32 %v5587, %v5908
        %5910 = vmatprep.mubr.f32.mxu0 0.0
        %5911 = vmatmul.mubr.f32.gmra.mrb[0].mxu0 %v5204
        %v5912 = vpop.f32.mrb[0].mxu0
        %v5913 = vadd.f32 %v5591, %v5912
        %v5914 = vpop.f32.mrb[0].mxu0
        %v5915 = vadd.f32 %v5593, %v5914
        %5916 = vmatprep.mubr.f32.mxu0 0.0
        %5917 = vmatmul.mubr.f32.gmra.mrb[0].mxu0 %v5205
        %v5918 = vpop.f32.mrb[0].mxu0
        %v5919 = vadd.f32 %v5597, %v5918
        %v5920 = vpop.f32.mrb[0].mxu0
        %v5921 = vadd.f32 %v5599, %v5920
        %5922 = vmatprep.mubr.f32.mxu0 0.0
        %5923 = vmatmul.mubr.f32.gmra.mrb[0].mxu0 %v5206
        %v5924 = vpop.f32.mrb[0].mxu0
        %v5925 = vadd.f32 %v5603, %v5924
        %v5926 = vpop.f32.mrb[0].mxu0
        %v5927 = vadd.f32 %v5605, %v5926
        %5928 = vmatprep.mubr.f32.mxu0 0.0
        %5929 = vmatmul.mubr.f32.gmra.mrb[0].mxu0 %v5207
        %v5930 = vpop.f32.mrb[0].mxu0
        %v5931 = vadd.f32 %v5609, %v5930
        %v5932 = vpop.f32.mrb[0].mxu0
        %v5933 = vadd.f32 %v5611, %v5932
        %5934 = vmatprep.mubr.f32.mxu0 0.0
        %5935 = vmatmul.mubr.f32.gmra.mrb[0].mxu0 %v5208
        %v5936 = vpop.f32.mrb[0].mxu0
        %v5937 = vadd.f32 %v5615, %v5936
        %v5938 = vpop.f32.mrb[0].mxu0
        %v5939 = vadd.f32 %v5617, %v5938
        %5940 = vmatprep.mubr.f32.mxu0 0.0
        %5941 = vmatmul.mubr.f32.gmra.mrb[0].mxu0 %v5209
        %v5942 = vpop.f32.mrb[0].mxu0
        %v5943 = vadd.f32 %v5621, %v5942
        %v5944 = vpop.f32.mrb[0].mxu0
        %v5945 = vadd.f32 %v5623, %v5944
        %5946 = vmatprep.mubr.f32.mxu0 0.0
        %5947 = vmatmul.mubr.f32.gmra.mrb[0].mxu0 %v5210
        %v5948 = vpop.f32.mrb[0].mxu0
        %v5949 = vadd.f32 %v5627, %v5948
        %v5950 = vpop.f32.mrb[0].mxu0
        %v5951 = vadd.f32 %v5629, %v5950
        %5952 = vmatprep.mubr.f32.mxu0 0.0
        %5953 = vmatmul.mubr.f32.gmra.mrb[0].mxu0 %v5211
        %v5954 = vpop.f32.mrb[0].mxu0
        %v5955 = vadd.f32 %v5633, %v5954
        %v5956 = vpop.f32.mrb[0].mxu0
        %v5957 = vadd.f32 %v5635, %v5956
        %5958 = vmatprep.mubr.f32.mxu0 0.0
        %5959 = vmatmul.mubr.f32.gmra.mrb[0].mxu0 %v5212
        %v5960 = vpop.f32.mrb[0].mxu0
        %v5961 = vadd.f32 %v5639, %v5960
        %v5962 = vpop.f32.mrb[0].mxu0
        %v5963 = vadd.f32 %v5641, %v5962
        %5964 = vmatprep.mubr.f32.mxu0 0.0
        %5965 = vmatmul.mubr.f32.gmra.mrb[0].mxu0 %v5213
        %v5966 = vpop.f32.mrb[0].mxu0
        %v5967 = vadd.f32 %v5645, %v5966
        %v5968 = vpop.f32.mrb[0].mxu0
        %v5969 = vadd.f32 %v5647, %v5968
        %5970 = vmatprep.mubr.f32.mxu0 0.0
        %5971 = vmatmul.mubr.f32.gmra.mrb[0].mxu0 %v5214
        %v5972 = vpop.f32.mrb[0].mxu0
        %v5973 = vadd.f32 %v5651, %v5972
        %v5974 = vpop.f32.mrb[0].mxu0
        %v5975 = vadd.f32 %v5653, %v5974
        %5976 = vmatprep.mubr.f32.mxu0 0.0
        %5977 = vmatmul.mubr.f32.gmra.mrb[0].mxu0 %v5215
        %v5978 = vpop.f32.mrb[0].mxu0
        %v5979 = vadd.f32 %v5657, %v5978
        %v5980 = vpop.f32.mrb[0].mxu0
        %v5981 = vadd.f32 %v5659, %v5980
        %5982 = vmatprep.mubr.f32.mxu0 0.0
        %5983 = vmatmul.mubr.f32.gmra.mrb[0].mxu0 %v5216
        %v5984 = vpop.f32.mrb[0].mxu0
        %v5985 = vadd.f32 %v5663, %v5984
        %v5986 = vpop.f32.mrb[0].mxu0
        %v5987 = vadd.f32 %v5665, %v5986
        %5988 = vdwg.mxu0
        %v5989 = vld [vmem:[%s22] sm:$0xf]
        %v5991 = vlaneseq
        %v5992 = vshrl.u32 %v5991, 7
        %v5993 = vsub.s32 0, %v5992
        %v5994 = vrot.slane %v5989, %v5993
        %v5995 = vlaneseq
        %v5996 = vshrl.u32 %v5995, 7
        %v5997 = vsub.s32 1, %v5996
        %v5998 = vrot.slane %v5989, %v5997
        %v5999 = vlaneseq
        %v6000 = vshrl.u32 %v5999, 7
        %v6001 = vsub.s32 2, %v6000
        %v6002 = vrot.slane %v5989, %v6001
        %v6003 = vlaneseq
        %v6004 = vshrl.u32 %v6003, 7
        %v6005 = vsub.s32 3, %v6004
        %v6006 = vrot.slane %v5989, %v6005
        %v6011 = vadd.f32 %v5734, %v5994
        %v6012 = vadd.f32 %v5736, %v5998
        %v6013 = vadd.f32 %v5895, %v6002
        %v6014 = vadd.f32 %v5897, %v6006
        %v6015 = vadd.f32 %v5740, %v5994
        %v6016 = vadd.f32 %v5742, %v5998
        %v6017 = vadd.f32 %v5901, %v6002
        %v6018 = vadd.f32 %v5903, %v6006
        %v6019 = vadd.f32 %v5746, %v5994
        %v6020 = vadd.f32 %v5748, %v5998
        %v6021 = vadd.f32 %v5907, %v6002
        %v6022 = vadd.f32 %v5909, %v6006
        %v6023 = vadd.f32 %v5752, %v5994
        %v6024 = vadd.f32 %v5754, %v5998
        %v6025 = vadd.f32 %v5913, %v6002
        %v6026 = vadd.f32 %v5915, %v6006
        %v6027 = vadd.f32 %v5758, %v5994
        %v6028 = vadd.f32 %v5760, %v5998
        %v6029 = vadd.f32 %v5919, %v6002
        %v6030 = vadd.f32 %v5921, %v6006
        %v6031 = vadd.f32 %v5764, %v5994
        %v6032 = vadd.f32 %v5766, %v5998
        %v6033 = vadd.f32 %v5925, %v6002
        %v6034 = vadd.f32 %v5927, %v6006
        %v6035 = vadd.f32 %v5770, %v5994
        %v6036 = vadd.f32 %v5772, %v5998
        %v6037 = vadd.f32 %v5931, %v6002
        %v6038 = vadd.f32 %v5933, %v6006
        %v6039 = vadd.f32 %v5776, %v5994
        %v6040 = vadd.f32 %v5778, %v5998
        %v6041 = vadd.f32 %v5937, %v6002
        %v6042 = vadd.f32 %v5939, %v6006
        %v6043 = vadd.f32 %v5782, %v5994
        %v6044 = vadd.f32 %v5784, %v5998
        %v6045 = vadd.f32 %v5943, %v6002
        %v6046 = vadd.f32 %v5945, %v6006
        %v6047 = vadd.f32 %v5788, %v5994
        %v6048 = vadd.f32 %v5790, %v5998
        %v6049 = vadd.f32 %v5949, %v6002
        %v6050 = vadd.f32 %v5951, %v6006
        %v6051 = vadd.f32 %v5794, %v5994
        %v6052 = vadd.f32 %v5796, %v5998
        %v6053 = vadd.f32 %v5955, %v6002
        %v6054 = vadd.f32 %v5957, %v6006
        %v6055 = vadd.f32 %v5800, %v5994
        %v6056 = vadd.f32 %v5802, %v5998
        %v6057 = vadd.f32 %v5961, %v6002
        %v6058 = vadd.f32 %v5963, %v6006
        %v6059 = vadd.f32 %v5806, %v5994
        %v6060 = vadd.f32 %v5808, %v5998
        %v6061 = vadd.f32 %v5967, %v6002
        %v6062 = vadd.f32 %v5969, %v6006
        %v6063 = vadd.f32 %v5812, %v5994
        %v6064 = vadd.f32 %v5814, %v5998
        %v6065 = vadd.f32 %v5973, %v6002
        %v6066 = vadd.f32 %v5975, %v6006
        %v6067 = vadd.f32 %v5818, %v5994
        %v6068 = vadd.f32 %v5820, %v5998
        %v6069 = vadd.f32 %v5979, %v6002
        %v6070 = vadd.f32 %v5981, %v6006
        %v6071 = vadd.f32 %v5824, %v5994
        %v6072 = vadd.f32 %v5826, %v5998
        %v6073 = vadd.f32 %v5985, %v6002
        %v6074 = vadd.f32 %v5987, %v6006
        %v6075 = vmax.f32 %v6011, 0.0
        %v6076 = vmax.f32 %v6012, 0.0
        %v6077 = vmax.f32 %v6013, 0.0
        %v6078 = vmax.f32 %v6014, 0.0
        %v6079 = vmax.f32 %v6015, 0.0
        %v6080 = vmax.f32 %v6016, 0.0
        %v6081 = vmax.f32 %v6017, 0.0
        %v6082 = vmax.f32 %v6018, 0.0
        %v6083 = vmax.f32 %v6019, 0.0
        %v6084 = vmax.f32 %v6020, 0.0
        %v6085 = vmax.f32 %v6021, 0.0
        %v6086 = vmax.f32 %v6022, 0.0
        %v6087 = vmax.f32 %v6023, 0.0
        %v6088 = vmax.f32 %v6024, 0.0
        %v6089 = vmax.f32 %v6025, 0.0
        %v6090 = vmax.f32 %v6026, 0.0
        %v6091 = vmax.f32 %v6027, 0.0
        %v6092 = vmax.f32 %v6028, 0.0
        %v6093 = vmax.f32 %v6029, 0.0
        %v6094 = vmax.f32 %v6030, 0.0
        %v6095 = vmax.f32 %v6031, 0.0
        %v6096 = vmax.f32 %v6032, 0.0
        %v6097 = vmax.f32 %v6033, 0.0
        %v6098 = vmax.f32 %v6034, 0.0
        %v6099 = vmax.f32 %v6035, 0.0
        %v6100 = vmax.f32 %v6036, 0.0
        %v6101 = vmax.f32 %v6037, 0.0
        %v6102 = vmax.f32 %v6038, 0.0
        %v6103 = vmax.f32 %v6039, 0.0
        %v6104 = vmax.f32 %v6040, 0.0
        %v6105 = vmax.f32 %v6041, 0.0
        %v6106 = vmax.f32 %v6042, 0.0
        %v6107 = vmax.f32 %v6043, 0.0
        %v6108 = vmax.f32 %v6044, 0.0
        %v6109 = vmax.f32 %v6045, 0.0
        %v6110 = vmax.f32 %v6046, 0.0
        %v6111 = vmax.f32 %v6047, 0.0
        %v6112 = vmax.f32 %v6048, 0.0
        %v6113 = vmax.f32 %v6049, 0.0
        %v6114 = vmax.f32 %v6050, 0.0
        %v6115 = vmax.f32 %v6051, 0.0
        %v6116 = vmax.f32 %v6052, 0.0
        %v6117 = vmax.f32 %v6053, 0.0
        %v6118 = vmax.f32 %v6054, 0.0
        %v6119 = vmax.f32 %v6055, 0.0
        %v6120 = vmax.f32 %v6056, 0.0
        %v6121 = vmax.f32 %v6057, 0.0
        %v6122 = vmax.f32 %v6058, 0.0
        %v6123 = vmax.f32 %v6059, 0.0
        %v6124 = vmax.f32 %v6060, 0.0
        %v6125 = vmax.f32 %v6061, 0.0
        %v6126 = vmax.f32 %v6062, 0.0
        %v6127 = vmax.f32 %v6063, 0.0
        %v6128 = vmax.f32 %v6064, 0.0
        %v6129 = vmax.f32 %v6065, 0.0
        %v6130 = vmax.f32 %v6066, 0.0
        %v6131 = vmax.f32 %v6067, 0.0
        %v6132 = vmax.f32 %v6068, 0.0
        %v6133 = vmax.f32 %v6069, 0.0
        %v6134 = vmax.f32 %v6070, 0.0
        %v6135 = vmax.f32 %v6071, 0.0
        %v6136 = vmax.f32 %v6072, 0.0
        %v6137 = vmax.f32 %v6073, 0.0
        %v6138 = vmax.f32 %v6074, 0.0
        %6139 = vst [vmem:[%s855] sm:$0xff] %v6075
        %6140 = vst [vmem:[%s855 + $0x8] sm:$0xff] %v6076
        %6141 = vst [vmem:[%s855 + $0x10] sm:$0xff] %v6077
        %6142 = vst [vmem:[%s855 + $0x18] sm:$0xff] %v6078
        %6143 = vst [vmem:[%s855 + $0x20] sm:$0xff] %v6079
        %6144 = vst [vmem:[%s855 + $0x28] sm:$0xff] %v6080
        %6145 = vst [vmem:[%s855 + $0x30] sm:$0xff] %v6081
        %6146 = vst [vmem:[%s855 + $0x38] sm:$0xff] %v6082
        %6147 = vst [vmem:[%s855 + $0x40] sm:$0xff] %v6083
        %6148 = vst [vmem:[%s855 + $0x48] sm:$0xff] %v6084
        %6149 = vst [vmem:[%s855 + $0x50] sm:$0xff] %v6085
        %6150 = vst [vmem:[%s855 + $0x58] sm:$0xff] %v6086
        %6151 = vst [vmem:[%s855 + $0x60] sm:$0xff] %v6087
        %6152 = vst [vmem:[%s855 + $0x68] sm:$0xff] %v6088
        %6153 = vst [vmem:[%s855 + $0x70] sm:$0xff] %v6089
        %6154 = vst [vmem:[%s855 + $0x78] sm:$0xff] %v6090
        %6155 = vst [vmem:[%s855 + $0x80] sm:$0xff] %v6091
        %6156 = vst [vmem:[%s855 + $0x88] sm:$0xff] %v6092
        %6157 = vst [vmem:[%s855 + $0x90] sm:$0xff] %v6093
        %6158 = vst [vmem:[%s855 + $0x98] sm:$0xff] %v6094
        %6159 = vst [vmem:[%s855 + $0xa0] sm:$0xff] %v6095
        %6160 = vst [vmem:[%s855 + $0xa8] sm:$0xff] %v6096
        %6161 = vst [vmem:[%s855 + $0xb0] sm:$0xff] %v6097
        %6162 = vst [vmem:[%s855 + $0xb8] sm:$0xff] %v6098
        %6163 = vst [vmem:[%s855 + $0xc0] sm:$0xff] %v6099
        %6164 = vst [vmem:[%s855 + $0xc8] sm:$0xff] %v6100
        %6165 = vst [vmem:[%s855 + $0xd0] sm:$0xff] %v6101
        %6166 = vst [vmem:[%s855 + $0xd8] sm:$0xff] %v6102
        %6167 = vst [vmem:[%s855 + $0xe0] sm:$0xff] %v6103
        %6168 = vst [vmem:[%s855 + $0xe8] sm:$0xff] %v6104
        %6169 = vst [vmem:[%s855 + $0xf0] sm:$0xff] %v6105
        %6170 = vst [vmem:[%s855 + $0xf8] sm:$0xff] %v6106
        %6171 = vst [vmem:[%s855 + $0x100] sm:$0xff] %v6107
        %6172 = vst [vmem:[%s855 + $0x108] sm:$0xff] %v6108
        %6173 = vst [vmem:[%s855 + $0x110] sm:$0xff] %v6109
        %6174 = vst [vmem:[%s855 + $0x118] sm:$0xff] %v6110
        %6175 = vst [vmem:[%s855 + $0x120] sm:$0xff] %v6111
        %6176 = vst [vmem:[%s855 + $0x128] sm:$0xff] %v6112
        %6177 = vst [vmem:[%s855 + $0x130] sm:$0xff] %v6113
        %6178 = vst [vmem:[%s855 + $0x138] sm:$0xff] %v6114
        %6179 = vst [vmem:[%s855 + $0x140] sm:$0xff] %v6115
        %6180 = vst [vmem:[%s855 + $0x148] sm:$0xff] %v6116
        %6181 = vst [vmem:[%s855 + $0x150] sm:$0xff] %v6117
        %6182 = vst [vmem:[%s855 + $0x158] sm:$0xff] %v6118
        %6183 = vst [vmem:[%s855 + $0x160] sm:$0xff] %v6119
        %6184 = vst [vmem:[%s855 + $0x168] sm:$0xff] %v6120
        %6185 = vst [vmem:[%s855 + $0x170] sm:$0xff] %v6121
        %6186 = vst [vmem:[%s855 + $0x178] sm:$0xff] %v6122
        %6187 = vst [vmem:[%s855 + $0x180] sm:$0xff] %v6123
        %6188 = vst [vmem:[%s855 + $0x188] sm:$0xff] %v6124
        %6189 = vst [vmem:[%s855 + $0x190] sm:$0xff] %v6125
        %6190 = vst [vmem:[%s855 + $0x198] sm:$0xff] %v6126
        %6191 = vst [vmem:[%s855 + $0x1a0] sm:$0xff] %v6127
        %6192 = vst [vmem:[%s855 + $0x1a8] sm:$0xff] %v6128
        %6193 = vst [vmem:[%s855 + $0x1b0] sm:$0xff] %v6129
        %6194 = vst [vmem:[%s855 + $0x1b8] sm:$0xff] %v6130
        %6195 = vst [vmem:[%s855 + $0x1c0] sm:$0xff] %v6131
        %6196 = vst [vmem:[%s855 + $0x1c8] sm:$0xff] %v6132
        %6197 = vst [vmem:[%s855 + $0x1d0] sm:$0xff] %v6133
        %6198 = vst [vmem:[%s855 + $0x1d8] sm:$0xff] %v6134
        %6199 = vst [vmem:[%s855 + $0x1e0] sm:$0xff] %v6135
        %6200 = vst [vmem:[%s855 + $0x1e8] sm:$0xff] %v6136
        %6201 = vst [vmem:[%s855 + $0x1f0] sm:$0xff] %v6137
        %6202 = vst [vmem:[%s855 + $0x1f8] sm:$0xff] %v6138
        %s6203 = sand.u32 %s541, 1
        %s6204 = scalar_lea.sflag [#allocation4], %s6203
        %s6205 = sand.u32 %s541, 1
        %s6206 = smul.addr %s6205, 512
        %s6207 = scalar_lea.vmem [#allocation20], %s6206
        // Predicated region
        $region157: #{tpu_custom_call.1} parent=111 // pred_check
          %p6208 = pneg %p551
        $region158: #{tpu_custom_call.1} parent=111 // pred_check_branch
          %6210 = sbr.rel (%p6208) target = $region160
        $region159: #{tpu_custom_call.1} parent=111 // pred_region
          %s6211 = smul.u32 16, %s45
          %s6213 = ssub.s32 8192, 8192
          %6214 = vsyncadd %s6204, %s6213
          %s6215 = smul.addr %s6211, 4
          %s6216 = smul.addr %s6215, 128
          %s6217 = scalar_lea.hbm %s23, %s6216
          %s6218 = sshll.u32 %s6207, 4
          %s6219 = int_to_ptr.vmem [resolvable:$true] %s6218
          %6224 = dma.vmem_to_hbm [thread:$0]  %s6219, 8192, %s6217, %s6204, 512, 512, 32
        $region160: #{tpu_custom_call.1} parent=111 // pred_fallthru
          _
      $region112: #{tpu_custom_call.1} parent=5 // pred_fallthru
        _
      %p6225 = scmp.le.s32.totalorder 2, %s40
      // Predicated region
      $region161: #{tpu_custom_call.1} parent=5 // pred_check
        %p6226 = pneg %p6225
      $region162: #{tpu_custom_call.1} parent=5 // pred_check_branch
        %6228 = sbr.rel (%p6226) target = $region164
      $region163: #{tpu_custom_call.1} parent=5 // pred_region
        %s6229 = ssub.s32 %s40, 2
        // Predicated region
        $region165: #{tpu_custom_call.1} parent=163 // pred_check
          %p6230 = pneg %p557
        $region166: #{tpu_custom_call.1} parent=163 // pred_check_branch
          %6232 = sbr.rel (%p6230) target = $region168
        $region167: #{tpu_custom_call.1} parent=163 // pred_region
          %s6233 = sand.u32 %s542, 1
          %s6234 = scalar_lea.sflag [#allocation4], %s6233
          %s6235 = sand.u32 %s542, 1
          %s6236 = smul.addr %s6235, 512
          %s6237 = scalar_lea.vmem [#allocation20], %s6236
          %6238 = dma.done %s6234, 8192
        $region168: #{tpu_custom_call.1} parent=163 // pred_fallthru
          _
      $region164: #{tpu_custom_call.1} parent=5 // pred_fallthru
        _
    $region6: #{tpu_custom_call.1} parent=1 // loop_footer
      %s44 = sadd.s32 1, %s40
    $region7: #{tpu_custom_call.1} parent=1 // loop_footer_branch
      %39 = sbr.rel target = $region3
    $region8: #{tpu_custom_call.1} parent=1 // loop_exit
      _
    %6239 = vsyncpa [#allocation3], 1
    %s6240 = scalar_lea.sflag [#allocation3], 1
    %6241 = vsyncpa %s6240, 1
    %6242 = vsyncpa [#allocation6], 1
    %6243 = vsyncpa [#allocation9], 1
    %6244 = vsyncpa [#allocation12], 1
    %6245 = vsyncpa [#allocation15], 1
    %6246 = vsyncpa [#allocation18], 1
    %6247 = vsyncpa [#allocation4], 1
    %s6248 = scalar_lea.sflag [#allocation4], 1
    %6249 = vsyncpa %s6248, 1

</llo_original>
